<compile_context>
chip_gen: v7x
topology: tpu7x:2x2x1
jax: 0.10.0
libtpu: 0.0.40
codegen_flags: <defaults>
</compile_context>

<pallas_src>
import numpy as np

import jax
import jax.numpy as jnp
from jax import lax
from jax.experimental import pallas as pl
from jax.experimental.pallas import tpu as pltpu


ROWS_PER_IMG = 7   # slab rows per image at every stage (28/4 = 14/2 = 7)

# Layer geometry: G = image rows packed per slab row.
_L1 = dict(H=28, W=28, C_in=1, C_out=16, G=4)    # in 112 lanes, conv out 1792
_L2 = dict(H=14, W=14, C_in=16, C_out=32, G=2)   # in 448 lanes, conv out  896

_COMPILER_PARAMS = pltpu.CompilerParams(
    dimension_semantics=("parallel",),           # batch blocks are independent
    vmem_limit_bytes=48 * 1024 * 1024,           # well under v7x's 64 MiB physical
)


def _round_up(x, m):
    return (x + m - 1) // m * m


# ------------------------------ fused kernel -------------------------------- #

def _cnn_fused_kernel(x_ref, pm_ref, nm_ref, w1_ref, b1_ref, w2_ref, b2_ref,
                      wfc_ref, bfc_ref, o_ref):
    """Whole CNN forward for one block of images.

    x_ref  : (n, 112)  f32   input slab, n = B_TILE*7, 4 image rows per slab row
    pm/nm  : (n, 1)    f32   1.0 where a prev / next slab row exists in-image
    w1_ref : (336, 1792) bf16  layer-1 3-tap band matrix
    b1_ref : (1, 1792)  f32
    w2_ref : (1344, 896) bf16  layer-2 3-tap band matrix
    b2_ref : (1, 896)   f32
    wfc_ref: (1568, 10) bf16   FC weight, rows in (h, w, c) order
    bfc_ref: (1, 10)    f32
    o_ref  : (n, 10)    f32    row b*7 holds image b's logits
    """
    pm = pm_ref[...].astype(jnp.bfloat16)
    nm = nm_ref[...].astype(jnp.bfloat16)

    def band_lhs(h):
        # [prev slab row | this | next] on lanes; zero across image borders.
        zrow = jnp.zeros((1, h.shape[1]), h.dtype)
        prev = jnp.concatenate([zrow, h[:-1, :]], axis=0) * pm
        nxt = jnp.concatenate([h[1:, :], zrow], axis=0) * nm
        return jnp.concatenate([prev, h, nxt], axis=-1)

    def conv_relu_pool(h, w_ref, b_ref):
        # 5x5 SAME conv as ONE MXU matmul, f32 accumulate, then bias + ReLU and
        # the fused 2x2 max-pool as two "max of contiguous lane halves".
        acc = jnp.dot(band_lhs(h), w_ref[...], preferred_element_type=jnp.float32)
        act = jnp.maximum(acc + b_ref[...], 0.0)
        width = act.shape[1]
        hp = jnp.maximum(act[:, : width // 2], act[:, width // 2:])   # pool rows
        wp = jnp.maximum(hp[:, : width // 4], hp[:, width // 4:])     # pool cols
        return wp.astype(jnp.bfloat16)

    h1 = conv_relu_pool(x_ref[...].astype(jnp.bfloat16), w1_ref, b1_ref)  # (n, 448)
    h2 = conv_relu_pool(h1, w2_ref, b2_ref)                               # (n, 224)

    # FC head: gather each image's 7 feature rows onto the lanes of its first
    # slab row, single matmul.  Rows not == 0 mod 7 are discarded by the wrapper.
    f = h2.shape[1]
    pieces = [h2]
    for r in range(1, ROWS_PER_IMG):
        pieces.append(jnp.concatenate(
            [h2[r:, :], jnp.zeros((r, f), h2.dtype)], axis=0))
    feats = jnp.concatenate(pieces, axis=-1)                              # (n, 1568)
    logits = jnp.dot(feats, wfc_ref[...], preferred_element_type=jnp.float32)
    o_ref[...] = (logits + bfc_ref[...]).astype(o_ref.dtype)


# --------------------------------- wrapper ----------------------------------- #

def _fused_cnn_call(x2d, kp, *, b_tile):
    n_rows = x2d.shape[0]                      # Bp * 7
    rows_per_step = b_tile * ROWS_PER_IMG
    grid = (n_rows // rows_per_step,)

    # Image-boundary masks (pattern repeats every 7 rows, identical per block).
    r_in_img = np.arange(rows_per_step) % ROWS_PER_IMG
    pm = jnp.asarray((r_in_img != 0).astype(np.float32).reshape(-1, 1))
    nm = jnp.asarray((r_in_img != ROWS_PER_IMG - 1).astype(np.float32).reshape(-1, 1))

    def full(a):
        idx = (0,) * a.ndim
        return pl.BlockSpec(a.shape, lambda i: idx)        # resident, constant block

    return pl.pallas_call(
        _cnn_fused_kernel,
        out_shape=jax.ShapeDtypeStruct((n_rows, 10), jnp.float32),
        grid=grid,
        in_specs=[
            pl.BlockSpec((rows_per_step, x2d.shape[1]), lambda i: (i, 0)),  # streamed
            full(pm), full(nm),
            full(kp["w1"]), full(kp["b1"]),
            full(kp["w2"]), full(kp["b2"]),
            full(kp["wfc"]), full(kp["bfc"]),
        ],
        out_specs=pl.BlockSpec((rows_per_step, 10), lambda i: (i, 0)),
        compiler_params=_COMPILER_PARAMS,
    )(x2d, pm, nm, kp["w1"], kp["b1"], kp["w2"], kp["b2"], kp["wfc"], kp["bfc"])


@jax.jit
def cnn_forward(kparams, x_nchw):
    """x_nchw: (B, 1, 28, 28) f32 -> logits (B, 10) f32."""
    B = x_nchw.shape[0]
    assert x_nchw.shape[1:] == (1, 28, 28)
    b_tile = min(32, _round_up(B, 8))                      # 8..32 images per grid step
    Bp = _round_up(B, b_tile)
    x = x_nchw.reshape(B, 28, 28)
    if Bp != B:
        x = jnp.concatenate([x, jnp.zeros((Bp - B, 28, 28), x.dtype)], axis=0)
    # Pack 4 image rows per slab row: a pure row-major view (free in XLA).
    x2d = x.reshape(Bp * ROWS_PER_IMG, 4 * 28)             # (Bp*7, 112)
    out2d = _fused_cnn_call(x2d, kparams, b_tile=b_tile)   # (Bp*7, 10)
    # Only the first slab row of each image carries that image's logits.
    return out2d.reshape(Bp, ROWS_PER_IMG, 10)[:B, 0, :]


# ----------------------- one-time parameter preparation ---------------------- #

def _band_conv_weights(w_oihw, bias, *, H, W, C_in, C_out, G):
    """Fold a 5x5 SAME conv (PyTorch OIHW weight) into a 3-tap slab band matrix.

    Input slab lanes (per slab row):  (p, w, c_in)  with p in [0, G) image rows.
    Output conv lanes (per slab row): ordered (q%2, w%2, q//2, w//2, c_out) so
    the 2x2 max-pool is two "max of contiguous lane halves" and the pooled
    result lands directly in the next layer's input ordering.  Runs once at init.
    """
    w = np.asarray(w_oihw, np.float32)                     # (C_out, C_in, 5, 5)
    Wo = W // 2
    L_in = G * W * C_in
    L_out = G * W * C_out
    band = np.zeros((3, L_in, L_out), np.float32)
    for t in range(3):                                     # input slab row r + (t-1)
        for p in range(G):                                 # image row within input slab row
            for q in range(G):                             # image row within output slab row
                kh = (t - 1) * G + p - q + 2
                if not 0 <= kh < 5:
                    continue
                for w_out in range(W):
                    for w_in in range(max(0, w_out - 2), min(W, w_out + 3)):
                        kw = w_in - w_out + 2              # SAME padding: oob taps omitted
                        ci = (p * W + w_in) * C_in
                        co = ((q % 2) * (L_out // 2) + (w_out % 2) * (L_out // 4)
                              + (q // 2) * (Wo * C_out) + (w_out // 2) * C_out)
                        band[t, ci:ci + C_in, co:co + C_out] = w[:, :, kh, kw].T
    band = band.reshape(3 * L_in, L_out)
    b_slab = np.tile(np.asarray(bias, np.float32), G * W).reshape(1, L_out)
    return jnp.asarray(band, jnp.bfloat16), jnp.asarray(b_slab, jnp.float32)


def init_params(key):
    """PyTorch-layout parameters of the reference CNN module."""
    ks = jax.random.split(key, 6)
    return {
        "conv1_w": jax.random.normal(ks[0], (16, 1, 5, 5), jnp.float32) * 0.1,
        "conv1_b": jax.random.normal(ks[1], (16,), jnp.float32) * 0.1,
        "conv2_w": jax.random.normal(ks[2], (32, 16, 5, 5), jnp.float32) * 0.05,
        "conv2_b": jax.random.normal(ks[3], (32,), jnp.float32) * 0.05,
        "fc_w":   jax.random.normal(ks[4], (10, 32 * 7 * 7), jnp.float32) * 0.02,
        "fc_b":   jax.random.normal(ks[5], (10,), jnp.float32) * 0.02,
    }


def prepare_params(p):
    """PyTorch-layout params -> kernel-layout params (once, off the hot path)."""
    w1, b1 = _band_conv_weights(p["conv1_w"], p["conv1_b"], **_L1)
    w2, b2 = _band_conv_weights(p["conv2_w"], p["conv2_b"], **_L2)
    # PyTorch flattens (C, H, W); the kernel's features are (H, W, C).
    wfc = jnp.transpose(p["fc_w"].reshape(10, 32, 7, 7), (2, 3, 1, 0))
    wfc = wfc.reshape(7 * 7 * 32, 10).astype(jnp.bfloat16)
    bfc = p["fc_b"].reshape(1, 10).astype(jnp.float32)
    return {"w1": w1, "b1": b1, "w2": w2, "b2": b2, "wfc": wfc, "bfc": bfc}


# ------------------------- pure-JAX reference check -------------------------- #

@jax.jit
def reference_forward(p, x_nchw):
    """The PyTorch module in plain JAX, with the same bf16 matmul-operand /
    f32-accumulate policy as the Pallas kernel."""
    def conv_block(x, w, b):
        y = lax.conv_general_dilated(
            x.astype(jnp.bfloat16), w.astype(jnp.bfloat16),
            window_strides=(1, 1), padding=((2, 2), (2, 2)),
            dimension_numbers=("NCHW", "OIHW", "NCHW"),
            preferred_element_type=jnp.float32)
        y = jnp.maximum(y + b.reshape(1, -1, 1, 1), 0.0)
        B_, C_, H_, W_ = y.shape
        return y.reshape(B_, C_, H_ // 2, 2, W_ // 2, 2).max(axis=(3, 5))

    h = conv_block(x_nchw, p["conv1_w"], p["conv1_b"])
    h = conv_block(h, p["conv2_w"], p["conv2_b"])
    f = h.reshape(h.shape[0], -1)                           # PyTorch (C,H,W) flatten
    return jnp.dot(f.astype(jnp.bfloat16), p["fc_w"].T.astype(jnp.bfloat16),
                   preferred_element_type=jnp.float32) + p["fc_b"]


if __name__ == "__main__":
    key = jax.random.PRNGKey(0)
    pkey, xkey = jax.random.split(key)
    torch_params = init_params(pkey)
    kparams = prepare_params(torch_params)

    # Input must be 28x28 (the Linear layer is 32*7*7 -> 10); batch = 2.
    x = jax.random.normal(xkey, (2, 1, 28, 28), jnp.float32)

    out = cnn_forward(kparams, x)
    jax.block_until_ready(out)
    assert out.shape == (2, 10) and out.dtype == jnp.float32

    ref = reference_forward(torch_params, x)
    max_err = jnp.max(jnp.abs(out - ref))
    assert jnp.allclose(out, ref, atol=1e-2, rtol=1e-2), \
        f"kernel/reference mismatch, max |err| = {max_err}"

    print("KERNEL_OK")
</pallas_src>

<mosaic_0001>
module attributes {stable_mosaic.version = 11 : i64} {
  func.func @_cnn_fused_kernel(%arg0: i32, %arg1: memref<56x112xf32, #tpu.memory_space<vmem>>, %arg2: memref<56x1xf32, #tpu.memory_space<vmem>>, %arg3: memref<56x1xf32, #tpu.memory_space<vmem>>, %arg4: memref<336x1792xbf16, #tpu.memory_space<vmem>>, %arg5: memref<1x1792xf32, #tpu.memory_space<vmem>>, %arg6: memref<1344x896xbf16, #tpu.memory_space<vmem>>, %arg7: memref<1x896xf32, #tpu.memory_space<vmem>>, %arg8: memref<1568x10xbf16, #tpu.memory_space<vmem>>, %arg9: memref<1x10xf32, #tpu.memory_space<vmem>>, %arg10: memref<56x10xf32, #tpu.memory_space<vmem>>) attributes {dimension_semantics = [#tpu.dimension_semantics<parallel>], iteration_bounds = array<i64: 1>, scalar_prefetch = 0 : i64, scratch_operands = 0 : i64, tpu.core_type = #tpu.core_type<tc>, window_params = [{transform_indices = @transform_0, window_bounds = array<i64: 56, 112>}, {pipeline_mode = #tpu.pipeline_mode<synchronous>, transform_indices = @transform_1, window_bounds = array<i64: 56, 1>}, {pipeline_mode = #tpu.pipeline_mode<synchronous>, transform_indices = @transform_2, window_bounds = array<i64: 56, 1>}, {pipeline_mode = #tpu.pipeline_mode<synchronous>, transform_indices = @transform_3, window_bounds = array<i64: 336, 1792>}, {pipeline_mode = #tpu.pipeline_mode<synchronous>, transform_indices = @transform_4, window_bounds = array<i64: 1, 1792>}, {pipeline_mode = #tpu.pipeline_mode<synchronous>, transform_indices = @transform_5, window_bounds = array<i64: 1344, 896>}, {pipeline_mode = #tpu.pipeline_mode<synchronous>, transform_indices = @transform_6, window_bounds = array<i64: 1, 896>}, {pipeline_mode = #tpu.pipeline_mode<synchronous>, transform_indices = @transform_7, window_bounds = array<i64: 1568, 10>}, {pipeline_mode = #tpu.pipeline_mode<synchronous>, transform_indices = @transform_8, window_bounds = array<i64: 1, 10>}, {transform_indices = @transform_9, window_bounds = array<i64: 56, 10>}]} {
    %c0 = arith.constant 0 : index
    %c0_0 = arith.constant 0 : index
    %0 = vector.load %arg2[%c0, %c0_0] : memref<56x1xf32, #tpu.memory_space<vmem>>, vector<56x1xf32>
    %1 = arith.truncf %0 : vector<56x1xf32> to vector<56x1xbf16>
    %c0_1 = arith.constant 0 : index
    %c0_2 = arith.constant 0 : index
    %2 = vector.load %arg3[%c0_1, %c0_2] : memref<56x1xf32, #tpu.memory_space<vmem>>, vector<56x1xf32>
    %3 = arith.truncf %2 : vector<56x1xf32> to vector<56x1xbf16>
    %c0_3 = arith.constant 0 : index
    %c0_4 = arith.constant 0 : index
    %4 = vector.load %arg1[%c0_3, %c0_4] : memref<56x112xf32, #tpu.memory_space<vmem>>, vector<56x112xf32>
    %5 = arith.truncf %4 : vector<56x112xf32> to vector<56x112xbf16>
    %cst = arith.constant 0.000000e+00 : bf16
    %6 = vector.broadcast %cst : bf16 to vector<1x112xbf16>
    %7 = vector.extract_strided_slice %5 {offsets = [0, 0], sizes = [55, 112], strides = [1, 1]} : vector<56x112xbf16> to vector<55x112xbf16>
    %8 = tpu.concatenate %6, %7 in 0 : vector<1x112xbf16>, vector<55x112xbf16> -> vector<56x112xbf16>
    %9 = vector.broadcast %1 : vector<56x1xbf16> to vector<56x112xbf16>
    %10 = arith.mulf %8, %9 : vector<56x112xbf16>
    %11 = vector.extract_strided_slice %5 {offsets = [1, 0], sizes = [55, 112], strides = [1, 1]} : vector<56x112xbf16> to vector<55x112xbf16>
    %12 = tpu.concatenate %11, %6 in 0 : vector<55x112xbf16>, vector<1x112xbf16> -> vector<56x112xbf16>
    %13 = vector.broadcast %3 : vector<56x1xbf16> to vector<56x112xbf16>
    %14 = arith.mulf %12, %13 : vector<56x112xbf16>
    %15 = tpu.concatenate %10, %5, %14 in 1 : vector<56x112xbf16>, vector<56x112xbf16>, vector<56x112xbf16> -> vector<56x336xbf16>
    %c0_5 = arith.constant 0 : index
    %c0_6 = arith.constant 0 : index
    %16 = vector.load %arg4[%c0_5, %c0_6] : memref<336x1792xbf16, #tpu.memory_space<vmem>>, vector<336x1792xbf16>
    %cst_7 = arith.constant dense<0.000000e+00> : vector<56x1792xf32>
    %17 = tpu.matmul %15, %16, %cst_7 {dimension_numbers = #tpu.dot_dimension_numbers<[1], [0], [0], [1], [0, 0, 1, 1], [], []>} : vector<56x336xbf16>, vector<336x1792xbf16>, vector<56x1792xf32> -> vector<56x1792xf32>
    %c0_8 = arith.constant 0 : index
    %c0_9 = arith.constant 0 : index
    %18 = vector.load %arg5[%c0_8, %c0_9] : memref<1x1792xf32, #tpu.memory_space<vmem>>, vector<1x1792xf32>
    %19 = vector.broadcast %18 : vector<1x1792xf32> to vector<56x1792xf32>
    %20 = arith.addf %17, %19 : vector<56x1792xf32>
    %cst_10 = arith.constant 0.000000e+00 : f32
    %21 = vector.broadcast %cst_10 : f32 to vector<56x1792xf32>
    %22 = arith.maximumf %20, %21 : vector<56x1792xf32>
    %23 = vector.extract_strided_slice %22 {offsets = [0, 0], sizes = [56, 896], strides = [1, 1]} : vector<56x1792xf32> to vector<56x896xf32>
    %24 = vector.extract_strided_slice %22 {offsets = [0, 896], sizes = [56, 896], strides = [1, 1]} : vector<56x1792xf32> to vector<56x896xf32>
    %25 = arith.maximumf %23, %24 : vector<56x896xf32>
    %26 = vector.extract_strided_slice %25 {offsets = [0, 0], sizes = [56, 448], strides = [1, 1]} : vector<56x896xf32> to vector<56x448xf32>
    %27 = vector.extract_strided_slice %25 {offsets = [0, 448], sizes = [56, 448], strides = [1, 1]} : vector<56x896xf32> to vector<56x448xf32>
    %28 = arith.maximumf %26, %27 : vector<56x448xf32>
    %29 = arith.truncf %28 : vector<56x448xf32> to vector<56x448xbf16>
    %cst_11 = arith.constant 0.000000e+00 : bf16
    %30 = vector.broadcast %cst_11 : bf16 to vector<1x448xbf16>
    %31 = vector.extract_strided_slice %29 {offsets = [0, 0], sizes = [55, 448], strides = [1, 1]} : vector<56x448xbf16> to vector<55x448xbf16>
    %32 = tpu.concatenate %30, %31 in 0 : vector<1x448xbf16>, vector<55x448xbf16> -> vector<56x448xbf16>
    %33 = vector.broadcast %1 : vector<56x1xbf16> to vector<56x448xbf16>
    %34 = arith.mulf %32, %33 : vector<56x448xbf16>
    %35 = vector.extract_strided_slice %29 {offsets = [1, 0], sizes = [55, 448], strides = [1, 1]} : vector<56x448xbf16> to vector<55x448xbf16>
    %36 = tpu.concatenate %35, %30 in 0 : vector<55x448xbf16>, vector<1x448xbf16> -> vector<56x448xbf16>
    %37 = vector.broadcast %3 : vector<56x1xbf16> to vector<56x448xbf16>
    %38 = arith.mulf %36, %37 : vector<56x448xbf16>
    %39 = tpu.concatenate %34, %29, %38 in 1 : vector<56x448xbf16>, vector<56x448xbf16>, vector<56x448xbf16> -> vector<56x1344xbf16>
    %c0_12 = arith.constant 0 : index
    %c0_13 = arith.constant 0 : index
    %40 = vector.load %arg6[%c0_12, %c0_13] : memref<1344x896xbf16, #tpu.memory_space<vmem>>, vector<1344x896xbf16>
    %cst_14 = arith.constant dense<0.000000e+00> : vector<56x896xf32>
    %41 = tpu.matmul %39, %40, %cst_14 {dimension_numbers = #tpu.dot_dimension_numbers<[1], [0], [0], [1], [0, 0, 1, 1], [], []>} : vector<56x1344xbf16>, vector<1344x896xbf16>, vector<56x896xf32> -> vector<56x896xf32>
    %c0_15 = arith.constant 0 : index
    %c0_16 = arith.constant 0 : index
    %42 = vector.load %arg7[%c0_15, %c0_16] : memref<1x896xf32, #tpu.memory_space<vmem>>, vector<1x896xf32>
    %43 = vector.broadcast %42 : vector<1x896xf32> to vector<56x896xf32>
    %44 = arith.addf %41, %43 : vector<56x896xf32>
    %cst_17 = arith.constant 0.000000e+00 : f32
    %45 = vector.broadcast %cst_17 : f32 to vector<56x896xf32>
    %46 = arith.maximumf %44, %45 : vector<56x896xf32>
    %47 = vector.extract_strided_slice %46 {offsets = [0, 0], sizes = [56, 448], strides = [1, 1]} : vector<56x896xf32> to vector<56x448xf32>
    %48 = vector.extract_strided_slice %46 {offsets = [0, 448], sizes = [56, 448], strides = [1, 1]} : vector<56x896xf32> to vector<56x448xf32>
    %49 = arith.maximumf %47, %48 : vector<56x448xf32>
    %50 = vector.extract_strided_slice %49 {offsets = [0, 0], sizes = [56, 224], strides = [1, 1]} : vector<56x448xf32> to vector<56x224xf32>
    %51 = vector.extract_strided_slice %49 {offsets = [0, 224], sizes = [56, 224], strides = [1, 1]} : vector<56x448xf32> to vector<56x224xf32>
    %52 = arith.maximumf %50, %51 : vector<56x224xf32>
    %53 = arith.truncf %52 : vector<56x224xf32> to vector<56x224xbf16>
    %54 = vector.extract_strided_slice %53 {offsets = [1, 0], sizes = [55, 224], strides = [1, 1]} : vector<56x224xbf16> to vector<55x224xbf16>
    %cst_18 = arith.constant 0.000000e+00 : bf16
    %55 = vector.broadcast %cst_18 : bf16 to vector<1x224xbf16>
    %56 = tpu.concatenate %54, %55 in 0 : vector<55x224xbf16>, vector<1x224xbf16> -> vector<56x224xbf16>
    %57 = vector.extract_strided_slice %53 {offsets = [2, 0], sizes = [54, 224], strides = [1, 1]} : vector<56x224xbf16> to vector<54x224xbf16>
    %cst_19 = arith.constant 0.000000e+00 : bf16
    %58 = vector.broadcast %cst_19 : bf16 to vector<2x224xbf16>
    %59 = tpu.concatenate %57, %58 in 0 : vector<54x224xbf16>, vector<2x224xbf16> -> vector<56x224xbf16>
    %60 = vector.extract_strided_slice %53 {offsets = [3, 0], sizes = [53, 224], strides = [1, 1]} : vector<56x224xbf16> to vector<53x224xbf16>
    %cst_20 = arith.constant 0.000000e+00 : bf16
    %61 = vector.broadcast %cst_20 : bf16 to vector<3x224xbf16>
    %62 = tpu.concatenate %60, %61 in 0 : vector<53x224xbf16>, vector<3x224xbf16> -> vector<56x224xbf16>
    %63 = vector.extract_strided_slice %53 {offsets = [4, 0], sizes = [52, 224], strides = [1, 1]} : vector<56x224xbf16> to vector<52x224xbf16>
    %cst_21 = arith.constant 0.000000e+00 : bf16
    %64 = vector.broadcast %cst_21 : bf16 to vector<4x224xbf16>
    %65 = tpu.concatenate %63, %64 in 0 : vector<52x224xbf16>, vector<4x224xbf16> -> vector<56x224xbf16>
    %66 = vector.extract_strided_slice %53 {offsets = [5, 0], sizes = [51, 224], strides = [1, 1]} : vector<56x224xbf16> to vector<51x224xbf16>
    %cst_22 = arith.constant 0.000000e+00 : bf16
    %67 = vector.broadcast %cst_22 : bf16 to vector<5x224xbf16>
    %68 = tpu.concatenate %66, %67 in 0 : vector<51x224xbf16>, vector<5x224xbf16> -> vector<56x224xbf16>
    %69 = vector.extract_strided_slice %53 {offsets = [6, 0], sizes = [50, 224], strides = [1, 1]} : vector<56x224xbf16> to vector<50x224xbf16>
    %cst_23 = arith.constant 0.000000e+00 : bf16
    %70 = vector.broadcast %cst_23 : bf16 to vector<6x224xbf16>
    %71 = tpu.concatenate %69, %70 in 0 : vector<50x224xbf16>, vector<6x224xbf16> -> vector<56x224xbf16>
    %72 = tpu.concatenate %53, %56, %59, %62, %65, %68, %71 in 1 : vector<56x224xbf16>, vector<56x224xbf16>, vector<56x224xbf16>, vector<56x224xbf16>, vector<56x224xbf16>, vector<56x224xbf16>, vector<56x224xbf16> -> vector<56x1568xbf16>
    %c0_24 = arith.constant 0 : index
    %c0_25 = arith.constant 0 : index
    %73 = vector.load %arg8[%c0_24, %c0_25] : memref<1568x10xbf16, #tpu.memory_space<vmem>>, vector<1568x10xbf16>
    %cst_26 = arith.constant dense<0.000000e+00> : vector<56x10xf32>
    %74 = tpu.matmul %72, %73, %cst_26 {dimension_numbers = #tpu.dot_dimension_numbers<[1], [0], [0], [1], [0, 0, 1, 1], [], []>} : vector<56x1568xbf16>, vector<1568x10xbf16>, vector<56x10xf32> -> vector<56x10xf32>
    %c0_27 = arith.constant 0 : index
    %c0_28 = arith.constant 0 : index
    %75 = vector.load %arg9[%c0_27, %c0_28] : memref<1x10xf32, #tpu.memory_space<vmem>>, vector<1x10xf32>
    %76 = vector.broadcast %75 : vector<1x10xf32> to vector<56x10xf32>
    %77 = arith.addf %74, %76 : vector<56x10xf32>
    %c0_29 = arith.constant 0 : index
    %c0_30 = arith.constant 0 : index
    %78 = vector.load %arg10[%c0_29, %c0_30] : memref<56x10xf32, #tpu.memory_space<vmem>>, vector<56x10xf32>
    tpu.vector_store %arg10[%c0_29, %c0_30], %77 {strides = array<i32>} : memref<56x10xf32, #tpu.memory_space<vmem>>, vector<56x10xf32>,
    return
  }
  func.func @transform_0(%arg0: i32) -> (i32, i32) {
    %c0_i32 = arith.constant 0 : i32
    %c0_i32_0 = arith.constant 0 : i32
    return %arg0, %c0_i32 : i32, i32
  }
  func.func @transform_1(%arg0: i32) -> (i32, i32) {
    %c0_i32 = arith.constant 0 : i32
    %c0_i32_0 = arith.constant 0 : i32
    %c0_i32_1 = arith.constant 0 : i32
    return %c0_i32, %c0_i32_0 : i32, i32
  }
  func.func @transform_2(%arg0: i32) -> (i32, i32) {
    %c0_i32 = arith.constant 0 : i32
    %c0_i32_0 = arith.constant 0 : i32
    %c0_i32_1 = arith.constant 0 : i32
    return %c0_i32, %c0_i32_0 : i32, i32
  }
  func.func @transform_3(%arg0: i32) -> (i32, i32) {
    %c0_i32 = arith.constant 0 : i32
    %c0_i32_0 = arith.constant 0 : i32
    %c0_i32_1 = arith.constant 0 : i32
    return %c0_i32, %c0_i32_0 : i32, i32
  }
  func.func @transform_4(%arg0: i32) -> (i32, i32) {
    %c0_i32 = arith.constant 0 : i32
    %c0_i32_0 = arith.constant 0 : i32
    %c0_i32_1 = arith.constant 0 : i32
    return %c0_i32, %c0_i32_0 : i32, i32
  }
  func.func @transform_5(%arg0: i32) -> (i32, i32) {
    %c0_i32 = arith.constant 0 : i32
    %c0_i32_0 = arith.constant 0 : i32
    %c0_i32_1 = arith.constant 0 : i32
    return %c0_i32, %c0_i32_0 : i32, i32
  }
  func.func @transform_6(%arg0: i32) -> (i32, i32) {
    %c0_i32 = arith.constant 0 : i32
    %c0_i32_0 = arith.constant 0 : i32
    %c0_i32_1 = arith.constant 0 : i32
    return %c0_i32, %c0_i32_0 : i32, i32
  }
  func.func @transform_7(%arg0: i32) -> (i32, i32) {
    %c0_i32 = arith.constant 0 : i32
    %c0_i32_0 = arith.constant 0 : i32
    %c0_i32_1 = arith.constant 0 : i32
    return %c0_i32, %c0_i32_0 : i32, i32
  }
  func.func @transform_8(%arg0: i32) -> (i32, i32) {
    %c0_i32 = arith.constant 0 : i32
    %c0_i32_0 = arith.constant 0 : i32
    %c0_i32_1 = arith.constant 0 : i32
    return %c0_i32, %c0_i32_0 : i32, i32
  }
  func.func @transform_9(%arg0: i32) -> (i32, i32) {
    %c0_i32 = arith.constant 0 : i32
    %c0_i32_0 = arith.constant 0 : i32
    return %arg0, %c0_i32 : i32, i32
  }
}

</mosaic_0001>

<llo_original>
// kernel: cnn_forward.1
$region0: #{cnn_forward.1}
  #allocation0 [shape = 'u32[]', space=smem, size = 0x4, offset = 0x4, fixed_abs, tag = 'smem constant byte address 0x4 - core index']
  #allocation1 [shape = 'u32[144,128]{1,0:T(1,128)}', space=vmem, size = 0x12000, scoped, tag = 'internal scratch']
  %s0 = inlined_call_operand.vmem [shape: f32[56,112], index: 0, kind: input, shape index: {}]
  %s1 = inlined_call_operand.hbm [shape: f32[56,1], index: 1, kind: input, shape index: {}]
  %s2 = inlined_call_operand.hbm [shape: f32[56,1], index: 2, kind: input, shape index: {}]
  %s3 = inlined_call_operand.hbm [shape: bf16[336,1792], index: 3, kind: input, shape index: {}]
  %s4 = inlined_call_operand.hbm [shape: f32[1,1792], index: 4, kind: input, shape index: {}]
  %s5 = inlined_call_operand.hbm [shape: bf16[1344,896], index: 5, kind: input, shape index: {}]
  %s6 = inlined_call_operand.hbm [shape: f32[1,896], index: 6, kind: input, shape index: {}]
  %s7 = inlined_call_operand.vmem [shape: bf16[1568,10], index: 7, kind: input, shape index: {}]
  %s8 = inlined_call_operand.hbm [shape: f32[1,10], index: 8, kind: input, shape index: {}]
  %s9 = inlined_call_operand.vmem [shape: f32[56,10], index: 9, kind: output, shape index: {}]
  %s10 = sld [smem:[#allocation0]]
  $region74: #{cnn_forward.1} parent=0
    _
  %s12 = ssub.s32 1, %s10
  %s13 = scalar_select 0, %s12, %s10
  $region1: #{cnn_forward.1} parent=0
    #allocation2 [shape = 'u8[28672]{0}', space=vmem, size = 0x7000, scoped, tag = 'input window, operand 1, single buffered']
    #allocation3 [shape = 's32[1]{0}', space=sflag, size = 0x4, scoped, tag = 'scoped memory for cnn_forward.1']
    #allocation4 [shape = 'u8[28672]{0}', space=vmem, size = 0x7000, scoped, tag = 'input window, operand 2, single buffered']
    #allocation5 [shape = 's32[1]{0}', space=sflag, size = 0x4, scoped, tag = 'scoped memory for cnn_forward.1']
    #allocation6 [shape = 'u8[1204224]{0}', space=vmem, size = 0x126000, scoped, tag = 'input window, operand 3, single buffered']
    #allocation7 [shape = 'u8[7168]{0}', space=vmem, size = 0x1c00, scoped, tag = 'input window, operand 4, single buffered']
    #allocation8 [shape = 's32[1]{0}', space=sflag, size = 0x4, scoped, tag = 'scoped memory for cnn_forward.1']
    #allocation9 [shape = 'u8[2408448]{0}', space=vmem, size = 0x24c000, scoped, tag = 'input window, operand 5, single buffered']
    #allocation10 [shape = 'u8[3584]{0}', space=vmem, size = 0x1000, scoped, tag = 'input window, operand 6, single buffered']
    #allocation11 [shape = 's32[1]{0}', space=sflag, size = 0x4, scoped, tag = 'scoped memory for cnn_forward.1']
    #allocation12 [shape = 'u8[512]{0}', space=vmem, size = 0x400, scoped, tag = 'input window, operand 8, single buffered']
    %14 = vsyncpa [#allocation3], 0
    %15 = vsyncpa [#allocation5], 0
    %16 = vsyncpa [#allocation8], 0
    %17 = vsyncpa [#allocation11], 0
    // Predicated region
    $region2: #{cnn_forward.1} parent=1 // pred_check
      _
    $region3: #{cnn_forward.1} parent=1 // pred_check_branch
      %19 = sbr.rel (0) target = $region5
    $region4: #{cnn_forward.1} parent=1 // pred_region
      _
    $region5: #{cnn_forward.1} parent=1 // pred_fallthru
      _
    // Predicated region
    $region6: #{cnn_forward.1} parent=1 // pred_check
      _
    $region7: #{cnn_forward.1} parent=1 // pred_check_branch
      %21 = sbr.rel (0) target = $region9
    $region8: #{cnn_forward.1} parent=1 // pred_region
      %s23 = ssub.s32 896, 896
      %24 = vsyncadd [#allocation3], %s23
      %s25 = sshll.u32 [#allocation2], 4
      %s26 = int_to_ptr.vmem [resolvable:$true] %s25
      %31 = dma.hbm_to_vmem [thread:$0]  %s1, 896, %s26, [#allocation3], 128, 128, 8
    $region9: #{cnn_forward.1} parent=1 // pred_fallthru
      _
    // Predicated region
    $region10: #{cnn_forward.1} parent=1 // pred_check
      _
    $region11: #{cnn_forward.1} parent=1 // pred_check_branch
      %33 = sbr.rel (0) target = $region13
    $region12: #{cnn_forward.1} parent=1 // pred_region
      %s35 = ssub.s32 896, 896
      %36 = vsyncadd [#allocation5], %s35
      %s37 = sshll.u32 [#allocation4], 4
      %s38 = int_to_ptr.vmem [resolvable:$true] %s37
      %43 = dma.hbm_to_vmem [thread:$0]  %s2, 896, %s38, [#allocation5], 128, 128, 8
    $region13: #{cnn_forward.1} parent=1 // pred_fallthru
      _
    // Predicated region
    $region14: #{cnn_forward.1} parent=1 // pred_check
      _
    $region15: #{cnn_forward.1} parent=1 // pred_check_branch
      %45 = sbr.rel (0) target = $region17
    $region16: #{cnn_forward.1} parent=1 // pred_region
      %s47 = ssub.s32 37632, 37632
      %48 = vsyncadd [#allocation5], %s47
      %s49 = sshll.u32 [#allocation6], 4
      %s50 = int_to_ptr.vmem [resolvable:$true] %s49
      %55 = dma.hbm_to_vmem [thread:$0]  %s3, 37632, %s50, [#allocation5], 896, 896, 56
    $region17: #{cnn_forward.1} parent=1 // pred_fallthru
      _
    // Predicated region
    $region18: #{cnn_forward.1} parent=1 // pred_check
      _
    $region19: #{cnn_forward.1} parent=1 // pred_check_branch
      %57 = sbr.rel (0) target = $region21
    $region20: #{cnn_forward.1} parent=1 // pred_region
      %s59 = ssub.s32 224, 224
      %60 = vsyncadd [#allocation8], %s59
      %s62 = sshll.u32 [#allocation7], 4
      %s63 = int_to_ptr.vmem [resolvable:$true] %s62
      %65 = dma.hbm_to_vmem [thread:$0]  %s4, 224, %s63, [#allocation8]
    $region21: #{cnn_forward.1} parent=1 // pred_fallthru
      _
    // Predicated region
    $region22: #{cnn_forward.1} parent=1 // pred_check
      _
    $region23: #{cnn_forward.1} parent=1 // pred_check_branch
      %67 = sbr.rel (0) target = $region25
    $region24: #{cnn_forward.1} parent=1 // pred_region
      %s69 = ssub.s32 75264, 75264
      %70 = vsyncadd [#allocation8], %s69
      %s71 = sshll.u32 [#allocation9], 4
      %s72 = int_to_ptr.vmem [resolvable:$true] %s71
      %77 = dma.hbm_to_vmem [thread:$0]  %s5, 75264, %s72, [#allocation8], 448, 448, 28
    $region25: #{cnn_forward.1} parent=1 // pred_fallthru
      _
    // Predicated region
    $region26: #{cnn_forward.1} parent=1 // pred_check
      _
    $region27: #{cnn_forward.1} parent=1 // pred_check_branch
      %79 = sbr.rel (0) target = $region29
    $region28: #{cnn_forward.1} parent=1 // pred_region
      %s81 = ssub.s32 112, 112
      %82 = vsyncadd [#allocation11], %s81
      %s84 = sshll.u32 [#allocation10], 4
      %s85 = int_to_ptr.vmem [resolvable:$true] %s84
      %87 = dma.hbm_to_vmem [thread:$0]  %s6, 112, %s85, [#allocation11]
    $region29: #{cnn_forward.1} parent=1 // pred_fallthru
      _
    // Predicated region
    $region30: #{cnn_forward.1} parent=1 // pred_check
      _
    $region31: #{cnn_forward.1} parent=1 // pred_check_branch
      %89 = sbr.rel (0) target = $region33
    $region32: #{cnn_forward.1} parent=1 // pred_region
      _
    $region33: #{cnn_forward.1} parent=1 // pred_fallthru
      _
    // Predicated region
    $region34: #{cnn_forward.1} parent=1 // pred_check
      _
    $region35: #{cnn_forward.1} parent=1 // pred_check_branch
      %91 = sbr.rel (0) target = $region37
    $region36: #{cnn_forward.1} parent=1 // pred_region
      %s93 = ssub.s32 16, 16
      %94 = vsyncadd [#allocation11], %s93
      %s96 = sshll.u32 [#allocation12], 4
      %s97 = int_to_ptr.vmem [resolvable:$true] %s96
      %99 = dma.hbm_to_vmem [thread:$0]  %s8, 16, %s97, [#allocation11]
    $region37: #{cnn_forward.1} parent=1 // pred_fallthru
      _
    // Predicated region
    $region38: #{cnn_forward.1} parent=1 // pred_check
      _
    $region39: #{cnn_forward.1} parent=1 // pred_check_branch
      %101 = sbr.rel (0) target = $region41
    $region40: #{cnn_forward.1} parent=1 // pred_region
      %102 = dma.done [#allocation3], 896
    $region41: #{cnn_forward.1} parent=1 // pred_fallthru
      _
    // Predicated region
    $region42: #{cnn_forward.1} parent=1 // pred_check
      _
    $region43: #{cnn_forward.1} parent=1 // pred_check_branch
      %104 = sbr.rel (0) target = $region45
    $region44: #{cnn_forward.1} parent=1 // pred_region
      %105 = dma.done [#allocation5], 896
    $region45: #{cnn_forward.1} parent=1 // pred_fallthru
      _
    // Predicated region
    $region46: #{cnn_forward.1} parent=1 // pred_check
      _
    $region47: #{cnn_forward.1} parent=1 // pred_check_branch
      %107 = sbr.rel (0) target = $region49
    $region48: #{cnn_forward.1} parent=1 // pred_region
      %108 = dma.done [#allocation5], 37632
    $region49: #{cnn_forward.1} parent=1 // pred_fallthru
      _
    // Predicated region
    $region50: #{cnn_forward.1} parent=1 // pred_check
      _
    $region51: #{cnn_forward.1} parent=1 // pred_check_branch
      %110 = sbr.rel (0) target = $region53
    $region52: #{cnn_forward.1} parent=1 // pred_region
      %111 = dma.done [#allocation8], 224
    $region53: #{cnn_forward.1} parent=1 // pred_fallthru
      _
    // Predicated region
    $region54: #{cnn_forward.1} parent=1 // pred_check
      _
    $region55: #{cnn_forward.1} parent=1 // pred_check_branch
      %113 = sbr.rel (0) target = $region57
    $region56: #{cnn_forward.1} parent=1 // pred_region
      %114 = dma.done [#allocation8], 75264
    $region57: #{cnn_forward.1} parent=1 // pred_fallthru
      _
    // Predicated region
    $region58: #{cnn_forward.1} parent=1 // pred_check
      _
    $region59: #{cnn_forward.1} parent=1 // pred_check_branch
      %116 = sbr.rel (0) target = $region61
    $region60: #{cnn_forward.1} parent=1 // pred_region
      %117 = dma.done [#allocation11], 112
    $region61: #{cnn_forward.1} parent=1 // pred_fallthru
      _
    // Predicated region
    $region62: #{cnn_forward.1} parent=1 // pred_check
      _
    $region63: #{cnn_forward.1} parent=1 // pred_check_branch
      %119 = sbr.rel (0) target = $region65
    $region64: #{cnn_forward.1} parent=1 // pred_region
      %120 = dma.done [#allocation11], 16
    $region65: #{cnn_forward.1} parent=1 // pred_fallthru
      _
    %v122 = vld [vmem:[#allocation2] sm:$0xff]
    %v123 = vld [vmem:[#allocation2 + $0x8] sm:$0xff]
    %v124 = vld [vmem:[#allocation2 + $0x10] sm:$0xff]
    %v125 = vld [vmem:[#allocation2 + $0x18] sm:$0xff]
    %v126 = vld [vmem:[#allocation2 + $0x20] sm:$0xff]
    %v127 = vld [vmem:[#allocation2 + $0x28] sm:$0xff]
    %v128 = vld [vmem:[#allocation2 + $0x30] sm:$0xff]
    %v129 = vpack.c.bf16 %v123, %v122
    %v130 = vpack.c.bf16 %v125, %v124
    %v131 = vpack.c.bf16 %v127, %v126
    %v132 = vpack.c.bf16 %v128, %v128
    %v133 = vld [vmem:[#allocation4] sm:$0xff]
    %v134 = vld [vmem:[#allocation4 + $0x8] sm:$0xff]
    %v135 = vld [vmem:[#allocation4 + $0x10] sm:$0xff]
    %v136 = vld [vmem:[#allocation4 + $0x18] sm:$0xff]
    %v137 = vld [vmem:[#allocation4 + $0x20] sm:$0xff]
    %v138 = vld [vmem:[#allocation4 + $0x28] sm:$0xff]
    %v139 = vld [vmem:[#allocation4 + $0x30] sm:$0xff]
    %v140 = vpack.c.bf16 %v134, %v133
    %v141 = vpack.c.bf16 %v136, %v135
    %v142 = vpack.c.bf16 %v138, %v137
    %v143 = vpack.c.bf16 %v139, %v139
    %v144 = vld [vmem:[%s0] sm:$0xff]
    %v145 = vld [vmem:[%s0 + $0x8] sm:$0xff]
    %v146 = vld [vmem:[%s0 + $0x10] sm:$0xff]
    %v147 = vld [vmem:[%s0 + $0x18] sm:$0xff]
    %v148 = vld [vmem:[%s0 + $0x20] sm:$0xff]
    %v149 = vld [vmem:[%s0 + $0x28] sm:$0xff]
    %v150 = vld [vmem:[%s0 + $0x30] sm:$0xff]
    %v151 = vpack.c.bf16 %v145, %v144
    %v152 = vpack.c.bf16 %v147, %v146
    %v153 = vpack.c.bf16 %v149, %v148
    %v154 = vpack.c.bf16 %v150, %v150
    %vm155 = vsmask.f32 256
    %v157 = vshrl.u32 %v151, 16
    %v159 = vrot.slane %v157, 7
    %v160 = vshll.u32 %v151, 16
    %v162 = vor.u32 %v159, %v160
    %v164 = vshrl.u32 %v152, 16
    %v166 = vrot.slane %v164, 7
    %v167 = vshll.u32 %v152, 16
    %v169 = vor.u32 %v166, %v167
    %v170 = vsel %vm155, %v159, %v169
    %v172 = vshrl.u32 %v153, 16
    %v174 = vrot.slane %v172, 7
    %v175 = vshll.u32 %v153, 16
    %v177 = vor.u32 %v174, %v175
    %v178 = vsel %vm155, %v166, %v177
    %v180 = vshrl.u32 %v154, 16
    %v182 = vrot.slane %v180, 7
    %v183 = vshll.u32 %v154, 16
    %v185 = vor.u32 %v182, %v183
    %v186 = vsel %vm155, %v174, %v185
    %vm191 = vcmask 1040384
    %vm192 = vmand %vm191, %vm155
    %v193 = vsel %vm192, 0, %v162
    %195 = vset.pattern.permute.xlu0 0
    %196 = vperm.xlu0 %195, %v129
    %v197 = vpop.permute.xlu0 %196
    %200 = vset.pattern.permute.xlu0 0
    %201 = vperm.xlu0 %200, %v130
    %v202 = vpop.permute.xlu0 %201
    %205 = vset.pattern.permute.xlu0 0
    %206 = vperm.xlu0 %205, %v131
    %v207 = vpop.permute.xlu0 %206
    %210 = vset.pattern.permute.xlu0 0
    %211 = vperm.xlu0 %210, %v132
    %v212 = vpop.permute.xlu0 %211
    %v214 = vmul.bf16 %v193, %v197
    %v215 = vmul.bf16 %v170, %v202
    %v216 = vmul.bf16 %v178, %v207
    %v217 = vmul.bf16 %v186, %v212
    %vm218 = vsmask.f32 7424
    %v219 = vrot.slane %v160, 1
    %v220 = vor.u32 %v157, %v219
    %v221 = vrot.slane %v167, 1
    %v222 = vsel %vm218, %v220, %v221
    %v223 = vor.u32 %v164, %v221
    %v224 = vrot.slane %v175, 1
    %v225 = vsel %vm218, %v223, %v224
    %v226 = vor.u32 %v172, %v224
    %v227 = vrot.slane %v183, 1
    %v228 = vsel %vm218, %v226, %v227
    %v229 = vor.u32 %v180, %v227
    %vm234 = vcmask 1043456
    %vm235 = vsmask.f32 3328
    %vm236 = vmand %vm234, %vm235
    %v237 = vsel %vm236, %v229, 0
    %239 = vset.pattern.permute.xlu0 0
    %240 = vperm.xlu0 %239, %v140
    %v241 = vpop.permute.xlu0 %240
    %244 = vset.pattern.permute.xlu0 0
    %245 = vperm.xlu0 %244, %v141
    %v246 = vpop.permute.xlu0 %245
    %249 = vset.pattern.permute.xlu0 0
    %250 = vperm.xlu0 %249, %v142
    %v251 = vpop.permute.xlu0 %250
    %254 = vset.pattern.permute.xlu0 0
    %255 = vperm.xlu0 %254, %v143
    %v256 = vpop.permute.xlu0 %255
    %v258 = vmul.bf16 %v222, %v241
    %v259 = vmul.bf16 %v225, %v246
    %v260 = vmul.bf16 %v228, %v251
    %v261 = vmul.bf16 %v237, %v256
    %266 = vrot.lane.b32.xlu0 %v151, 112
    %v267 = vpop.permute.xlu0 %266
    %268 = vrot.lane.b32.xlu0 %v152, 112
    %v269 = vpop.permute.xlu0 %268
    %270 = vrot.lane.b32.xlu0 %v153, 112
    %v271 = vpop.permute.xlu0 %270
    %272 = vrot.lane.b32.xlu0 %v154, 112
    %v273 = vpop.permute.xlu0 %272
    %278 = vrot.lane.b32.xlu0 %v258, 96
    %v279 = vpop.permute.xlu0 %278
    %280 = vrot.lane.b32.xlu0 %v259, 96
    %v281 = vpop.permute.xlu0 %280
    %282 = vrot.lane.b32.xlu0 %v260, 96
    %v283 = vpop.permute.xlu0 %282
    %284 = vrot.lane.b32.xlu0 %v261, 96
    %v285 = vpop.permute.xlu0 %284
    %vm286 = vcmask 916480
    %v289 = vsel %vm286, %v214, %v267
    %v293 = vsel %vm286, %v215, %v269
    %v297 = vsel %vm286, %v216, %v271
    %v301 = vsel %vm286, %v217, %v273
    %vm303 = vcmask 785408
    %v305 = vsel %vm303, %v267, %v279
    %v308 = vsel %vm303, %v269, %v281
    %v311 = vsel %vm303, %v271, %v283
    %v314 = vsel %vm303, %v273, %v285
    %v316 = vld [vmem:[#allocation6] sm:$0xff]
    %v317 = vld [vmem:[#allocation6 + $0x8] sm:$0xff]
    %v318 = vld [vmem:[#allocation6 + $0x10] sm:$0xff]
    %v319 = vld [vmem:[#allocation6 + $0x18] sm:$0xff]
    %v320 = vld [vmem:[#allocation6 + $0x20] sm:$0xff]
    %v321 = vld [vmem:[#allocation6 + $0x28] sm:$0xff]
    %v322 = vld [vmem:[#allocation6 + $0x30] sm:$0xff]
    %v323 = vld [vmem:[#allocation6 + $0x38] sm:$0xff]
    %v324 = vld [vmem:[#allocation6 + $0x40] sm:$0xff]
    %v325 = vld [vmem:[#allocation6 + $0x48] sm:$0xff]
    %v326 = vld [vmem:[#allocation6 + $0x50] sm:$0xff]
    %v327 = vld [vmem:[#allocation6 + $0x58] sm:$0xff]
    %v328 = vld [vmem:[#allocation6 + $0x60] sm:$0xff]
    %v329 = vld [vmem:[#allocation6 + $0x68] sm:$0xff]
    %v330 = vld [vmem:[#allocation6 + $0x70] sm:$0xff]
    %v331 = vld [vmem:[#allocation6 + $0x78] sm:$0xff]
    %v332 = vld [vmem:[#allocation6 + $0x80] sm:$0xff]
    %v333 = vld [vmem:[#allocation6 + $0x88] sm:$0xff]
    %v334 = vld [vmem:[#allocation6 + $0x90] sm:$0xff]
    %v335 = vld [vmem:[#allocation6 + $0x98] sm:$0xff]
    %v336 = vld [vmem:[#allocation6 + $0xa0] sm:$0xff]
    %v337 = vld [vmem:[#allocation6 + $0xa8] sm:$0xff]
    %v338 = vld [vmem:[#allocation6 + $0xb0] sm:$0xff]
    %v339 = vld [vmem:[#allocation6 + $0xb8] sm:$0xff]
    %v340 = vld [vmem:[#allocation6 + $0xc0] sm:$0xff]
    %v341 = vld [vmem:[#allocation6 + $0xc8] sm:$0xff]
    %v342 = vld [vmem:[#allocation6 + $0xd0] sm:$0xff]
    %v343 = vld [vmem:[#allocation6 + $0xd8] sm:$0xff]
    %v344 = vld [vmem:[#allocation6 + $0xe0] sm:$0xff]
    %v345 = vld [vmem:[#allocation6 + $0xe8] sm:$0xff]
    %v346 = vld [vmem:[#allocation6 + $0xf0] sm:$0xff]
    %v347 = vld [vmem:[#allocation6 + $0xf8] sm:$0xff]
    %v348 = vld [vmem:[#allocation6 + $0x100] sm:$0xff]
    %v349 = vld [vmem:[#allocation6 + $0x108] sm:$0xff]
    %v350 = vld [vmem:[#allocation6 + $0x110] sm:$0xff]
    %v351 = vld [vmem:[#allocation6 + $0x118] sm:$0xff]
    %v352 = vld [vmem:[#allocation6 + $0x120] sm:$0xff]
    %v353 = vld [vmem:[#allocation6 + $0x128] sm:$0xff]
    %v354 = vld [vmem:[#allocation6 + $0x130] sm:$0xff]
    %v355 = vld [vmem:[#allocation6 + $0x138] sm:$0xff]
    %v356 = vld [vmem:[#allocation6 + $0x140] sm:$0xff]
    %v357 = vld [vmem:[#allocation6 + $0x148] sm:$0xff]
    %v358 = vld [vmem:[#allocation6 + $0x150] sm:$0xff]
    %v359 = vld [vmem:[#allocation6 + $0x158] sm:$0xff]
    %v360 = vld [vmem:[#allocation6 + $0x160] sm:$0xff]
    %v361 = vld [vmem:[#allocation6 + $0x168] sm:$0xff]
    %v362 = vld [vmem:[#allocation6 + $0x170] sm:$0xff]
    %v363 = vld [vmem:[#allocation6 + $0x178] sm:$0xff]
    %v364 = vld [vmem:[#allocation6 + $0x180] sm:$0xff]
    %v365 = vld [vmem:[#allocation6 + $0x188] sm:$0xff]
    %v366 = vld [vmem:[#allocation6 + $0x190] sm:$0xff]
    %v367 = vld [vmem:[#allocation6 + $0x198] sm:$0xff]
    %v368 = vld [vmem:[#allocation6 + $0x1a0] sm:$0xff]
    %v369 = vld [vmem:[#allocation6 + $0x1a8] sm:$0xff]
    %v370 = vld [vmem:[#allocation6 + $0x1b0] sm:$0xff]
    %v371 = vld [vmem:[#allocation6 + $0x1b8] sm:$0xff]
    %v372 = vld [vmem:[#allocation6 + $0x1c0] sm:$0xff]
    %v373 = vld [vmem:[#allocation6 + $0x1c8] sm:$0xff]
    %v374 = vld [vmem:[#allocation6 + $0x1d0] sm:$0xff]
    %v375 = vld [vmem:[#allocation6 + $0x1d8] sm:$0xff]
    %v376 = vld [vmem:[#allocation6 + $0x1e0] sm:$0xff]
    %v377 = vld [vmem:[#allocation6 + $0x1e8] sm:$0xff]
    %v378 = vld [vmem:[#allocation6 + $0x1f0] sm:$0xff]
    %v379 = vld [vmem:[#allocation6 + $0x1f8] sm:$0xff]
    %v380 = vld [vmem:[#allocation6 + $0x200] sm:$0xff]
    %v381 = vld [vmem:[#allocation6 + $0x208] sm:$0xff]
    %v382 = vld [vmem:[#allocation6 + $0x210] sm:$0xff]
    %v383 = vld [vmem:[#allocation6 + $0x218] sm:$0xff]
    %v384 = vld [vmem:[#allocation6 + $0x220] sm:$0xff]
    %v385 = vld [vmem:[#allocation6 + $0x228] sm:$0xff]
    %v386 = vld [vmem:[#allocation6 + $0x230] sm:$0xff]
    %v387 = vld [vmem:[#allocation6 + $0x238] sm:$0xff]
    %v388 = vld [vmem:[#allocation6 + $0x240] sm:$0xff]
    %v389 = vld [vmem:[#allocation6 + $0x248] sm:$0xff]
    %v390 = vld [vmem:[#allocation6 + $0x250] sm:$0xff]
    %v391 = vld [vmem:[#allocation6 + $0x258] sm:$0xff]
    %v392 = vld [vmem:[#allocation6 + $0x260] sm:$0xff]
    %v393 = vld [vmem:[#allocation6 + $0x268] sm:$0xff]
    %v394 = vld [vmem:[#allocation6 + $0x270] sm:$0xff]
    %v395 = vld [vmem:[#allocation6 + $0x278] sm:$0xff]
    %v396 = vld [vmem:[#allocation6 + $0x280] sm:$0xff]
    %v397 = vld [vmem:[#allocation6 + $0x288] sm:$0xff]
    %v398 = vld [vmem:[#allocation6 + $0x290] sm:$0xff]
    %v399 = vld [vmem:[#allocation6 + $0x298] sm:$0xff]
    %v400 = vld [vmem:[#allocation6 + $0x2a0] sm:$0xff]
    %v401 = vld [vmem:[#allocation6 + $0x2a8] sm:$0xff]
    %v402 = vld [vmem:[#allocation6 + $0x2b0] sm:$0xff]
    %v403 = vld [vmem:[#allocation6 + $0x2b8] sm:$0xff]
    %v404 = vld [vmem:[#allocation6 + $0x2c0] sm:$0xff]
    %v405 = vld [vmem:[#allocation6 + $0x2c8] sm:$0xff]
    %v406 = vld [vmem:[#allocation6 + $0x2d0] sm:$0xff]
    %v407 = vld [vmem:[#allocation6 + $0x2d8] sm:$0xff]
    %v408 = vld [vmem:[#allocation6 + $0x2e0] sm:$0xff]
    %v409 = vld [vmem:[#allocation6 + $0x2e8] sm:$0xff]
    %v410 = vld [vmem:[#allocation6 + $0x2f0] sm:$0xff]
    %v411 = vld [vmem:[#allocation6 + $0x2f8] sm:$0xff]
    %v412 = vld [vmem:[#allocation6 + $0x300] sm:$0xff]
    %v413 = vld [vmem:[#allocation6 + $0x308] sm:$0xff]
    %v414 = vld [vmem:[#allocation6 + $0x310] sm:$0xff]
    %v415 = vld [vmem:[#allocation6 + $0x318] sm:$0xff]
    %v416 = vld [vmem:[#allocation6 + $0x320] sm:$0xff]
    %v417 = vld [vmem:[#allocation6 + $0x328] sm:$0xff]
    %v418 = vld [vmem:[#allocation6 + $0x330] sm:$0xff]
    %v419 = vld [vmem:[#allocation6 + $0x338] sm:$0xff]
    %v420 = vld [vmem:[#allocation6 + $0x340] sm:$0xff]
    %v421 = vld [vmem:[#allocation6 + $0x348] sm:$0xff]
    %v422 = vld [vmem:[#allocation6 + $0x350] sm:$0xff]
    %v423 = vld [vmem:[#allocation6 + $0x358] sm:$0xff]
    %v424 = vld [vmem:[#allocation6 + $0x360] sm:$0xff]
    %v425 = vld [vmem:[#allocation6 + $0x368] sm:$0xff]
    %v426 = vld [vmem:[#allocation6 + $0x370] sm:$0xff]
    %v427 = vld [vmem:[#allocation6 + $0x378] sm:$0xff]
    %v428 = vld [vmem:[#allocation6 + $0x380] sm:$0xff]
    %v429 = vld [vmem:[#allocation6 + $0x388] sm:$0xff]
    %v430 = vld [vmem:[#allocation6 + $0x390] sm:$0xff]
    %v431 = vld [vmem:[#allocation6 + $0x398] sm:$0xff]
    %v432 = vld [vmem:[#allocation6 + $0x3a0] sm:$0xff]
    %v433 = vld [vmem:[#allocation6 + $0x3a8] sm:$0xff]
    %v434 = vld [vmem:[#allocation6 + $0x3b0] sm:$0xff]
    %v435 = vld [vmem:[#allocation6 + $0x3b8] sm:$0xff]
    %v436 = vld [vmem:[#allocation6 + $0x3c0] sm:$0xff]
    %v437 = vld [vmem:[#allocation6 + $0x3c8] sm:$0xff]
    %v438 = vld [vmem:[#allocation6 + $0x3d0] sm:$0xff]
    %v439 = vld [vmem:[#allocation6 + $0x3d8] sm:$0xff]
    %v440 = vld [vmem:[#allocation6 + $0x3e0] sm:$0xff]
    %v441 = vld [vmem:[#allocation6 + $0x3e8] sm:$0xff]
    %v442 = vld [vmem:[#allocation6 + $0x3f0] sm:$0xff]
    %v443 = vld [vmem:[#allocation6 + $0x3f8] sm:$0xff]
    %v444 = vld [vmem:[#allocation6 + $0x400] sm:$0xff]
    %v445 = vld [vmem:[#allocation6 + $0x408] sm:$0xff]
    %v446 = vld [vmem:[#allocation6 + $0x410] sm:$0xff]
    %v447 = vld [vmem:[#allocation6 + $0x418] sm:$0xff]
    %v448 = vld [vmem:[#allocation6 + $0x420] sm:$0xff]
    %v449 = vld [vmem:[#allocation6 + $0x428] sm:$0xff]
    %v450 = vld [vmem:[#allocation6 + $0x430] sm:$0xff]
    %v451 = vld [vmem:[#allocation6 + $0x438] sm:$0xff]
    %v452 = vld [vmem:[#allocation6 + $0x440] sm:$0xff]
    %v453 = vld [vmem:[#allocation6 + $0x448] sm:$0xff]
    %v454 = vld [vmem:[#allocation6 + $0x450] sm:$0xff]
    %v455 = vld [vmem:[#allocation6 + $0x458] sm:$0xff]
    %v456 = vld [vmem:[#allocation6 + $0x460] sm:$0xff]
    %v457 = vld [vmem:[#allocation6 + $0x468] sm:$0xff]
    %v458 = vld [vmem:[#allocation6 + $0x470] sm:$0xff]
    %v459 = vld [vmem:[#allocation6 + $0x478] sm:$0xff]
    %v460 = vld [vmem:[#allocation6 + $0x480] sm:$0xff]
    %v461 = vld [vmem:[#allocation6 + $0x488] sm:$0xff]
    %v462 = vld [vmem:[#allocation6 + $0x490] sm:$0xff]
    %v463 = vld [vmem:[#allocation6 + $0x498] sm:$0xff]
    %v464 = vld [vmem:[#allocation6 + $0x4a0] sm:$0xff]
    %v465 = vld [vmem:[#allocation6 + $0x4a8] sm:$0xff]
    %v466 = vld [vmem:[#allocation6 + $0x4b0] sm:$0xff]
    %v467 = vld [vmem:[#allocation6 + $0x4b8] sm:$0xff]
    %v468 = vld [vmem:[#allocation6 + $0x4c0] sm:$0xff]
    %v469 = vld [vmem:[#allocation6 + $0x4c8] sm:$0xff]
    %v470 = vld [vmem:[#allocation6 + $0x4d0] sm:$0xff]
    %v471 = vld [vmem:[#allocation6 + $0x4d8] sm:$0xff]
    %v472 = vld [vmem:[#allocation6 + $0x4e0] sm:$0xff]
    %v473 = vld [vmem:[#allocation6 + $0x4e8] sm:$0xff]
    %v474 = vld [vmem:[#allocation6 + $0x4f0] sm:$0xff]
    %v475 = vld [vmem:[#allocation6 + $0x4f8] sm:$0xff]
    %v476 = vld [vmem:[#allocation6 + $0x500] sm:$0xff]
    %v477 = vld [vmem:[#allocation6 + $0x508] sm:$0xff]
    %v478 = vld [vmem:[#allocation6 + $0x510] sm:$0xff]
    %v479 = vld [vmem:[#allocation6 + $0x518] sm:$0xff]
    %v480 = vld [vmem:[#allocation6 + $0x520] sm:$0xff]
    %v481 = vld [vmem:[#allocation6 + $0x528] sm:$0xff]
    %v482 = vld [vmem:[#allocation6 + $0x530] sm:$0xff]
    %v483 = vld [vmem:[#allocation6 + $0x538] sm:$0xff]
    %v484 = vld [vmem:[#allocation6 + $0x540] sm:$0xff]
    %v485 = vld [vmem:[#allocation6 + $0x548] sm:$0xff]
    %v486 = vld [vmem:[#allocation6 + $0x550] sm:$0xff]
    %v487 = vld [vmem:[#allocation6 + $0x558] sm:$0xff]
    %v488 = vld [vmem:[#allocation6 + $0x560] sm:$0xff]
    %v489 = vld [vmem:[#allocation6 + $0x568] sm:$0xff]
    %v490 = vld [vmem:[#allocation6 + $0x570] sm:$0xff]
    %v491 = vld [vmem:[#allocation6 + $0x578] sm:$0xff]
    %v492 = vld [vmem:[#allocation6 + $0x580] sm:$0xff]
    %v493 = vld [vmem:[#allocation6 + $0x588] sm:$0xff]
    %v494 = vld [vmem:[#allocation6 + $0x590] sm:$0xff]
    %v495 = vld [vmem:[#allocation6 + $0x598] sm:$0xff]
    %v496 = vld [vmem:[#allocation6 + $0x5a0] sm:$0xff]
    %v497 = vld [vmem:[#allocation6 + $0x5a8] sm:$0xff]
    %v498 = vld [vmem:[#allocation6 + $0x5b0] sm:$0xff]
    %v499 = vld [vmem:[#allocation6 + $0x5b8] sm:$0xff]
    %v500 = vld [vmem:[#allocation6 + $0x5c0] sm:$0xff]
    %v501 = vld [vmem:[#allocation6 + $0x5c8] sm:$0xff]
    %v502 = vld [vmem:[#allocation6 + $0x5d0] sm:$0xff]
    %v503 = vld [vmem:[#allocation6 + $0x5d8] sm:$0xff]
    %v504 = vld [vmem:[#allocation6 + $0x5e0] sm:$0xff]
    %v505 = vld [vmem:[#allocation6 + $0x5e8] sm:$0xff]
    %v506 = vld [vmem:[#allocation6 + $0x5f0] sm:$0xff]
    %v507 = vld [vmem:[#allocation6 + $0x5f8] sm:$0xff]
    %v508 = vld [vmem:[#allocation6 + $0x600] sm:$0xff]
    %v509 = vld [vmem:[#allocation6 + $0x608] sm:$0xff]
    %v510 = vld [vmem:[#allocation6 + $0x610] sm:$0xff]
    %v511 = vld [vmem:[#allocation6 + $0x618] sm:$0xff]
    %v512 = vld [vmem:[#allocation6 + $0x620] sm:$0xff]
    %v513 = vld [vmem:[#allocation6 + $0x628] sm:$0xff]
    %v514 = vld [vmem:[#allocation6 + $0x630] sm:$0xff]
    %v515 = vld [vmem:[#allocation6 + $0x638] sm:$0xff]
    %v516 = vld [vmem:[#allocation6 + $0x640] sm:$0xff]
    %v517 = vld [vmem:[#allocation6 + $0x648] sm:$0xff]
    %v518 = vld [vmem:[#allocation6 + $0x650] sm:$0xff]
    %v519 = vld [vmem:[#allocation6 + $0x658] sm:$0xff]
    %v520 = vld [vmem:[#allocation6 + $0x660] sm:$0xff]
    %v521 = vld [vmem:[#allocation6 + $0x668] sm:$0xff]
    %v522 = vld [vmem:[#allocation6 + $0x670] sm:$0xff]
    %v523 = vld [vmem:[#allocation6 + $0x678] sm:$0xff]
    %v524 = vld [vmem:[#allocation6 + $0x680] sm:$0xff]
    %v525 = vld [vmem:[#allocation6 + $0x688] sm:$0xff]
    %v526 = vld [vmem:[#allocation6 + $0x690] sm:$0xff]
    %v527 = vld [vmem:[#allocation6 + $0x698] sm:$0xff]
    %v528 = vld [vmem:[#allocation6 + $0x6a0] sm:$0xff]
    %v529 = vld [vmem:[#allocation6 + $0x6a8] sm:$0xff]
    %v530 = vld [vmem:[#allocation6 + $0x6b0] sm:$0xff]
    %v531 = vld [vmem:[#allocation6 + $0x6b8] sm:$0xff]
    %v532 = vld [vmem:[#allocation6 + $0x6c0] sm:$0xff]
    %v533 = vld [vmem:[#allocation6 + $0x6c8] sm:$0xff]
    %v534 = vld [vmem:[#allocation6 + $0x6d0] sm:$0xff]
    %v535 = vld [vmem:[#allocation6 + $0x6d8] sm:$0xff]
    %v536 = vld [vmem:[#allocation6 + $0x6e0] sm:$0xff]
    %v537 = vld [vmem:[#allocation6 + $0x6e8] sm:$0xff]
    %v538 = vld [vmem:[#allocation6 + $0x6f0] sm:$0xff]
    %v539 = vld [vmem:[#allocation6 + $0x6f8] sm:$0xff]
    %v540 = vld [vmem:[#allocation6 + $0x700] sm:$0xff]
    %v541 = vld [vmem:[#allocation6 + $0x708] sm:$0xff]
    %v542 = vld [vmem:[#allocation6 + $0x710] sm:$0xff]
    %v543 = vld [vmem:[#allocation6 + $0x718] sm:$0xff]
    %v544 = vld [vmem:[#allocation6 + $0x720] sm:$0xff]
    %v545 = vld [vmem:[#allocation6 + $0x728] sm:$0xff]
    %v546 = vld [vmem:[#allocation6 + $0x730] sm:$0xff]
    %v547 = vld [vmem:[#allocation6 + $0x738] sm:$0xff]
    %v548 = vld [vmem:[#allocation6 + $0x740] sm:$0xff]
    %v549 = vld [vmem:[#allocation6 + $0x748] sm:$0xff]
    %v550 = vld [vmem:[#allocation6 + $0x750] sm:$0xff]
    %v551 = vld [vmem:[#allocation6 + $0x758] sm:$0xff]
    %v552 = vld [vmem:[#allocation6 + $0x760] sm:$0xff]
    %v553 = vld [vmem:[#allocation6 + $0x768] sm:$0xff]
    %v554 = vld [vmem:[#allocation6 + $0x770] sm:$0xff]
    %v555 = vld [vmem:[#allocation6 + $0x778] sm:$0xff]
    %v556 = vld [vmem:[#allocation6 + $0x780] sm:$0xff]
    %v557 = vld [vmem:[#allocation6 + $0x788] sm:$0xff]
    %v558 = vld [vmem:[#allocation6 + $0x790] sm:$0xff]
    %v559 = vld [vmem:[#allocation6 + $0x798] sm:$0xff]
    %v560 = vld [vmem:[#allocation6 + $0x7a0] sm:$0xff]
    %v561 = vld [vmem:[#allocation6 + $0x7a8] sm:$0xff]
    %v562 = vld [vmem:[#allocation6 + $0x7b0] sm:$0xff]
    %v563 = vld [vmem:[#allocation6 + $0x7b8] sm:$0xff]
    %v564 = vld [vmem:[#allocation6 + $0x7c0] sm:$0xff]
    %v565 = vld [vmem:[#allocation6 + $0x7c8] sm:$0xff]
    %v566 = vld [vmem:[#allocation6 + $0x7d0] sm:$0xff]
    %v567 = vld [vmem:[#allocation6 + $0x7d8] sm:$0xff]
    %v568 = vld [vmem:[#allocation6 + $0x7e0] sm:$0xff]
    %v569 = vld [vmem:[#allocation6 + $0x7e8] sm:$0xff]
    %v570 = vld [vmem:[#allocation6 + $0x7f0] sm:$0xff]
    %v571 = vld [vmem:[#allocation6 + $0x7f8] sm:$0xff]
    %v572 = vld [vmem:[#allocation6 + $0x800] sm:$0xff]
    %v573 = vld [vmem:[#allocation6 + $0x808] sm:$0xff]
    %v574 = vld [vmem:[#allocation6 + $0x810] sm:$0xff]
    %v575 = vld [vmem:[#allocation6 + $0x818] sm:$0xff]
    %v576 = vld [vmem:[#allocation6 + $0x820] sm:$0xff]
    %v577 = vld [vmem:[#allocation6 + $0x828] sm:$0xff]
    %v578 = vld [vmem:[#allocation6 + $0x830] sm:$0xff]
    %v579 = vld [vmem:[#allocation6 + $0x838] sm:$0xff]
    %v580 = vld [vmem:[#allocation6 + $0x840] sm:$0xff]
    %v581 = vld [vmem:[#allocation6 + $0x848] sm:$0xff]
    %v582 = vld [vmem:[#allocation6 + $0x850] sm:$0xff]
    %v583 = vld [vmem:[#allocation6 + $0x858] sm:$0xff]
    %v584 = vld [vmem:[#allocation6 + $0x860] sm:$0xff]
    %v585 = vld [vmem:[#allocation6 + $0x868] sm:$0xff]
    %v586 = vld [vmem:[#allocation6 + $0x870] sm:$0xff]
    %v587 = vld [vmem:[#allocation6 + $0x878] sm:$0xff]
    %v588 = vld [vmem:[#allocation6 + $0x880] sm:$0xff]
    %v589 = vld [vmem:[#allocation6 + $0x888] sm:$0xff]
    %v590 = vld [vmem:[#allocation6 + $0x890] sm:$0xff]
    %v591 = vld [vmem:[#allocation6 + $0x898] sm:$0xff]
    %v592 = vld [vmem:[#allocation6 + $0x8a0] sm:$0xff]
    %v593 = vld [vmem:[#allocation6 + $0x8a8] sm:$0xff]
    %v594 = vld [vmem:[#allocation6 + $0x8b0] sm:$0xff]
    %v595 = vld [vmem:[#allocation6 + $0x8b8] sm:$0xff]
    %v596 = vld [vmem:[#allocation6 + $0x8c0] sm:$0xff]
    %v597 = vld [vmem:[#allocation6 + $0x8c8] sm:$0xff]
    %v598 = vld [vmem:[#allocation6 + $0x8d0] sm:$0xff]
    %v599 = vld [vmem:[#allocation6 + $0x8d8] sm:$0xff]
    %v600 = vld [vmem:[#allocation6 + $0x8e0] sm:$0xff]
    %v601 = vld [vmem:[#allocation6 + $0x8e8] sm:$0xff]
    %v602 = vld [vmem:[#allocation6 + $0x8f0] sm:$0xff]
    %v603 = vld [vmem:[#allocation6 + $0x8f8] sm:$0xff]
    %v604 = vld [vmem:[#allocation6 + $0x900] sm:$0xff]
    %v605 = vld [vmem:[#allocation6 + $0x908] sm:$0xff]
    %v606 = vld [vmem:[#allocation6 + $0x910] sm:$0xff]
    %v607 = vld [vmem:[#allocation6 + $0x918] sm:$0xff]
    %v608 = vld [vmem:[#allocation6 + $0x920] sm:$0xff]
    %v609 = vld [vmem:[#allocation6 + $0x928] sm:$0xff]
    %v610 = vld [vmem:[#allocation7] sm:$0xff]
    %v611 = vld [vmem:[#allocation7 + $0x8] sm:$0x3f]
    %v614 = vlaneseq
    %v615 = vshrl.u32 %v614, 7
    %v616 = vsub.s32 0, %v615
    %v617 = vrot.slane %v610, %v616
    %v618 = vlaneseq
    %v619 = vshrl.u32 %v618, 7
    %v620 = vsub.s32 1, %v619
    %v621 = vrot.slane %v610, %v620
    %v622 = vlaneseq
    %v623 = vshrl.u32 %v622, 7
    %v624 = vsub.s32 2, %v623
    %v625 = vrot.slane %v610, %v624
    %v626 = vlaneseq
    %v627 = vshrl.u32 %v626, 7
    %v628 = vsub.s32 3, %v627
    %v629 = vrot.slane %v610, %v628
    %v630 = vlaneseq
    %v631 = vshrl.u32 %v630, 7
    %v632 = vsub.s32 4, %v631
    %v633 = vrot.slane %v610, %v632
    %v634 = vlaneseq
    %v635 = vshrl.u32 %v634, 7
    %v636 = vsub.s32 5, %v635
    %v637 = vrot.slane %v610, %v636
    %v638 = vlaneseq
    %v639 = vshrl.u32 %v638, 7
    %v640 = vsub.s32 6, %v639
    %v641 = vrot.slane %v610, %v640
    %v642 = vlaneseq
    %v643 = vshrl.u32 %v642, 7
    %v644 = vsub.s32 7, %v643
    %v645 = vrot.slane %v610, %v644
    %v646 = vlaneseq
    %v647 = vshrl.u32 %v646, 7
    %v648 = vsub.s32 0, %v647
    %v649 = vrot.slane %v611, %v648
    %v650 = vlaneseq
    %v651 = vshrl.u32 %v650, 7
    %v652 = vsub.s32 1, %v651
    %v653 = vrot.slane %v611, %v652
    %v654 = vlaneseq
    %v655 = vshrl.u32 %v654, 7
    %v656 = vsub.s32 2, %v655
    %v657 = vrot.slane %v611, %v656
    %v658 = vlaneseq
    %v659 = vshrl.u32 %v658, 7
    %v660 = vsub.s32 3, %v659
    %v661 = vrot.slane %v611, %v660
    %v662 = vlaneseq
    %v663 = vshrl.u32 %v662, 7
    %v664 = vsub.s32 4, %v663
    %v665 = vrot.slane %v611, %v664
    %v666 = vlaneseq
    %v667 = vshrl.u32 %v666, 7
    %v668 = vsub.s32 5, %v667
    %v669 = vrot.slane %v611, %v668
    %v978 = vunpack.c.l.b16 %v316
    %v979 = vunpack.c.h.b16 %v316
    %v980 = vunpack.c.l.b16 %v317
    %v981 = vunpack.c.h.b16 %v317
    %v982 = vunpack.c.l.b16 %v318
    %v983 = vunpack.c.h.b16 %v318
    %v984 = vunpack.c.l.b16 %v319
    %v985 = vunpack.c.h.b16 %v319
    %v986 = vunpack.c.l.b16 %v320
    %v987 = vunpack.c.h.b16 %v320
    %v988 = vunpack.c.l.b16 %v321
    %v989 = vunpack.c.h.b16 %v321
    %v990 = vunpack.c.l.b16 %v322
    %v991 = vunpack.c.h.b16 %v322
    %v992 = vunpack.c.l.b16 %v323
    %v993 = vunpack.c.h.b16 %v323
    %v994 = vunpack.c.l.b16 %v324
    %v995 = vunpack.c.h.b16 %v324
    %v996 = vunpack.c.l.b16 %v325
    %v997 = vunpack.c.h.b16 %v325
    %v998 = vunpack.c.l.b16 %v326
    %v999 = vunpack.c.h.b16 %v326
    %v1000 = vunpack.c.l.b16 %v327
    %v1001 = vunpack.c.h.b16 %v327
    %v1002 = vunpack.c.l.b16 %v328
    %v1003 = vunpack.c.h.b16 %v328
    %v1004 = vunpack.c.l.b16 %v329
    %v1005 = vunpack.c.h.b16 %v329
    %v1006 = vunpack.c.l.b16 %v330
    %v1007 = vunpack.c.h.b16 %v330
    %v1008 = vunpack.c.l.b16 %v331
    %v1009 = vunpack.c.h.b16 %v331
    %v1010 = vunpack.c.l.b16 %v332
    %v1011 = vunpack.c.h.b16 %v332
    %v1012 = vunpack.c.l.b16 %v333
    %v1013 = vunpack.c.h.b16 %v333
    %v1014 = vunpack.c.l.b16 %v334
    %v1015 = vunpack.c.h.b16 %v334
    %v1016 = vunpack.c.l.b16 %v335
    %v1017 = vunpack.c.h.b16 %v335
    %v1018 = vunpack.c.l.b16 %v336
    %v1019 = vunpack.c.h.b16 %v336
    %v1020 = vunpack.c.l.b16 %v337
    %v1021 = vunpack.c.h.b16 %v337
    %v1022 = vunpack.c.l.b16 %v338
    %v1023 = vunpack.c.h.b16 %v338
    %v1024 = vunpack.c.l.b16 %v339
    %v1025 = vunpack.c.h.b16 %v339
    %v1026 = vunpack.c.l.b16 %v340
    %v1027 = vunpack.c.h.b16 %v340
    %v1028 = vunpack.c.l.b16 %v341
    %v1029 = vunpack.c.h.b16 %v341
    %v1030 = vunpack.c.l.b16 %v342
    %v1031 = vunpack.c.h.b16 %v342
    %v1032 = vunpack.c.l.b16 %v343
    %v1033 = vunpack.c.h.b16 %v343
    %v1034 = vunpack.c.l.b16 %v344
    %v1035 = vunpack.c.h.b16 %v344
    %v1036 = vunpack.c.l.b16 %v345
    %v1037 = vunpack.c.h.b16 %v345
    %v1038 = vunpack.c.l.b16 %v346
    %v1039 = vunpack.c.h.b16 %v346
    %v1040 = vunpack.c.l.b16 %v347
    %v1041 = vunpack.c.h.b16 %v347
    %v1042 = vunpack.c.l.b16 %v348
    %v1043 = vunpack.c.h.b16 %v348
    %v1044 = vunpack.c.l.b16 %v349
    %v1045 = vunpack.c.h.b16 %v349
    %v1046 = vunpack.c.l.b16 %v350
    %v1047 = vunpack.c.h.b16 %v350
    %v1048 = vunpack.c.l.b16 %v351
    %v1049 = vunpack.c.h.b16 %v351
    %v1050 = vunpack.c.l.b16 %v352
    %v1051 = vunpack.c.h.b16 %v352
    %v1052 = vunpack.c.l.b16 %v353
    %v1053 = vunpack.c.h.b16 %v353
    %v1054 = vunpack.c.l.b16 %v354
    %v1055 = vunpack.c.h.b16 %v354
    %v1056 = vunpack.c.l.b16 %v355
    %v1057 = vunpack.c.h.b16 %v355
    %v1058 = vunpack.c.l.b16 %v356
    %v1059 = vunpack.c.h.b16 %v356
    %v1060 = vunpack.c.l.b16 %v357
    %v1061 = vunpack.c.h.b16 %v357
    %v1062 = vunpack.c.l.b16 %v358
    %v1063 = vunpack.c.h.b16 %v358
    %v1064 = vunpack.c.l.b16 %v359
    %v1065 = vunpack.c.h.b16 %v359
    %v1066 = vunpack.c.l.b16 %v360
    %v1067 = vunpack.c.h.b16 %v360
    %v1068 = vunpack.c.l.b16 %v361
    %v1069 = vunpack.c.h.b16 %v361
    %v1070 = vunpack.c.l.b16 %v362
    %v1071 = vunpack.c.h.b16 %v362
    %v1072 = vunpack.c.l.b16 %v363
    %v1073 = vunpack.c.h.b16 %v363
    %v1074 = vunpack.c.l.b16 %v364
    %v1075 = vunpack.c.h.b16 %v364
    %v1076 = vunpack.c.l.b16 %v365
    %v1077 = vunpack.c.h.b16 %v365
    %v1078 = vunpack.c.l.b16 %v366
    %v1079 = vunpack.c.h.b16 %v366
    %v1080 = vunpack.c.l.b16 %v367
    %v1081 = vunpack.c.h.b16 %v367
    %v1082 = vunpack.c.l.b16 %v368
    %v1083 = vunpack.c.h.b16 %v368
    %v1084 = vunpack.c.l.b16 %v369
    %v1085 = vunpack.c.h.b16 %v369
    %v1086 = vunpack.c.l.b16 %v370
    %v1087 = vunpack.c.h.b16 %v370
    %v1088 = vunpack.c.l.b16 %v371
    %v1089 = vunpack.c.h.b16 %v371
    %v1090 = vunpack.c.l.b16 %v372
    %v1091 = vunpack.c.h.b16 %v372
    %v1092 = vunpack.c.l.b16 %v373
    %v1093 = vunpack.c.h.b16 %v373
    %v1094 = vunpack.c.l.b16 %v374
    %v1095 = vunpack.c.h.b16 %v374
    %v1096 = vunpack.c.l.b16 %v375
    %v1097 = vunpack.c.h.b16 %v375
    %v1098 = vunpack.c.l.b16 %v376
    %v1099 = vunpack.c.h.b16 %v376
    %v1100 = vunpack.c.l.b16 %v377
    %v1101 = vunpack.c.h.b16 %v377
    %v1102 = vunpack.c.l.b16 %v378
    %v1103 = vunpack.c.h.b16 %v378
    %v1104 = vunpack.c.l.b16 %v379
    %v1105 = vunpack.c.h.b16 %v379
    %v1106 = vunpack.c.l.b16 %v380
    %v1107 = vunpack.c.h.b16 %v380
    %v1108 = vunpack.c.l.b16 %v381
    %v1109 = vunpack.c.h.b16 %v381
    %v1110 = vunpack.c.l.b16 %v382
    %v1111 = vunpack.c.h.b16 %v382
    %v1112 = vunpack.c.l.b16 %v383
    %v1113 = vunpack.c.h.b16 %v383
    %v1114 = vunpack.c.l.b16 %v384
    %v1115 = vunpack.c.h.b16 %v384
    %v1116 = vunpack.c.l.b16 %v385
    %v1117 = vunpack.c.h.b16 %v385
    %v1118 = vunpack.c.l.b16 %v386
    %v1119 = vunpack.c.h.b16 %v386
    %v1120 = vunpack.c.l.b16 %v387
    %v1121 = vunpack.c.h.b16 %v387
    %v1122 = vunpack.c.l.b16 %v388
    %v1123 = vunpack.c.h.b16 %v388
    %v1124 = vunpack.c.l.b16 %v389
    %v1125 = vunpack.c.h.b16 %v389
    %v1126 = vunpack.c.l.b16 %v390
    %v1127 = vunpack.c.h.b16 %v390
    %v1128 = vunpack.c.l.b16 %v391
    %v1129 = vunpack.c.h.b16 %v391
    %v1130 = vunpack.c.l.b16 %v392
    %v1131 = vunpack.c.h.b16 %v392
    %v1132 = vunpack.c.l.b16 %v393
    %v1133 = vunpack.c.h.b16 %v393
    %v1134 = vunpack.c.l.b16 %v394
    %v1135 = vunpack.c.h.b16 %v394
    %v1136 = vunpack.c.l.b16 %v395
    %v1137 = vunpack.c.h.b16 %v395
    %v1138 = vunpack.c.l.b16 %v396
    %v1139 = vunpack.c.h.b16 %v396
    %v1140 = vunpack.c.l.b16 %v397
    %v1141 = vunpack.c.h.b16 %v397
    %v1142 = vunpack.c.l.b16 %v398
    %v1143 = vunpack.c.h.b16 %v398
    %v1144 = vunpack.c.l.b16 %v399
    %v1145 = vunpack.c.h.b16 %v399
    %v1146 = vunpack.c.l.b16 %v400
    %v1147 = vunpack.c.h.b16 %v400
    %v1148 = vunpack.c.l.b16 %v401
    %v1149 = vunpack.c.h.b16 %v401
    %v1150 = vunpack.c.l.b16 %v402
    %v1151 = vunpack.c.h.b16 %v402
    %v1152 = vunpack.c.l.b16 %v403
    %v1153 = vunpack.c.h.b16 %v403
    %v1154 = vunpack.c.l.b16 %v404
    %v1155 = vunpack.c.h.b16 %v404
    %v1156 = vunpack.c.l.b16 %v405
    %v1157 = vunpack.c.h.b16 %v405
    %v1158 = vunpack.c.l.b16 %v406
    %v1159 = vunpack.c.h.b16 %v406
    %v1160 = vunpack.c.l.b16 %v407
    %v1161 = vunpack.c.h.b16 %v407
    %v1162 = vunpack.c.l.b16 %v408
    %v1163 = vunpack.c.h.b16 %v408
    %v1164 = vunpack.c.l.b16 %v409
    %v1165 = vunpack.c.h.b16 %v409
    %v1166 = vunpack.c.l.b16 %v410
    %v1167 = vunpack.c.h.b16 %v410
    %v1168 = vunpack.c.l.b16 %v411
    %v1169 = vunpack.c.h.b16 %v411
    %v1170 = vunpack.c.l.b16 %v412
    %v1171 = vunpack.c.h.b16 %v412
    %v1172 = vunpack.c.l.b16 %v413
    %v1173 = vunpack.c.h.b16 %v413
    %v1174 = vunpack.c.l.b16 %v414
    %v1175 = vunpack.c.h.b16 %v414
    %v1176 = vunpack.c.l.b16 %v415
    %v1177 = vunpack.c.h.b16 %v415
    %v1178 = vunpack.c.l.b16 %v416
    %v1179 = vunpack.c.h.b16 %v416
    %v1180 = vunpack.c.l.b16 %v417
    %v1181 = vunpack.c.h.b16 %v417
    %v1182 = vunpack.c.l.b16 %v418
    %v1183 = vunpack.c.h.b16 %v418
    %v1184 = vunpack.c.l.b16 %v419
    %v1185 = vunpack.c.h.b16 %v419
    %v1186 = vunpack.c.l.b16 %v420
    %v1187 = vunpack.c.h.b16 %v420
    %v1188 = vunpack.c.l.b16 %v421
    %v1189 = vunpack.c.h.b16 %v421
    %v1190 = vunpack.c.l.b16 %v422
    %v1191 = vunpack.c.h.b16 %v422
    %v1192 = vunpack.c.l.b16 %v423
    %v1193 = vunpack.c.h.b16 %v423
    %v1194 = vunpack.c.l.b16 %v424
    %v1195 = vunpack.c.h.b16 %v424
    %v1196 = vunpack.c.l.b16 %v425
    %v1197 = vunpack.c.h.b16 %v425
    %v1198 = vunpack.c.l.b16 %v426
    %v1199 = vunpack.c.h.b16 %v426
    %v1200 = vunpack.c.l.b16 %v427
    %v1201 = vunpack.c.h.b16 %v427
    %v1202 = vunpack.c.l.b16 %v428
    %v1203 = vunpack.c.h.b16 %v428
    %v1204 = vunpack.c.l.b16 %v429
    %v1205 = vunpack.c.h.b16 %v429
    %v1206 = vunpack.c.l.b16 %v430
    %v1207 = vunpack.c.h.b16 %v430
    %v1208 = vunpack.c.l.b16 %v431
    %v1209 = vunpack.c.h.b16 %v431
    %v1210 = vunpack.c.l.b16 %v432
    %v1211 = vunpack.c.h.b16 %v432
    %v1212 = vunpack.c.l.b16 %v433
    %v1213 = vunpack.c.h.b16 %v433
    %v1214 = vunpack.c.l.b16 %v434
    %v1215 = vunpack.c.h.b16 %v434
    %v1216 = vunpack.c.l.b16 %v435
    %v1217 = vunpack.c.h.b16 %v435
    %v1218 = vunpack.c.l.b16 %v436
    %v1219 = vunpack.c.h.b16 %v436
    %v1220 = vunpack.c.l.b16 %v437
    %v1221 = vunpack.c.h.b16 %v437
    %v1222 = vunpack.c.l.b16 %v438
    %v1223 = vunpack.c.h.b16 %v438
    %v1224 = vunpack.c.l.b16 %v439
    %v1225 = vunpack.c.h.b16 %v439
    %v1226 = vunpack.c.l.b16 %v440
    %v1227 = vunpack.c.h.b16 %v440
    %v1228 = vunpack.c.l.b16 %v441
    %v1229 = vunpack.c.h.b16 %v441
    %v1230 = vunpack.c.l.b16 %v442
    %v1231 = vunpack.c.h.b16 %v442
    %v1232 = vunpack.c.l.b16 %v443
    %v1233 = vunpack.c.h.b16 %v443
    %v1234 = vunpack.c.l.b16 %v444
    %v1235 = vunpack.c.h.b16 %v444
    %v1236 = vunpack.c.l.b16 %v445
    %v1237 = vunpack.c.h.b16 %v445
    %v1238 = vunpack.c.l.b16 %v446
    %v1239 = vunpack.c.h.b16 %v446
    %v1240 = vunpack.c.l.b16 %v447
    %v1241 = vunpack.c.h.b16 %v447
    %v1242 = vunpack.c.l.b16 %v448
    %v1243 = vunpack.c.h.b16 %v448
    %v1244 = vunpack.c.l.b16 %v449
    %v1245 = vunpack.c.h.b16 %v449
    %v1246 = vunpack.c.l.b16 %v450
    %v1247 = vunpack.c.h.b16 %v450
    %v1248 = vunpack.c.l.b16 %v451
    %v1249 = vunpack.c.h.b16 %v451
    %v1250 = vunpack.c.l.b16 %v452
    %v1251 = vunpack.c.h.b16 %v452
    %v1252 = vunpack.c.l.b16 %v453
    %v1253 = vunpack.c.h.b16 %v453
    %v1254 = vunpack.c.l.b16 %v454
    %v1255 = vunpack.c.h.b16 %v454
    %v1256 = vunpack.c.l.b16 %v455
    %v1257 = vunpack.c.h.b16 %v455
    %v1258 = vunpack.c.l.b16 %v456
    %v1259 = vunpack.c.h.b16 %v456
    %v1260 = vunpack.c.l.b16 %v457
    %v1261 = vunpack.c.h.b16 %v457
    %v1262 = vunpack.c.l.b16 %v458
    %v1263 = vunpack.c.h.b16 %v458
    %v1264 = vunpack.c.l.b16 %v459
    %v1265 = vunpack.c.h.b16 %v459
    %v1266 = vunpack.c.l.b16 %v460
    %v1267 = vunpack.c.h.b16 %v460
    %v1268 = vunpack.c.l.b16 %v461
    %v1269 = vunpack.c.h.b16 %v461
    %v1270 = vunpack.c.l.b16 %v462
    %v1271 = vunpack.c.h.b16 %v462
    %v1272 = vunpack.c.l.b16 %v463
    %v1273 = vunpack.c.h.b16 %v463
    %v1274 = vunpack.c.l.b16 %v464
    %v1275 = vunpack.c.h.b16 %v464
    %v1276 = vunpack.c.l.b16 %v465
    %v1277 = vunpack.c.h.b16 %v465
    %v1278 = vunpack.c.l.b16 %v466
    %v1279 = vunpack.c.h.b16 %v466
    %v1280 = vunpack.c.l.b16 %v467
    %v1281 = vunpack.c.h.b16 %v467
    %v1282 = vunpack.c.l.b16 %v468
    %v1283 = vunpack.c.h.b16 %v468
    %v1284 = vunpack.c.l.b16 %v469
    %v1285 = vunpack.c.h.b16 %v469
    %v1286 = vunpack.c.l.b16 %v470
    %v1287 = vunpack.c.h.b16 %v470
    %v1288 = vunpack.c.l.b16 %v471
    %v1289 = vunpack.c.h.b16 %v471
    %v1290 = vunpack.c.l.b16 %v472
    %v1291 = vunpack.c.h.b16 %v472
    %v1292 = vunpack.c.l.b16 %v473
    %v1293 = vunpack.c.h.b16 %v473
    %v1294 = vunpack.c.l.b16 %v474
    %v1295 = vunpack.c.h.b16 %v474
    %v1296 = vunpack.c.l.b16 %v475
    %v1297 = vunpack.c.h.b16 %v475
    %v1298 = vunpack.c.l.b16 %v476
    %v1299 = vunpack.c.h.b16 %v476
    %v1300 = vunpack.c.l.b16 %v477
    %v1301 = vunpack.c.h.b16 %v477
    %v1302 = vunpack.c.l.b16 %v478
    %v1303 = vunpack.c.h.b16 %v478
    %v1304 = vunpack.c.l.b16 %v479
    %v1305 = vunpack.c.h.b16 %v479
    %v1306 = vunpack.c.l.b16 %v480
    %v1307 = vunpack.c.h.b16 %v480
    %v1308 = vunpack.c.l.b16 %v481
    %v1309 = vunpack.c.h.b16 %v481
    %v1310 = vunpack.c.l.b16 %v482
    %v1311 = vunpack.c.h.b16 %v482
    %v1312 = vunpack.c.l.b16 %v483
    %v1313 = vunpack.c.h.b16 %v483
    %v1314 = vunpack.c.l.b16 %v484
    %v1315 = vunpack.c.h.b16 %v484
    %v1316 = vunpack.c.l.b16 %v485
    %v1317 = vunpack.c.h.b16 %v485
    %v1318 = vunpack.c.l.b16 %v486
    %v1319 = vunpack.c.h.b16 %v486
    %v1320 = vunpack.c.l.b16 %v487
    %v1321 = vunpack.c.h.b16 %v487
    %v1322 = vunpack.c.l.b16 %v488
    %v1323 = vunpack.c.h.b16 %v488
    %v1324 = vunpack.c.l.b16 %v489
    %v1325 = vunpack.c.h.b16 %v489
    %v1326 = vunpack.c.l.b16 %v490
    %v1327 = vunpack.c.h.b16 %v490
    %v1328 = vunpack.c.l.b16 %v491
    %v1329 = vunpack.c.h.b16 %v491
    %v1330 = vunpack.c.l.b16 %v492
    %v1331 = vunpack.c.h.b16 %v492
    %v1332 = vunpack.c.l.b16 %v493
    %v1333 = vunpack.c.h.b16 %v493
    %v1334 = vunpack.c.l.b16 %v494
    %v1335 = vunpack.c.h.b16 %v494
    %v1336 = vunpack.c.l.b16 %v495
    %v1337 = vunpack.c.h.b16 %v495
    %v1338 = vunpack.c.l.b16 %v496
    %v1339 = vunpack.c.h.b16 %v496
    %v1340 = vunpack.c.l.b16 %v497
    %v1341 = vunpack.c.h.b16 %v497
    %v1342 = vunpack.c.l.b16 %v498
    %v1343 = vunpack.c.h.b16 %v498
    %v1344 = vunpack.c.l.b16 %v499
    %v1345 = vunpack.c.h.b16 %v499
    %v1346 = vunpack.c.l.b16 %v500
    %v1347 = vunpack.c.h.b16 %v500
    %v1348 = vunpack.c.l.b16 %v501
    %v1349 = vunpack.c.h.b16 %v501
    %v1350 = vunpack.c.l.b16 %v502
    %v1351 = vunpack.c.h.b16 %v502
    %v1352 = vunpack.c.l.b16 %v503
    %v1353 = vunpack.c.h.b16 %v503
    %v1354 = vunpack.c.l.b16 %v504
    %v1355 = vunpack.c.h.b16 %v504
    %v1356 = vunpack.c.l.b16 %v505
    %v1357 = vunpack.c.h.b16 %v505
    %v1358 = vunpack.c.l.b16 %v506
    %v1359 = vunpack.c.h.b16 %v506
    %v1360 = vunpack.c.l.b16 %v507
    %v1361 = vunpack.c.h.b16 %v507
    %v1362 = vunpack.c.l.b16 %v508
    %v1363 = vunpack.c.h.b16 %v508
    %v1364 = vunpack.c.l.b16 %v509
    %v1365 = vunpack.c.h.b16 %v509
    %v1366 = vunpack.c.l.b16 %v510
    %v1367 = vunpack.c.h.b16 %v510
    %v1368 = vunpack.c.l.b16 %v511
    %v1369 = vunpack.c.h.b16 %v511
    %v1370 = vunpack.c.l.b16 %v512
    %v1371 = vunpack.c.h.b16 %v512
    %v1372 = vunpack.c.l.b16 %v513
    %v1373 = vunpack.c.h.b16 %v513
    %v1374 = vunpack.c.l.b16 %v514
    %v1375 = vunpack.c.h.b16 %v514
    %v1376 = vunpack.c.l.b16 %v515
    %v1377 = vunpack.c.h.b16 %v515
    %v1378 = vunpack.c.l.b16 %v516
    %v1379 = vunpack.c.h.b16 %v516
    %v1380 = vunpack.c.l.b16 %v517
    %v1381 = vunpack.c.h.b16 %v517
    %v1382 = vunpack.c.l.b16 %v518
    %v1383 = vunpack.c.h.b16 %v518
    %v1384 = vunpack.c.l.b16 %v519
    %v1385 = vunpack.c.h.b16 %v519
    %v1386 = vunpack.c.l.b16 %v520
    %v1387 = vunpack.c.h.b16 %v520
    %v1388 = vunpack.c.l.b16 %v521
    %v1389 = vunpack.c.h.b16 %v521
    %v1390 = vunpack.c.l.b16 %v522
    %v1391 = vunpack.c.h.b16 %v522
    %v1392 = vunpack.c.l.b16 %v523
    %v1393 = vunpack.c.h.b16 %v523
    %v1394 = vunpack.c.l.b16 %v524
    %v1395 = vunpack.c.h.b16 %v524
    %v1396 = vunpack.c.l.b16 %v525
    %v1397 = vunpack.c.h.b16 %v525
    %v1398 = vunpack.c.l.b16 %v526
    %v1399 = vunpack.c.h.b16 %v526
    %v1400 = vunpack.c.l.b16 %v527
    %v1401 = vunpack.c.h.b16 %v527
    %v1402 = vunpack.c.l.b16 %v528
    %v1403 = vunpack.c.h.b16 %v528
    %v1404 = vunpack.c.l.b16 %v529
    %v1405 = vunpack.c.h.b16 %v529
    %v1406 = vunpack.c.l.b16 %v530
    %v1407 = vunpack.c.h.b16 %v530
    %v1408 = vunpack.c.l.b16 %v531
    %v1409 = vunpack.c.h.b16 %v531
    %v1410 = vunpack.c.l.b16 %v532
    %v1411 = vunpack.c.h.b16 %v532
    %v1412 = vunpack.c.l.b16 %v533
    %v1413 = vunpack.c.h.b16 %v533
    %v1414 = vunpack.c.l.b16 %v534
    %v1415 = vunpack.c.h.b16 %v534
    %v1416 = vunpack.c.l.b16 %v535
    %v1417 = vunpack.c.h.b16 %v535
    %v1418 = vunpack.c.l.b16 %v536
    %v1419 = vunpack.c.h.b16 %v536
    %v1420 = vunpack.c.l.b16 %v537
    %v1421 = vunpack.c.h.b16 %v537
    %v1422 = vunpack.c.l.b16 %v538
    %v1423 = vunpack.c.h.b16 %v538
    %v1424 = vunpack.c.l.b16 %v539
    %v1425 = vunpack.c.h.b16 %v539
    %v1426 = vunpack.c.l.b16 %v540
    %v1427 = vunpack.c.h.b16 %v540
    %v1428 = vunpack.c.l.b16 %v541
    %v1429 = vunpack.c.h.b16 %v541
    %v1430 = vunpack.c.l.b16 %v542
    %v1431 = vunpack.c.h.b16 %v542
    %v1432 = vunpack.c.l.b16 %v543
    %v1433 = vunpack.c.h.b16 %v543
    %v1434 = vunpack.c.l.b16 %v544
    %v1435 = vunpack.c.h.b16 %v544
    %v1436 = vunpack.c.l.b16 %v545
    %v1437 = vunpack.c.h.b16 %v545
    %v1438 = vunpack.c.l.b16 %v546
    %v1439 = vunpack.c.h.b16 %v546
    %v1440 = vunpack.c.l.b16 %v547
    %v1441 = vunpack.c.h.b16 %v547
    %v1442 = vunpack.c.l.b16 %v548
    %v1443 = vunpack.c.h.b16 %v548
    %v1444 = vunpack.c.l.b16 %v549
    %v1445 = vunpack.c.h.b16 %v549
    %v1446 = vunpack.c.l.b16 %v550
    %v1447 = vunpack.c.h.b16 %v550
    %v1448 = vunpack.c.l.b16 %v551
    %v1449 = vunpack.c.h.b16 %v551
    %v1450 = vunpack.c.l.b16 %v552
    %v1451 = vunpack.c.h.b16 %v552
    %v1452 = vunpack.c.l.b16 %v553
    %v1453 = vunpack.c.h.b16 %v553
    %v1454 = vunpack.c.l.b16 %v554
    %v1455 = vunpack.c.h.b16 %v554
    %v1456 = vunpack.c.l.b16 %v555
    %v1457 = vunpack.c.h.b16 %v555
    %v1458 = vunpack.c.l.b16 %v556
    %v1459 = vunpack.c.h.b16 %v556
    %v1460 = vunpack.c.l.b16 %v557
    %v1461 = vunpack.c.h.b16 %v557
    %v1462 = vunpack.c.l.b16 %v558
    %v1463 = vunpack.c.h.b16 %v558
    %v1464 = vunpack.c.l.b16 %v559
    %v1465 = vunpack.c.h.b16 %v559
    %v1466 = vunpack.c.l.b16 %v560
    %v1467 = vunpack.c.h.b16 %v560
    %v1468 = vunpack.c.l.b16 %v561
    %v1469 = vunpack.c.h.b16 %v561
    %v1470 = vunpack.c.l.b16 %v562
    %v1471 = vunpack.c.h.b16 %v562
    %v1472 = vunpack.c.l.b16 %v563
    %v1473 = vunpack.c.h.b16 %v563
    %v1474 = vunpack.c.l.b16 %v564
    %v1475 = vunpack.c.h.b16 %v564
    %v1476 = vunpack.c.l.b16 %v565
    %v1477 = vunpack.c.h.b16 %v565
    %v1478 = vunpack.c.l.b16 %v566
    %v1479 = vunpack.c.h.b16 %v566
    %v1480 = vunpack.c.l.b16 %v567
    %v1481 = vunpack.c.h.b16 %v567
    %v1482 = vunpack.c.l.b16 %v568
    %v1483 = vunpack.c.h.b16 %v568
    %v1484 = vunpack.c.l.b16 %v569
    %v1485 = vunpack.c.h.b16 %v569
    %v1486 = vunpack.c.l.b16 %v570
    %v1487 = vunpack.c.h.b16 %v570
    %v1488 = vunpack.c.l.b16 %v571
    %v1489 = vunpack.c.h.b16 %v571
    %v1490 = vunpack.c.l.b16 %v572
    %v1491 = vunpack.c.h.b16 %v572
    %v1492 = vunpack.c.l.b16 %v573
    %v1493 = vunpack.c.h.b16 %v573
    %v1494 = vunpack.c.l.b16 %v574
    %v1495 = vunpack.c.h.b16 %v574
    %v1496 = vunpack.c.l.b16 %v575
    %v1497 = vunpack.c.h.b16 %v575
    %v1498 = vunpack.c.l.b16 %v576
    %v1499 = vunpack.c.h.b16 %v576
    %v1500 = vunpack.c.l.b16 %v577
    %v1501 = vunpack.c.h.b16 %v577
    %v1502 = vunpack.c.l.b16 %v578
    %v1503 = vunpack.c.h.b16 %v578
    %v1504 = vunpack.c.l.b16 %v579
    %v1505 = vunpack.c.h.b16 %v579
    %v1506 = vunpack.c.l.b16 %v580
    %v1507 = vunpack.c.h.b16 %v580
    %v1508 = vunpack.c.l.b16 %v581
    %v1509 = vunpack.c.h.b16 %v581
    %v1510 = vunpack.c.l.b16 %v582
    %v1511 = vunpack.c.h.b16 %v582
    %v1512 = vunpack.c.l.b16 %v583
    %v1513 = vunpack.c.h.b16 %v583
    %v1514 = vunpack.c.l.b16 %v584
    %v1515 = vunpack.c.h.b16 %v584
    %v1516 = vunpack.c.l.b16 %v585
    %v1517 = vunpack.c.h.b16 %v585
    %v1518 = vunpack.c.l.b16 %v586
    %v1519 = vunpack.c.h.b16 %v586
    %v1520 = vunpack.c.l.b16 %v587
    %v1521 = vunpack.c.h.b16 %v587
    %v1522 = vunpack.c.l.b16 %v588
    %v1523 = vunpack.c.h.b16 %v588
    %v1524 = vunpack.c.l.b16 %v589
    %v1525 = vunpack.c.h.b16 %v589
    %v1526 = vunpack.c.l.b16 %v590
    %v1527 = vunpack.c.h.b16 %v590
    %v1528 = vunpack.c.l.b16 %v591
    %v1529 = vunpack.c.h.b16 %v591
    %v1530 = vunpack.c.l.b16 %v592
    %v1531 = vunpack.c.h.b16 %v592
    %v1532 = vunpack.c.l.b16 %v593
    %v1533 = vunpack.c.h.b16 %v593
    %v1534 = vunpack.c.l.b16 %v594
    %v1535 = vunpack.c.h.b16 %v594
    %v1536 = vunpack.c.l.b16 %v595
    %v1537 = vunpack.c.h.b16 %v595
    %v1538 = vunpack.c.l.b16 %v596
    %v1539 = vunpack.c.h.b16 %v596
    %v1540 = vunpack.c.l.b16 %v597
    %v1541 = vunpack.c.h.b16 %v597
    %v1542 = vunpack.c.l.b16 %v598
    %v1543 = vunpack.c.h.b16 %v598
    %v1544 = vunpack.c.l.b16 %v599
    %v1545 = vunpack.c.h.b16 %v599
    %v1546 = vunpack.c.l.b16 %v600
    %v1547 = vunpack.c.h.b16 %v600
    %v1548 = vunpack.c.l.b16 %v601
    %v1549 = vunpack.c.h.b16 %v601
    %v1550 = vunpack.c.l.b16 %v602
    %v1551 = vunpack.c.h.b16 %v602
    %v1552 = vunpack.c.l.b16 %v603
    %v1553 = vunpack.c.h.b16 %v603
    %v1554 = vunpack.c.l.b16 %v604
    %v1555 = vunpack.c.h.b16 %v604
    %v1556 = vunpack.c.l.b16 %v605
    %v1557 = vunpack.c.h.b16 %v605
    %v1558 = vunpack.c.l.b16 %v606
    %v1559 = vunpack.c.h.b16 %v606
    %v1560 = vunpack.c.l.b16 %v607
    %v1561 = vunpack.c.h.b16 %v607
    %v1562 = vunpack.c.l.b16 %v608
    %v1563 = vunpack.c.h.b16 %v608
    %v1564 = vunpack.c.l.b16 %v609
    %v1565 = vunpack.c.h.b16 %v609
    %v1566 = vpack.c.b16 %v992, %v978
    %v1567 = vpack.c.b16 %v993, %v979
    %v1568 = vpack.c.b16 %v994, %v980
    %v1569 = vpack.c.b16 %v995, %v981
    %v1570 = vpack.c.b16 %v996, %v982
    %v1571 = vpack.c.b16 %v997, %v983
    %v1572 = vpack.c.b16 %v998, %v984
    %v1573 = vpack.c.b16 %v999, %v985
    %v1574 = vpack.c.b16 %v1000, %v986
    %v1575 = vpack.c.b16 %v1001, %v987
    %v1576 = vpack.c.b16 %v1002, %v988
    %v1577 = vpack.c.b16 %v1003, %v989
    %v1578 = vpack.c.b16 %v1004, %v990
    %v1579 = vpack.c.b16 %v1005, %v991
    %v1580 = vpack.c.b16 %v1020, %v1006
    %v1581 = vpack.c.b16 %v1021, %v1007
    %v1582 = vpack.c.b16 %v1022, %v1008
    %v1583 = vpack.c.b16 %v1023, %v1009
    %v1584 = vpack.c.b16 %v1024, %v1010
    %v1585 = vpack.c.b16 %v1025, %v1011
    %v1586 = vpack.c.b16 %v1026, %v1012
    %v1587 = vpack.c.b16 %v1027, %v1013
    %v1588 = vpack.c.b16 %v1028, %v1014
    %v1589 = vpack.c.b16 %v1029, %v1015
    %v1590 = vpack.c.b16 %v1030, %v1016
    %v1591 = vpack.c.b16 %v1031, %v1017
    %v1592 = vpack.c.b16 %v1032, %v1018
    %v1593 = vpack.c.b16 %v1033, %v1019
    %v1594 = vpack.c.b16 %v1048, %v1034
    %v1595 = vpack.c.b16 %v1049, %v1035
    %v1596 = vpack.c.b16 %v1050, %v1036
    %v1597 = vpack.c.b16 %v1051, %v1037
    %v1598 = vpack.c.b16 %v1052, %v1038
    %v1599 = vpack.c.b16 %v1053, %v1039
    %v1600 = vpack.c.b16 %v1054, %v1040
    %v1601 = vpack.c.b16 %v1055, %v1041
    %v1602 = vpack.c.b16 %v1056, %v1042
    %v1603 = vpack.c.b16 %v1057, %v1043
    %v1604 = vpack.c.b16 %v1058, %v1044
    %v1605 = vpack.c.b16 %v1059, %v1045
    %v1606 = vpack.c.b16 %v1060, %v1046
    %v1607 = vpack.c.b16 %v1061, %v1047
    %v1608 = vpack.c.b16 %v1076, %v1062
    %v1609 = vpack.c.b16 %v1077, %v1063
    %v1610 = vpack.c.b16 %v1078, %v1064
    %v1611 = vpack.c.b16 %v1079, %v1065
    %v1612 = vpack.c.b16 %v1080, %v1066
    %v1613 = vpack.c.b16 %v1081, %v1067
    %v1614 = vpack.c.b16 %v1082, %v1068
    %v1615 = vpack.c.b16 %v1083, %v1069
    %v1616 = vpack.c.b16 %v1084, %v1070
    %v1617 = vpack.c.b16 %v1085, %v1071
    %v1618 = vpack.c.b16 %v1086, %v1072
    %v1619 = vpack.c.b16 %v1087, %v1073
    %v1620 = vpack.c.b16 %v1088, %v1074
    %v1621 = vpack.c.b16 %v1089, %v1075
    %v1622 = vpack.c.b16 %v1104, %v1090
    %v1623 = vpack.c.b16 %v1105, %v1091
    %v1624 = vpack.c.b16 %v1106, %v1092
    %v1625 = vpack.c.b16 %v1107, %v1093
    %v1626 = vpack.c.b16 %v1108, %v1094
    %v1627 = vpack.c.b16 %v1109, %v1095
    %v1628 = vpack.c.b16 %v1110, %v1096
    %v1629 = vpack.c.b16 %v1111, %v1097
    %v1630 = vpack.c.b16 %v1112, %v1098
    %v1631 = vpack.c.b16 %v1113, %v1099
    %v1632 = vpack.c.b16 %v1114, %v1100
    %v1633 = vpack.c.b16 %v1115, %v1101
    %v1634 = vpack.c.b16 %v1116, %v1102
    %v1635 = vpack.c.b16 %v1117, %v1103
    %v1636 = vpack.c.b16 %v1132, %v1118
    %v1637 = vpack.c.b16 %v1133, %v1119
    %v1638 = vpack.c.b16 %v1134, %v1120
    %v1639 = vpack.c.b16 %v1135, %v1121
    %v1640 = vpack.c.b16 %v1136, %v1122
    %v1641 = vpack.c.b16 %v1137, %v1123
    %v1642 = vpack.c.b16 %v1138, %v1124
    %v1643 = vpack.c.b16 %v1139, %v1125
    %v1644 = vpack.c.b16 %v1140, %v1126
    %v1645 = vpack.c.b16 %v1141, %v1127
    %v1646 = vpack.c.b16 %v1142, %v1128
    %v1647 = vpack.c.b16 %v1143, %v1129
    %v1648 = vpack.c.b16 %v1144, %v1130
    %v1649 = vpack.c.b16 %v1145, %v1131
    %v1650 = vpack.c.b16 %v1160, %v1146
    %v1651 = vpack.c.b16 %v1161, %v1147
    %v1652 = vpack.c.b16 %v1162, %v1148
    %v1653 = vpack.c.b16 %v1163, %v1149
    %v1654 = vpack.c.b16 %v1164, %v1150
    %v1655 = vpack.c.b16 %v1165, %v1151
    %v1656 = vpack.c.b16 %v1166, %v1152
    %v1657 = vpack.c.b16 %v1167, %v1153
    %v1658 = vpack.c.b16 %v1168, %v1154
    %v1659 = vpack.c.b16 %v1169, %v1155
    %v1660 = vpack.c.b16 %v1170, %v1156
    %v1661 = vpack.c.b16 %v1171, %v1157
    %v1662 = vpack.c.b16 %v1172, %v1158
    %v1663 = vpack.c.b16 %v1173, %v1159
    %v1664 = vpack.c.b16 %v1188, %v1174
    %v1665 = vpack.c.b16 %v1189, %v1175
    %v1666 = vpack.c.b16 %v1190, %v1176
    %v1667 = vpack.c.b16 %v1191, %v1177
    %v1668 = vpack.c.b16 %v1192, %v1178
    %v1669 = vpack.c.b16 %v1193, %v1179
    %v1670 = vpack.c.b16 %v1194, %v1180
    %v1671 = vpack.c.b16 %v1195, %v1181
    %v1672 = vpack.c.b16 %v1196, %v1182
    %v1673 = vpack.c.b16 %v1197, %v1183
    %v1674 = vpack.c.b16 %v1198, %v1184
    %v1675 = vpack.c.b16 %v1199, %v1185
    %v1676 = vpack.c.b16 %v1200, %v1186
    %v1677 = vpack.c.b16 %v1201, %v1187
    %v1678 = vpack.c.b16 %v1216, %v1202
    %v1679 = vpack.c.b16 %v1217, %v1203
    %v1680 = vpack.c.b16 %v1218, %v1204
    %v1681 = vpack.c.b16 %v1219, %v1205
    %v1682 = vpack.c.b16 %v1220, %v1206
    %v1683 = vpack.c.b16 %v1221, %v1207
    %v1684 = vpack.c.b16 %v1222, %v1208
    %v1685 = vpack.c.b16 %v1223, %v1209
    %v1686 = vpack.c.b16 %v1224, %v1210
    %v1687 = vpack.c.b16 %v1225, %v1211
    %v1688 = vpack.c.b16 %v1226, %v1212
    %v1689 = vpack.c.b16 %v1227, %v1213
    %v1690 = vpack.c.b16 %v1228, %v1214
    %v1691 = vpack.c.b16 %v1229, %v1215
    %v1692 = vpack.c.b16 %v1244, %v1230
    %v1693 = vpack.c.b16 %v1245, %v1231
    %v1694 = vpack.c.b16 %v1246, %v1232
    %v1695 = vpack.c.b16 %v1247, %v1233
    %v1696 = vpack.c.b16 %v1248, %v1234
    %v1697 = vpack.c.b16 %v1249, %v1235
    %v1698 = vpack.c.b16 %v1250, %v1236
    %v1699 = vpack.c.b16 %v1251, %v1237
    %v1700 = vpack.c.b16 %v1252, %v1238
    %v1701 = vpack.c.b16 %v1253, %v1239
    %v1702 = vpack.c.b16 %v1254, %v1240
    %v1703 = vpack.c.b16 %v1255, %v1241
    %v1704 = vpack.c.b16 %v1256, %v1242
    %v1705 = vpack.c.b16 %v1257, %v1243
    %v1706 = vpack.c.b16 %v1272, %v1258
    %v1707 = vpack.c.b16 %v1273, %v1259
    %v1708 = vpack.c.b16 %v1274, %v1260
    %v1709 = vpack.c.b16 %v1275, %v1261
    %v1710 = vpack.c.b16 %v1276, %v1262
    %v1711 = vpack.c.b16 %v1277, %v1263
    %v1712 = vpack.c.b16 %v1278, %v1264
    %v1713 = vpack.c.b16 %v1279, %v1265
    %v1714 = vpack.c.b16 %v1280, %v1266
    %v1715 = vpack.c.b16 %v1281, %v1267
    %v1716 = vpack.c.b16 %v1282, %v1268
    %v1717 = vpack.c.b16 %v1283, %v1269
    %v1718 = vpack.c.b16 %v1284, %v1270
    %v1719 = vpack.c.b16 %v1285, %v1271
    %v1720 = vpack.c.b16 %v1300, %v1286
    %v1721 = vpack.c.b16 %v1301, %v1287
    %v1722 = vpack.c.b16 %v1302, %v1288
    %v1723 = vpack.c.b16 %v1303, %v1289
    %v1724 = vpack.c.b16 %v1304, %v1290
    %v1725 = vpack.c.b16 %v1305, %v1291
    %v1726 = vpack.c.b16 %v1306, %v1292
    %v1727 = vpack.c.b16 %v1307, %v1293
    %v1728 = vpack.c.b16 %v1308, %v1294
    %v1729 = vpack.c.b16 %v1309, %v1295
    %v1730 = vpack.c.b16 %v1310, %v1296
    %v1731 = vpack.c.b16 %v1311, %v1297
    %v1732 = vpack.c.b16 %v1312, %v1298
    %v1733 = vpack.c.b16 %v1313, %v1299
    %v1734 = vpack.c.b16 %v1328, %v1314
    %v1735 = vpack.c.b16 %v1329, %v1315
    %v1736 = vpack.c.b16 %v1330, %v1316
    %v1737 = vpack.c.b16 %v1331, %v1317
    %v1738 = vpack.c.b16 %v1332, %v1318
    %v1739 = vpack.c.b16 %v1333, %v1319
    %v1740 = vpack.c.b16 %v1334, %v1320
    %v1741 = vpack.c.b16 %v1335, %v1321
    %v1742 = vpack.c.b16 %v1336, %v1322
    %v1743 = vpack.c.b16 %v1337, %v1323
    %v1744 = vpack.c.b16 %v1338, %v1324
    %v1745 = vpack.c.b16 %v1339, %v1325
    %v1746 = vpack.c.b16 %v1340, %v1326
    %v1747 = vpack.c.b16 %v1341, %v1327
    %v1748 = vpack.c.b16 %v1356, %v1342
    %v1749 = vpack.c.b16 %v1357, %v1343
    %v1750 = vpack.c.b16 %v1358, %v1344
    %v1751 = vpack.c.b16 %v1359, %v1345
    %v1752 = vpack.c.b16 %v1360, %v1346
    %v1753 = vpack.c.b16 %v1361, %v1347
    %v1754 = vpack.c.b16 %v1362, %v1348
    %v1755 = vpack.c.b16 %v1363, %v1349
    %v1756 = vpack.c.b16 %v1364, %v1350
    %v1757 = vpack.c.b16 %v1365, %v1351
    %v1758 = vpack.c.b16 %v1366, %v1352
    %v1759 = vpack.c.b16 %v1367, %v1353
    %v1760 = vpack.c.b16 %v1368, %v1354
    %v1761 = vpack.c.b16 %v1369, %v1355
    %v1762 = vpack.c.b16 %v1384, %v1370
    %v1763 = vpack.c.b16 %v1385, %v1371
    %v1764 = vpack.c.b16 %v1386, %v1372
    %v1765 = vpack.c.b16 %v1387, %v1373
    %v1766 = vpack.c.b16 %v1388, %v1374
    %v1767 = vpack.c.b16 %v1389, %v1375
    %v1768 = vpack.c.b16 %v1390, %v1376
    %v1769 = vpack.c.b16 %v1391, %v1377
    %v1770 = vpack.c.b16 %v1392, %v1378
    %v1771 = vpack.c.b16 %v1393, %v1379
    %v1772 = vpack.c.b16 %v1394, %v1380
    %v1773 = vpack.c.b16 %v1395, %v1381
    %v1774 = vpack.c.b16 %v1396, %v1382
    %v1775 = vpack.c.b16 %v1397, %v1383
    %v1776 = vpack.c.b16 %v1412, %v1398
    %v1777 = vpack.c.b16 %v1413, %v1399
    %v1778 = vpack.c.b16 %v1414, %v1400
    %v1779 = vpack.c.b16 %v1415, %v1401
    %v1780 = vpack.c.b16 %v1416, %v1402
    %v1781 = vpack.c.b16 %v1417, %v1403
    %v1782 = vpack.c.b16 %v1418, %v1404
    %v1783 = vpack.c.b16 %v1419, %v1405
    %v1784 = vpack.c.b16 %v1420, %v1406
    %v1785 = vpack.c.b16 %v1421, %v1407
    %v1786 = vpack.c.b16 %v1422, %v1408
    %v1787 = vpack.c.b16 %v1423, %v1409
    %v1788 = vpack.c.b16 %v1424, %v1410
    %v1789 = vpack.c.b16 %v1425, %v1411
    %v1790 = vpack.c.b16 %v1440, %v1426
    %v1791 = vpack.c.b16 %v1441, %v1427
    %v1792 = vpack.c.b16 %v1442, %v1428
    %v1793 = vpack.c.b16 %v1443, %v1429
    %v1794 = vpack.c.b16 %v1444, %v1430
    %v1795 = vpack.c.b16 %v1445, %v1431
    %v1796 = vpack.c.b16 %v1446, %v1432
    %v1797 = vpack.c.b16 %v1447, %v1433
    %v1798 = vpack.c.b16 %v1448, %v1434
    %v1799 = vpack.c.b16 %v1449, %v1435
    %v1800 = vpack.c.b16 %v1450, %v1436
    %v1801 = vpack.c.b16 %v1451, %v1437
    %v1802 = vpack.c.b16 %v1452, %v1438
    %v1803 = vpack.c.b16 %v1453, %v1439
    %v1804 = vpack.c.b16 %v1468, %v1454
    %v1805 = vpack.c.b16 %v1469, %v1455
    %v1806 = vpack.c.b16 %v1470, %v1456
    %v1807 = vpack.c.b16 %v1471, %v1457
    %v1808 = vpack.c.b16 %v1472, %v1458
    %v1809 = vpack.c.b16 %v1473, %v1459
    %v1810 = vpack.c.b16 %v1474, %v1460
    %v1811 = vpack.c.b16 %v1475, %v1461
    %v1812 = vpack.c.b16 %v1476, %v1462
    %v1813 = vpack.c.b16 %v1477, %v1463
    %v1814 = vpack.c.b16 %v1478, %v1464
    %v1815 = vpack.c.b16 %v1479, %v1465
    %v1816 = vpack.c.b16 %v1480, %v1466
    %v1817 = vpack.c.b16 %v1481, %v1467
    %v1818 = vpack.c.b16 %v1496, %v1482
    %v1819 = vpack.c.b16 %v1497, %v1483
    %v1820 = vpack.c.b16 %v1498, %v1484
    %v1821 = vpack.c.b16 %v1499, %v1485
    %v1822 = vpack.c.b16 %v1500, %v1486
    %v1823 = vpack.c.b16 %v1501, %v1487
    %v1824 = vpack.c.b16 %v1502, %v1488
    %v1825 = vpack.c.b16 %v1503, %v1489
    %v1826 = vpack.c.b16 %v1504, %v1490
    %v1827 = vpack.c.b16 %v1505, %v1491
    %v1828 = vpack.c.b16 %v1506, %v1492
    %v1829 = vpack.c.b16 %v1507, %v1493
    %v1830 = vpack.c.b16 %v1508, %v1494
    %v1831 = vpack.c.b16 %v1509, %v1495
    %v1832 = vpack.c.b16 %v1524, %v1510
    %v1833 = vpack.c.b16 %v1525, %v1511
    %v1834 = vpack.c.b16 %v1526, %v1512
    %v1835 = vpack.c.b16 %v1527, %v1513
    %v1836 = vpack.c.b16 %v1528, %v1514
    %v1837 = vpack.c.b16 %v1529, %v1515
    %v1838 = vpack.c.b16 %v1530, %v1516
    %v1839 = vpack.c.b16 %v1531, %v1517
    %v1840 = vpack.c.b16 %v1532, %v1518
    %v1841 = vpack.c.b16 %v1533, %v1519
    %v1842 = vpack.c.b16 %v1534, %v1520
    %v1843 = vpack.c.b16 %v1535, %v1521
    %v1844 = vpack.c.b16 %v1536, %v1522
    %v1845 = vpack.c.b16 %v1537, %v1523
    %v1846 = vpack.c.b16 %v1552, %v1538
    %v1847 = vpack.c.b16 %v1553, %v1539
    %v1848 = vpack.c.b16 %v1554, %v1540
    %v1849 = vpack.c.b16 %v1555, %v1541
    %v1850 = vpack.c.b16 %v1556, %v1542
    %v1851 = vpack.c.b16 %v1557, %v1543
    %v1852 = vpack.c.b16 %v1558, %v1544
    %v1853 = vpack.c.b16 %v1559, %v1545
    %v1854 = vpack.c.b16 %v1560, %v1546
    %v1855 = vpack.c.b16 %v1561, %v1547
    %v1856 = vpack.c.b16 %v1562, %v1548
    %v1857 = vpack.c.b16 %v1563, %v1549
    %v1858 = vpack.c.b16 %v1564, %v1550
    %v1859 = vpack.c.b16 %v1565, %v1551
    %vm2154 = vcmask 654336
    %v2155 = vsel %vm2154, %v279, 0
    %v2157 = vsel %vm2154, %v281, 0
    %v2159 = vsel %vm2154, %v283, 0
    %v2161 = vsel %vm2154, %v285, 0
    %2163 = vmatprep.subr.bf16.mxu0 %v1567
    %2164 = vmatpush1.bf16.msra.mxu0 %v1566
    %2165 = vmatprep.subr.bf16.mxu0 %v1581
    %2166 = vmatpush1.bf16.msra.mxu0 %v1580
    %2167 = vmatprep.subr.bf16.mxu0 %v1595
    %2168 = vmatpush1.bf16.msra.mxu0 %v1594
    %2169 = vmatprep.subr.bf16.mxu0 %v1609
    %2170 = vmatpush1.bf16.msra.mxu0 %v1608
    %2171 = vmatprep.subr.bf16.mxu0 %v1623
    %2172 = vmatpush1.bf16.msra.mxu0 %v1622
    %2173 = vmatprep.subr.bf16.mxu0 %v1637
    %2174 = vmatpush1.bf16.msra.mxu0 %v1636
    %2175 = vmatprep.subr.bf16.mxu0 %v1651
    %2176 = vmatpush1.bf16.msra.mxu0 %v1650
    %2177 = vmatprep.subr.bf16.mxu0 %v1665
    %2178 = vmatpush1.bf16.msra.mxu0 %v1664
    %2179 = vmatprep.subr.bf16.mxu0 %v1679
    %2180 = vmatpush1.bf16.msra.mxu0 %v1678
    %2181 = vmatprep.subr.bf16.mxu0 %v1693
    %2182 = vmatpush1.bf16.msra.mxu0 %v1692
    %2183 = vmatprep.subr.bf16.mxu0 %v1707
    %2184 = vmatpush1.bf16.msra.mxu0 %v1706
    %2185 = vmatprep.subr.bf16.mxu0 %v1721
    %2186 = vmatpush1.bf16.msra.mxu0 %v1720
    %2187 = vmatprep.subr.bf16.mxu0 %v1735
    %2188 = vmatpush1.bf16.msra.mxu0 %v1734
    %2189 = vmatprep.subr.bf16.mxu0 %v1749
    %2190 = vmatpush1.bf16.msra.mxu0 %v1748
    %2191 = vmatprep.subr.bf16.mxu0 %v1763
    %2192 = vmatpush1.bf16.msra.mxu0 %v1762
    %2193 = vmatprep.subr.bf16.mxu0 %v1777
    %2194 = vmatpush1.bf16.msra.mxu0 %v1776
    %2195 = vmatprep.mubr.bf16.mxu0 %v305
    %2196 = vmatmul.mubr.bf16.gmra.mrb[0].mxu0 %v289
    %v2197 = vpop.f32.mrb[0].mxu0
    %v2198 = vadd.f32 %v617, %v2197
    %v2199 = vpop.f32.mrb[0].mxu0
    %v2200 = vadd.f32 %v621, %v2199
    %v2201 = vpop.f32.mrb[0].mxu0
    %v2202 = vadd.f32 %v617, %v2201
    %v2203 = vpop.f32.mrb[0].mxu0
    %v2204 = vadd.f32 %v621, %v2203
    %2205 = vmatprep.mubr.bf16.mxu0 %v308
    %2206 = vmatmul.mubr.bf16.gmra.mrb[0].mxu0 %v293
    %v2207 = vpop.f32.mrb[0].mxu0
    %v2208 = vadd.f32 %v617, %v2207
    %v2209 = vpop.f32.mrb[0].mxu0
    %v2210 = vadd.f32 %v621, %v2209
    %v2211 = vpop.f32.mrb[0].mxu0
    %v2212 = vadd.f32 %v617, %v2211
    %v2213 = vpop.f32.mrb[0].mxu0
    %v2214 = vadd.f32 %v621, %v2213
    %2215 = vmatprep.mubr.bf16.mxu0 %v311
    %2216 = vmatmul.mubr.bf16.gmra.mrb[0].mxu0 %v297
    %v2217 = vpop.f32.mrb[0].mxu0
    %v2218 = vadd.f32 %v617, %v2217
    %v2219 = vpop.f32.mrb[0].mxu0
    %v2220 = vadd.f32 %v621, %v2219
    %v2221 = vpop.f32.mrb[0].mxu0
    %v2222 = vadd.f32 %v617, %v2221
    %v2223 = vpop.f32.mrb[0].mxu0
    %v2224 = vadd.f32 %v621, %v2223
    %2225 = vmatprep.mubr.bf16.mxu0 %v314
    %2226 = vmatmul.mubr.bf16.gmra.mrb[0].mxu0 %v301
    %v2227 = vpop.f32.mrb[0].mxu0
    %v2228 = vadd.f32 %v617, %v2227
    %v2229 = vpop.f32.mrb[0].mxu0
    %v2230 = vadd.f32 %v621, %v2229
    %v2231 = vpop.f32.mrb[0].mxu0
    %v2232 = vpop.f32.mrb[0].mxu0
    %2233 = vdwg.mxu0
    %2234 = vmatprep.subr.bf16.mxu0 %v1791
    %2235 = vmatpush1.bf16.msra.mxu0 %v1790
    %2236 = vmatprep.subr.bf16.mxu0 %v1805
    %2237 = vmatpush1.bf16.msra.mxu0 %v1804
    %2238 = vmatprep.subr.bf16.mxu0 %v1819
    %2239 = vmatpush1.bf16.msra.mxu0 %v1818
    %2240 = vmatprep.subr.bf16.mxu0 %v1833
    %2241 = vmatpush1.bf16.msra.mxu0 %v1832
    %2242 = vmatprep.subr.bf16.mxu0 %v1847
    %2243 = vmatpush1.bf16.msra.mxu0 %v1846
    %2244 = vmatprep.subr.bf16.mxu0 0
    %2245 = vmatpush1.bf16.msra.mxu0 0
    %2246 = vmatprep.subr.bf16.mxu0 0
    %2247 = vmatpush1.bf16.msra.mxu0 0
    %2248 = vmatprep.subr.bf16.mxu0 0
    %2249 = vmatpush1.bf16.msra.mxu0 0
    %2250 = vmatprep.subr.bf16.mxu0 0
    %2251 = vmatpush1.bf16.msra.mxu0 0
    %2252 = vmatprep.subr.bf16.mxu0 0
    %2253 = vmatpush1.bf16.msra.mxu0 0
    %2254 = vmatprep.subr.bf16.mxu0 0
    %2255 = vmatpush1.bf16.msra.mxu0 0
    %2256 = vmatprep.subr.bf16.mxu0 0
    %2257 = vmatpush1.bf16.msra.mxu0 0
    %2258 = vmatprep.subr.bf16.mxu0 0
    %2259 = vmatpush1.bf16.msra.mxu0 0
    %2260 = vmatprep.subr.bf16.mxu0 0
    %2261 = vmatpush1.bf16.msra.mxu0 0
    %2262 = vmatprep.subr.bf16.mxu0 0
    %2263 = vmatpush1.bf16.msra.mxu0 0
    %2264 = vmatprep.subr.bf16.mxu0 0
    %2265 = vmatpush1.bf16.msra.mxu0 0
    %2266 = vmatprep.mubr.bf16.mxu0 0
    %2267 = vmatmul.mubr.bf16.gmra.mrb[0].mxu0 %v2155
    %v2268 = vpop.f32.mrb[0].mxu0
    %v2269 = vadd.f32 %v2198, %v2268
    %v2270 = vpop.f32.mrb[0].mxu0
    %v2271 = vadd.f32 %v2200, %v2270
    %v2272 = vpop.f32.mrb[0].mxu0
    %v2273 = vadd.f32 %v2202, %v2272
    %v2274 = vpop.f32.mrb[0].mxu0
    %v2275 = vadd.f32 %v2204, %v2274
    %2276 = vmatprep.mubr.bf16.mxu0 0
    %2277 = vmatmul.mubr.bf16.gmra.mrb[0].mxu0 %v2157
    %v2278 = vpop.f32.mrb[0].mxu0
    %v2279 = vadd.f32 %v2208, %v2278
    %v2280 = vpop.f32.mrb[0].mxu0
    %v2281 = vadd.f32 %v2210, %v2280
    %v2282 = vpop.f32.mrb[0].mxu0
    %v2283 = vadd.f32 %v2212, %v2282
    %v2284 = vpop.f32.mrb[0].mxu0
    %v2285 = vadd.f32 %v2214, %v2284
    %2286 = vmatprep.mubr.bf16.mxu0 0
    %2287 = vmatmul.mubr.bf16.gmra.mrb[0].mxu0 %v2159
    %v2288 = vpop.f32.mrb[0].mxu0
    %v2289 = vadd.f32 %v2218, %v2288
    %v2290 = vpop.f32.mrb[0].mxu0
    %v2291 = vadd.f32 %v2220, %v2290
    %v2292 = vpop.f32.mrb[0].mxu0
    %v2293 = vadd.f32 %v2222, %v2292
    %v2294 = vpop.f32.mrb[0].mxu0
    %v2295 = vadd.f32 %v2224, %v2294
    %2296 = vmatprep.mubr.bf16.mxu0 0
    %2297 = vmatmul.mubr.bf16.gmra.mrb[0].mxu0 %v2161
    %v2298 = vpop.f32.mrb[0].mxu0
    %v2299 = vadd.f32 %v2228, %v2298
    %v2300 = vpop.f32.mrb[0].mxu0
    %v2301 = vadd.f32 %v2230, %v2300
    %v2302 = vpop.f32.mrb[0].mxu0
    %v2303 = vpop.f32.mrb[0].mxu0
    %2304 = vdwg.mxu0
    %2305 = vmatprep.subr.bf16.mxu0 %v1569
    %2306 = vmatpush1.bf16.msra.mxu0 %v1568
    %2307 = vmatprep.subr.bf16.mxu0 %v1583
    %2308 = vmatpush1.bf16.msra.mxu0 %v1582
    %2309 = vmatprep.subr.bf16.mxu0 %v1597
    %2310 = vmatpush1.bf16.msra.mxu0 %v1596
    %2311 = vmatprep.subr.bf16.mxu0 %v1611
    %2312 = vmatpush1.bf16.msra.mxu0 %v1610
    %2313 = vmatprep.subr.bf16.mxu0 %v1625
    %2314 = vmatpush1.bf16.msra.mxu0 %v1624
    %2315 = vmatprep.subr.bf16.mxu0 %v1639
    %2316 = vmatpush1.bf16.msra.mxu0 %v1638
    %2317 = vmatprep.subr.bf16.mxu0 %v1653
    %2318 = vmatpush1.bf16.msra.mxu0 %v1652
    %2319 = vmatprep.subr.bf16.mxu0 %v1667
    %2320 = vmatpush1.bf16.msra.mxu0 %v1666
    %2321 = vmatprep.subr.bf16.mxu0 %v1681
    %2322 = vmatpush1.bf16.msra.mxu0 %v1680
    %2323 = vmatprep.subr.bf16.mxu0 %v1695
    %2324 = vmatpush1.bf16.msra.mxu0 %v1694
    %2325 = vmatprep.subr.bf16.mxu0 %v1709
    %2326 = vmatpush1.bf16.msra.mxu0 %v1708
    %2327 = vmatprep.subr.bf16.mxu0 %v1723
    %2328 = vmatpush1.bf16.msra.mxu0 %v1722
    %2329 = vmatprep.subr.bf16.mxu0 %v1737
    %2330 = vmatpush1.bf16.msra.mxu0 %v1736
    %2331 = vmatprep.subr.bf16.mxu0 %v1751
    %2332 = vmatpush1.bf16.msra.mxu0 %v1750
    %2333 = vmatprep.subr.bf16.mxu0 %v1765
    %2334 = vmatpush1.bf16.msra.mxu0 %v1764
    %2335 = vmatprep.subr.bf16.mxu0 %v1779
    %2336 = vmatpush1.bf16.msra.mxu0 %v1778
    %2337 = vmatprep.mubr.bf16.mxu0 %v305
    %2338 = vmatmul.mubr.bf16.gmra.mrb[0].mxu0 %v289
    %v2339 = vpop.f32.mrb[0].mxu0
    %v2340 = vadd.f32 %v625, %v2339
    %v2341 = vpop.f32.mrb[0].mxu0
    %v2342 = vadd.f32 %v629, %v2341
    %v2343 = vpop.f32.mrb[0].mxu0
    %v2344 = vadd.f32 %v625, %v2343
    %v2345 = vpop.f32.mrb[0].mxu0
    %v2346 = vadd.f32 %v629, %v2345
    %2347 = vmatprep.mubr.bf16.mxu0 %v308
    %2348 = vmatmul.mubr.bf16.gmra.mrb[0].mxu0 %v293
    %v2349 = vpop.f32.mrb[0].mxu0
    %v2350 = vadd.f32 %v625, %v2349
    %v2351 = vpop.f32.mrb[0].mxu0
    %v2352 = vadd.f32 %v629, %v2351
    %v2353 = vpop.f32.mrb[0].mxu0
    %v2354 = vadd.f32 %v625, %v2353
    %v2355 = vpop.f32.mrb[0].mxu0
    %v2356 = vadd.f32 %v629, %v2355
    %2357 = vmatprep.mubr.bf16.mxu0 %v311
    %2358 = vmatmul.mubr.bf16.gmra.mrb[0].mxu0 %v297
    %v2359 = vpop.f32.mrb[0].mxu0
    %v2360 = vadd.f32 %v625, %v2359
    %v2361 = vpop.f32.mrb[0].mxu0
    %v2362 = vadd.f32 %v629, %v2361
    %v2363 = vpop.f32.mrb[0].mxu0
    %v2364 = vadd.f32 %v625, %v2363
    %v2365 = vpop.f32.mrb[0].mxu0
    %v2366 = vadd.f32 %v629, %v2365
    %2367 = vmatprep.mubr.bf16.mxu0 %v314
    %2368 = vmatmul.mubr.bf16.gmra.mrb[0].mxu0 %v301
    %v2369 = vpop.f32.mrb[0].mxu0
    %v2370 = vadd.f32 %v625, %v2369
    %v2371 = vpop.f32.mrb[0].mxu0
    %v2372 = vadd.f32 %v629, %v2371
    %v2373 = vpop.f32.mrb[0].mxu0
    %v2374 = vpop.f32.mrb[0].mxu0
    %2375 = vdwg.mxu0
    %2376 = vmatprep.subr.bf16.mxu0 %v1793
    %2377 = vmatpush1.bf16.msra.mxu0 %v1792
    %2378 = vmatprep.subr.bf16.mxu0 %v1807
    %2379 = vmatpush1.bf16.msra.mxu0 %v1806
    %2380 = vmatprep.subr.bf16.mxu0 %v1821
    %2381 = vmatpush1.bf16.msra.mxu0 %v1820
    %2382 = vmatprep.subr.bf16.mxu0 %v1835
    %2383 = vmatpush1.bf16.msra.mxu0 %v1834
    %2384 = vmatprep.subr.bf16.mxu0 %v1849
    %2385 = vmatpush1.bf16.msra.mxu0 %v1848
    %2386 = vmatprep.subr.bf16.mxu0 0
    %2387 = vmatpush1.bf16.msra.mxu0 0
    %2388 = vmatprep.subr.bf16.mxu0 0
    %2389 = vmatpush1.bf16.msra.mxu0 0
    %2390 = vmatprep.subr.bf16.mxu0 0
    %2391 = vmatpush1.bf16.msra.mxu0 0
    %2392 = vmatprep.subr.bf16.mxu0 0
    %2393 = vmatpush1.bf16.msra.mxu0 0
    %2394 = vmatprep.subr.bf16.mxu0 0
    %2395 = vmatpush1.bf16.msra.mxu0 0
    %2396 = vmatprep.subr.bf16.mxu0 0
    %2397 = vmatpush1.bf16.msra.mxu0 0
    %2398 = vmatprep.subr.bf16.mxu0 0
    %2399 = vmatpush1.bf16.msra.mxu0 0
    %2400 = vmatprep.subr.bf16.mxu0 0
    %2401 = vmatpush1.bf16.msra.mxu0 0
    %2402 = vmatprep.subr.bf16.mxu0 0
    %2403 = vmatpush1.bf16.msra.mxu0 0
    %2404 = vmatprep.subr.bf16.mxu0 0
    %2405 = vmatpush1.bf16.msra.mxu0 0
    %2406 = vmatprep.subr.bf16.mxu0 0
    %2407 = vmatpush1.bf16.msra.mxu0 0
    %2408 = vmatprep.mubr.bf16.mxu0 0
    %2409 = vmatmul.mubr.bf16.gmra.mrb[0].mxu0 %v2155
    %v2410 = vpop.f32.mrb[0].mxu0
    %v2411 = vadd.f32 %v2340, %v2410
    %v2412 = vpop.f32.mrb[0].mxu0
    %v2413 = vadd.f32 %v2342, %v2412
    %v2414 = vpop.f32.mrb[0].mxu0
    %v2415 = vadd.f32 %v2344, %v2414
    %v2416 = vpop.f32.mrb[0].mxu0
    %v2417 = vadd.f32 %v2346, %v2416
    %2418 = vmatprep.mubr.bf16.mxu0 0
    %2419 = vmatmul.mubr.bf16.gmra.mrb[0].mxu0 %v2157
    %v2420 = vpop.f32.mrb[0].mxu0
    %v2421 = vadd.f32 %v2350, %v2420
    %v2422 = vpop.f32.mrb[0].mxu0
    %v2423 = vadd.f32 %v2352, %v2422
    %v2424 = vpop.f32.mrb[0].mxu0
    %v2425 = vadd.f32 %v2354, %v2424
    %v2426 = vpop.f32.mrb[0].mxu0
    %v2427 = vadd.f32 %v2356, %v2426
    %2428 = vmatprep.mubr.bf16.mxu0 0
    %2429 = vmatmul.mubr.bf16.gmra.mrb[0].mxu0 %v2159
    %v2430 = vpop.f32.mrb[0].mxu0
    %v2431 = vadd.f32 %v2360, %v2430
    %v2432 = vpop.f32.mrb[0].mxu0
    %v2433 = vadd.f32 %v2362, %v2432
    %v2434 = vpop.f32.mrb[0].mxu0
    %v2435 = vadd.f32 %v2364, %v2434
    %v2436 = vpop.f32.mrb[0].mxu0
    %v2437 = vadd.f32 %v2366, %v2436
    %2438 = vmatprep.mubr.bf16.mxu0 0
    %2439 = vmatmul.mubr.bf16.gmra.mrb[0].mxu0 %v2161
    %v2440 = vpop.f32.mrb[0].mxu0
    %v2441 = vadd.f32 %v2370, %v2440
    %v2442 = vpop.f32.mrb[0].mxu0
    %v2443 = vadd.f32 %v2372, %v2442
    %v2444 = vpop.f32.mrb[0].mxu0
    %v2445 = vpop.f32.mrb[0].mxu0
    %2446 = vdwg.mxu0
    %2447 = vmatprep.subr.bf16.mxu0 %v1571
    %2448 = vmatpush1.bf16.msra.mxu0 %v1570
    %2449 = vmatprep.subr.bf16.mxu0 %v1585
    %2450 = vmatpush1.bf16.msra.mxu0 %v1584
    %2451 = vmatprep.subr.bf16.mxu0 %v1599
    %2452 = vmatpush1.bf16.msra.mxu0 %v1598
    %2453 = vmatprep.subr.bf16.mxu0 %v1613
    %2454 = vmatpush1.bf16.msra.mxu0 %v1612
    %2455 = vmatprep.subr.bf16.mxu0 %v1627
    %2456 = vmatpush1.bf16.msra.mxu0 %v1626
    %2457 = vmatprep.subr.bf16.mxu0 %v1641
    %2458 = vmatpush1.bf16.msra.mxu0 %v1640
    %2459 = vmatprep.subr.bf16.mxu0 %v1655
    %2460 = vmatpush1.bf16.msra.mxu0 %v1654
    %2461 = vmatprep.subr.bf16.mxu0 %v1669
    %2462 = vmatpush1.bf16.msra.mxu0 %v1668
    %2463 = vmatprep.subr.bf16.mxu0 %v1683
    %2464 = vmatpush1.bf16.msra.mxu0 %v1682
    %2465 = vmatprep.subr.bf16.mxu0 %v1697
    %2466 = vmatpush1.bf16.msra.mxu0 %v1696
    %2467 = vmatprep.subr.bf16.mxu0 %v1711
    %2468 = vmatpush1.bf16.msra.mxu0 %v1710
    %2469 = vmatprep.subr.bf16.mxu0 %v1725
    %2470 = vmatpush1.bf16.msra.mxu0 %v1724
    %2471 = vmatprep.subr.bf16.mxu0 %v1739
    %2472 = vmatpush1.bf16.msra.mxu0 %v1738
    %2473 = vmatprep.subr.bf16.mxu0 %v1753
    %2474 = vmatpush1.bf16.msra.mxu0 %v1752
    %2475 = vmatprep.subr.bf16.mxu0 %v1767
    %2476 = vmatpush1.bf16.msra.mxu0 %v1766
    %2477 = vmatprep.subr.bf16.mxu0 %v1781
    %2478 = vmatpush1.bf16.msra.mxu0 %v1780
    %2479 = vmatprep.mubr.bf16.mxu0 %v305
    %2480 = vmatmul.mubr.bf16.gmra.mrb[0].mxu0 %v289
    %v2481 = vpop.f32.mrb[0].mxu0
    %v2482 = vadd.f32 %v633, %v2481
    %v2483 = vpop.f32.mrb[0].mxu0
    %v2484 = vadd.f32 %v637, %v2483
    %v2485 = vpop.f32.mrb[0].mxu0
    %v2486 = vadd.f32 %v633, %v2485
    %v2487 = vpop.f32.mrb[0].mxu0
    %v2488 = vadd.f32 %v637, %v2487
    %2489 = vmatprep.mubr.bf16.mxu0 %v308
    %2490 = vmatmul.mubr.bf16.gmra.mrb[0].mxu0 %v293
    %v2491 = vpop.f32.mrb[0].mxu0
    %v2492 = vadd.f32 %v633, %v2491
    %v2493 = vpop.f32.mrb[0].mxu0
    %v2494 = vadd.f32 %v637, %v2493
    %v2495 = vpop.f32.mrb[0].mxu0
    %v2496 = vadd.f32 %v633, %v2495
    %v2497 = vpop.f32.mrb[0].mxu0
    %v2498 = vadd.f32 %v637, %v2497
    %2499 = vmatprep.mubr.bf16.mxu0 %v311
    %2500 = vmatmul.mubr.bf16.gmra.mrb[0].mxu0 %v297
    %v2501 = vpop.f32.mrb[0].mxu0
    %v2502 = vadd.f32 %v633, %v2501
    %v2503 = vpop.f32.mrb[0].mxu0
    %v2504 = vadd.f32 %v637, %v2503
    %v2505 = vpop.f32.mrb[0].mxu0
    %v2506 = vadd.f32 %v633, %v2505
    %v2507 = vpop.f32.mrb[0].mxu0
    %v2508 = vadd.f32 %v637, %v2507
    %2509 = vmatprep.mubr.bf16.mxu0 %v314
    %2510 = vmatmul.mubr.bf16.gmra.mrb[0].mxu0 %v301
    %v2511 = vpop.f32.mrb[0].mxu0
    %v2512 = vadd.f32 %v633, %v2511
    %v2513 = vpop.f32.mrb[0].mxu0
    %v2514 = vadd.f32 %v637, %v2513
    %v2515 = vpop.f32.mrb[0].mxu0
    %v2516 = vpop.f32.mrb[0].mxu0
    %2517 = vdwg.mxu0
    %2518 = vmatprep.subr.bf16.mxu0 %v1795
    %2519 = vmatpush1.bf16.msra.mxu0 %v1794
    %2520 = vmatprep.subr.bf16.mxu0 %v1809
    %2521 = vmatpush1.bf16.msra.mxu0 %v1808
    %2522 = vmatprep.subr.bf16.mxu0 %v1823
    %2523 = vmatpush1.bf16.msra.mxu0 %v1822
    %2524 = vmatprep.subr.bf16.mxu0 %v1837
    %2525 = vmatpush1.bf16.msra.mxu0 %v1836
    %2526 = vmatprep.subr.bf16.mxu0 %v1851
    %2527 = vmatpush1.bf16.msra.mxu0 %v1850
    %2528 = vmatprep.subr.bf16.mxu0 0
    %2529 = vmatpush1.bf16.msra.mxu0 0
    %2530 = vmatprep.subr.bf16.mxu0 0
    %2531 = vmatpush1.bf16.msra.mxu0 0
    %2532 = vmatprep.subr.bf16.mxu0 0
    %2533 = vmatpush1.bf16.msra.mxu0 0
    %2534 = vmatprep.subr.bf16.mxu0 0
    %2535 = vmatpush1.bf16.msra.mxu0 0
    %2536 = vmatprep.subr.bf16.mxu0 0
    %2537 = vmatpush1.bf16.msra.mxu0 0
    %2538 = vmatprep.subr.bf16.mxu0 0
    %2539 = vmatpush1.bf16.msra.mxu0 0
    %2540 = vmatprep.subr.bf16.mxu0 0
    %2541 = vmatpush1.bf16.msra.mxu0 0
    %2542 = vmatprep.subr.bf16.mxu0 0
    %2543 = vmatpush1.bf16.msra.mxu0 0
    %2544 = vmatprep.subr.bf16.mxu0 0
    %2545 = vmatpush1.bf16.msra.mxu0 0
    %2546 = vmatprep.subr.bf16.mxu0 0
    %2547 = vmatpush1.bf16.msra.mxu0 0
    %2548 = vmatprep.subr.bf16.mxu0 0
    %2549 = vmatpush1.bf16.msra.mxu0 0
    %2550 = vmatprep.mubr.bf16.mxu0 0
    %2551 = vmatmul.mubr.bf16.gmra.mrb[0].mxu0 %v2155
    %v2552 = vpop.f32.mrb[0].mxu0
    %v2553 = vadd.f32 %v2482, %v2552
    %v2554 = vpop.f32.mrb[0].mxu0
    %v2555 = vadd.f32 %v2484, %v2554
    %v2556 = vpop.f32.mrb[0].mxu0
    %v2557 = vadd.f32 %v2486, %v2556
    %v2558 = vpop.f32.mrb[0].mxu0
    %v2559 = vadd.f32 %v2488, %v2558
    %2560 = vmatprep.mubr.bf16.mxu0 0
    %2561 = vmatmul.mubr.bf16.gmra.mrb[0].mxu0 %v2157
    %v2562 = vpop.f32.mrb[0].mxu0
    %v2563 = vadd.f32 %v2492, %v2562
    %v2564 = vpop.f32.mrb[0].mxu0
    %v2565 = vadd.f32 %v2494, %v2564
    %v2566 = vpop.f32.mrb[0].mxu0
    %v2567 = vadd.f32 %v2496, %v2566
    %v2568 = vpop.f32.mrb[0].mxu0
    %v2569 = vadd.f32 %v2498, %v2568
    %2570 = vmatprep.mubr.bf16.mxu0 0
    %2571 = vmatmul.mubr.bf16.gmra.mrb[0].mxu0 %v2159
    %v2572 = vpop.f32.mrb[0].mxu0
    %v2573 = vadd.f32 %v2502, %v2572
    %v2574 = vpop.f32.mrb[0].mxu0
    %v2575 = vadd.f32 %v2504, %v2574
    %v2576 = vpop.f32.mrb[0].mxu0
    %v2577 = vadd.f32 %v2506, %v2576
    %v2578 = vpop.f32.mrb[0].mxu0
    %v2579 = vadd.f32 %v2508, %v2578
    %2580 = vmatprep.mubr.bf16.mxu0 0
    %2581 = vmatmul.mubr.bf16.gmra.mrb[0].mxu0 %v2161
    %v2582 = vpop.f32.mrb[0].mxu0
    %v2583 = vadd.f32 %v2512, %v2582
    %v2584 = vpop.f32.mrb[0].mxu0
    %v2585 = vadd.f32 %v2514, %v2584
    %v2586 = vpop.f32.mrb[0].mxu0
    %v2587 = vpop.f32.mrb[0].mxu0
    %2588 = vdwg.mxu0
    %2589 = vmatprep.subr.bf16.mxu0 %v1573
    %2590 = vmatpush1.bf16.msra.mxu0 %v1572
    %2591 = vmatprep.subr.bf16.mxu0 %v1587
    %2592 = vmatpush1.bf16.msra.mxu0 %v1586
    %2593 = vmatprep.subr.bf16.mxu0 %v1601
    %2594 = vmatpush1.bf16.msra.mxu0 %v1600
    %2595 = vmatprep.subr.bf16.mxu0 %v1615
    %2596 = vmatpush1.bf16.msra.mxu0 %v1614
    %2597 = vmatprep.subr.bf16.mxu0 %v1629
    %2598 = vmatpush1.bf16.msra.mxu0 %v1628
    %2599 = vmatprep.subr.bf16.mxu0 %v1643
    %2600 = vmatpush1.bf16.msra.mxu0 %v1642
    %2601 = vmatprep.subr.bf16.mxu0 %v1657
    %2602 = vmatpush1.bf16.msra.mxu0 %v1656
    %2603 = vmatprep.subr.bf16.mxu0 %v1671
    %2604 = vmatpush1.bf16.msra.mxu0 %v1670
    %2605 = vmatprep.subr.bf16.mxu0 %v1685
    %2606 = vmatpush1.bf16.msra.mxu0 %v1684
    %2607 = vmatprep.subr.bf16.mxu0 %v1699
    %2608 = vmatpush1.bf16.msra.mxu0 %v1698
    %2609 = vmatprep.subr.bf16.mxu0 %v1713
    %2610 = vmatpush1.bf16.msra.mxu0 %v1712
    %2611 = vmatprep.subr.bf16.mxu0 %v1727
    %2612 = vmatpush1.bf16.msra.mxu0 %v1726
    %2613 = vmatprep.subr.bf16.mxu0 %v1741
    %2614 = vmatpush1.bf16.msra.mxu0 %v1740
    %2615 = vmatprep.subr.bf16.mxu0 %v1755
    %2616 = vmatpush1.bf16.msra.mxu0 %v1754
    %2617 = vmatprep.subr.bf16.mxu0 %v1769
    %2618 = vmatpush1.bf16.msra.mxu0 %v1768
    %2619 = vmatprep.subr.bf16.mxu0 %v1783
    %2620 = vmatpush1.bf16.msra.mxu0 %v1782
    %2621 = vmatprep.mubr.bf16.mxu0 %v305
    %2622 = vmatmul.mubr.bf16.gmra.mrb[0].mxu0 %v289
    %v2623 = vpop.f32.mrb[0].mxu0
    %v2624 = vadd.f32 %v641, %v2623
    %v2625 = vpop.f32.mrb[0].mxu0
    %v2626 = vadd.f32 %v645, %v2625
    %v2627 = vpop.f32.mrb[0].mxu0
    %v2628 = vadd.f32 %v641, %v2627
    %v2629 = vpop.f32.mrb[0].mxu0
    %v2630 = vadd.f32 %v645, %v2629
    %2631 = vmatprep.mubr.bf16.mxu0 %v308
    %2632 = vmatmul.mubr.bf16.gmra.mrb[0].mxu0 %v293
    %v2633 = vpop.f32.mrb[0].mxu0
    %v2634 = vadd.f32 %v641, %v2633
    %v2635 = vpop.f32.mrb[0].mxu0
    %v2636 = vadd.f32 %v645, %v2635
    %v2637 = vpop.f32.mrb[0].mxu0
    %v2638 = vadd.f32 %v641, %v2637
    %v2639 = vpop.f32.mrb[0].mxu0
    %v2640 = vadd.f32 %v645, %v2639
    %2641 = vmatprep.mubr.bf16.mxu0 %v311
    %2642 = vmatmul.mubr.bf16.gmra.mrb[0].mxu0 %v297
    %v2643 = vpop.f32.mrb[0].mxu0
    %v2644 = vadd.f32 %v641, %v2643
    %v2645 = vpop.f32.mrb[0].mxu0
    %v2646 = vadd.f32 %v645, %v2645
    %v2647 = vpop.f32.mrb[0].mxu0
    %v2648 = vadd.f32 %v641, %v2647
    %v2649 = vpop.f32.mrb[0].mxu0
    %v2650 = vadd.f32 %v645, %v2649
    %2651 = vmatprep.mubr.bf16.mxu0 %v314
    %2652 = vmatmul.mubr.bf16.gmra.mrb[0].mxu0 %v301
    %v2653 = vpop.f32.mrb[0].mxu0
    %v2654 = vadd.f32 %v641, %v2653
    %v2655 = vpop.f32.mrb[0].mxu0
    %v2656 = vadd.f32 %v645, %v2655
    %v2657 = vpop.f32.mrb[0].mxu0
    %v2658 = vpop.f32.mrb[0].mxu0
    %2659 = vdwg.mxu0
    %2660 = vmatprep.subr.bf16.mxu0 %v1797
    %2661 = vmatpush1.bf16.msra.mxu0 %v1796
    %2662 = vmatprep.subr.bf16.mxu0 %v1811
    %2663 = vmatpush1.bf16.msra.mxu0 %v1810
    %2664 = vmatprep.subr.bf16.mxu0 %v1825
    %2665 = vmatpush1.bf16.msra.mxu0 %v1824
    %2666 = vmatprep.subr.bf16.mxu0 %v1839
    %2667 = vmatpush1.bf16.msra.mxu0 %v1838
    %2668 = vmatprep.subr.bf16.mxu0 %v1853
    %2669 = vmatpush1.bf16.msra.mxu0 %v1852
    %2670 = vmatprep.subr.bf16.mxu0 0
    %2671 = vmatpush1.bf16.msra.mxu0 0
    %2672 = vmatprep.subr.bf16.mxu0 0
    %2673 = vmatpush1.bf16.msra.mxu0 0
    %2674 = vmatprep.subr.bf16.mxu0 0
    %2675 = vmatpush1.bf16.msra.mxu0 0
    %2676 = vmatprep.subr.bf16.mxu0 0
    %2677 = vmatpush1.bf16.msra.mxu0 0
    %2678 = vmatprep.subr.bf16.mxu0 0
    %2679 = vmatpush1.bf16.msra.mxu0 0
    %2680 = vmatprep.subr.bf16.mxu0 0
    %2681 = vmatpush1.bf16.msra.mxu0 0
    %2682 = vmatprep.subr.bf16.mxu0 0
    %2683 = vmatpush1.bf16.msra.mxu0 0
    %2684 = vmatprep.subr.bf16.mxu0 0
    %2685 = vmatpush1.bf16.msra.mxu0 0
    %2686 = vmatprep.subr.bf16.mxu0 0
    %2687 = vmatpush1.bf16.msra.mxu0 0
    %2688 = vmatprep.subr.bf16.mxu0 0
    %2689 = vmatpush1.bf16.msra.mxu0 0
    %2690 = vmatprep.subr.bf16.mxu0 0
    %2691 = vmatpush1.bf16.msra.mxu0 0
    %2692 = vmatprep.mubr.bf16.mxu0 0
    %2693 = vmatmul.mubr.bf16.gmra.mrb[0].mxu0 %v2155
    %v2694 = vpop.f32.mrb[0].mxu0
    %v2695 = vadd.f32 %v2624, %v2694
    %v2696 = vpop.f32.mrb[0].mxu0
    %v2697 = vadd.f32 %v2626, %v2696
    %v2698 = vpop.f32.mrb[0].mxu0
    %v2699 = vadd.f32 %v2628, %v2698
    %v2700 = vpop.f32.mrb[0].mxu0
    %v2701 = vadd.f32 %v2630, %v2700
    %2702 = vmatprep.mubr.bf16.mxu0 0
    %2703 = vmatmul.mubr.bf16.gmra.mrb[0].mxu0 %v2157
    %v2704 = vpop.f32.mrb[0].mxu0
    %v2705 = vadd.f32 %v2634, %v2704
    %v2706 = vpop.f32.mrb[0].mxu0
    %v2707 = vadd.f32 %v2636, %v2706
    %v2708 = vpop.f32.mrb[0].mxu0
    %v2709 = vadd.f32 %v2638, %v2708
    %v2710 = vpop.f32.mrb[0].mxu0
    %v2711 = vadd.f32 %v2640, %v2710
    %2712 = vmatprep.mubr.bf16.mxu0 0
    %2713 = vmatmul.mubr.bf16.gmra.mrb[0].mxu0 %v2159
    %v2714 = vpop.f32.mrb[0].mxu0
    %v2715 = vadd.f32 %v2644, %v2714
    %v2716 = vpop.f32.mrb[0].mxu0
    %v2717 = vadd.f32 %v2646, %v2716
    %v2718 = vpop.f32.mrb[0].mxu0
    %v2719 = vadd.f32 %v2648, %v2718
    %v2720 = vpop.f32.mrb[0].mxu0
    %v2721 = vadd.f32 %v2650, %v2720
    %2722 = vmatprep.mubr.bf16.mxu0 0
    %2723 = vmatmul.mubr.bf16.gmra.mrb[0].mxu0 %v2161
    %v2724 = vpop.f32.mrb[0].mxu0
    %v2725 = vadd.f32 %v2654, %v2724
    %v2726 = vpop.f32.mrb[0].mxu0
    %v2727 = vadd.f32 %v2656, %v2726
    %v2728 = vpop.f32.mrb[0].mxu0
    %v2729 = vpop.f32.mrb[0].mxu0
    %2730 = vdwg.mxu0
    %2731 = vmatprep.subr.bf16.mxu0 %v1575
    %2732 = vmatpush1.bf16.msra.mxu0 %v1574
    %2733 = vmatprep.subr.bf16.mxu0 %v1589
    %2734 = vmatpush1.bf16.msra.mxu0 %v1588
    %2735 = vmatprep.subr.bf16.mxu0 %v1603
    %2736 = vmatpush1.bf16.msra.mxu0 %v1602
    %2737 = vmatprep.subr.bf16.mxu0 %v1617
    %2738 = vmatpush1.bf16.msra.mxu0 %v1616
    %2739 = vmatprep.subr.bf16.mxu0 %v1631
    %2740 = vmatpush1.bf16.msra.mxu0 %v1630
    %2741 = vmatprep.subr.bf16.mxu0 %v1645
    %2742 = vmatpush1.bf16.msra.mxu0 %v1644
    %2743 = vmatprep.subr.bf16.mxu0 %v1659
    %2744 = vmatpush1.bf16.msra.mxu0 %v1658
    %2745 = vmatprep.subr.bf16.mxu0 %v1673
    %2746 = vmatpush1.bf16.msra.mxu0 %v1672
    %2747 = vmatprep.subr.bf16.mxu0 %v1687
    %2748 = vmatpush1.bf16.msra.mxu0 %v1686
    %2749 = vmatprep.subr.bf16.mxu0 %v1701
    %2750 = vmatpush1.bf16.msra.mxu0 %v1700
    %2751 = vmatprep.subr.bf16.mxu0 %v1715
    %2752 = vmatpush1.bf16.msra.mxu0 %v1714
    %2753 = vmatprep.subr.bf16.mxu0 %v1729
    %2754 = vmatpush1.bf16.msra.mxu0 %v1728
    %2755 = vmatprep.subr.bf16.mxu0 %v1743
    %2756 = vmatpush1.bf16.msra.mxu0 %v1742
    %2757 = vmatprep.subr.bf16.mxu0 %v1757
    %2758 = vmatpush1.bf16.msra.mxu0 %v1756
    %2759 = vmatprep.subr.bf16.mxu0 %v1771
    %2760 = vmatpush1.bf16.msra.mxu0 %v1770
    %2761 = vmatprep.subr.bf16.mxu0 %v1785
    %2762 = vmatpush1.bf16.msra.mxu0 %v1784
    %2763 = vmatprep.mubr.bf16.mxu0 %v305
    %2764 = vmatmul.mubr.bf16.gmra.mrb[0].mxu0 %v289
    %v2765 = vpop.f32.mrb[0].mxu0
    %v2766 = vadd.f32 %v649, %v2765
    %v2767 = vpop.f32.mrb[0].mxu0
    %v2768 = vadd.f32 %v653, %v2767
    %v2769 = vpop.f32.mrb[0].mxu0
    %v2770 = vadd.f32 %v649, %v2769
    %v2771 = vpop.f32.mrb[0].mxu0
    %v2772 = vadd.f32 %v653, %v2771
    %2773 = vmatprep.mubr.bf16.mxu0 %v308
    %2774 = vmatmul.mubr.bf16.gmra.mrb[0].mxu0 %v293
    %v2775 = vpop.f32.mrb[0].mxu0
    %v2776 = vadd.f32 %v649, %v2775
    %v2777 = vpop.f32.mrb[0].mxu0
    %v2778 = vadd.f32 %v653, %v2777
    %v2779 = vpop.f32.mrb[0].mxu0
    %v2780 = vadd.f32 %v649, %v2779
    %v2781 = vpop.f32.mrb[0].mxu0
    %v2782 = vadd.f32 %v653, %v2781
    %2783 = vmatprep.mubr.bf16.mxu0 %v311
    %2784 = vmatmul.mubr.bf16.gmra.mrb[0].mxu0 %v297
    %v2785 = vpop.f32.mrb[0].mxu0
    %v2786 = vadd.f32 %v649, %v2785
    %v2787 = vpop.f32.mrb[0].mxu0
    %v2788 = vadd.f32 %v653, %v2787
    %v2789 = vpop.f32.mrb[0].mxu0
    %v2790 = vadd.f32 %v649, %v2789
    %v2791 = vpop.f32.mrb[0].mxu0
    %v2792 = vadd.f32 %v653, %v2791
    %2793 = vmatprep.mubr.bf16.mxu0 %v314
    %2794 = vmatmul.mubr.bf16.gmra.mrb[0].mxu0 %v301
    %v2795 = vpop.f32.mrb[0].mxu0
    %v2796 = vadd.f32 %v649, %v2795
    %v2797 = vpop.f32.mrb[0].mxu0
    %v2798 = vadd.f32 %v653, %v2797
    %v2799 = vpop.f32.mrb[0].mxu0
    %v2800 = vpop.f32.mrb[0].mxu0
    %2801 = vdwg.mxu0
    %2802 = vmatprep.subr.bf16.mxu0 %v1799
    %2803 = vmatpush1.bf16.msra.mxu0 %v1798
    %2804 = vmatprep.subr.bf16.mxu0 %v1813
    %2805 = vmatpush1.bf16.msra.mxu0 %v1812
    %2806 = vmatprep.subr.bf16.mxu0 %v1827
    %2807 = vmatpush1.bf16.msra.mxu0 %v1826
    %2808 = vmatprep.subr.bf16.mxu0 %v1841
    %2809 = vmatpush1.bf16.msra.mxu0 %v1840
    %2810 = vmatprep.subr.bf16.mxu0 %v1855
    %2811 = vmatpush1.bf16.msra.mxu0 %v1854
    %2812 = vmatprep.subr.bf16.mxu0 0
    %2813 = vmatpush1.bf16.msra.mxu0 0
    %2814 = vmatprep.subr.bf16.mxu0 0
    %2815 = vmatpush1.bf16.msra.mxu0 0
    %2816 = vmatprep.subr.bf16.mxu0 0
    %2817 = vmatpush1.bf16.msra.mxu0 0
    %2818 = vmatprep.subr.bf16.mxu0 0
    %2819 = vmatpush1.bf16.msra.mxu0 0
    %2820 = vmatprep.subr.bf16.mxu0 0
    %2821 = vmatpush1.bf16.msra.mxu0 0
    %2822 = vmatprep.subr.bf16.mxu0 0
    %2823 = vmatpush1.bf16.msra.mxu0 0
    %2824 = vmatprep.subr.bf16.mxu0 0
    %2825 = vmatpush1.bf16.msra.mxu0 0
    %2826 = vmatprep.subr.bf16.mxu0 0
    %2827 = vmatpush1.bf16.msra.mxu0 0
    %2828 = vmatprep.subr.bf16.mxu0 0
    %2829 = vmatpush1.bf16.msra.mxu0 0
    %2830 = vmatprep.subr.bf16.mxu0 0
    %2831 = vmatpush1.bf16.msra.mxu0 0
    %2832 = vmatprep.subr.bf16.mxu0 0
    %2833 = vmatpush1.bf16.msra.mxu0 0
    %2834 = vmatprep.mubr.bf16.mxu0 0
    %2835 = vmatmul.mubr.bf16.gmra.mrb[0].mxu0 %v2155
    %v2836 = vpop.f32.mrb[0].mxu0
    %v2837 = vadd.f32 %v2766, %v2836
    %v2838 = vpop.f32.mrb[0].mxu0
    %v2839 = vadd.f32 %v2768, %v2838
    %v2840 = vpop.f32.mrb[0].mxu0
    %v2841 = vadd.f32 %v2770, %v2840
    %v2842 = vpop.f32.mrb[0].mxu0
    %v2843 = vadd.f32 %v2772, %v2842
    %2844 = vmatprep.mubr.bf16.mxu0 0
    %2845 = vmatmul.mubr.bf16.gmra.mrb[0].mxu0 %v2157
    %v2846 = vpop.f32.mrb[0].mxu0
    %v2847 = vadd.f32 %v2776, %v2846
    %v2848 = vpop.f32.mrb[0].mxu0
    %v2849 = vadd.f32 %v2778, %v2848
    %v2850 = vpop.f32.mrb[0].mxu0
    %v2851 = vadd.f32 %v2780, %v2850
    %v2852 = vpop.f32.mrb[0].mxu0
    %v2853 = vadd.f32 %v2782, %v2852
    %2854 = vmatprep.mubr.bf16.mxu0 0
    %2855 = vmatmul.mubr.bf16.gmra.mrb[0].mxu0 %v2159
    %v2856 = vpop.f32.mrb[0].mxu0
    %v2857 = vadd.f32 %v2786, %v2856
    %v2858 = vpop.f32.mrb[0].mxu0
    %v2859 = vadd.f32 %v2788, %v2858
    %v2860 = vpop.f32.mrb[0].mxu0
    %v2861 = vadd.f32 %v2790, %v2860
    %v2862 = vpop.f32.mrb[0].mxu0
    %v2863 = vadd.f32 %v2792, %v2862
    %2864 = vmatprep.mubr.bf16.mxu0 0
    %2865 = vmatmul.mubr.bf16.gmra.mrb[0].mxu0 %v2161
    %v2866 = vpop.f32.mrb[0].mxu0
    %v2867 = vadd.f32 %v2796, %v2866
    %v2868 = vpop.f32.mrb[0].mxu0
    %v2869 = vadd.f32 %v2798, %v2868
    %v2870 = vpop.f32.mrb[0].mxu0
    %v2871 = vpop.f32.mrb[0].mxu0
    %2872 = vdwg.mxu0
    %2873 = vmatprep.subr.bf16.mxu0 %v1577
    %2874 = vmatpush1.bf16.msra.mxu0 %v1576
    %2875 = vmatprep.subr.bf16.mxu0 %v1591
    %2876 = vmatpush1.bf16.msra.mxu0 %v1590
    %2877 = vmatprep.subr.bf16.mxu0 %v1605
    %2878 = vmatpush1.bf16.msra.mxu0 %v1604
    %2879 = vmatprep.subr.bf16.mxu0 %v1619
    %2880 = vmatpush1.bf16.msra.mxu0 %v1618
    %2881 = vmatprep.subr.bf16.mxu0 %v1633
    %2882 = vmatpush1.bf16.msra.mxu0 %v1632
    %2883 = vmatprep.subr.bf16.mxu0 %v1647
    %2884 = vmatpush1.bf16.msra.mxu0 %v1646
    %2885 = vmatprep.subr.bf16.mxu0 %v1661
    %2886 = vmatpush1.bf16.msra.mxu0 %v1660
    %2887 = vmatprep.subr.bf16.mxu0 %v1675
    %2888 = vmatpush1.bf16.msra.mxu0 %v1674
    %2889 = vmatprep.subr.bf16.mxu0 %v1689
    %2890 = vmatpush1.bf16.msra.mxu0 %v1688
    %2891 = vmatprep.subr.bf16.mxu0 %v1703
    %2892 = vmatpush1.bf16.msra.mxu0 %v1702
    %2893 = vmatprep.subr.bf16.mxu0 %v1717
    %2894 = vmatpush1.bf16.msra.mxu0 %v1716
    %2895 = vmatprep.subr.bf16.mxu0 %v1731
    %2896 = vmatpush1.bf16.msra.mxu0 %v1730
    %2897 = vmatprep.subr.bf16.mxu0 %v1745
    %2898 = vmatpush1.bf16.msra.mxu0 %v1744
    %2899 = vmatprep.subr.bf16.mxu0 %v1759
    %2900 = vmatpush1.bf16.msra.mxu0 %v1758
    %2901 = vmatprep.subr.bf16.mxu0 %v1773
    %2902 = vmatpush1.bf16.msra.mxu0 %v1772
    %2903 = vmatprep.subr.bf16.mxu0 %v1787
    %2904 = vmatpush1.bf16.msra.mxu0 %v1786
    %2905 = vmatprep.mubr.bf16.mxu0 %v305
    %2906 = vmatmul.mubr.bf16.gmra.mrb[0].mxu0 %v289
    %v2907 = vpop.f32.mrb[0].mxu0
    %v2908 = vadd.f32 %v657, %v2907
    %v2909 = vpop.f32.mrb[0].mxu0
    %v2910 = vadd.f32 %v661, %v2909
    %v2911 = vpop.f32.mrb[0].mxu0
    %v2912 = vadd.f32 %v657, %v2911
    %v2913 = vpop.f32.mrb[0].mxu0
    %v2914 = vadd.f32 %v661, %v2913
    %2915 = vmatprep.mubr.bf16.mxu0 %v308
    %2916 = vmatmul.mubr.bf16.gmra.mrb[0].mxu0 %v293
    %v2917 = vpop.f32.mrb[0].mxu0
    %v2918 = vadd.f32 %v657, %v2917
    %v2919 = vpop.f32.mrb[0].mxu0
    %v2920 = vadd.f32 %v661, %v2919
    %v2921 = vpop.f32.mrb[0].mxu0
    %v2922 = vadd.f32 %v657, %v2921
    %v2923 = vpop.f32.mrb[0].mxu0
    %v2924 = vadd.f32 %v661, %v2923
    %2925 = vmatprep.mubr.bf16.mxu0 %v311
    %2926 = vmatmul.mubr.bf16.gmra.mrb[0].mxu0 %v297
    %v2927 = vpop.f32.mrb[0].mxu0
    %v2928 = vadd.f32 %v657, %v2927
    %v2929 = vpop.f32.mrb[0].mxu0
    %v2930 = vadd.f32 %v661, %v2929
    %v2931 = vpop.f32.mrb[0].mxu0
    %v2932 = vadd.f32 %v657, %v2931
    %v2933 = vpop.f32.mrb[0].mxu0
    %v2934 = vadd.f32 %v661, %v2933
    %2935 = vmatprep.mubr.bf16.mxu0 %v314
    %2936 = vmatmul.mubr.bf16.gmra.mrb[0].mxu0 %v301
    %v2937 = vpop.f32.mrb[0].mxu0
    %v2938 = vadd.f32 %v657, %v2937
    %v2939 = vpop.f32.mrb[0].mxu0
    %v2940 = vadd.f32 %v661, %v2939
    %v2941 = vpop.f32.mrb[0].mxu0
    %v2942 = vpop.f32.mrb[0].mxu0
    %2943 = vdwg.mxu0
    %2944 = vmatprep.subr.bf16.mxu0 %v1801
    %2945 = vmatpush1.bf16.msra.mxu0 %v1800
    %2946 = vmatprep.subr.bf16.mxu0 %v1815
    %2947 = vmatpush1.bf16.msra.mxu0 %v1814
    %2948 = vmatprep.subr.bf16.mxu0 %v1829
    %2949 = vmatpush1.bf16.msra.mxu0 %v1828
    %2950 = vmatprep.subr.bf16.mxu0 %v1843
    %2951 = vmatpush1.bf16.msra.mxu0 %v1842
    %2952 = vmatprep.subr.bf16.mxu0 %v1857
    %2953 = vmatpush1.bf16.msra.mxu0 %v1856
    %2954 = vmatprep.subr.bf16.mxu0 0
    %2955 = vmatpush1.bf16.msra.mxu0 0
    %2956 = vmatprep.subr.bf16.mxu0 0
    %2957 = vmatpush1.bf16.msra.mxu0 0
    %2958 = vmatprep.subr.bf16.mxu0 0
    %2959 = vmatpush1.bf16.msra.mxu0 0
    %2960 = vmatprep.subr.bf16.mxu0 0
    %2961 = vmatpush1.bf16.msra.mxu0 0
    %2962 = vmatprep.subr.bf16.mxu0 0
    %2963 = vmatpush1.bf16.msra.mxu0 0
    %2964 = vmatprep.subr.bf16.mxu0 0
    %2965 = vmatpush1.bf16.msra.mxu0 0
    %2966 = vmatprep.subr.bf16.mxu0 0
    %2967 = vmatpush1.bf16.msra.mxu0 0
    %2968 = vmatprep.subr.bf16.mxu0 0
    %2969 = vmatpush1.bf16.msra.mxu0 0
    %2970 = vmatprep.subr.bf16.mxu0 0
    %2971 = vmatpush1.bf16.msra.mxu0 0
    %2972 = vmatprep.subr.bf16.mxu0 0
    %2973 = vmatpush1.bf16.msra.mxu0 0
    %2974 = vmatprep.subr.bf16.mxu0 0
    %2975 = vmatpush1.bf16.msra.mxu0 0
    %2976 = vmatprep.mubr.bf16.mxu0 0
    %2977 = vmatmul.mubr.bf16.gmra.mrb[0].mxu0 %v2155
    %v2978 = vpop.f32.mrb[0].mxu0
    %v2979 = vadd.f32 %v2908, %v2978
    %v2980 = vpop.f32.mrb[0].mxu0
    %v2981 = vadd.f32 %v2910, %v2980
    %v2982 = vpop.f32.mrb[0].mxu0
    %v2983 = vadd.f32 %v2912, %v2982
    %v2984 = vpop.f32.mrb[0].mxu0
    %v2985 = vadd.f32 %v2914, %v2984
    %2986 = vmatprep.mubr.bf16.mxu0 0
    %2987 = vmatmul.mubr.bf16.gmra.mrb[0].mxu0 %v2157
    %v2988 = vpop.f32.mrb[0].mxu0
    %v2989 = vadd.f32 %v2918, %v2988
    %v2990 = vpop.f32.mrb[0].mxu0
    %v2991 = vadd.f32 %v2920, %v2990
    %v2992 = vpop.f32.mrb[0].mxu0
    %v2993 = vadd.f32 %v2922, %v2992
    %v2994 = vpop.f32.mrb[0].mxu0
    %v2995 = vadd.f32 %v2924, %v2994
    %2996 = vmatprep.mubr.bf16.mxu0 0
    %2997 = vmatmul.mubr.bf16.gmra.mrb[0].mxu0 %v2159
    %v2998 = vpop.f32.mrb[0].mxu0
    %v2999 = vadd.f32 %v2928, %v2998
    %v3000 = vpop.f32.mrb[0].mxu0
    %v3001 = vadd.f32 %v2930, %v3000
    %v3002 = vpop.f32.mrb[0].mxu0
    %v3003 = vadd.f32 %v2932, %v3002
    %v3004 = vpop.f32.mrb[0].mxu0
    %v3005 = vadd.f32 %v2934, %v3004
    %3006 = vmatprep.mubr.bf16.mxu0 0
    %3007 = vmatmul.mubr.bf16.gmra.mrb[0].mxu0 %v2161
    %v3008 = vpop.f32.mrb[0].mxu0
    %v3009 = vadd.f32 %v2938, %v3008
    %v3010 = vpop.f32.mrb[0].mxu0
    %v3011 = vadd.f32 %v2940, %v3010
    %v3012 = vpop.f32.mrb[0].mxu0
    %v3013 = vpop.f32.mrb[0].mxu0
    %3014 = vdwg.mxu0
    %3015 = vmatprep.subr.bf16.mxu0 %v1579
    %3016 = vmatpush1.bf16.msra.mxu0 %v1578
    %3017 = vmatprep.subr.bf16.mxu0 %v1593
    %3018 = vmatpush1.bf16.msra.mxu0 %v1592
    %3019 = vmatprep.subr.bf16.mxu0 %v1607
    %3020 = vmatpush1.bf16.msra.mxu0 %v1606
    %3021 = vmatprep.subr.bf16.mxu0 %v1621
    %3022 = vmatpush1.bf16.msra.mxu0 %v1620
    %3023 = vmatprep.subr.bf16.mxu0 %v1635
    %3024 = vmatpush1.bf16.msra.mxu0 %v1634
    %3025 = vmatprep.subr.bf16.mxu0 %v1649
    %3026 = vmatpush1.bf16.msra.mxu0 %v1648
    %3027 = vmatprep.subr.bf16.mxu0 %v1663
    %3028 = vmatpush1.bf16.msra.mxu0 %v1662
    %3029 = vmatprep.subr.bf16.mxu0 %v1677
    %3030 = vmatpush1.bf16.msra.mxu0 %v1676
    %3031 = vmatprep.subr.bf16.mxu0 %v1691
    %3032 = vmatpush1.bf16.msra.mxu0 %v1690
    %3033 = vmatprep.subr.bf16.mxu0 %v1705
    %3034 = vmatpush1.bf16.msra.mxu0 %v1704
    %3035 = vmatprep.subr.bf16.mxu0 %v1719
    %3036 = vmatpush1.bf16.msra.mxu0 %v1718
    %3037 = vmatprep.subr.bf16.mxu0 %v1733
    %3038 = vmatpush1.bf16.msra.mxu0 %v1732
    %3039 = vmatprep.subr.bf16.mxu0 %v1747
    %3040 = vmatpush1.bf16.msra.mxu0 %v1746
    %3041 = vmatprep.subr.bf16.mxu0 %v1761
    %3042 = vmatpush1.bf16.msra.mxu0 %v1760
    %3043 = vmatprep.subr.bf16.mxu0 %v1775
    %3044 = vmatpush1.bf16.msra.mxu0 %v1774
    %3045 = vmatprep.subr.bf16.mxu0 %v1789
    %3046 = vmatpush1.bf16.msra.mxu0 %v1788
    %3047 = vmatprep.mubr.bf16.mxu0 %v305
    %3048 = vmatmul.mubr.bf16.gmra.mrb[0].mxu0 %v289
    %v3049 = vpop.f32.mrb[0].mxu0
    %v3050 = vadd.f32 %v665, %v3049
    %v3051 = vpop.f32.mrb[0].mxu0
    %v3052 = vadd.f32 %v669, %v3051
    %v3053 = vpop.f32.mrb[0].mxu0
    %v3054 = vadd.f32 %v665, %v3053
    %v3055 = vpop.f32.mrb[0].mxu0
    %v3056 = vadd.f32 %v669, %v3055
    %3057 = vmatprep.mubr.bf16.mxu0 %v308
    %3058 = vmatmul.mubr.bf16.gmra.mrb[0].mxu0 %v293
    %v3059 = vpop.f32.mrb[0].mxu0
    %v3060 = vadd.f32 %v665, %v3059
    %v3061 = vpop.f32.mrb[0].mxu0
    %v3062 = vadd.f32 %v669, %v3061
    %v3063 = vpop.f32.mrb[0].mxu0
    %v3064 = vadd.f32 %v665, %v3063
    %v3065 = vpop.f32.mrb[0].mxu0
    %v3066 = vadd.f32 %v669, %v3065
    %3067 = vmatprep.mubr.bf16.mxu0 %v311
    %3068 = vmatmul.mubr.bf16.gmra.mrb[0].mxu0 %v297
    %v3069 = vpop.f32.mrb[0].mxu0
    %v3070 = vadd.f32 %v665, %v3069
    %v3071 = vpop.f32.mrb[0].mxu0
    %v3072 = vadd.f32 %v669, %v3071
    %v3073 = vpop.f32.mrb[0].mxu0
    %v3074 = vadd.f32 %v665, %v3073
    %v3075 = vpop.f32.mrb[0].mxu0
    %v3076 = vadd.f32 %v669, %v3075
    %3077 = vmatprep.mubr.bf16.mxu0 %v314
    %3078 = vmatmul.mubr.bf16.gmra.mrb[0].mxu0 %v301
    %v3079 = vpop.f32.mrb[0].mxu0
    %v3080 = vadd.f32 %v665, %v3079
    %v3081 = vpop.f32.mrb[0].mxu0
    %v3082 = vadd.f32 %v669, %v3081
    %v3083 = vpop.f32.mrb[0].mxu0
    %v3084 = vpop.f32.mrb[0].mxu0
    %3085 = vdwg.mxu0
    %3086 = vmatprep.subr.bf16.mxu0 %v1803
    %3087 = vmatpush1.bf16.msra.mxu0 %v1802
    %3088 = vmatprep.subr.bf16.mxu0 %v1817
    %3089 = vmatpush1.bf16.msra.mxu0 %v1816
    %3090 = vmatprep.subr.bf16.mxu0 %v1831
    %3091 = vmatpush1.bf16.msra.mxu0 %v1830
    %3092 = vmatprep.subr.bf16.mxu0 %v1845
    %3093 = vmatpush1.bf16.msra.mxu0 %v1844
    %3094 = vmatprep.subr.bf16.mxu0 %v1859
    %3095 = vmatpush1.bf16.msra.mxu0 %v1858
    %3096 = vmatprep.subr.bf16.mxu0 0
    %3097 = vmatpush1.bf16.msra.mxu0 0
    %3098 = vmatprep.subr.bf16.mxu0 0
    %3099 = vmatpush1.bf16.msra.mxu0 0
    %3100 = vmatprep.subr.bf16.mxu0 0
    %3101 = vmatpush1.bf16.msra.mxu0 0
    %3102 = vmatprep.subr.bf16.mxu0 0
    %3103 = vmatpush1.bf16.msra.mxu0 0
    %3104 = vmatprep.subr.bf16.mxu0 0
    %3105 = vmatpush1.bf16.msra.mxu0 0
    %3106 = vmatprep.subr.bf16.mxu0 0
    %3107 = vmatpush1.bf16.msra.mxu0 0
    %3108 = vmatprep.subr.bf16.mxu0 0
    %3109 = vmatpush1.bf16.msra.mxu0 0
    %3110 = vmatprep.subr.bf16.mxu0 0
    %3111 = vmatpush1.bf16.msra.mxu0 0
    %3112 = vmatprep.subr.bf16.mxu0 0
    %3113 = vmatpush1.bf16.msra.mxu0 0
    %3114 = vmatprep.subr.bf16.mxu0 0
    %3115 = vmatpush1.bf16.msra.mxu0 0
    %3116 = vmatprep.subr.bf16.mxu0 0
    %3117 = vmatpush1.bf16.msra.mxu0 0
    %3118 = vmatprep.mubr.bf16.mxu0 0
    %3119 = vmatmul.mubr.bf16.gmra.mrb[0].mxu0 %v2155
    %v3120 = vpop.f32.mrb[0].mxu0
    %v3121 = vadd.f32 %v3050, %v3120
    %v3122 = vpop.f32.mrb[0].mxu0
    %v3123 = vadd.f32 %v3052, %v3122
    %v3124 = vpop.f32.mrb[0].mxu0
    %v3125 = vadd.f32 %v3054, %v3124
    %v3126 = vpop.f32.mrb[0].mxu0
    %v3127 = vadd.f32 %v3056, %v3126
    %3128 = vmatprep.mubr.bf16.mxu0 0
    %3129 = vmatmul.mubr.bf16.gmra.mrb[0].mxu0 %v2157
    %v3130 = vpop.f32.mrb[0].mxu0
    %v3131 = vadd.f32 %v3060, %v3130
    %v3132 = vpop.f32.mrb[0].mxu0
    %v3133 = vadd.f32 %v3062, %v3132
    %v3134 = vpop.f32.mrb[0].mxu0
    %v3135 = vadd.f32 %v3064, %v3134
    %v3136 = vpop.f32.mrb[0].mxu0
    %v3137 = vadd.f32 %v3066, %v3136
    %3138 = vmatprep.mubr.bf16.mxu0 0
    %3139 = vmatmul.mubr.bf16.gmra.mrb[0].mxu0 %v2159
    %v3140 = vpop.f32.mrb[0].mxu0
    %v3141 = vadd.f32 %v3070, %v3140
    %v3142 = vpop.f32.mrb[0].mxu0
    %v3143 = vadd.f32 %v3072, %v3142
    %v3144 = vpop.f32.mrb[0].mxu0
    %v3145 = vadd.f32 %v3074, %v3144
    %v3146 = vpop.f32.mrb[0].mxu0
    %v3147 = vadd.f32 %v3076, %v3146
    %3148 = vmatprep.mubr.bf16.mxu0 0
    %3149 = vmatmul.mubr.bf16.gmra.mrb[0].mxu0 %v2161
    %v3150 = vpop.f32.mrb[0].mxu0
    %v3151 = vadd.f32 %v3080, %v3150
    %v3152 = vpop.f32.mrb[0].mxu0
    %v3153 = vadd.f32 %v3082, %v3152
    %v3154 = vpop.f32.mrb[0].mxu0
    %v3155 = vpop.f32.mrb[0].mxu0
    %3156 = vdwg.mxu0
    %v3157 = vmax.f32 %v2269, 0.0
    %v3158 = vmax.f32 %v2271, 0.0
    %v3159 = vmax.f32 %v2411, 0.0
    %v3160 = vmax.f32 %v2413, 0.0
    %v3161 = vmax.f32 %v2553, 0.0
    %v3162 = vmax.f32 %v2555, 0.0
    %v3163 = vmax.f32 %v2695, 0.0
    %v3164 = vmax.f32 %v2697, 0.0
    %v3165 = vmax.f32 %v2837, 0.0
    %v3166 = vmax.f32 %v2839, 0.0
    %v3167 = vmax.f32 %v2979, 0.0
    %v3168 = vmax.f32 %v2981, 0.0
    %v3169 = vmax.f32 %v3121, 0.0
    %v3170 = vmax.f32 %v3123, 0.0
    %v3171 = vmax.f32 %v2273, 0.0
    %v3172 = vmax.f32 %v2275, 0.0
    %v3173 = vmax.f32 %v2415, 0.0
    %v3174 = vmax.f32 %v2417, 0.0
    %v3175 = vmax.f32 %v2557, 0.0
    %v3176 = vmax.f32 %v2559, 0.0
    %v3177 = vmax.f32 %v2699, 0.0
    %v3178 = vmax.f32 %v2701, 0.0
    %v3179 = vmax.f32 %v2841, 0.0
    %v3180 = vmax.f32 %v2843, 0.0
    %v3181 = vmax.f32 %v2983, 0.0
    %v3182 = vmax.f32 %v2985, 0.0
    %v3183 = vmax.f32 %v3125, 0.0
    %v3184 = vmax.f32 %v3127, 0.0
    %v3185 = vmax.f32 %v2279, 0.0
    %v3186 = vmax.f32 %v2281, 0.0
    %v3187 = vmax.f32 %v2421, 0.0
    %v3188 = vmax.f32 %v2423, 0.0
    %v3189 = vmax.f32 %v2563, 0.0
    %v3190 = vmax.f32 %v2565, 0.0
    %v3191 = vmax.f32 %v2705, 0.0
    %v3192 = vmax.f32 %v2707, 0.0
    %v3193 = vmax.f32 %v2847, 0.0
    %v3194 = vmax.f32 %v2849, 0.0
    %v3195 = vmax.f32 %v2989, 0.0
    %v3196 = vmax.f32 %v2991, 0.0
    %v3197 = vmax.f32 %v3131, 0.0
    %v3198 = vmax.f32 %v3133, 0.0
    %v3199 = vmax.f32 %v2283, 0.0
    %v3200 = vmax.f32 %v2285, 0.0
    %v3201 = vmax.f32 %v2425, 0.0
    %v3202 = vmax.f32 %v2427, 0.0
    %v3203 = vmax.f32 %v2567, 0.0
    %v3204 = vmax.f32 %v2569, 0.0
    %v3205 = vmax.f32 %v2709, 0.0
    %v3206 = vmax.f32 %v2711, 0.0
    %v3207 = vmax.f32 %v2851, 0.0
    %v3208 = vmax.f32 %v2853, 0.0
    %v3209 = vmax.f32 %v2993, 0.0
    %v3210 = vmax.f32 %v2995, 0.0
    %v3211 = vmax.f32 %v3135, 0.0
    %v3212 = vmax.f32 %v3137, 0.0
    %v3213 = vmax.f32 %v2289, 0.0
    %v3214 = vmax.f32 %v2291, 0.0
    %v3215 = vmax.f32 %v2431, 0.0
    %v3216 = vmax.f32 %v2433, 0.0
    %v3217 = vmax.f32 %v2573, 0.0
    %v3218 = vmax.f32 %v2575, 0.0
    %v3219 = vmax.f32 %v2715, 0.0
    %v3220 = vmax.f32 %v2717, 0.0
    %v3221 = vmax.f32 %v2857, 0.0
    %v3222 = vmax.f32 %v2859, 0.0
    %v3223 = vmax.f32 %v2999, 0.0
    %v3224 = vmax.f32 %v3001, 0.0
    %v3225 = vmax.f32 %v3141, 0.0
    %v3226 = vmax.f32 %v3143, 0.0
    %v3227 = vmax.f32 %v2293, 0.0
    %v3228 = vmax.f32 %v2295, 0.0
    %v3229 = vmax.f32 %v2435, 0.0
    %v3230 = vmax.f32 %v2437, 0.0
    %v3231 = vmax.f32 %v2577, 0.0
    %v3232 = vmax.f32 %v2579, 0.0
    %v3233 = vmax.f32 %v2719, 0.0
    %v3234 = vmax.f32 %v2721, 0.0
    %v3235 = vmax.f32 %v2861, 0.0
    %v3236 = vmax.f32 %v2863, 0.0
    %v3237 = vmax.f32 %v3003, 0.0
    %v3238 = vmax.f32 %v3005, 0.0
    %v3239 = vmax.f32 %v3145, 0.0
    %v3240 = vmax.f32 %v3147, 0.0
    %v3241 = vmax.f32 %v2299, 0.0
    %v3242 = vmax.f32 %v2301, 0.0
    %v3243 = vmax.f32 %v2441, 0.0
    %v3244 = vmax.f32 %v2443, 0.0
    %v3245 = vmax.f32 %v2583, 0.0
    %v3246 = vmax.f32 %v2585, 0.0
    %v3247 = vmax.f32 %v2725, 0.0
    %v3248 = vmax.f32 %v2727, 0.0
    %v3249 = vmax.f32 %v2867, 0.0
    %v3250 = vmax.f32 %v2869, 0.0
    %v3251 = vmax.f32 %v3009, 0.0
    %v3252 = vmax.f32 %v3011, 0.0
    %v3253 = vmax.f32 %v3151, 0.0
    %v3254 = vmax.f32 %v3153, 0.0
    %v3255 = vmax.f32 %v3157, %v3164
    %v3256 = vmax.f32 %v3158, %v3165
    %v3257 = vmax.f32 %v3159, %v3166
    %v3258 = vmax.f32 %v3160, %v3167
    %v3259 = vmax.f32 %v3161, %v3168
    %v3260 = vmax.f32 %v3162, %v3169
    %v3261 = vmax.f32 %v3163, %v3170
    %v3262 = vmax.f32 %v3171, %v3178
    %v3263 = vmax.f32 %v3172, %v3179
    %v3264 = vmax.f32 %v3173, %v3180
    %v3265 = vmax.f32 %v3174, %v3181
    %v3266 = vmax.f32 %v3175, %v3182
    %v3267 = vmax.f32 %v3176, %v3183
    %v3268 = vmax.f32 %v3177, %v3184
    %v3269 = vmax.f32 %v3185, %v3192
    %v3270 = vmax.f32 %v3186, %v3193
    %v3271 = vmax.f32 %v3187, %v3194
    %v3272 = vmax.f32 %v3188, %v3195
    %v3273 = vmax.f32 %v3189, %v3196
    %v3274 = vmax.f32 %v3190, %v3197
    %v3275 = vmax.f32 %v3191, %v3198
    %v3276 = vmax.f32 %v3199, %v3206
    %v3277 = vmax.f32 %v3200, %v3207
    %v3278 = vmax.f32 %v3201, %v3208
    %v3279 = vmax.f32 %v3202, %v3209
    %v3280 = vmax.f32 %v3203, %v3210
    %v3281 = vmax.f32 %v3204, %v3211
    %v3282 = vmax.f32 %v3205, %v3212
    %v3283 = vmax.f32 %v3213, %v3220
    %v3284 = vmax.f32 %v3214, %v3221
    %v3285 = vmax.f32 %v3215, %v3222
    %v3286 = vmax.f32 %v3216, %v3223
    %v3287 = vmax.f32 %v3217, %v3224
    %v3288 = vmax.f32 %v3218, %v3225
    %v3289 = vmax.f32 %v3219, %v3226
    %v3290 = vmax.f32 %v3227, %v3234
    %v3291 = vmax.f32 %v3228, %v3235
    %v3292 = vmax.f32 %v3229, %v3236
    %v3293 = vmax.f32 %v3230, %v3237
    %v3294 = vmax.f32 %v3231, %v3238
    %v3295 = vmax.f32 %v3232, %v3239
    %v3296 = vmax.f32 %v3233, %v3240
    %v3297 = vmax.f32 %v3241, %v3248
    %v3298 = vmax.f32 %v3242, %v3249
    %v3299 = vmax.f32 %v3243, %v3250
    %v3300 = vmax.f32 %v3244, %v3251
    %v3301 = vmax.f32 %v3245, %v3252
    %v3302 = vmax.f32 %v3246, %v3253
    %v3303 = vmax.f32 %v3247, %v3254
    %3332 = vrot.lane.b32.xlu0 %v3258, 64
    %v3333 = vpop.permute.xlu0 %3332
    %3334 = vrot.lane.b32.xlu0 %v3259, 64
    %v3335 = vpop.permute.xlu0 %3334
    %3336 = vrot.lane.b32.xlu0 %v3260, 64
    %v3337 = vpop.permute.xlu0 %3336
    %3338 = vrot.lane.b32.xlu0 %v3261, 64
    %v3339 = vpop.permute.xlu0 %3338
    %3340 = vrot.lane.b32.xlu0 %v3265, 64
    %v3341 = vpop.permute.xlu0 %3340
    %3342 = vrot.lane.b32.xlu0 %v3266, 64
    %v3343 = vpop.permute.xlu0 %3342
    %3344 = vrot.lane.b32.xlu0 %v3267, 64
    %v3345 = vpop.permute.xlu0 %3344
    %3346 = vrot.lane.b32.xlu0 %v3268, 64
    %v3347 = vpop.permute.xlu0 %3346
    %3348 = vrot.lane.b32.xlu0 %v3272, 64
    %v3349 = vpop.permute.xlu0 %3348
    %3350 = vrot.lane.b32.xlu0 %v3273, 64
    %v3351 = vpop.permute.xlu0 %3350
    %3352 = vrot.lane.b32.xlu0 %v3274, 64
    %v3353 = vpop.permute.xlu0 %3352
    %3354 = vrot.lane.b32.xlu0 %v3275, 64
    %v3355 = vpop.permute.xlu0 %3354
    %3356 = vrot.lane.b32.xlu0 %v3279, 64
    %v3357 = vpop.permute.xlu0 %3356
    %3358 = vrot.lane.b32.xlu0 %v3280, 64
    %v3359 = vpop.permute.xlu0 %3358
    %3360 = vrot.lane.b32.xlu0 %v3281, 64
    %v3361 = vpop.permute.xlu0 %3360
    %3362 = vrot.lane.b32.xlu0 %v3282, 64
    %v3363 = vpop.permute.xlu0 %3362
    %3364 = vrot.lane.b32.xlu0 %v3286, 64
    %v3365 = vpop.permute.xlu0 %3364
    %3366 = vrot.lane.b32.xlu0 %v3287, 64
    %v3367 = vpop.permute.xlu0 %3366
    %3368 = vrot.lane.b32.xlu0 %v3288, 64
    %v3369 = vpop.permute.xlu0 %3368
    %3370 = vrot.lane.b32.xlu0 %v3289, 64
    %v3371 = vpop.permute.xlu0 %3370
    %3372 = vrot.lane.b32.xlu0 %v3293, 64
    %v3373 = vpop.permute.xlu0 %3372
    %3374 = vrot.lane.b32.xlu0 %v3294, 64
    %v3375 = vpop.permute.xlu0 %3374
    %3376 = vrot.lane.b32.xlu0 %v3295, 64
    %v3377 = vpop.permute.xlu0 %3376
    %3378 = vrot.lane.b32.xlu0 %v3296, 64
    %v3379 = vpop.permute.xlu0 %3378
    %3380 = vrot.lane.b32.xlu0 %v3300, 64
    %v3381 = vpop.permute.xlu0 %3380
    %3382 = vrot.lane.b32.xlu0 %v3301, 64
    %v3383 = vpop.permute.xlu0 %3382
    %3384 = vrot.lane.b32.xlu0 %v3302, 64
    %v3385 = vpop.permute.xlu0 %3384
    %3386 = vrot.lane.b32.xlu0 %v3303, 64
    %v3387 = vpop.permute.xlu0 %3386
    %vm3388 = vcmask 523264
    %v3389 = vsel %vm3388, %v3333, %v3335
    %v3390 = vsel %vm3388, %v3335, %v3337
    %v3391 = vsel %vm3388, %v3337, %v3339
    %v3392 = vsel %vm3388, %v3341, %v3343
    %v3393 = vsel %vm3388, %v3343, %v3345
    %v3394 = vsel %vm3388, %v3345, %v3347
    %v3395 = vsel %vm3388, %v3349, %v3351
    %v3396 = vsel %vm3388, %v3351, %v3353
    %v3397 = vsel %vm3388, %v3353, %v3355
    %v3398 = vsel %vm3388, %v3357, %v3359
    %v3399 = vsel %vm3388, %v3359, %v3361
    %v3400 = vsel %vm3388, %v3361, %v3363
    %v3401 = vsel %vm3388, %v3365, %v3367
    %v3402 = vsel %vm3388, %v3367, %v3369
    %v3403 = vsel %vm3388, %v3369, %v3371
    %v3404 = vsel %vm3388, %v3373, %v3375
    %v3405 = vsel %vm3388, %v3375, %v3377
    %v3406 = vsel %vm3388, %v3377, %v3379
    %v3407 = vsel %vm3388, %v3381, %v3383
    %v3408 = vsel %vm3388, %v3383, %v3385
    %v3409 = vsel %vm3388, %v3385, %v3387
    %v3438 = vmax.f32 %v3255, %v3389
    %v3439 = vmax.f32 %v3256, %v3390
    %v3440 = vmax.f32 %v3257, %v3391
    %v3441 = vmax.f32 %v3258, %v3339
    %v3442 = vmax.f32 %v3262, %v3392
    %v3443 = vmax.f32 %v3263, %v3393
    %v3444 = vmax.f32 %v3264, %v3394
    %v3445 = vmax.f32 %v3265, %v3347
    %v3446 = vmax.f32 %v3269, %v3395
    %v3447 = vmax.f32 %v3270, %v3396
    %v3448 = vmax.f32 %v3271, %v3397
    %v3449 = vmax.f32 %v3272, %v3355
    %v3450 = vmax.f32 %v3276, %v3398
    %v3451 = vmax.f32 %v3277, %v3399
    %v3452 = vmax.f32 %v3278, %v3400
    %v3453 = vmax.f32 %v3279, %v3363
    %v3454 = vmax.f32 %v3283, %v3401
    %v3455 = vmax.f32 %v3284, %v3402
    %v3456 = vmax.f32 %v3285, %v3403
    %v3457 = vmax.f32 %v3286, %v3371
    %v3458 = vmax.f32 %v3290, %v3404
    %v3459 = vmax.f32 %v3291, %v3405
    %v3460 = vmax.f32 %v3292, %v3406
    %v3461 = vmax.f32 %v3293, %v3379
    %v3462 = vmax.f32 %v3297, %v3407
    %v3463 = vmax.f32 %v3298, %v3408
    %v3464 = vmax.f32 %v3299, %v3409
    %v3465 = vmax.f32 %v3300, %v3387
    %v3466 = vpack.c.bf16 %v3442, %v3438
    %v3467 = vpack.c.bf16 %v3443, %v3439
    %v3468 = vpack.c.bf16 %v3444, %v3440
    %v3469 = vpack.c.bf16 %v3445, %v3441
    %v3470 = vpack.c.bf16 %v3450, %v3446
    %v3471 = vpack.c.bf16 %v3451, %v3447
    %v3472 = vpack.c.bf16 %v3452, %v3448
    %v3473 = vpack.c.bf16 %v3453, %v3449
    %v3474 = vpack.c.bf16 %v3458, %v3454
    %v3475 = vpack.c.bf16 %v3459, %v3455
    %v3476 = vpack.c.bf16 %v3460, %v3456
    %v3477 = vpack.c.bf16 %v3461, %v3457
    %v3478 = vpack.c.bf16 %v3462, %v3462
    %v3479 = vpack.c.bf16 %v3463, %v3463
    %v3480 = vpack.c.bf16 %v3464, %v3464
    %v3481 = vpack.c.bf16 %v3465, %v3465
    %v3483 = vshrl.u32 %v3466, 16
    %v3485 = vrot.slane %v3483, 7
    %v3486 = vshll.u32 %v3466, 16
    %v3488 = vor.u32 %v3485, %v3486
    %v3490 = vshrl.u32 %v3467, 16
    %v3492 = vrot.slane %v3490, 7
    %v3493 = vshll.u32 %v3467, 16
    %v3495 = vor.u32 %v3492, %v3493
    %v3497 = vshrl.u32 %v3468, 16
    %v3499 = vrot.slane %v3497, 7
    %v3500 = vshll.u32 %v3468, 16
    %v3502 = vor.u32 %v3499, %v3500
    %v3504 = vshrl.u32 %v3469, 16
    %v3506 = vrot.slane %v3504, 7
    %v3507 = vshll.u32 %v3469, 16
    %v3509 = vor.u32 %v3506, %v3507
    %v3511 = vshrl.u32 %v3470, 16
    %v3513 = vrot.slane %v3511, 7
    %v3514 = vshll.u32 %v3470, 16
    %v3516 = vor.u32 %v3513, %v3514
    %v3517 = vsel %vm155, %v3485, %v3516
    %v3519 = vshrl.u32 %v3471, 16
    %v3521 = vrot.slane %v3519, 7
    %v3522 = vshll.u32 %v3471, 16
    %v3524 = vor.u32 %v3521, %v3522
    %v3525 = vsel %vm155, %v3492, %v3524
    %v3527 = vshrl.u32 %v3472, 16
    %v3529 = vrot.slane %v3527, 7
    %v3530 = vshll.u32 %v3472, 16
    %v3532 = vor.u32 %v3529, %v3530
    %v3533 = vsel %vm155, %v3499, %v3532
    %v3535 = vshrl.u32 %v3473, 16
    %v3537 = vrot.slane %v3535, 7
    %v3538 = vshll.u32 %v3473, 16
    %v3540 = vor.u32 %v3537, %v3538
    %v3541 = vsel %vm155, %v3506, %v3540
    %v3543 = vshrl.u32 %v3474, 16
    %v3545 = vrot.slane %v3543, 7
    %v3546 = vshll.u32 %v3474, 16
    %v3548 = vor.u32 %v3545, %v3546
    %v3549 = vsel %vm155, %v3513, %v3548
    %v3551 = vshrl.u32 %v3475, 16
    %v3553 = vrot.slane %v3551, 7
    %v3554 = vshll.u32 %v3475, 16
    %v3556 = vor.u32 %v3553, %v3554
    %v3557 = vsel %vm155, %v3521, %v3556
    %v3559 = vshrl.u32 %v3476, 16
    %v3561 = vrot.slane %v3559, 7
    %v3562 = vshll.u32 %v3476, 16
    %v3564 = vor.u32 %v3561, %v3562
    %v3565 = vsel %vm155, %v3529, %v3564
    %v3567 = vshrl.u32 %v3477, 16
    %v3569 = vrot.slane %v3567, 7
    %v3570 = vshll.u32 %v3477, 16
    %v3572 = vor.u32 %v3569, %v3570
    %v3573 = vsel %vm155, %v3537, %v3572
    %v3575 = vshrl.u32 %v3478, 16
    %v3577 = vrot.slane %v3575, 7
    %v3578 = vshll.u32 %v3478, 16
    %v3580 = vor.u32 %v3577, %v3578
    %v3581 = vsel %vm155, %v3545, %v3580
    %v3583 = vshrl.u32 %v3479, 16
    %v3585 = vrot.slane %v3583, 7
    %v3586 = vshll.u32 %v3479, 16
    %v3588 = vor.u32 %v3585, %v3586
    %v3589 = vsel %vm155, %v3553, %v3588
    %v3591 = vshrl.u32 %v3480, 16
    %v3593 = vrot.slane %v3591, 7
    %v3594 = vshll.u32 %v3480, 16
    %v3596 = vor.u32 %v3593, %v3594
    %v3597 = vsel %vm155, %v3561, %v3596
    %v3599 = vshrl.u32 %v3481, 16
    %v3601 = vrot.slane %v3599, 7
    %v3602 = vshll.u32 %v3481, 16
    %v3604 = vor.u32 %v3601, %v3602
    %v3605 = vsel %vm155, %v3569, %v3604
    %v3622 = vsel %vm192, 0, %v3488
    %v3623 = vsel %vm192, 0, %v3495
    %v3624 = vsel %vm192, 0, %v3502
    %v3625 = vsel %vm192, 0, %v3509
    %v3626 = vmul.bf16 %v3622, %v197
    %v3627 = vmul.bf16 %v3623, %v197
    %v3628 = vmul.bf16 %v3624, %v197
    %v3629 = vmul.bf16 %v3625, %v197
    %v3630 = vmul.bf16 %v3517, %v202
    %v3631 = vmul.bf16 %v3525, %v202
    %v3632 = vmul.bf16 %v3533, %v202
    %v3633 = vmul.bf16 %v3541, %v202
    %v3634 = vmul.bf16 %v3549, %v207
    %v3635 = vmul.bf16 %v3557, %v207
    %v3636 = vmul.bf16 %v3565, %v207
    %v3637 = vmul.bf16 %v3573, %v207
    %v3638 = vmul.bf16 %v3581, %v212
    %v3639 = vmul.bf16 %v3589, %v212
    %v3640 = vmul.bf16 %v3597, %v212
    %v3641 = vmul.bf16 %v3605, %v212
    %v3642 = vrot.slane %v3486, 1
    %v3643 = vor.u32 %v3483, %v3642
    %v3644 = vrot.slane %v3514, 1
    %v3645 = vsel %vm218, %v3643, %v3644
    %v3646 = vrot.slane %v3493, 1
    %v3647 = vor.u32 %v3490, %v3646
    %v3648 = vrot.slane %v3522, 1
    %v3649 = vsel %vm218, %v3647, %v3648
    %v3650 = vrot.slane %v3500, 1
    %v3651 = vor.u32 %v3497, %v3650
    %v3652 = vrot.slane %v3530, 1
    %v3653 = vsel %vm218, %v3651, %v3652
    %v3654 = vrot.slane %v3507, 1
    %v3655 = vor.u32 %v3504, %v3654
    %v3656 = vrot.slane %v3538, 1
    %v3657 = vsel %vm218, %v3655, %v3656
    %v3658 = vor.u32 %v3511, %v3644
    %v3659 = vrot.slane %v3546, 1
    %v3660 = vsel %vm218, %v3658, %v3659
    %v3661 = vor.u32 %v3519, %v3648
    %v3662 = vrot.slane %v3554, 1
    %v3663 = vsel %vm218, %v3661, %v3662
    %v3664 = vor.u32 %v3527, %v3652
    %v3665 = vrot.slane %v3562, 1
    %v3666 = vsel %vm218, %v3664, %v3665
    %v3667 = vor.u32 %v3535, %v3656
    %v3668 = vrot.slane %v3570, 1
    %v3669 = vsel %vm218, %v3667, %v3668
    %v3670 = vor.u32 %v3543, %v3659
    %v3671 = vrot.slane %v3578, 1
    %v3672 = vsel %vm218, %v3670, %v3671
    %v3673 = vor.u32 %v3551, %v3662
    %v3674 = vrot.slane %v3586, 1
    %v3675 = vsel %vm218, %v3673, %v3674
    %v3676 = vor.u32 %v3559, %v3665
    %v3677 = vrot.slane %v3594, 1
    %v3678 = vsel %vm218, %v3676, %v3677
    %v3679 = vor.u32 %v3567, %v3668
    %v3680 = vrot.slane %v3602, 1
    %v3681 = vsel %vm218, %v3679, %v3680
    %v3682 = vor.u32 %v3575, %v3671
    %v3683 = vor.u32 %v3583, %v3674
    %v3684 = vor.u32 %v3591, %v3677
    %v3685 = vor.u32 %v3599, %v3680
    %v3702 = vsel %vm236, %v3682, 0
    %v3703 = vsel %vm236, %v3683, 0
    %v3704 = vsel %vm236, %v3684, 0
    %v3705 = vsel %vm236, %v3685, 0
    %v3706 = vmul.bf16 %v3645, %v241
    %v3707 = vmul.bf16 %v3649, %v241
    %v3708 = vmul.bf16 %v3653, %v241
    %v3709 = vmul.bf16 %v3657, %v241
    %v3710 = vmul.bf16 %v3660, %v246
    %v3711 = vmul.bf16 %v3663, %v246
    %v3712 = vmul.bf16 %v3666, %v246
    %v3713 = vmul.bf16 %v3669, %v246
    %v3714 = vmul.bf16 %v3672, %v251
    %v3715 = vmul.bf16 %v3675, %v251
    %v3716 = vmul.bf16 %v3678, %v251
    %v3717 = vmul.bf16 %v3681, %v251
    %v3718 = vmul.bf16 %v3702, %v256
    %v3719 = vmul.bf16 %v3703, %v256
    %v3720 = vmul.bf16 %v3704, %v256
    %v3721 = vmul.bf16 %v3705, %v256
    %3738 = vrot.lane.b32.xlu0 %v3466, 64
    %v3739 = vpop.permute.xlu0 %3738
    %3740 = vrot.lane.b32.xlu0 %v3467, 64
    %v3741 = vpop.permute.xlu0 %3740
    %3742 = vrot.lane.b32.xlu0 %v3468, 64
    %v3743 = vpop.permute.xlu0 %3742
    %3744 = vrot.lane.b32.xlu0 %v3469, 64
    %v3745 = vpop.permute.xlu0 %3744
    %3746 = vrot.lane.b32.xlu0 %v3470, 64
    %v3747 = vpop.permute.xlu0 %3746
    %3748 = vrot.lane.b32.xlu0 %v3471, 64
    %v3749 = vpop.permute.xlu0 %3748
    %3750 = vrot.lane.b32.xlu0 %v3472, 64
    %v3751 = vpop.permute.xlu0 %3750
    %3752 = vrot.lane.b32.xlu0 %v3473, 64
    %v3753 = vpop.permute.xlu0 %3752
    %3754 = vrot.lane.b32.xlu0 %v3474, 64
    %v3755 = vpop.permute.xlu0 %3754
    %3756 = vrot.lane.b32.xlu0 %v3475, 64
    %v3757 = vpop.permute.xlu0 %3756
    %3758 = vrot.lane.b32.xlu0 %v3476, 64
    %v3759 = vpop.permute.xlu0 %3758
    %3760 = vrot.lane.b32.xlu0 %v3477, 64
    %v3761 = vpop.permute.xlu0 %3760
    %3762 = vrot.lane.b32.xlu0 %v3478, 64
    %v3763 = vpop.permute.xlu0 %3762
    %3764 = vrot.lane.b32.xlu0 %v3479, 64
    %v3765 = vpop.permute.xlu0 %3764
    %3766 = vrot.lane.b32.xlu0 %v3480, 64
    %v3767 = vpop.permute.xlu0 %3766
    %3768 = vrot.lane.b32.xlu0 %v3481, 64
    %v3769 = vpop.permute.xlu0 %3768
    %vm3770 = vcmask 523264
    %v3771 = vsel %vm3770, %v3739, %v3741
    %v3772 = vsel %vm3770, %v3741, %v3743
    %v3773 = vsel %vm3770, %v3743, %v3745
    %v3774 = vsel %vm3770, %v3747, %v3749
    %v3775 = vsel %vm3770, %v3749, %v3751
    %v3776 = vsel %vm3770, %v3751, %v3753
    %v3777 = vsel %vm3770, %v3755, %v3757
    %v3778 = vsel %vm3770, %v3757, %v3759
    %v3779 = vsel %vm3770, %v3759, %v3761
    %v3780 = vsel %vm3770, %v3763, %v3765
    %v3781 = vsel %vm3770, %v3765, %v3767
    %v3782 = vsel %vm3770, %v3767, %v3769
    %v3797 = vsel %vm3388, %v3629, %v3739
    %v3801 = vsel %vm3388, %v3633, %v3747
    %v3805 = vsel %vm3388, %v3637, %v3755
    %v3809 = vsel %vm3388, %v3641, %v3763
    %v3811 = vld [vmem:[#allocation9] sm:$0xff]
    %v3812 = vld [vmem:[#allocation9 + $0x8] sm:$0xff]
    %v3813 = vld [vmem:[#allocation9 + $0x10] sm:$0xff]
    %v3814 = vld [vmem:[#allocation9 + $0x18] sm:$0xf]
    %v3815 = vld [vmem:[#allocation9 + $0x1c] sm:$0xff]
    %v3816 = vld [vmem:[#allocation9 + $0x24] sm:$0xff]
    %v3817 = vld [vmem:[#allocation9 + $0x2c] sm:$0xff]
    %v3818 = vld [vmem:[#allocation9 + $0x34] sm:$0xf]
    %v3819 = vld [vmem:[#allocation9 + $0x38] sm:$0xff]
    %v3820 = vld [vmem:[#allocation9 + $0x40] sm:$0xff]
    %v3821 = vld [vmem:[#allocation9 + $0x48] sm:$0xff]
    %v3822 = vld [vmem:[#allocation9 + $0x50] sm:$0xf]
    %v3823 = vld [vmem:[#allocation9 + $0x54] sm:$0xff]
    %v3824 = vld [vmem:[#allocation9 + $0x5c] sm:$0xff]
    %v3825 = vld [vmem:[#allocation9 + $0x64] sm:$0xff]
    %v3826 = vld [vmem:[#allocation9 + $0x6c] sm:$0xf]
    %v3827 = vld [vmem:[#allocation9 + $0x70] sm:$0xff]
    %v3828 = vld [vmem:[#allocation9 + $0x78] sm:$0xff]
    %v3829 = vld [vmem:[#allocation9 + $0x80] sm:$0xff]
    %v3830 = vld [vmem:[#allocation9 + $0x88] sm:$0xf]
    %v3831 = vld [vmem:[#allocation9 + $0x8c] sm:$0xff]
    %v3832 = vld [vmem:[#allocation9 + $0x94] sm:$0xff]
    %v3833 = vld [vmem:[#allocation9 + $0x9c] sm:$0xff]
    %v3834 = vld [vmem:[#allocation9 + $0xa4] sm:$0xf]
    %v3835 = vld [vmem:[#allocation9 + $0xa8] sm:$0xff]
    %v3836 = vld [vmem:[#allocation9 + $0xb0] sm:$0xff]
    %v3837 = vld [vmem:[#allocation9 + $0xb8] sm:$0xff]
    %v3838 = vld [vmem:[#allocation9 + $0xc0] sm:$0xf]
    %v3839 = vld [vmem:[#allocation9 + $0xc4] sm:$0xff]
    %v3840 = vld [vmem:[#allocation9 + $0xcc] sm:$0xff]
    %v3841 = vld [vmem:[#allocation9 + $0xd4] sm:$0xff]
    %v3842 = vld [vmem:[#allocation9 + $0xdc] sm:$0xf]
    %v3843 = vld [vmem:[#allocation9 + $0xe0] sm:$0xff]
    %v3844 = vld [vmem:[#allocation9 + $0xe8] sm:$0xff]
    %v3845 = vld [vmem:[#allocation9 + $0xf0] sm:$0xff]
    %v3846 = vld [vmem:[#allocation9 + $0xf8] sm:$0xf]
    %v3847 = vld [vmem:[#allocation9 + $0xfc] sm:$0xff]
    %v3848 = vld [vmem:[#allocation9 + $0x104] sm:$0xff]
    %v3849 = vld [vmem:[#allocation9 + $0x10c] sm:$0xff]
    %v3850 = vld [vmem:[#allocation9 + $0x114] sm:$0xf]
    %v3851 = vld [vmem:[#allocation9 + $0x118] sm:$0xff]
    %v3852 = vld [vmem:[#allocation9 + $0x120] sm:$0xff]
    %v3853 = vld [vmem:[#allocation9 + $0x128] sm:$0xff]
    %v3854 = vld [vmem:[#allocation9 + $0x130] sm:$0xf]
    %v3855 = vld [vmem:[#allocation9 + $0x134] sm:$0xff]
    %v3856 = vld [vmem:[#allocation9 + $0x13c] sm:$0xff]
    %v3857 = vld [vmem:[#allocation9 + $0x144] sm:$0xff]
    %v3858 = vld [vmem:[#allocation9 + $0x14c] sm:$0xf]
    %v3859 = vld [vmem:[#allocation9 + $0x150] sm:$0xff]
    %v3860 = vld [vmem:[#allocation9 + $0x158] sm:$0xff]
    %v3861 = vld [vmem:[#allocation9 + $0x160] sm:$0xff]
    %v3862 = vld [vmem:[#allocation9 + $0x168] sm:$0xf]
    %v3863 = vld [vmem:[#allocation9 + $0x16c] sm:$0xff]
    %v3864 = vld [vmem:[#allocation9 + $0x174] sm:$0xff]
    %v3865 = vld [vmem:[#allocation9 + $0x17c] sm:$0xff]
    %v3866 = vld [vmem:[#allocation9 + $0x184] sm:$0xf]
    %v3867 = vld [vmem:[#allocation9 + $0x188] sm:$0xff]
    %v3868 = vld [vmem:[#allocation9 + $0x190] sm:$0xff]
    %v3869 = vld [vmem:[#allocation9 + $0x198] sm:$0xff]
    %v3870 = vld [vmem:[#allocation9 + $0x1a0] sm:$0xf]
    %v3871 = vld [vmem:[#allocation9 + $0x1a4] sm:$0xff]
    %v3872 = vld [vmem:[#allocation9 + $0x1ac] sm:$0xff]
    %v3873 = vld [vmem:[#allocation9 + $0x1b4] sm:$0xff]
    %v3874 = vld [vmem:[#allocation9 + $0x1bc] sm:$0xf]
    %v3875 = vld [vmem:[#allocation9 + $0x1c0] sm:$0xff]
    %v3876 = vld [vmem:[#allocation9 + $0x1c8] sm:$0xff]
    %v3877 = vld [vmem:[#allocation9 + $0x1d0] sm:$0xff]
    %v3878 = vld [vmem:[#allocation9 + $0x1d8] sm:$0xf]
    %v3879 = vld [vmem:[#allocation9 + $0x1dc] sm:$0xff]
    %v3880 = vld [vmem:[#allocation9 + $0x1e4] sm:$0xff]
    %v3881 = vld [vmem:[#allocation9 + $0x1ec] sm:$0xff]
    %v3882 = vld [vmem:[#allocation9 + $0x1f4] sm:$0xf]
    %v3883 = vld [vmem:[#allocation9 + $0x1f8] sm:$0xff]
    %v3884 = vld [vmem:[#allocation9 + $0x200] sm:$0xff]
    %v3885 = vld [vmem:[#allocation9 + $0x208] sm:$0xff]
    %v3886 = vld [vmem:[#allocation9 + $0x210] sm:$0xf]
    %v3887 = vld [vmem:[#allocation9 + $0x214] sm:$0xff]
    %v3888 = vld [vmem:[#allocation9 + $0x21c] sm:$0xff]
    %v3889 = vld [vmem:[#allocation9 + $0x224] sm:$0xff]
    %v3890 = vld [vmem:[#allocation9 + $0x22c] sm:$0xf]
    %v3891 = vld [vmem:[#allocation9 + $0x230] sm:$0xff]
    %v3892 = vld [vmem:[#allocation9 + $0x238] sm:$0xff]
    %v3893 = vld [vmem:[#allocation9 + $0x240] sm:$0xff]
    %v3894 = vld [vmem:[#allocation9 + $0x248] sm:$0xf]
    %v3895 = vld [vmem:[#allocation9 + $0x24c] sm:$0xff]
    %v3896 = vld [vmem:[#allocation9 + $0x254] sm:$0xff]
    %v3897 = vld [vmem:[#allocation9 + $0x25c] sm:$0xff]
    %v3898 = vld [vmem:[#allocation9 + $0x264] sm:$0xf]
    %v3899 = vld [vmem:[#allocation9 + $0x268] sm:$0xff]
    %v3900 = vld [vmem:[#allocation9 + $0x270] sm:$0xff]
    %v3901 = vld [vmem:[#allocation9 + $0x278] sm:$0xff]
    %v3902 = vld [vmem:[#allocation9 + $0x280] sm:$0xf]
    %v3903 = vld [vmem:[#allocation9 + $0x284] sm:$0xff]
    %v3904 = vld [vmem:[#allocation9 + $0x28c] sm:$0xff]
    %v3905 = vld [vmem:[#allocation9 + $0x294] sm:$0xff]
    %v3906 = vld [vmem:[#allocation9 + $0x29c] sm:$0xf]
    %v3907 = vld [vmem:[#allocation9 + $0x2a0] sm:$0xff]
    %v3908 = vld [vmem:[#allocation9 + $0x2a8] sm:$0xff]
    %v3909 = vld [vmem:[#allocation9 + $0x2b0] sm:$0xff]
    %v3910 = vld [vmem:[#allocation9 + $0x2b8] sm:$0xf]
    %v3911 = vld [vmem:[#allocation9 + $0x2bc] sm:$0xff]
    %v3912 = vld [vmem:[#allocation9 + $0x2c4] sm:$0xff]
    %v3913 = vld [vmem:[#allocation9 + $0x2cc] sm:$0xff]
    %v3914 = vld [vmem:[#allocation9 + $0x2d4] sm:$0xf]
    %v3915 = vld [vmem:[#allocation9 + $0x2d8] sm:$0xff]
    %v3916 = vld [vmem:[#allocation9 + $0x2e0] sm:$0xff]
    %v3917 = vld [vmem:[#allocation9 + $0x2e8] sm:$0xff]
    %v3918 = vld [vmem:[#allocation9 + $0x2f0] sm:$0xf]
    %v3919 = vld [vmem:[#allocation9 + $0x2f4] sm:$0xff]
    %v3920 = vld [vmem:[#allocation9 + $0x2fc] sm:$0xff]
    %v3921 = vld [vmem:[#allocation9 + $0x304] sm:$0xff]
    %v3922 = vld [vmem:[#allocation9 + $0x30c] sm:$0xf]
    %v3923 = vld [vmem:[#allocation9 + $0x310] sm:$0xff]
    %v3924 = vld [vmem:[#allocation9 + $0x318] sm:$0xff]
    %v3925 = vld [vmem:[#allocation9 + $0x320] sm:$0xff]
    %v3926 = vld [vmem:[#allocation9 + $0x328] sm:$0xf]
    %v3927 = vld [vmem:[#allocation9 + $0x32c] sm:$0xff]
    %v3928 = vld [vmem:[#allocation9 + $0x334] sm:$0xff]
    %v3929 = vld [vmem:[#allocation9 + $0x33c] sm:$0xff]
    %v3930 = vld [vmem:[#allocation9 + $0x344] sm:$0xf]
    %v3931 = vld [vmem:[#allocation9 + $0x348] sm:$0xff]
    %v3932 = vld [vmem:[#allocation9 + $0x350] sm:$0xff]
    %v3933 = vld [vmem:[#allocation9 + $0x358] sm:$0xff]
    %v3934 = vld [vmem:[#allocation9 + $0x360] sm:$0xf]
    %v3935 = vld [vmem:[#allocation9 + $0x364] sm:$0xff]
    %v3936 = vld [vmem:[#allocation9 + $0x36c] sm:$0xff]
    %v3937 = vld [vmem:[#allocation9 + $0x374] sm:$0xff]
    %v3938 = vld [vmem:[#allocation9 + $0x37c] sm:$0xf]
    %v3939 = vld [vmem:[#allocation9 + $0x380] sm:$0xff]
    %v3940 = vld [vmem:[#allocation9 + $0x388] sm:$0xff]
    %v3941 = vld [vmem:[#allocation9 + $0x390] sm:$0xff]
    %v3942 = vld [vmem:[#allocation9 + $0x398] sm:$0xf]
    %v3943 = vld [vmem:[#allocation9 + $0x39c] sm:$0xff]
    %v3944 = vld [vmem:[#allocation9 + $0x3a4] sm:$0xff]
    %v3945 = vld [vmem:[#allocation9 + $0x3ac] sm:$0xff]
    %v3946 = vld [vmem:[#allocation9 + $0x3b4] sm:$0xf]
    %v3947 = vld [vmem:[#allocation9 + $0x3b8] sm:$0xff]
    %v3948 = vld [vmem:[#allocation9 + $0x3c0] sm:$0xff]
    %v3949 = vld [vmem:[#allocation9 + $0x3c8] sm:$0xff]
    %v3950 = vld [vmem:[#allocation9 + $0x3d0] sm:$0xf]
    %v3951 = vld [vmem:[#allocation9 + $0x3d4] sm:$0xff]
    %v3952 = vld [vmem:[#allocation9 + $0x3dc] sm:$0xff]
    %v3953 = vld [vmem:[#allocation9 + $0x3e4] sm:$0xff]
    %v3954 = vld [vmem:[#allocation9 + $0x3ec] sm:$0xf]
    %v3955 = vld [vmem:[#allocation9 + $0x3f0] sm:$0xff]
    %v3956 = vld [vmem:[#allocation9 + $0x3f8] sm:$0xff]
    %v3957 = vld [vmem:[#allocation9 + $0x400] sm:$0xff]
    %v3958 = vld [vmem:[#allocation9 + $0x408] sm:$0xf]
    %v3959 = vld [vmem:[#allocation9 + $0x40c] sm:$0xff]
    %v3960 = vld [vmem:[#allocation9 + $0x414] sm:$0xff]
    %v3961 = vld [vmem:[#allocation9 + $0x41c] sm:$0xff]
    %v3962 = vld [vmem:[#allocation9 + $0x424] sm:$0xf]
    %v3963 = vld [vmem:[#allocation9 + $0x428] sm:$0xff]
    %v3964 = vld [vmem:[#allocation9 + $0x430] sm:$0xff]
    %v3965 = vld [vmem:[#allocation9 + $0x438] sm:$0xff]
    %v3966 = vld [vmem:[#allocation9 + $0x440] sm:$0xf]
    %v3967 = vld [vmem:[#allocation9 + $0x444] sm:$0xff]
    %v3968 = vld [vmem:[#allocation9 + $0x44c] sm:$0xff]
    %v3969 = vld [vmem:[#allocation9 + $0x454] sm:$0xff]
    %v3970 = vld [vmem:[#allocation9 + $0x45c] sm:$0xf]
    %v3971 = vld [vmem:[#allocation9 + $0x460] sm:$0xff]
    %v3972 = vld [vmem:[#allocation9 + $0x468] sm:$0xff]
    %v3973 = vld [vmem:[#allocation9 + $0x470] sm:$0xff]
    %v3974 = vld [vmem:[#allocation9 + $0x478] sm:$0xf]
    %v3975 = vld [vmem:[#allocation9 + $0x47c] sm:$0xff]
    %v3976 = vld [vmem:[#allocation9 + $0x484] sm:$0xff]
    %v3977 = vld [vmem:[#allocation9 + $0x48c] sm:$0xff]
    %v3978 = vld [vmem:[#allocation9 + $0x494] sm:$0xf]
    %v3979 = vld [vmem:[#allocation9 + $0x498] sm:$0xff]
    %v3980 = vld [vmem:[#allocation9 + $0x4a0] sm:$0xff]
    %v3981 = vld [vmem:[#allocation9 + $0x4a8] sm:$0xff]
    %v3982 = vld [vmem:[#allocation9 + $0x4b0] sm:$0xf]
    %v3983 = vld [vmem:[#allocation9 + $0x4b4] sm:$0xff]
    %v3984 = vld [vmem:[#allocation9 + $0x4bc] sm:$0xff]
    %v3985 = vld [vmem:[#allocation9 + $0x4c4] sm:$0xff]
    %v3986 = vld [vmem:[#allocation9 + $0x4cc] sm:$0xf]
    %v3987 = vld [vmem:[#allocation9 + $0x4d0] sm:$0xff]
    %v3988 = vld [vmem:[#allocation9 + $0x4d8] sm:$0xff]
    %v3989 = vld [vmem:[#allocation9 + $0x4e0] sm:$0xff]
    %v3990 = vld [vmem:[#allocation9 + $0x4e8] sm:$0xf]
    %v3991 = vld [vmem:[#allocation9 + $0x4ec] sm:$0xff]
    %v3992 = vld [vmem:[#allocation9 + $0x4f4] sm:$0xff]
    %v3993 = vld [vmem:[#allocation9 + $0x4fc] sm:$0xff]
    %v3994 = vld [vmem:[#allocation9 + $0x504] sm:$0xf]
    %v3995 = vld [vmem:[#allocation9 + $0x508] sm:$0xff]
    %v3996 = vld [vmem:[#allocation9 + $0x510] sm:$0xff]
    %v3997 = vld [vmem:[#allocation9 + $0x518] sm:$0xff]
    %v3998 = vld [vmem:[#allocation9 + $0x520] sm:$0xf]
    %v3999 = vld [vmem:[#allocation9 + $0x524] sm:$0xff]
    %v4000 = vld [vmem:[#allocation9 + $0x52c] sm:$0xff]
    %v4001 = vld [vmem:[#allocation9 + $0x534] sm:$0xff]
    %v4002 = vld [vmem:[#allocation9 + $0x53c] sm:$0xf]
    %v4003 = vld [vmem:[#allocation9 + $0x540] sm:$0xff]
    %v4004 = vld [vmem:[#allocation9 + $0x548] sm:$0xff]
    %v4005 = vld [vmem:[#allocation9 + $0x550] sm:$0xff]
    %v4006 = vld [vmem:[#allocation9 + $0x558] sm:$0xf]
    %v4007 = vld [vmem:[#allocation9 + $0x55c] sm:$0xff]
    %v4008 = vld [vmem:[#allocation9 + $0x564] sm:$0xff]
    %v4009 = vld [vmem:[#allocation9 + $0x56c] sm:$0xff]
    %v4010 = vld [vmem:[#allocation9 + $0x574] sm:$0xf]
    %v4011 = vld [vmem:[#allocation9 + $0x578] sm:$0xff]
    %v4012 = vld [vmem:[#allocation9 + $0x580] sm:$0xff]
    %v4013 = vld [vmem:[#allocation9 + $0x588] sm:$0xff]
    %v4014 = vld [vmem:[#allocation9 + $0x590] sm:$0xf]
    %v4015 = vld [vmem:[#allocation9 + $0x594] sm:$0xff]
    %v4016 = vld [vmem:[#allocation9 + $0x59c] sm:$0xff]
    %v4017 = vld [vmem:[#allocation9 + $0x5a4] sm:$0xff]
    %v4018 = vld [vmem:[#allocation9 + $0x5ac] sm:$0xf]
    %v4019 = vld [vmem:[#allocation9 + $0x5b0] sm:$0xff]
    %v4020 = vld [vmem:[#allocation9 + $0x5b8] sm:$0xff]
    %v4021 = vld [vmem:[#allocation9 + $0x5c0] sm:$0xff]
    %v4022 = vld [vmem:[#allocation9 + $0x5c8] sm:$0xf]
    %v4023 = vld [vmem:[#allocation9 + $0x5cc] sm:$0xff]
    %v4024 = vld [vmem:[#allocation9 + $0x5d4] sm:$0xff]
    %v4025 = vld [vmem:[#allocation9 + $0x5dc] sm:$0xff]
    %v4026 = vld [vmem:[#allocation9 + $0x5e4] sm:$0xf]
    %v4027 = vld [vmem:[#allocation9 + $0x5e8] sm:$0xff]
    %v4028 = vld [vmem:[#allocation9 + $0x5f0] sm:$0xff]
    %v4029 = vld [vmem:[#allocation9 + $0x5f8] sm:$0xff]
    %v4030 = vld [vmem:[#allocation9 + $0x600] sm:$0xf]
    %v4031 = vld [vmem:[#allocation9 + $0x604] sm:$0xff]
    %v4032 = vld [vmem:[#allocation9 + $0x60c] sm:$0xff]
    %v4033 = vld [vmem:[#allocation9 + $0x614] sm:$0xff]
    %v4034 = vld [vmem:[#allocation9 + $0x61c] sm:$0xf]
    %v4035 = vld [vmem:[#allocation9 + $0x620] sm:$0xff]
    %v4036 = vld [vmem:[#allocation9 + $0x628] sm:$0xff]
    %v4037 = vld [vmem:[#allocation9 + $0x630] sm:$0xff]
    %v4038 = vld [vmem:[#allocation9 + $0x638] sm:$0xf]
    %v4039 = vld [vmem:[#allocation9 + $0x63c] sm:$0xff]
    %v4040 = vld [vmem:[#allocation9 + $0x644] sm:$0xff]
    %v4041 = vld [vmem:[#allocation9 + $0x64c] sm:$0xff]
    %v4042 = vld [vmem:[#allocation9 + $0x654] sm:$0xf]
    %v4043 = vld [vmem:[#allocation9 + $0x658] sm:$0xff]
    %v4044 = vld [vmem:[#allocation9 + $0x660] sm:$0xff]
    %v4045 = vld [vmem:[#allocation9 + $0x668] sm:$0xff]
    %v4046 = vld [vmem:[#allocation9 + $0x670] sm:$0xf]
    %v4047 = vld [vmem:[#allocation9 + $0x674] sm:$0xff]
    %v4048 = vld [vmem:[#allocation9 + $0x67c] sm:$0xff]
    %v4049 = vld [vmem:[#allocation9 + $0x684] sm:$0xff]
    %v4050 = vld [vmem:[#allocation9 + $0x68c] sm:$0xf]
    %v4051 = vld [vmem:[#allocation9 + $0x690] sm:$0xff]
    %v4052 = vld [vmem:[#allocation9 + $0x698] sm:$0xff]
    %v4053 = vld [vmem:[#allocation9 + $0x6a0] sm:$0xff]
    %v4054 = vld [vmem:[#allocation9 + $0x6a8] sm:$0xf]
    %v4055 = vld [vmem:[#allocation9 + $0x6ac] sm:$0xff]
    %v4056 = vld [vmem:[#allocation9 + $0x6b4] sm:$0xff]
    %v4057 = vld [vmem:[#allocation9 + $0x6bc] sm:$0xff]
    %v4058 = vld [vmem:[#allocation9 + $0x6c4] sm:$0xf]
    %v4059 = vld [vmem:[#allocation9 + $0x6c8] sm:$0xff]
    %v4060 = vld [vmem:[#allocation9 + $0x6d0] sm:$0xff]
    %v4061 = vld [vmem:[#allocation9 + $0x6d8] sm:$0xff]
    %v4062 = vld [vmem:[#allocation9 + $0x6e0] sm:$0xf]
    %v4063 = vld [vmem:[#allocation9 + $0x6e4] sm:$0xff]
    %v4064 = vld [vmem:[#allocation9 + $0x6ec] sm:$0xff]
    %v4065 = vld [vmem:[#allocation9 + $0x6f4] sm:$0xff]
    %v4066 = vld [vmem:[#allocation9 + $0x6fc] sm:$0xf]
    %v4067 = vld [vmem:[#allocation9 + $0x700] sm:$0xff]
    %v4068 = vld [vmem:[#allocation9 + $0x708] sm:$0xff]
    %v4069 = vld [vmem:[#allocation9 + $0x710] sm:$0xff]
    %v4070 = vld [vmem:[#allocation9 + $0x718] sm:$0xf]
    %v4071 = vld [vmem:[#allocation9 + $0x71c] sm:$0xff]
    %v4072 = vld [vmem:[#allocation9 + $0x724] sm:$0xff]
    %v4073 = vld [vmem:[#allocation9 + $0x72c] sm:$0xff]
    %v4074 = vld [vmem:[#allocation9 + $0x734] sm:$0xf]
    %v4075 = vld [vmem:[#allocation9 + $0x738] sm:$0xff]
    %v4076 = vld [vmem:[#allocation9 + $0x740] sm:$0xff]
    %v4077 = vld [vmem:[#allocation9 + $0x748] sm:$0xff]
    %v4078 = vld [vmem:[#allocation9 + $0x750] sm:$0xf]
    %v4079 = vld [vmem:[#allocation9 + $0x754] sm:$0xff]
    %v4080 = vld [vmem:[#allocation9 + $0x75c] sm:$0xff]
    %v4081 = vld [vmem:[#allocation9 + $0x764] sm:$0xff]
    %v4082 = vld [vmem:[#allocation9 + $0x76c] sm:$0xf]
    %v4083 = vld [vmem:[#allocation9 + $0x770] sm:$0xff]
    %v4084 = vld [vmem:[#allocation9 + $0x778] sm:$0xff]
    %v4085 = vld [vmem:[#allocation9 + $0x780] sm:$0xff]
    %v4086 = vld [vmem:[#allocation9 + $0x788] sm:$0xf]
    %v4087 = vld [vmem:[#allocation9 + $0x78c] sm:$0xff]
    %v4088 = vld [vmem:[#allocation9 + $0x794] sm:$0xff]
    %v4089 = vld [vmem:[#allocation9 + $0x79c] sm:$0xff]
    %v4090 = vld [vmem:[#allocation9 + $0x7a4] sm:$0xf]
    %v4091 = vld [vmem:[#allocation9 + $0x7a8] sm:$0xff]
    %v4092 = vld [vmem:[#allocation9 + $0x7b0] sm:$0xff]
    %v4093 = vld [vmem:[#allocation9 + $0x7b8] sm:$0xff]
    %v4094 = vld [vmem:[#allocation9 + $0x7c0] sm:$0xf]
    %v4095 = vld [vmem:[#allocation9 + $0x7c4] sm:$0xff]
    %v4096 = vld [vmem:[#allocation9 + $0x7cc] sm:$0xff]
    %v4097 = vld [vmem:[#allocation9 + $0x7d4] sm:$0xff]
    %v4098 = vld [vmem:[#allocation9 + $0x7dc] sm:$0xf]
    %v4099 = vld [vmem:[#allocation9 + $0x7e0] sm:$0xff]
    %v4100 = vld [vmem:[#allocation9 + $0x7e8] sm:$0xff]
    %v4101 = vld [vmem:[#allocation9 + $0x7f0] sm:$0xff]
    %v4102 = vld [vmem:[#allocation9 + $0x7f8] sm:$0xf]
    %v4103 = vld [vmem:[#allocation9 + $0x7fc] sm:$0xff]
    %v4104 = vld [vmem:[#allocation9 + $0x804] sm:$0xff]
    %v4105 = vld [vmem:[#allocation9 + $0x80c] sm:$0xff]
    %v4106 = vld [vmem:[#allocation9 + $0x814] sm:$0xf]
    %v4107 = vld [vmem:[#allocation9 + $0x818] sm:$0xff]
    %v4108 = vld [vmem:[#allocation9 + $0x820] sm:$0xff]
    %v4109 = vld [vmem:[#allocation9 + $0x828] sm:$0xff]
    %v4110 = vld [vmem:[#allocation9 + $0x830] sm:$0xf]
    %v4111 = vld [vmem:[#allocation9 + $0x834] sm:$0xff]
    %v4112 = vld [vmem:[#allocation9 + $0x83c] sm:$0xff]
    %v4113 = vld [vmem:[#allocation9 + $0x844] sm:$0xff]
    %v4114 = vld [vmem:[#allocation9 + $0x84c] sm:$0xf]
    %v4115 = vld [vmem:[#allocation9 + $0x850] sm:$0xff]
    %v4116 = vld [vmem:[#allocation9 + $0x858] sm:$0xff]
    %v4117 = vld [vmem:[#allocation9 + $0x860] sm:$0xff]
    %v4118 = vld [vmem:[#allocation9 + $0x868] sm:$0xf]
    %v4119 = vld [vmem:[#allocation9 + $0x86c] sm:$0xff]
    %v4120 = vld [vmem:[#allocation9 + $0x874] sm:$0xff]
    %v4121 = vld [vmem:[#allocation9 + $0x87c] sm:$0xff]
    %v4122 = vld [vmem:[#allocation9 + $0x884] sm:$0xf]
    %v4123 = vld [vmem:[#allocation9 + $0x888] sm:$0xff]
    %v4124 = vld [vmem:[#allocation9 + $0x890] sm:$0xff]
    %v4125 = vld [vmem:[#allocation9 + $0x898] sm:$0xff]
    %v4126 = vld [vmem:[#allocation9 + $0x8a0] sm:$0xf]
    %v4127 = vld [vmem:[#allocation9 + $0x8a4] sm:$0xff]
    %v4128 = vld [vmem:[#allocation9 + $0x8ac] sm:$0xff]
    %v4129 = vld [vmem:[#allocation9 + $0x8b4] sm:$0xff]
    %v4130 = vld [vmem:[#allocation9 + $0x8bc] sm:$0xf]
    %v4131 = vld [vmem:[#allocation9 + $0x8c0] sm:$0xff]
    %v4132 = vld [vmem:[#allocation9 + $0x8c8] sm:$0xff]
    %v4133 = vld [vmem:[#allocation9 + $0x8d0] sm:$0xff]
    %v4134 = vld [vmem:[#allocation9 + $0x8d8] sm:$0xf]
    %v4135 = vld [vmem:[#allocation9 + $0x8dc] sm:$0xff]
    %v4136 = vld [vmem:[#allocation9 + $0x8e4] sm:$0xff]
    %v4137 = vld [vmem:[#allocation9 + $0x8ec] sm:$0xff]
    %v4138 = vld [vmem:[#allocation9 + $0x8f4] sm:$0xf]
    %v4139 = vld [vmem:[#allocation9 + $0x8f8] sm:$0xff]
    %v4140 = vld [vmem:[#allocation9 + $0x900] sm:$0xff]
    %v4141 = vld [vmem:[#allocation9 + $0x908] sm:$0xff]
    %v4142 = vld [vmem:[#allocation9 + $0x910] sm:$0xf]
    %v4143 = vld [vmem:[#allocation9 + $0x914] sm:$0xff]
    %v4144 = vld [vmem:[#allocation9 + $0x91c] sm:$0xff]
    %v4145 = vld [vmem:[#allocation9 + $0x924] sm:$0xff]
    %v4146 = vld [vmem:[#allocation9 + $0x92c] sm:$0xf]
    %v4147 = vld [vmem:[#allocation9 + $0x930] sm:$0xff]
    %v4148 = vld [vmem:[#allocation9 + $0x938] sm:$0xff]
    %v4149 = vld [vmem:[#allocation9 + $0x940] sm:$0xff]
    %v4150 = vld [vmem:[#allocation9 + $0x948] sm:$0xf]
    %v4151 = vld [vmem:[#allocation9 + $0x94c] sm:$0xff]
    %v4152 = vld [vmem:[#allocation9 + $0x954] sm:$0xff]
    %v4153 = vld [vmem:[#allocation9 + $0x95c] sm:$0xff]
    %v4154 = vld [vmem:[#allocation9 + $0x964] sm:$0xf]
    %v4155 = vld [vmem:[#allocation9 + $0x968] sm:$0xff]
    %v4156 = vld [vmem:[#allocation9 + $0x970] sm:$0xff]
    %v4157 = vld [vmem:[#allocation9 + $0x978] sm:$0xff]
    %v4158 = vld [vmem:[#allocation9 + $0x980] sm:$0xf]
    %v4159 = vld [vmem:[#allocation9 + $0x984] sm:$0xff]
    %v4160 = vld [vmem:[#allocation9 + $0x98c] sm:$0xff]
    %v4161 = vld [vmem:[#allocation9 + $0x994] sm:$0xff]
    %v4162 = vld [vmem:[#allocation9 + $0x99c] sm:$0xf]
    %v4163 = vld [vmem:[#allocation9 + $0x9a0] sm:$0xff]
    %v4164 = vld [vmem:[#allocation9 + $0x9a8] sm:$0xff]
    %v4165 = vld [vmem:[#allocation9 + $0x9b0] sm:$0xff]
    %v4166 = vld [vmem:[#allocation9 + $0x9b8] sm:$0xf]
    %v4167 = vld [vmem:[#allocation9 + $0x9bc] sm:$0xff]
    %v4168 = vld [vmem:[#allocation9 + $0x9c4] sm:$0xff]
    %v4169 = vld [vmem:[#allocation9 + $0x9cc] sm:$0xff]
    %v4170 = vld [vmem:[#allocation9 + $0x9d4] sm:$0xf]
    %v4171 = vld [vmem:[#allocation9 + $0x9d8] sm:$0xff]
    %v4172 = vld [vmem:[#allocation9 + $0x9e0] sm:$0xff]
    %v4173 = vld [vmem:[#allocation9 + $0x9e8] sm:$0xff]
    %v4174 = vld [vmem:[#allocation9 + $0x9f0] sm:$0xf]
    %v4175 = vld [vmem:[#allocation9 + $0x9f4] sm:$0xff]
    %v4176 = vld [vmem:[#allocation9 + $0x9fc] sm:$0xff]
    %v4177 = vld [vmem:[#allocation9 + $0xa04] sm:$0xff]
    %v4178 = vld [vmem:[#allocation9 + $0xa0c] sm:$0xf]
    %v4179 = vld [vmem:[#allocation9 + $0xa10] sm:$0xff]
    %v4180 = vld [vmem:[#allocation9 + $0xa18] sm:$0xff]
    %v4181 = vld [vmem:[#allocation9 + $0xa20] sm:$0xff]
    %v4182 = vld [vmem:[#allocation9 + $0xa28] sm:$0xf]
    %v4183 = vld [vmem:[#allocation9 + $0xa2c] sm:$0xff]
    %v4184 = vld [vmem:[#allocation9 + $0xa34] sm:$0xff]
    %v4185 = vld [vmem:[#allocation9 + $0xa3c] sm:$0xff]
    %v4186 = vld [vmem:[#allocation9 + $0xa44] sm:$0xf]
    %v4187 = vld [vmem:[#allocation9 + $0xa48] sm:$0xff]
    %v4188 = vld [vmem:[#allocation9 + $0xa50] sm:$0xff]
    %v4189 = vld [vmem:[#allocation9 + $0xa58] sm:$0xff]
    %v4190 = vld [vmem:[#allocation9 + $0xa60] sm:$0xf]
    %v4191 = vld [vmem:[#allocation9 + $0xa64] sm:$0xff]
    %v4192 = vld [vmem:[#allocation9 + $0xa6c] sm:$0xff]
    %v4193 = vld [vmem:[#allocation9 + $0xa74] sm:$0xff]
    %v4194 = vld [vmem:[#allocation9 + $0xa7c] sm:$0xf]
    %v4195 = vld [vmem:[#allocation9 + $0xa80] sm:$0xff]
    %v4196 = vld [vmem:[#allocation9 + $0xa88] sm:$0xff]
    %v4197 = vld [vmem:[#allocation9 + $0xa90] sm:$0xff]
    %v4198 = vld [vmem:[#allocation9 + $0xa98] sm:$0xf]
    %v4199 = vld [vmem:[#allocation9 + $0xa9c] sm:$0xff]
    %v4200 = vld [vmem:[#allocation9 + $0xaa4] sm:$0xff]
    %v4201 = vld [vmem:[#allocation9 + $0xaac] sm:$0xff]
    %v4202 = vld [vmem:[#allocation9 + $0xab4] sm:$0xf]
    %v4203 = vld [vmem:[#allocation9 + $0xab8] sm:$0xff]
    %v4204 = vld [vmem:[#allocation9 + $0xac0] sm:$0xff]
    %v4205 = vld [vmem:[#allocation9 + $0xac8] sm:$0xff]
    %v4206 = vld [vmem:[#allocation9 + $0xad0] sm:$0xf]
    %v4207 = vld [vmem:[#allocation9 + $0xad4] sm:$0xff]
    %v4208 = vld [vmem:[#allocation9 + $0xadc] sm:$0xff]
    %v4209 = vld [vmem:[#allocation9 + $0xae4] sm:$0xff]
    %v4210 = vld [vmem:[#allocation9 + $0xaec] sm:$0xf]
    %v4211 = vld [vmem:[#allocation9 + $0xaf0] sm:$0xff]
    %v4212 = vld [vmem:[#allocation9 + $0xaf8] sm:$0xff]
    %v4213 = vld [vmem:[#allocation9 + $0xb00] sm:$0xff]
    %v4214 = vld [vmem:[#allocation9 + $0xb08] sm:$0xf]
    %v4215 = vld [vmem:[#allocation9 + $0xb0c] sm:$0xff]
    %v4216 = vld [vmem:[#allocation9 + $0xb14] sm:$0xff]
    %v4217 = vld [vmem:[#allocation9 + $0xb1c] sm:$0xff]
    %v4218 = vld [vmem:[#allocation9 + $0xb24] sm:$0xf]
    %v4219 = vld [vmem:[#allocation9 + $0xb28] sm:$0xff]
    %v4220 = vld [vmem:[#allocation9 + $0xb30] sm:$0xff]
    %v4221 = vld [vmem:[#allocation9 + $0xb38] sm:$0xff]
    %v4222 = vld [vmem:[#allocation9 + $0xb40] sm:$0xf]
    %v4223 = vld [vmem:[#allocation9 + $0xb44] sm:$0xff]
    %v4224 = vld [vmem:[#allocation9 + $0xb4c] sm:$0xff]
    %v4225 = vld [vmem:[#allocation9 + $0xb54] sm:$0xff]
    %v4226 = vld [vmem:[#allocation9 + $0xb5c] sm:$0xf]
    %v4227 = vld [vmem:[#allocation9 + $0xb60] sm:$0xff]
    %v4228 = vld [vmem:[#allocation9 + $0xb68] sm:$0xff]
    %v4229 = vld [vmem:[#allocation9 + $0xb70] sm:$0xff]
    %v4230 = vld [vmem:[#allocation9 + $0xb78] sm:$0xf]
    %v4231 = vld [vmem:[#allocation9 + $0xb7c] sm:$0xff]
    %v4232 = vld [vmem:[#allocation9 + $0xb84] sm:$0xff]
    %v4233 = vld [vmem:[#allocation9 + $0xb8c] sm:$0xff]
    %v4234 = vld [vmem:[#allocation9 + $0xb94] sm:$0xf]
    %v4235 = vld [vmem:[#allocation9 + $0xb98] sm:$0xff]
    %v4236 = vld [vmem:[#allocation9 + $0xba0] sm:$0xff]
    %v4237 = vld [vmem:[#allocation9 + $0xba8] sm:$0xff]
    %v4238 = vld [vmem:[#allocation9 + $0xbb0] sm:$0xf]
    %v4239 = vld [vmem:[#allocation9 + $0xbb4] sm:$0xff]
    %v4240 = vld [vmem:[#allocation9 + $0xbbc] sm:$0xff]
    %v4241 = vld [vmem:[#allocation9 + $0xbc4] sm:$0xff]
    %v4242 = vld [vmem:[#allocation9 + $0xbcc] sm:$0xf]
    %v4243 = vld [vmem:[#allocation9 + $0xbd0] sm:$0xff]
    %v4244 = vld [vmem:[#allocation9 + $0xbd8] sm:$0xff]
    %v4245 = vld [vmem:[#allocation9 + $0xbe0] sm:$0xff]
    %v4246 = vld [vmem:[#allocation9 + $0xbe8] sm:$0xf]
    %v4247 = vld [vmem:[#allocation9 + $0xbec] sm:$0xff]
    %v4248 = vld [vmem:[#allocation9 + $0xbf4] sm:$0xff]
    %v4249 = vld [vmem:[#allocation9 + $0xbfc] sm:$0xff]
    %v4250 = vld [vmem:[#allocation9 + $0xc04] sm:$0xf]
    %v4251 = vld [vmem:[#allocation9 + $0xc08] sm:$0xff]
    %v4252 = vld [vmem:[#allocation9 + $0xc10] sm:$0xff]
    %v4253 = vld [vmem:[#allocation9 + $0xc18] sm:$0xff]
    %v4254 = vld [vmem:[#allocation9 + $0xc20] sm:$0xf]
    %v4255 = vld [vmem:[#allocation9 + $0xc24] sm:$0xff]
    %v4256 = vld [vmem:[#allocation9 + $0xc2c] sm:$0xff]
    %v4257 = vld [vmem:[#allocation9 + $0xc34] sm:$0xff]
    %v4258 = vld [vmem:[#allocation9 + $0xc3c] sm:$0xf]
    %v4259 = vld [vmem:[#allocation9 + $0xc40] sm:$0xff]
    %v4260 = vld [vmem:[#allocation9 + $0xc48] sm:$0xff]
    %v4261 = vld [vmem:[#allocation9 + $0xc50] sm:$0xff]
    %v4262 = vld [vmem:[#allocation9 + $0xc58] sm:$0xf]
    %v4263 = vld [vmem:[#allocation9 + $0xc5c] sm:$0xff]
    %v4264 = vld [vmem:[#allocation9 + $0xc64] sm:$0xff]
    %v4265 = vld [vmem:[#allocation9 + $0xc6c] sm:$0xff]
    %v4266 = vld [vmem:[#allocation9 + $0xc74] sm:$0xf]
    %v4267 = vld [vmem:[#allocation9 + $0xc78] sm:$0xff]
    %v4268 = vld [vmem:[#allocation9 + $0xc80] sm:$0xff]
    %v4269 = vld [vmem:[#allocation9 + $0xc88] sm:$0xff]
    %v4270 = vld [vmem:[#allocation9 + $0xc90] sm:$0xf]
    %v4271 = vld [vmem:[#allocation9 + $0xc94] sm:$0xff]
    %v4272 = vld [vmem:[#allocation9 + $0xc9c] sm:$0xff]
    %v4273 = vld [vmem:[#allocation9 + $0xca4] sm:$0xff]
    %v4274 = vld [vmem:[#allocation9 + $0xcac] sm:$0xf]
    %v4275 = vld [vmem:[#allocation9 + $0xcb0] sm:$0xff]
    %v4276 = vld [vmem:[#allocation9 + $0xcb8] sm:$0xff]
    %v4277 = vld [vmem:[#allocation9 + $0xcc0] sm:$0xff]
    %v4278 = vld [vmem:[#allocation9 + $0xcc8] sm:$0xf]
    %v4279 = vld [vmem:[#allocation9 + $0xccc] sm:$0xff]
    %v4280 = vld [vmem:[#allocation9 + $0xcd4] sm:$0xff]
    %v4281 = vld [vmem:[#allocation9 + $0xcdc] sm:$0xff]
    %v4282 = vld [vmem:[#allocation9 + $0xce4] sm:$0xf]
    %v4283 = vld [vmem:[#allocation9 + $0xce8] sm:$0xff]
    %v4284 = vld [vmem:[#allocation9 + $0xcf0] sm:$0xff]
    %v4285 = vld [vmem:[#allocation9 + $0xcf8] sm:$0xff]
    %v4286 = vld [vmem:[#allocation9 + $0xd00] sm:$0xf]
    %v4287 = vld [vmem:[#allocation9 + $0xd04] sm:$0xff]
    %v4288 = vld [vmem:[#allocation9 + $0xd0c] sm:$0xff]
    %v4289 = vld [vmem:[#allocation9 + $0xd14] sm:$0xff]
    %v4290 = vld [vmem:[#allocation9 + $0xd1c] sm:$0xf]
    %v4291 = vld [vmem:[#allocation9 + $0xd20] sm:$0xff]
    %v4292 = vld [vmem:[#allocation9 + $0xd28] sm:$0xff]
    %v4293 = vld [vmem:[#allocation9 + $0xd30] sm:$0xff]
    %v4294 = vld [vmem:[#allocation9 + $0xd38] sm:$0xf]
    %v4295 = vld [vmem:[#allocation9 + $0xd3c] sm:$0xff]
    %v4296 = vld [vmem:[#allocation9 + $0xd44] sm:$0xff]
    %v4297 = vld [vmem:[#allocation9 + $0xd4c] sm:$0xff]
    %v4298 = vld [vmem:[#allocation9 + $0xd54] sm:$0xf]
    %v4299 = vld [vmem:[#allocation9 + $0xd58] sm:$0xff]
    %v4300 = vld [vmem:[#allocation9 + $0xd60] sm:$0xff]
    %v4301 = vld [vmem:[#allocation9 + $0xd68] sm:$0xff]
    %v4302 = vld [vmem:[#allocation9 + $0xd70] sm:$0xf]
    %v4303 = vld [vmem:[#allocation9 + $0xd74] sm:$0xff]
    %v4304 = vld [vmem:[#allocation9 + $0xd7c] sm:$0xff]
    %v4305 = vld [vmem:[#allocation9 + $0xd84] sm:$0xff]
    %v4306 = vld [vmem:[#allocation9 + $0xd8c] sm:$0xf]
    %v4307 = vld [vmem:[#allocation9 + $0xd90] sm:$0xff]
    %v4308 = vld [vmem:[#allocation9 + $0xd98] sm:$0xff]
    %v4309 = vld [vmem:[#allocation9 + $0xda0] sm:$0xff]
    %v4310 = vld [vmem:[#allocation9 + $0xda8] sm:$0xf]
    %v4311 = vld [vmem:[#allocation9 + $0xdac] sm:$0xff]
    %v4312 = vld [vmem:[#allocation9 + $0xdb4] sm:$0xff]
    %v4313 = vld [vmem:[#allocation9 + $0xdbc] sm:$0xff]
    %v4314 = vld [vmem:[#allocation9 + $0xdc4] sm:$0xf]
    %v4315 = vld [vmem:[#allocation9 + $0xdc8] sm:$0xff]
    %v4316 = vld [vmem:[#allocation9 + $0xdd0] sm:$0xff]
    %v4317 = vld [vmem:[#allocation9 + $0xdd8] sm:$0xff]
    %v4318 = vld [vmem:[#allocation9 + $0xde0] sm:$0xf]
    %v4319 = vld [vmem:[#allocation9 + $0xde4] sm:$0xff]
    %v4320 = vld [vmem:[#allocation9 + $0xdec] sm:$0xff]
    %v4321 = vld [vmem:[#allocation9 + $0xdf4] sm:$0xff]
    %v4322 = vld [vmem:[#allocation9 + $0xdfc] sm:$0xf]
    %v4323 = vld [vmem:[#allocation9 + $0xe00] sm:$0xff]
    %v4324 = vld [vmem:[#allocation9 + $0xe08] sm:$0xff]
    %v4325 = vld [vmem:[#allocation9 + $0xe10] sm:$0xff]
    %v4326 = vld [vmem:[#allocation9 + $0xe18] sm:$0xf]
    %v4327 = vld [vmem:[#allocation9 + $0xe1c] sm:$0xff]
    %v4328 = vld [vmem:[#allocation9 + $0xe24] sm:$0xff]
    %v4329 = vld [vmem:[#allocation9 + $0xe2c] sm:$0xff]
    %v4330 = vld [vmem:[#allocation9 + $0xe34] sm:$0xf]
    %v4331 = vld [vmem:[#allocation9 + $0xe38] sm:$0xff]
    %v4332 = vld [vmem:[#allocation9 + $0xe40] sm:$0xff]
    %v4333 = vld [vmem:[#allocation9 + $0xe48] sm:$0xff]
    %v4334 = vld [vmem:[#allocation9 + $0xe50] sm:$0xf]
    %v4335 = vld [vmem:[#allocation9 + $0xe54] sm:$0xff]
    %v4336 = vld [vmem:[#allocation9 + $0xe5c] sm:$0xff]
    %v4337 = vld [vmem:[#allocation9 + $0xe64] sm:$0xff]
    %v4338 = vld [vmem:[#allocation9 + $0xe6c] sm:$0xf]
    %v4339 = vld [vmem:[#allocation9 + $0xe70] sm:$0xff]
    %v4340 = vld [vmem:[#allocation9 + $0xe78] sm:$0xff]
    %v4341 = vld [vmem:[#allocation9 + $0xe80] sm:$0xff]
    %v4342 = vld [vmem:[#allocation9 + $0xe88] sm:$0xf]
    %v4343 = vld [vmem:[#allocation9 + $0xe8c] sm:$0xff]
    %v4344 = vld [vmem:[#allocation9 + $0xe94] sm:$0xff]
    %v4345 = vld [vmem:[#allocation9 + $0xe9c] sm:$0xff]
    %v4346 = vld [vmem:[#allocation9 + $0xea4] sm:$0xf]
    %v4347 = vld [vmem:[#allocation9 + $0xea8] sm:$0xff]
    %v4348 = vld [vmem:[#allocation9 + $0xeb0] sm:$0xff]
    %v4349 = vld [vmem:[#allocation9 + $0xeb8] sm:$0xff]
    %v4350 = vld [vmem:[#allocation9 + $0xec0] sm:$0xf]
    %v4351 = vld [vmem:[#allocation9 + $0xec4] sm:$0xff]
    %v4352 = vld [vmem:[#allocation9 + $0xecc] sm:$0xff]
    %v4353 = vld [vmem:[#allocation9 + $0xed4] sm:$0xff]
    %v4354 = vld [vmem:[#allocation9 + $0xedc] sm:$0xf]
    %v4355 = vld [vmem:[#allocation9 + $0xee0] sm:$0xff]
    %v4356 = vld [vmem:[#allocation9 + $0xee8] sm:$0xff]
    %v4357 = vld [vmem:[#allocation9 + $0xef0] sm:$0xff]
    %v4358 = vld [vmem:[#allocation9 + $0xef8] sm:$0xf]
    %v4359 = vld [vmem:[#allocation9 + $0xefc] sm:$0xff]
    %v4360 = vld [vmem:[#allocation9 + $0xf04] sm:$0xff]
    %v4361 = vld [vmem:[#allocation9 + $0xf0c] sm:$0xff]
    %v4362 = vld [vmem:[#allocation9 + $0xf14] sm:$0xf]
    %v4363 = vld [vmem:[#allocation9 + $0xf18] sm:$0xff]
    %v4364 = vld [vmem:[#allocation9 + $0xf20] sm:$0xff]
    %v4365 = vld [vmem:[#allocation9 + $0xf28] sm:$0xff]
    %v4366 = vld [vmem:[#allocation9 + $0xf30] sm:$0xf]
    %v4367 = vld [vmem:[#allocation9 + $0xf34] sm:$0xff]
    %v4368 = vld [vmem:[#allocation9 + $0xf3c] sm:$0xff]
    %v4369 = vld [vmem:[#allocation9 + $0xf44] sm:$0xff]
    %v4370 = vld [vmem:[#allocation9 + $0xf4c] sm:$0xf]
    %v4371 = vld [vmem:[#allocation9 + $0xf50] sm:$0xff]
    %v4372 = vld [vmem:[#allocation9 + $0xf58] sm:$0xff]
    %v4373 = vld [vmem:[#allocation9 + $0xf60] sm:$0xff]
    %v4374 = vld [vmem:[#allocation9 + $0xf68] sm:$0xf]
    %v4375 = vld [vmem:[#allocation9 + $0xf6c] sm:$0xff]
    %v4376 = vld [vmem:[#allocation9 + $0xf74] sm:$0xff]
    %v4377 = vld [vmem:[#allocation9 + $0xf7c] sm:$0xff]
    %v4378 = vld [vmem:[#allocation9 + $0xf84] sm:$0xf]
    %v4379 = vld [vmem:[#allocation9 + $0xf88] sm:$0xff]
    %v4380 = vld [vmem:[#allocation9 + $0xf90] sm:$0xff]
    %v4381 = vld [vmem:[#allocation9 + $0xf98] sm:$0xff]
    %v4382 = vld [vmem:[#allocation9 + $0xfa0] sm:$0xf]
    %v4383 = vld [vmem:[#allocation9 + $0xfa4] sm:$0xff]
    %v4384 = vld [vmem:[#allocation9 + $0xfac] sm:$0xff]
    %v4385 = vld [vmem:[#allocation9 + $0xfb4] sm:$0xff]
    %v4386 = vld [vmem:[#allocation9 + $0xfbc] sm:$0xf]
    %v4387 = vld [vmem:[#allocation9 + $0xfc0] sm:$0xff]
    %v4388 = vld [vmem:[#allocation9 + $0xfc8] sm:$0xff]
    %v4389 = vld [vmem:[#allocation9 + $0xfd0] sm:$0xff]
    %v4390 = vld [vmem:[#allocation9 + $0xfd8] sm:$0xf]
    %v4391 = vld [vmem:[#allocation9 + $0xfdc] sm:$0xff]
    %v4392 = vld [vmem:[#allocation9 + $0xfe4] sm:$0xff]
    %v4393 = vld [vmem:[#allocation9 + $0xfec] sm:$0xff]
    %v4394 = vld [vmem:[#allocation9 + $0xff4] sm:$0xf]
    %v4395 = vld [vmem:[#allocation9 + $0xff8] sm:$0xff]
    %v4396 = vld [vmem:[#allocation9 + $0x1000] sm:$0xff]
    %v4397 = vld [vmem:[#allocation9 + $0x1008] sm:$0xff]
    %v4398 = vld [vmem:[#allocation9 + $0x1010] sm:$0xf]
    %v4399 = vld [vmem:[#allocation9 + $0x1014] sm:$0xff]
    %v4400 = vld [vmem:[#allocation9 + $0x101c] sm:$0xff]
    %v4401 = vld [vmem:[#allocation9 + $0x1024] sm:$0xff]
    %v4402 = vld [vmem:[#allocation9 + $0x102c] sm:$0xf]
    %v4403 = vld [vmem:[#allocation9 + $0x1030] sm:$0xff]
    %v4404 = vld [vmem:[#allocation9 + $0x1038] sm:$0xff]
    %v4405 = vld [vmem:[#allocation9 + $0x1040] sm:$0xff]
    %v4406 = vld [vmem:[#allocation9 + $0x1048] sm:$0xf]
    %v4407 = vld [vmem:[#allocation9 + $0x104c] sm:$0xff]
    %v4408 = vld [vmem:[#allocation9 + $0x1054] sm:$0xff]
    %v4409 = vld [vmem:[#allocation9 + $0x105c] sm:$0xff]
    %v4410 = vld [vmem:[#allocation9 + $0x1064] sm:$0xf]
    %v4411 = vld [vmem:[#allocation9 + $0x1068] sm:$0xff]
    %v4412 = vld [vmem:[#allocation9 + $0x1070] sm:$0xff]
    %v4413 = vld [vmem:[#allocation9 + $0x1078] sm:$0xff]
    %v4414 = vld [vmem:[#allocation9 + $0x1080] sm:$0xf]
    %v4415 = vld [vmem:[#allocation9 + $0x1084] sm:$0xff]
    %v4416 = vld [vmem:[#allocation9 + $0x108c] sm:$0xff]
    %v4417 = vld [vmem:[#allocation9 + $0x1094] sm:$0xff]
    %v4418 = vld [vmem:[#allocation9 + $0x109c] sm:$0xf]
    %v4419 = vld [vmem:[#allocation9 + $0x10a0] sm:$0xff]
    %v4420 = vld [vmem:[#allocation9 + $0x10a8] sm:$0xff]
    %v4421 = vld [vmem:[#allocation9 + $0x10b0] sm:$0xff]
    %v4422 = vld [vmem:[#allocation9 + $0x10b8] sm:$0xf]
    %v4423 = vld [vmem:[#allocation9 + $0x10bc] sm:$0xff]
    %v4424 = vld [vmem:[#allocation9 + $0x10c4] sm:$0xff]
    %v4425 = vld [vmem:[#allocation9 + $0x10cc] sm:$0xff]
    %v4426 = vld [vmem:[#allocation9 + $0x10d4] sm:$0xf]
    %v4427 = vld [vmem:[#allocation9 + $0x10d8] sm:$0xff]
    %v4428 = vld [vmem:[#allocation9 + $0x10e0] sm:$0xff]
    %v4429 = vld [vmem:[#allocation9 + $0x10e8] sm:$0xff]
    %v4430 = vld [vmem:[#allocation9 + $0x10f0] sm:$0xf]
    %v4431 = vld [vmem:[#allocation9 + $0x10f4] sm:$0xff]
    %v4432 = vld [vmem:[#allocation9 + $0x10fc] sm:$0xff]
    %v4433 = vld [vmem:[#allocation9 + $0x1104] sm:$0xff]
    %v4434 = vld [vmem:[#allocation9 + $0x110c] sm:$0xf]
    %v4435 = vld [vmem:[#allocation9 + $0x1110] sm:$0xff]
    %v4436 = vld [vmem:[#allocation9 + $0x1118] sm:$0xff]
    %v4437 = vld [vmem:[#allocation9 + $0x1120] sm:$0xff]
    %v4438 = vld [vmem:[#allocation9 + $0x1128] sm:$0xf]
    %v4439 = vld [vmem:[#allocation9 + $0x112c] sm:$0xff]
    %v4440 = vld [vmem:[#allocation9 + $0x1134] sm:$0xff]
    %v4441 = vld [vmem:[#allocation9 + $0x113c] sm:$0xff]
    %v4442 = vld [vmem:[#allocation9 + $0x1144] sm:$0xf]
    %v4443 = vld [vmem:[#allocation9 + $0x1148] sm:$0xff]
    %v4444 = vld [vmem:[#allocation9 + $0x1150] sm:$0xff]
    %v4445 = vld [vmem:[#allocation9 + $0x1158] sm:$0xff]
    %v4446 = vld [vmem:[#allocation9 + $0x1160] sm:$0xf]
    %v4447 = vld [vmem:[#allocation9 + $0x1164] sm:$0xff]
    %v4448 = vld [vmem:[#allocation9 + $0x116c] sm:$0xff]
    %v4449 = vld [vmem:[#allocation9 + $0x1174] sm:$0xff]
    %v4450 = vld [vmem:[#allocation9 + $0x117c] sm:$0xf]
    %v4451 = vld [vmem:[#allocation9 + $0x1180] sm:$0xff]
    %v4452 = vld [vmem:[#allocation9 + $0x1188] sm:$0xff]
    %v4453 = vld [vmem:[#allocation9 + $0x1190] sm:$0xff]
    %v4454 = vld [vmem:[#allocation9 + $0x1198] sm:$0xf]
    %v4455 = vld [vmem:[#allocation9 + $0x119c] sm:$0xff]
    %v4456 = vld [vmem:[#allocation9 + $0x11a4] sm:$0xff]
    %v4457 = vld [vmem:[#allocation9 + $0x11ac] sm:$0xff]
    %v4458 = vld [vmem:[#allocation9 + $0x11b4] sm:$0xf]
    %v4459 = vld [vmem:[#allocation9 + $0x11b8] sm:$0xff]
    %v4460 = vld [vmem:[#allocation9 + $0x11c0] sm:$0xff]
    %v4461 = vld [vmem:[#allocation9 + $0x11c8] sm:$0xff]
    %v4462 = vld [vmem:[#allocation9 + $0x11d0] sm:$0xf]
    %v4463 = vld [vmem:[#allocation9 + $0x11d4] sm:$0xff]
    %v4464 = vld [vmem:[#allocation9 + $0x11dc] sm:$0xff]
    %v4465 = vld [vmem:[#allocation9 + $0x11e4] sm:$0xff]
    %v4466 = vld [vmem:[#allocation9 + $0x11ec] sm:$0xf]
    %v4467 = vld [vmem:[#allocation9 + $0x11f0] sm:$0xff]
    %v4468 = vld [vmem:[#allocation9 + $0x11f8] sm:$0xff]
    %v4469 = vld [vmem:[#allocation9 + $0x1200] sm:$0xff]
    %v4470 = vld [vmem:[#allocation9 + $0x1208] sm:$0xf]
    %v4471 = vld [vmem:[#allocation9 + $0x120c] sm:$0xff]
    %v4472 = vld [vmem:[#allocation9 + $0x1214] sm:$0xff]
    %v4473 = vld [vmem:[#allocation9 + $0x121c] sm:$0xff]
    %v4474 = vld [vmem:[#allocation9 + $0x1224] sm:$0xf]
    %v4475 = vld [vmem:[#allocation9 + $0x1228] sm:$0xff]
    %v4476 = vld [vmem:[#allocation9 + $0x1230] sm:$0xff]
    %v4477 = vld [vmem:[#allocation9 + $0x1238] sm:$0xff]
    %v4478 = vld [vmem:[#allocation9 + $0x1240] sm:$0xf]
    %v4479 = vld [vmem:[#allocation9 + $0x1244] sm:$0xff]
    %v4480 = vld [vmem:[#allocation9 + $0x124c] sm:$0xff]
    %v4481 = vld [vmem:[#allocation9 + $0x1254] sm:$0xff]
    %v4482 = vld [vmem:[#allocation9 + $0x125c] sm:$0xf]
    %v4483 = vld [vmem:[#allocation10] sm:$0xff]
    %v4485 = vlaneseq
    %v4486 = vshrl.u32 %v4485, 7
    %v4487 = vsub.s32 0, %v4486
    %v4488 = vrot.slane %v4483, %v4487
    %v4489 = vlaneseq
    %v4490 = vshrl.u32 %v4489, 7
    %v4491 = vsub.s32 1, %v4490
    %v4492 = vrot.slane %v4483, %v4491
    %v4493 = vlaneseq
    %v4494 = vshrl.u32 %v4493, 7
    %v4495 = vsub.s32 2, %v4494
    %v4496 = vrot.slane %v4483, %v4495
    %v4497 = vlaneseq
    %v4498 = vshrl.u32 %v4497, 7
    %v4499 = vsub.s32 3, %v4498
    %v4500 = vrot.slane %v4483, %v4499
    %v4501 = vlaneseq
    %v4502 = vshrl.u32 %v4501, 7
    %v4503 = vsub.s32 4, %v4502
    %v4504 = vrot.slane %v4483, %v4503
    %v4505 = vlaneseq
    %v4506 = vshrl.u32 %v4505, 7
    %v4507 = vsub.s32 5, %v4506
    %v4508 = vrot.slane %v4483, %v4507
    %v4509 = vlaneseq
    %v4510 = vshrl.u32 %v4509, 7
    %v4511 = vsub.s32 6, %v4510
    %v4512 = vrot.slane %v4483, %v4511
    %v5192 = vunpack.c.l.b16 %v3811
    %v5193 = vunpack.c.h.b16 %v3811
    %v5194 = vunpack.c.l.b16 %v3812
    %v5195 = vunpack.c.h.b16 %v3812
    %v5196 = vunpack.c.l.b16 %v3813
    %v5197 = vunpack.c.h.b16 %v3813
    %v5198 = vunpack.c.l.b16 %v3814
    %v5199 = vunpack.c.l.b16 %v3815
    %v5200 = vunpack.c.h.b16 %v3815
    %v5201 = vunpack.c.l.b16 %v3816
    %v5202 = vunpack.c.h.b16 %v3816
    %v5203 = vunpack.c.l.b16 %v3817
    %v5204 = vunpack.c.h.b16 %v3817
    %v5205 = vunpack.c.l.b16 %v3818
    %v5206 = vunpack.c.l.b16 %v3819
    %v5207 = vunpack.c.h.b16 %v3819
    %v5208 = vunpack.c.l.b16 %v3820
    %v5209 = vunpack.c.h.b16 %v3820
    %v5210 = vunpack.c.l.b16 %v3821
    %v5211 = vunpack.c.h.b16 %v3821
    %v5212 = vunpack.c.l.b16 %v3822
    %v5213 = vunpack.c.l.b16 %v3823
    %v5214 = vunpack.c.h.b16 %v3823
    %v5215 = vunpack.c.l.b16 %v3824
    %v5216 = vunpack.c.h.b16 %v3824
    %v5217 = vunpack.c.l.b16 %v3825
    %v5218 = vunpack.c.h.b16 %v3825
    %v5219 = vunpack.c.l.b16 %v3826
    %v5220 = vunpack.c.l.b16 %v3827
    %v5221 = vunpack.c.h.b16 %v3827
    %v5222 = vunpack.c.l.b16 %v3828
    %v5223 = vunpack.c.h.b16 %v3828
    %v5224 = vunpack.c.l.b16 %v3829
    %v5225 = vunpack.c.h.b16 %v3829
    %v5226 = vunpack.c.l.b16 %v3830
    %v5227 = vunpack.c.l.b16 %v3831
    %v5228 = vunpack.c.h.b16 %v3831
    %v5229 = vunpack.c.l.b16 %v3832
    %v5230 = vunpack.c.h.b16 %v3832
    %v5231 = vunpack.c.l.b16 %v3833
    %v5232 = vunpack.c.h.b16 %v3833
    %v5233 = vunpack.c.l.b16 %v3834
    %v5234 = vunpack.c.l.b16 %v3835
    %v5235 = vunpack.c.h.b16 %v3835
    %v5236 = vunpack.c.l.b16 %v3836
    %v5237 = vunpack.c.h.b16 %v3836
    %v5238 = vunpack.c.l.b16 %v3837
    %v5239 = vunpack.c.h.b16 %v3837
    %v5240 = vunpack.c.l.b16 %v3838
    %v5241 = vunpack.c.l.b16 %v3839
    %v5242 = vunpack.c.h.b16 %v3839
    %v5243 = vunpack.c.l.b16 %v3840
    %v5244 = vunpack.c.h.b16 %v3840
    %v5245 = vunpack.c.l.b16 %v3841
    %v5246 = vunpack.c.h.b16 %v3841
    %v5247 = vunpack.c.l.b16 %v3842
    %v5248 = vunpack.c.l.b16 %v3843
    %v5249 = vunpack.c.h.b16 %v3843
    %v5250 = vunpack.c.l.b16 %v3844
    %v5251 = vunpack.c.h.b16 %v3844
    %v5252 = vunpack.c.l.b16 %v3845
    %v5253 = vunpack.c.h.b16 %v3845
    %v5254 = vunpack.c.l.b16 %v3846
    %v5255 = vunpack.c.l.b16 %v3847
    %v5256 = vunpack.c.h.b16 %v3847
    %v5257 = vunpack.c.l.b16 %v3848
    %v5258 = vunpack.c.h.b16 %v3848
    %v5259 = vunpack.c.l.b16 %v3849
    %v5260 = vunpack.c.h.b16 %v3849
    %v5261 = vunpack.c.l.b16 %v3850
    %v5262 = vunpack.c.l.b16 %v3851
    %v5263 = vunpack.c.h.b16 %v3851
    %v5264 = vunpack.c.l.b16 %v3852
    %v5265 = vunpack.c.h.b16 %v3852
    %v5266 = vunpack.c.l.b16 %v3853
    %v5267 = vunpack.c.h.b16 %v3853
    %v5268 = vunpack.c.l.b16 %v3854
    %v5269 = vunpack.c.l.b16 %v3855
    %v5270 = vunpack.c.h.b16 %v3855
    %v5271 = vunpack.c.l.b16 %v3856
    %v5272 = vunpack.c.h.b16 %v3856
    %v5273 = vunpack.c.l.b16 %v3857
    %v5274 = vunpack.c.h.b16 %v3857
    %v5275 = vunpack.c.l.b16 %v3858
    %v5276 = vunpack.c.l.b16 %v3859
    %v5277 = vunpack.c.h.b16 %v3859
    %v5278 = vunpack.c.l.b16 %v3860
    %v5279 = vunpack.c.h.b16 %v3860
    %v5280 = vunpack.c.l.b16 %v3861
    %v5281 = vunpack.c.h.b16 %v3861
    %v5282 = vunpack.c.l.b16 %v3862
    %v5283 = vunpack.c.l.b16 %v3863
    %v5284 = vunpack.c.h.b16 %v3863
    %v5285 = vunpack.c.l.b16 %v3864
    %v5286 = vunpack.c.h.b16 %v3864
    %v5287 = vunpack.c.l.b16 %v3865
    %v5288 = vunpack.c.h.b16 %v3865
    %v5289 = vunpack.c.l.b16 %v3866
    %v5290 = vunpack.c.l.b16 %v3867
    %v5291 = vunpack.c.h.b16 %v3867
    %v5292 = vunpack.c.l.b16 %v3868
    %v5293 = vunpack.c.h.b16 %v3868
    %v5294 = vunpack.c.l.b16 %v3869
    %v5295 = vunpack.c.h.b16 %v3869
    %v5296 = vunpack.c.l.b16 %v3870
    %v5297 = vunpack.c.l.b16 %v3871
    %v5298 = vunpack.c.h.b16 %v3871
    %v5299 = vunpack.c.l.b16 %v3872
    %v5300 = vunpack.c.h.b16 %v3872
    %v5301 = vunpack.c.l.b16 %v3873
    %v5302 = vunpack.c.h.b16 %v3873
    %v5303 = vunpack.c.l.b16 %v3874
    %v5304 = vunpack.c.l.b16 %v3875
    %v5305 = vunpack.c.h.b16 %v3875
    %v5306 = vunpack.c.l.b16 %v3876
    %v5307 = vunpack.c.h.b16 %v3876
    %v5308 = vunpack.c.l.b16 %v3877
    %v5309 = vunpack.c.h.b16 %v3877
    %v5310 = vunpack.c.l.b16 %v3878
    %v5311 = vunpack.c.l.b16 %v3879
    %v5312 = vunpack.c.h.b16 %v3879
    %v5313 = vunpack.c.l.b16 %v3880
    %v5314 = vunpack.c.h.b16 %v3880
    %v5315 = vunpack.c.l.b16 %v3881
    %v5316 = vunpack.c.h.b16 %v3881
    %v5317 = vunpack.c.l.b16 %v3882
    %v5318 = vunpack.c.l.b16 %v3883
    %v5319 = vunpack.c.h.b16 %v3883
    %v5320 = vunpack.c.l.b16 %v3884
    %v5321 = vunpack.c.h.b16 %v3884
    %v5322 = vunpack.c.l.b16 %v3885
    %v5323 = vunpack.c.h.b16 %v3885
    %v5324 = vunpack.c.l.b16 %v3886
    %v5325 = vunpack.c.l.b16 %v3887
    %v5326 = vunpack.c.h.b16 %v3887
    %v5327 = vunpack.c.l.b16 %v3888
    %v5328 = vunpack.c.h.b16 %v3888
    %v5329 = vunpack.c.l.b16 %v3889
    %v5330 = vunpack.c.h.b16 %v3889
    %v5331 = vunpack.c.l.b16 %v3890
    %v5332 = vunpack.c.l.b16 %v3891
    %v5333 = vunpack.c.h.b16 %v3891
    %v5334 = vunpack.c.l.b16 %v3892
    %v5335 = vunpack.c.h.b16 %v3892
    %v5336 = vunpack.c.l.b16 %v3893
    %v5337 = vunpack.c.h.b16 %v3893
    %v5338 = vunpack.c.l.b16 %v3894
    %v5339 = vunpack.c.l.b16 %v3895
    %v5340 = vunpack.c.h.b16 %v3895
    %v5341 = vunpack.c.l.b16 %v3896
    %v5342 = vunpack.c.h.b16 %v3896
    %v5343 = vunpack.c.l.b16 %v3897
    %v5344 = vunpack.c.h.b16 %v3897
    %v5345 = vunpack.c.l.b16 %v3898
    %v5346 = vunpack.c.l.b16 %v3899
    %v5347 = vunpack.c.h.b16 %v3899
    %v5348 = vunpack.c.l.b16 %v3900
    %v5349 = vunpack.c.h.b16 %v3900
    %v5350 = vunpack.c.l.b16 %v3901
    %v5351 = vunpack.c.h.b16 %v3901
    %v5352 = vunpack.c.l.b16 %v3902
    %v5353 = vunpack.c.l.b16 %v3903
    %v5354 = vunpack.c.h.b16 %v3903
    %v5355 = vunpack.c.l.b16 %v3904
    %v5356 = vunpack.c.h.b16 %v3904
    %v5357 = vunpack.c.l.b16 %v3905
    %v5358 = vunpack.c.h.b16 %v3905
    %v5359 = vunpack.c.l.b16 %v3906
    %v5360 = vunpack.c.l.b16 %v3907
    %v5361 = vunpack.c.h.b16 %v3907
    %v5362 = vunpack.c.l.b16 %v3908
    %v5363 = vunpack.c.h.b16 %v3908
    %v5364 = vunpack.c.l.b16 %v3909
    %v5365 = vunpack.c.h.b16 %v3909
    %v5366 = vunpack.c.l.b16 %v3910
    %v5367 = vunpack.c.l.b16 %v3911
    %v5368 = vunpack.c.h.b16 %v3911
    %v5369 = vunpack.c.l.b16 %v3912
    %v5370 = vunpack.c.h.b16 %v3912
    %v5371 = vunpack.c.l.b16 %v3913
    %v5372 = vunpack.c.h.b16 %v3913
    %v5373 = vunpack.c.l.b16 %v3914
    %v5374 = vunpack.c.l.b16 %v3915
    %v5375 = vunpack.c.h.b16 %v3915
    %v5376 = vunpack.c.l.b16 %v3916
    %v5377 = vunpack.c.h.b16 %v3916
    %v5378 = vunpack.c.l.b16 %v3917
    %v5379 = vunpack.c.h.b16 %v3917
    %v5380 = vunpack.c.l.b16 %v3918
    %v5381 = vunpack.c.l.b16 %v3919
    %v5382 = vunpack.c.h.b16 %v3919
    %v5383 = vunpack.c.l.b16 %v3920
    %v5384 = vunpack.c.h.b16 %v3920
    %v5385 = vunpack.c.l.b16 %v3921
    %v5386 = vunpack.c.h.b16 %v3921
    %v5387 = vunpack.c.l.b16 %v3922
    %v5388 = vunpack.c.l.b16 %v3923
    %v5389 = vunpack.c.h.b16 %v3923
    %v5390 = vunpack.c.l.b16 %v3924
    %v5391 = vunpack.c.h.b16 %v3924
    %v5392 = vunpack.c.l.b16 %v3925
    %v5393 = vunpack.c.h.b16 %v3925
    %v5394 = vunpack.c.l.b16 %v3926
    %v5395 = vunpack.c.l.b16 %v3927
    %v5396 = vunpack.c.h.b16 %v3927
    %v5397 = vunpack.c.l.b16 %v3928
    %v5398 = vunpack.c.h.b16 %v3928
    %v5399 = vunpack.c.l.b16 %v3929
    %v5400 = vunpack.c.h.b16 %v3929
    %v5401 = vunpack.c.l.b16 %v3930
    %v5402 = vunpack.c.l.b16 %v3931
    %v5403 = vunpack.c.h.b16 %v3931
    %v5404 = vunpack.c.l.b16 %v3932
    %v5405 = vunpack.c.h.b16 %v3932
    %v5406 = vunpack.c.l.b16 %v3933
    %v5407 = vunpack.c.h.b16 %v3933
    %v5408 = vunpack.c.l.b16 %v3934
    %v5409 = vunpack.c.l.b16 %v3935
    %v5410 = vunpack.c.h.b16 %v3935
    %v5411 = vunpack.c.l.b16 %v3936
    %v5412 = vunpack.c.h.b16 %v3936
    %v5413 = vunpack.c.l.b16 %v3937
    %v5414 = vunpack.c.h.b16 %v3937
    %v5415 = vunpack.c.l.b16 %v3938
    %v5416 = vunpack.c.l.b16 %v3939
    %v5417 = vunpack.c.h.b16 %v3939
    %v5418 = vunpack.c.l.b16 %v3940
    %v5419 = vunpack.c.h.b16 %v3940
    %v5420 = vunpack.c.l.b16 %v3941
    %v5421 = vunpack.c.h.b16 %v3941
    %v5422 = vunpack.c.l.b16 %v3942
    %v5423 = vunpack.c.l.b16 %v3943
    %v5424 = vunpack.c.h.b16 %v3943
    %v5425 = vunpack.c.l.b16 %v3944
    %v5426 = vunpack.c.h.b16 %v3944
    %v5427 = vunpack.c.l.b16 %v3945
    %v5428 = vunpack.c.h.b16 %v3945
    %v5429 = vunpack.c.l.b16 %v3946
    %v5430 = vunpack.c.l.b16 %v3947
    %v5431 = vunpack.c.h.b16 %v3947
    %v5432 = vunpack.c.l.b16 %v3948
    %v5433 = vunpack.c.h.b16 %v3948
    %v5434 = vunpack.c.l.b16 %v3949
    %v5435 = vunpack.c.h.b16 %v3949
    %v5436 = vunpack.c.l.b16 %v3950
    %v5437 = vunpack.c.l.b16 %v3951
    %v5438 = vunpack.c.h.b16 %v3951
    %v5439 = vunpack.c.l.b16 %v3952
    %v5440 = vunpack.c.h.b16 %v3952
    %v5441 = vunpack.c.l.b16 %v3953
    %v5442 = vunpack.c.h.b16 %v3953
    %v5443 = vunpack.c.l.b16 %v3954
    %v5444 = vunpack.c.l.b16 %v3955
    %v5445 = vunpack.c.h.b16 %v3955
    %v5446 = vunpack.c.l.b16 %v3956
    %v5447 = vunpack.c.h.b16 %v3956
    %v5448 = vunpack.c.l.b16 %v3957
    %v5449 = vunpack.c.h.b16 %v3957
    %v5450 = vunpack.c.l.b16 %v3958
    %v5451 = vunpack.c.l.b16 %v3959
    %v5452 = vunpack.c.h.b16 %v3959
    %v5453 = vunpack.c.l.b16 %v3960
    %v5454 = vunpack.c.h.b16 %v3960
    %v5455 = vunpack.c.l.b16 %v3961
    %v5456 = vunpack.c.h.b16 %v3961
    %v5457 = vunpack.c.l.b16 %v3962
    %v5458 = vunpack.c.l.b16 %v3963
    %v5459 = vunpack.c.h.b16 %v3963
    %v5460 = vunpack.c.l.b16 %v3964
    %v5461 = vunpack.c.h.b16 %v3964
    %v5462 = vunpack.c.l.b16 %v3965
    %v5463 = vunpack.c.h.b16 %v3965
    %v5464 = vunpack.c.l.b16 %v3966
    %v5465 = vunpack.c.l.b16 %v3967
    %v5466 = vunpack.c.h.b16 %v3967
    %v5467 = vunpack.c.l.b16 %v3968
    %v5468 = vunpack.c.h.b16 %v3968
    %v5469 = vunpack.c.l.b16 %v3969
    %v5470 = vunpack.c.h.b16 %v3969
    %v5471 = vunpack.c.l.b16 %v3970
    %v5472 = vunpack.c.l.b16 %v3971
    %v5473 = vunpack.c.h.b16 %v3971
    %v5474 = vunpack.c.l.b16 %v3972
    %v5475 = vunpack.c.h.b16 %v3972
    %v5476 = vunpack.c.l.b16 %v3973
    %v5477 = vunpack.c.h.b16 %v3973
    %v5478 = vunpack.c.l.b16 %v3974
    %v5479 = vunpack.c.l.b16 %v3975
    %v5480 = vunpack.c.h.b16 %v3975
    %v5481 = vunpack.c.l.b16 %v3976
    %v5482 = vunpack.c.h.b16 %v3976
    %v5483 = vunpack.c.l.b16 %v3977
    %v5484 = vunpack.c.h.b16 %v3977
    %v5485 = vunpack.c.l.b16 %v3978
    %v5486 = vunpack.c.l.b16 %v3979
    %v5487 = vunpack.c.h.b16 %v3979
    %v5488 = vunpack.c.l.b16 %v3980
    %v5489 = vunpack.c.h.b16 %v3980
    %v5490 = vunpack.c.l.b16 %v3981
    %v5491 = vunpack.c.h.b16 %v3981
    %v5492 = vunpack.c.l.b16 %v3982
    %v5493 = vunpack.c.l.b16 %v3983
    %v5494 = vunpack.c.h.b16 %v3983
    %v5495 = vunpack.c.l.b16 %v3984
    %v5496 = vunpack.c.h.b16 %v3984
    %v5497 = vunpack.c.l.b16 %v3985
    %v5498 = vunpack.c.h.b16 %v3985
    %v5499 = vunpack.c.l.b16 %v3986
    %v5500 = vunpack.c.l.b16 %v3987
    %v5501 = vunpack.c.h.b16 %v3987
    %v5502 = vunpack.c.l.b16 %v3988
    %v5503 = vunpack.c.h.b16 %v3988
    %v5504 = vunpack.c.l.b16 %v3989
    %v5505 = vunpack.c.h.b16 %v3989
    %v5506 = vunpack.c.l.b16 %v3990
    %v5507 = vunpack.c.l.b16 %v3991
    %v5508 = vunpack.c.h.b16 %v3991
    %v5509 = vunpack.c.l.b16 %v3992
    %v5510 = vunpack.c.h.b16 %v3992
    %v5511 = vunpack.c.l.b16 %v3993
    %v5512 = vunpack.c.h.b16 %v3993
    %v5513 = vunpack.c.l.b16 %v3994
    %v5514 = vunpack.c.l.b16 %v3995
    %v5515 = vunpack.c.h.b16 %v3995
    %v5516 = vunpack.c.l.b16 %v3996
    %v5517 = vunpack.c.h.b16 %v3996
    %v5518 = vunpack.c.l.b16 %v3997
    %v5519 = vunpack.c.h.b16 %v3997
    %v5520 = vunpack.c.l.b16 %v3998
    %v5521 = vunpack.c.l.b16 %v3999
    %v5522 = vunpack.c.h.b16 %v3999
    %v5523 = vunpack.c.l.b16 %v4000
    %v5524 = vunpack.c.h.b16 %v4000
    %v5525 = vunpack.c.l.b16 %v4001
    %v5526 = vunpack.c.h.b16 %v4001
    %v5527 = vunpack.c.l.b16 %v4002
    %v5528 = vunpack.c.l.b16 %v4003
    %v5529 = vunpack.c.h.b16 %v4003
    %v5530 = vunpack.c.l.b16 %v4004
    %v5531 = vunpack.c.h.b16 %v4004
    %v5532 = vunpack.c.l.b16 %v4005
    %v5533 = vunpack.c.h.b16 %v4005
    %v5534 = vunpack.c.l.b16 %v4006
    %v5535 = vunpack.c.l.b16 %v4007
    %v5536 = vunpack.c.h.b16 %v4007
    %v5537 = vunpack.c.l.b16 %v4008
    %v5538 = vunpack.c.h.b16 %v4008
    %v5539 = vunpack.c.l.b16 %v4009
    %v5540 = vunpack.c.h.b16 %v4009
    %v5541 = vunpack.c.l.b16 %v4010
    %v5542 = vunpack.c.l.b16 %v4011
    %v5543 = vunpack.c.h.b16 %v4011
    %v5544 = vunpack.c.l.b16 %v4012
    %v5545 = vunpack.c.h.b16 %v4012
    %v5546 = vunpack.c.l.b16 %v4013
    %v5547 = vunpack.c.h.b16 %v4013
    %v5548 = vunpack.c.l.b16 %v4014
    %v5549 = vunpack.c.l.b16 %v4015
    %v5550 = vunpack.c.h.b16 %v4015
    %v5551 = vunpack.c.l.b16 %v4016
    %v5552 = vunpack.c.h.b16 %v4016
    %v5553 = vunpack.c.l.b16 %v4017
    %v5554 = vunpack.c.h.b16 %v4017
    %v5555 = vunpack.c.l.b16 %v4018
    %v5556 = vunpack.c.l.b16 %v4019
    %v5557 = vunpack.c.h.b16 %v4019
    %v5558 = vunpack.c.l.b16 %v4020
    %v5559 = vunpack.c.h.b16 %v4020
    %v5560 = vunpack.c.l.b16 %v4021
    %v5561 = vunpack.c.h.b16 %v4021
    %v5562 = vunpack.c.l.b16 %v4022
    %v5563 = vunpack.c.l.b16 %v4023
    %v5564 = vunpack.c.h.b16 %v4023
    %v5565 = vunpack.c.l.b16 %v4024
    %v5566 = vunpack.c.h.b16 %v4024
    %v5567 = vunpack.c.l.b16 %v4025
    %v5568 = vunpack.c.h.b16 %v4025
    %v5569 = vunpack.c.l.b16 %v4026
    %v5570 = vunpack.c.l.b16 %v4027
    %v5571 = vunpack.c.h.b16 %v4027
    %v5572 = vunpack.c.l.b16 %v4028
    %v5573 = vunpack.c.h.b16 %v4028
    %v5574 = vunpack.c.l.b16 %v4029
    %v5575 = vunpack.c.h.b16 %v4029
    %v5576 = vunpack.c.l.b16 %v4030
    %v5577 = vunpack.c.l.b16 %v4031
    %v5578 = vunpack.c.h.b16 %v4031
    %v5579 = vunpack.c.l.b16 %v4032
    %v5580 = vunpack.c.h.b16 %v4032
    %v5581 = vunpack.c.l.b16 %v4033
    %v5582 = vunpack.c.h.b16 %v4033
    %v5583 = vunpack.c.l.b16 %v4034
    %v5584 = vunpack.c.l.b16 %v4035
    %v5585 = vunpack.c.h.b16 %v4035
    %v5586 = vunpack.c.l.b16 %v4036
    %v5587 = vunpack.c.h.b16 %v4036
    %v5588 = vunpack.c.l.b16 %v4037
    %v5589 = vunpack.c.h.b16 %v4037
    %v5590 = vunpack.c.l.b16 %v4038
    %v5591 = vunpack.c.l.b16 %v4039
    %v5592 = vunpack.c.h.b16 %v4039
    %v5593 = vunpack.c.l.b16 %v4040
    %v5594 = vunpack.c.h.b16 %v4040
    %v5595 = vunpack.c.l.b16 %v4041
    %v5596 = vunpack.c.h.b16 %v4041
    %v5597 = vunpack.c.l.b16 %v4042
    %v5598 = vunpack.c.l.b16 %v4043
    %v5599 = vunpack.c.h.b16 %v4043
    %v5600 = vunpack.c.l.b16 %v4044
    %v5601 = vunpack.c.h.b16 %v4044
    %v5602 = vunpack.c.l.b16 %v4045
    %v5603 = vunpack.c.h.b16 %v4045
    %v5604 = vunpack.c.l.b16 %v4046
    %v5605 = vunpack.c.l.b16 %v4047
    %v5606 = vunpack.c.h.b16 %v4047
    %v5607 = vunpack.c.l.b16 %v4048
    %v5608 = vunpack.c.h.b16 %v4048
    %v5609 = vunpack.c.l.b16 %v4049
    %v5610 = vunpack.c.h.b16 %v4049
    %v5611 = vunpack.c.l.b16 %v4050
    %v5612 = vunpack.c.l.b16 %v4051
    %v5613 = vunpack.c.h.b16 %v4051
    %v5614 = vunpack.c.l.b16 %v4052
    %v5615 = vunpack.c.h.b16 %v4052
    %v5616 = vunpack.c.l.b16 %v4053
    %v5617 = vunpack.c.h.b16 %v4053
    %v5618 = vunpack.c.l.b16 %v4054
    %v5619 = vunpack.c.l.b16 %v4055
    %v5620 = vunpack.c.h.b16 %v4055
    %v5621 = vunpack.c.l.b16 %v4056
    %v5622 = vunpack.c.h.b16 %v4056
    %v5623 = vunpack.c.l.b16 %v4057
    %v5624 = vunpack.c.h.b16 %v4057
    %v5625 = vunpack.c.l.b16 %v4058
    %v5626 = vunpack.c.l.b16 %v4059
    %v5627 = vunpack.c.h.b16 %v4059
    %v5628 = vunpack.c.l.b16 %v4060
    %v5629 = vunpack.c.h.b16 %v4060
    %v5630 = vunpack.c.l.b16 %v4061
    %v5631 = vunpack.c.h.b16 %v4061
    %v5632 = vunpack.c.l.b16 %v4062
    %v5633 = vunpack.c.l.b16 %v4063
    %v5634 = vunpack.c.h.b16 %v4063
    %v5635 = vunpack.c.l.b16 %v4064
    %v5636 = vunpack.c.h.b16 %v4064
    %v5637 = vunpack.c.l.b16 %v4065
    %v5638 = vunpack.c.h.b16 %v4065
    %v5639 = vunpack.c.l.b16 %v4066
    %v5640 = vunpack.c.l.b16 %v4067
    %v5641 = vunpack.c.h.b16 %v4067
    %v5642 = vunpack.c.l.b16 %v4068
    %v5643 = vunpack.c.h.b16 %v4068
    %v5644 = vunpack.c.l.b16 %v4069
    %v5645 = vunpack.c.h.b16 %v4069
    %v5646 = vunpack.c.l.b16 %v4070
    %v5647 = vunpack.c.l.b16 %v4071
    %v5648 = vunpack.c.h.b16 %v4071
    %v5649 = vunpack.c.l.b16 %v4072
    %v5650 = vunpack.c.h.b16 %v4072
    %v5651 = vunpack.c.l.b16 %v4073
    %v5652 = vunpack.c.h.b16 %v4073
    %v5653 = vunpack.c.l.b16 %v4074
    %v5654 = vunpack.c.l.b16 %v4075
    %v5655 = vunpack.c.h.b16 %v4075
    %v5656 = vunpack.c.l.b16 %v4076
    %v5657 = vunpack.c.h.b16 %v4076
    %v5658 = vunpack.c.l.b16 %v4077
    %v5659 = vunpack.c.h.b16 %v4077
    %v5660 = vunpack.c.l.b16 %v4078
    %v5661 = vunpack.c.l.b16 %v4079
    %v5662 = vunpack.c.h.b16 %v4079
    %v5663 = vunpack.c.l.b16 %v4080
    %v5664 = vunpack.c.h.b16 %v4080
    %v5665 = vunpack.c.l.b16 %v4081
    %v5666 = vunpack.c.h.b16 %v4081
    %v5667 = vunpack.c.l.b16 %v4082
    %v5668 = vunpack.c.l.b16 %v4083
    %v5669 = vunpack.c.h.b16 %v4083
    %v5670 = vunpack.c.l.b16 %v4084
    %v5671 = vunpack.c.h.b16 %v4084
    %v5672 = vunpack.c.l.b16 %v4085
    %v5673 = vunpack.c.h.b16 %v4085
    %v5674 = vunpack.c.l.b16 %v4086
    %v5675 = vunpack.c.l.b16 %v4087
    %v5676 = vunpack.c.h.b16 %v4087
    %v5677 = vunpack.c.l.b16 %v4088
    %v5678 = vunpack.c.h.b16 %v4088
    %v5679 = vunpack.c.l.b16 %v4089
    %v5680 = vunpack.c.h.b16 %v4089
    %v5681 = vunpack.c.l.b16 %v4090
    %v5682 = vunpack.c.l.b16 %v4091
    %v5683 = vunpack.c.h.b16 %v4091
    %v5684 = vunpack.c.l.b16 %v4092
    %v5685 = vunpack.c.h.b16 %v4092
    %v5686 = vunpack.c.l.b16 %v4093
    %v5687 = vunpack.c.h.b16 %v4093
    %v5688 = vunpack.c.l.b16 %v4094
    %v5689 = vunpack.c.l.b16 %v4095
    %v5690 = vunpack.c.h.b16 %v4095
    %v5691 = vunpack.c.l.b16 %v4096
    %v5692 = vunpack.c.h.b16 %v4096
    %v5693 = vunpack.c.l.b16 %v4097
    %v5694 = vunpack.c.h.b16 %v4097
    %v5695 = vunpack.c.l.b16 %v4098
    %v5696 = vunpack.c.l.b16 %v4099
    %v5697 = vunpack.c.h.b16 %v4099
    %v5698 = vunpack.c.l.b16 %v4100
    %v5699 = vunpack.c.h.b16 %v4100
    %v5700 = vunpack.c.l.b16 %v4101
    %v5701 = vunpack.c.h.b16 %v4101
    %v5702 = vunpack.c.l.b16 %v4102
    %v5703 = vunpack.c.l.b16 %v4103
    %v5704 = vunpack.c.h.b16 %v4103
    %v5705 = vunpack.c.l.b16 %v4104
    %v5706 = vunpack.c.h.b16 %v4104
    %v5707 = vunpack.c.l.b16 %v4105
    %v5708 = vunpack.c.h.b16 %v4105
    %v5709 = vunpack.c.l.b16 %v4106
    %v5710 = vunpack.c.l.b16 %v4107
    %v5711 = vunpack.c.h.b16 %v4107
    %v5712 = vunpack.c.l.b16 %v4108
    %v5713 = vunpack.c.h.b16 %v4108
    %v5714 = vunpack.c.l.b16 %v4109
    %v5715 = vunpack.c.h.b16 %v4109
    %v5716 = vunpack.c.l.b16 %v4110
    %v5717 = vunpack.c.l.b16 %v4111
    %v5718 = vunpack.c.h.b16 %v4111
    %v5719 = vunpack.c.l.b16 %v4112
    %v5720 = vunpack.c.h.b16 %v4112
    %v5721 = vunpack.c.l.b16 %v4113
    %v5722 = vunpack.c.h.b16 %v4113
    %v5723 = vunpack.c.l.b16 %v4114
    %v5724 = vunpack.c.l.b16 %v4115
    %v5725 = vunpack.c.h.b16 %v4115
    %v5726 = vunpack.c.l.b16 %v4116
    %v5727 = vunpack.c.h.b16 %v4116
    %v5728 = vunpack.c.l.b16 %v4117
    %v5729 = vunpack.c.h.b16 %v4117
    %v5730 = vunpack.c.l.b16 %v4118
    %v5731 = vunpack.c.l.b16 %v4119
    %v5732 = vunpack.c.h.b16 %v4119
    %v5733 = vunpack.c.l.b16 %v4120
    %v5734 = vunpack.c.h.b16 %v4120
    %v5735 = vunpack.c.l.b16 %v4121
    %v5736 = vunpack.c.h.b16 %v4121
    %v5737 = vunpack.c.l.b16 %v4122
    %v5738 = vunpack.c.l.b16 %v4123
    %v5739 = vunpack.c.h.b16 %v4123
    %v5740 = vunpack.c.l.b16 %v4124
    %v5741 = vunpack.c.h.b16 %v4124
    %v5742 = vunpack.c.l.b16 %v4125
    %v5743 = vunpack.c.h.b16 %v4125
    %v5744 = vunpack.c.l.b16 %v4126
    %v5745 = vunpack.c.l.b16 %v4127
    %v5746 = vunpack.c.h.b16 %v4127
    %v5747 = vunpack.c.l.b16 %v4128
    %v5748 = vunpack.c.h.b16 %v4128
    %v5749 = vunpack.c.l.b16 %v4129
    %v5750 = vunpack.c.h.b16 %v4129
    %v5751 = vunpack.c.l.b16 %v4130
    %v5752 = vunpack.c.l.b16 %v4131
    %v5753 = vunpack.c.h.b16 %v4131
    %v5754 = vunpack.c.l.b16 %v4132
    %v5755 = vunpack.c.h.b16 %v4132
    %v5756 = vunpack.c.l.b16 %v4133
    %v5757 = vunpack.c.h.b16 %v4133
    %v5758 = vunpack.c.l.b16 %v4134
    %v5759 = vunpack.c.l.b16 %v4135
    %v5760 = vunpack.c.h.b16 %v4135
    %v5761 = vunpack.c.l.b16 %v4136
    %v5762 = vunpack.c.h.b16 %v4136
    %v5763 = vunpack.c.l.b16 %v4137
    %v5764 = vunpack.c.h.b16 %v4137
    %v5765 = vunpack.c.l.b16 %v4138
    %v5766 = vunpack.c.l.b16 %v4139
    %v5767 = vunpack.c.h.b16 %v4139
    %v5768 = vunpack.c.l.b16 %v4140
    %v5769 = vunpack.c.h.b16 %v4140
    %v5770 = vunpack.c.l.b16 %v4141
    %v5771 = vunpack.c.h.b16 %v4141
    %v5772 = vunpack.c.l.b16 %v4142
    %v5773 = vunpack.c.l.b16 %v4143
    %v5774 = vunpack.c.h.b16 %v4143
    %v5775 = vunpack.c.l.b16 %v4144
    %v5776 = vunpack.c.h.b16 %v4144
    %v5777 = vunpack.c.l.b16 %v4145
    %v5778 = vunpack.c.h.b16 %v4145
    %v5779 = vunpack.c.l.b16 %v4146
    %v5780 = vunpack.c.l.b16 %v4147
    %v5781 = vunpack.c.h.b16 %v4147
    %v5782 = vunpack.c.l.b16 %v4148
    %v5783 = vunpack.c.h.b16 %v4148
    %v5784 = vunpack.c.l.b16 %v4149
    %v5785 = vunpack.c.h.b16 %v4149
    %v5786 = vunpack.c.l.b16 %v4150
    %v5787 = vunpack.c.l.b16 %v4151
    %v5788 = vunpack.c.h.b16 %v4151
    %v5789 = vunpack.c.l.b16 %v4152
    %v5790 = vunpack.c.h.b16 %v4152
    %v5791 = vunpack.c.l.b16 %v4153
    %v5792 = vunpack.c.h.b16 %v4153
    %v5793 = vunpack.c.l.b16 %v4154
    %v5794 = vunpack.c.l.b16 %v4155
    %v5795 = vunpack.c.h.b16 %v4155
    %v5796 = vunpack.c.l.b16 %v4156
    %v5797 = vunpack.c.h.b16 %v4156
    %v5798 = vunpack.c.l.b16 %v4157
    %v5799 = vunpack.c.h.b16 %v4157
    %v5800 = vunpack.c.l.b16 %v4158
    %v5801 = vunpack.c.l.b16 %v4159
    %v5802 = vunpack.c.h.b16 %v4159
    %v5803 = vunpack.c.l.b16 %v4160
    %v5804 = vunpack.c.h.b16 %v4160
    %v5805 = vunpack.c.l.b16 %v4161
    %v5806 = vunpack.c.h.b16 %v4161
    %v5807 = vunpack.c.l.b16 %v4162
    %v5808 = vunpack.c.l.b16 %v4163
    %v5809 = vunpack.c.h.b16 %v4163
    %v5810 = vunpack.c.l.b16 %v4164
    %v5811 = vunpack.c.h.b16 %v4164
    %v5812 = vunpack.c.l.b16 %v4165
    %v5813 = vunpack.c.h.b16 %v4165
    %v5814 = vunpack.c.l.b16 %v4166
    %v5815 = vunpack.c.l.b16 %v4167
    %v5816 = vunpack.c.h.b16 %v4167
    %v5817 = vunpack.c.l.b16 %v4168
    %v5818 = vunpack.c.h.b16 %v4168
    %v5819 = vunpack.c.l.b16 %v4169
    %v5820 = vunpack.c.h.b16 %v4169
    %v5821 = vunpack.c.l.b16 %v4170
    %v5822 = vunpack.c.l.b16 %v4171
    %v5823 = vunpack.c.h.b16 %v4171
    %v5824 = vunpack.c.l.b16 %v4172
    %v5825 = vunpack.c.h.b16 %v4172
    %v5826 = vunpack.c.l.b16 %v4173
    %v5827 = vunpack.c.h.b16 %v4173
    %v5828 = vunpack.c.l.b16 %v4174
    %v5829 = vunpack.c.l.b16 %v4175
    %v5830 = vunpack.c.h.b16 %v4175
    %v5831 = vunpack.c.l.b16 %v4176
    %v5832 = vunpack.c.h.b16 %v4176
    %v5833 = vunpack.c.l.b16 %v4177
    %v5834 = vunpack.c.h.b16 %v4177
    %v5835 = vunpack.c.l.b16 %v4178
    %v5836 = vunpack.c.l.b16 %v4179
    %v5837 = vunpack.c.h.b16 %v4179
    %v5838 = vunpack.c.l.b16 %v4180
    %v5839 = vunpack.c.h.b16 %v4180
    %v5840 = vunpack.c.l.b16 %v4181
    %v5841 = vunpack.c.h.b16 %v4181
    %v5842 = vunpack.c.l.b16 %v4182
    %v5843 = vunpack.c.l.b16 %v4183
    %v5844 = vunpack.c.h.b16 %v4183
    %v5845 = vunpack.c.l.b16 %v4184
    %v5846 = vunpack.c.h.b16 %v4184
    %v5847 = vunpack.c.l.b16 %v4185
    %v5848 = vunpack.c.h.b16 %v4185
    %v5849 = vunpack.c.l.b16 %v4186
    %v5850 = vunpack.c.l.b16 %v4187
    %v5851 = vunpack.c.h.b16 %v4187
    %v5852 = vunpack.c.l.b16 %v4188
    %v5853 = vunpack.c.h.b16 %v4188
    %v5854 = vunpack.c.l.b16 %v4189
    %v5855 = vunpack.c.h.b16 %v4189
    %v5856 = vunpack.c.l.b16 %v4190
    %v5857 = vunpack.c.l.b16 %v4191
    %v5858 = vunpack.c.h.b16 %v4191
    %v5859 = vunpack.c.l.b16 %v4192
    %v5860 = vunpack.c.h.b16 %v4192
    %v5861 = vunpack.c.l.b16 %v4193
    %v5862 = vunpack.c.h.b16 %v4193
    %v5863 = vunpack.c.l.b16 %v4194
    %v5864 = vunpack.c.l.b16 %v4195
    %v5865 = vunpack.c.h.b16 %v4195
    %v5866 = vunpack.c.l.b16 %v4196
    %v5867 = vunpack.c.h.b16 %v4196
    %v5868 = vunpack.c.l.b16 %v4197
    %v5869 = vunpack.c.h.b16 %v4197
    %v5870 = vunpack.c.l.b16 %v4198
    %v5871 = vunpack.c.l.b16 %v4199
    %v5872 = vunpack.c.h.b16 %v4199
    %v5873 = vunpack.c.l.b16 %v4200
    %v5874 = vunpack.c.h.b16 %v4200
    %v5875 = vunpack.c.l.b16 %v4201
    %v5876 = vunpack.c.h.b16 %v4201
    %v5877 = vunpack.c.l.b16 %v4202
    %v5878 = vunpack.c.l.b16 %v4203
    %v5879 = vunpack.c.h.b16 %v4203
    %v5880 = vunpack.c.l.b16 %v4204
    %v5881 = vunpack.c.h.b16 %v4204
    %v5882 = vunpack.c.l.b16 %v4205
    %v5883 = vunpack.c.h.b16 %v4205
    %v5884 = vunpack.c.l.b16 %v4206
    %v5885 = vunpack.c.l.b16 %v4207
    %v5886 = vunpack.c.h.b16 %v4207
    %v5887 = vunpack.c.l.b16 %v4208
    %v5888 = vunpack.c.h.b16 %v4208
    %v5889 = vunpack.c.l.b16 %v4209
    %v5890 = vunpack.c.h.b16 %v4209
    %v5891 = vunpack.c.l.b16 %v4210
    %v5892 = vunpack.c.l.b16 %v4211
    %v5893 = vunpack.c.h.b16 %v4211
    %v5894 = vunpack.c.l.b16 %v4212
    %v5895 = vunpack.c.h.b16 %v4212
    %v5896 = vunpack.c.l.b16 %v4213
    %v5897 = vunpack.c.h.b16 %v4213
    %v5898 = vunpack.c.l.b16 %v4214
    %v5899 = vunpack.c.l.b16 %v4215
    %v5900 = vunpack.c.h.b16 %v4215
    %v5901 = vunpack.c.l.b16 %v4216
    %v5902 = vunpack.c.h.b16 %v4216
    %v5903 = vunpack.c.l.b16 %v4217
    %v5904 = vunpack.c.h.b16 %v4217
    %v5905 = vunpack.c.l.b16 %v4218
    %v5906 = vunpack.c.l.b16 %v4219
    %v5907 = vunpack.c.h.b16 %v4219
    %v5908 = vunpack.c.l.b16 %v4220
    %v5909 = vunpack.c.h.b16 %v4220
    %v5910 = vunpack.c.l.b16 %v4221
    %v5911 = vunpack.c.h.b16 %v4221
    %v5912 = vunpack.c.l.b16 %v4222
    %v5913 = vunpack.c.l.b16 %v4223
    %v5914 = vunpack.c.h.b16 %v4223
    %v5915 = vunpack.c.l.b16 %v4224
    %v5916 = vunpack.c.h.b16 %v4224
    %v5917 = vunpack.c.l.b16 %v4225
    %v5918 = vunpack.c.h.b16 %v4225
    %v5919 = vunpack.c.l.b16 %v4226
    %v5920 = vunpack.c.l.b16 %v4227
    %v5921 = vunpack.c.h.b16 %v4227
    %v5922 = vunpack.c.l.b16 %v4228
    %v5923 = vunpack.c.h.b16 %v4228
    %v5924 = vunpack.c.l.b16 %v4229
    %v5925 = vunpack.c.h.b16 %v4229
    %v5926 = vunpack.c.l.b16 %v4230
    %v5927 = vunpack.c.l.b16 %v4231
    %v5928 = vunpack.c.h.b16 %v4231
    %v5929 = vunpack.c.l.b16 %v4232
    %v5930 = vunpack.c.h.b16 %v4232
    %v5931 = vunpack.c.l.b16 %v4233
    %v5932 = vunpack.c.h.b16 %v4233
    %v5933 = vunpack.c.l.b16 %v4234
    %v5934 = vunpack.c.l.b16 %v4235
    %v5935 = vunpack.c.h.b16 %v4235
    %v5936 = vunpack.c.l.b16 %v4236
    %v5937 = vunpack.c.h.b16 %v4236
    %v5938 = vunpack.c.l.b16 %v4237
    %v5939 = vunpack.c.h.b16 %v4237
    %v5940 = vunpack.c.l.b16 %v4238
    %v5941 = vunpack.c.l.b16 %v4239
    %v5942 = vunpack.c.h.b16 %v4239
    %v5943 = vunpack.c.l.b16 %v4240
    %v5944 = vunpack.c.h.b16 %v4240
    %v5945 = vunpack.c.l.b16 %v4241
    %v5946 = vunpack.c.h.b16 %v4241
    %v5947 = vunpack.c.l.b16 %v4242
    %v5948 = vunpack.c.l.b16 %v4243
    %v5949 = vunpack.c.h.b16 %v4243
    %v5950 = vunpack.c.l.b16 %v4244
    %v5951 = vunpack.c.h.b16 %v4244
    %v5952 = vunpack.c.l.b16 %v4245
    %v5953 = vunpack.c.h.b16 %v4245
    %v5954 = vunpack.c.l.b16 %v4246
    %v5955 = vunpack.c.l.b16 %v4247
    %v5956 = vunpack.c.h.b16 %v4247
    %v5957 = vunpack.c.l.b16 %v4248
    %v5958 = vunpack.c.h.b16 %v4248
    %v5959 = vunpack.c.l.b16 %v4249
    %v5960 = vunpack.c.h.b16 %v4249
    %v5961 = vunpack.c.l.b16 %v4250
    %v5962 = vunpack.c.l.b16 %v4251
    %v5963 = vunpack.c.h.b16 %v4251
    %v5964 = vunpack.c.l.b16 %v4252
    %v5965 = vunpack.c.h.b16 %v4252
    %v5966 = vunpack.c.l.b16 %v4253
    %v5967 = vunpack.c.h.b16 %v4253
    %v5968 = vunpack.c.l.b16 %v4254
    %v5969 = vunpack.c.l.b16 %v4255
    %v5970 = vunpack.c.h.b16 %v4255
    %v5971 = vunpack.c.l.b16 %v4256
    %v5972 = vunpack.c.h.b16 %v4256
    %v5973 = vunpack.c.l.b16 %v4257
    %v5974 = vunpack.c.h.b16 %v4257
    %v5975 = vunpack.c.l.b16 %v4258
    %v5976 = vunpack.c.l.b16 %v4259
    %v5977 = vunpack.c.h.b16 %v4259
    %v5978 = vunpack.c.l.b16 %v4260
    %v5979 = vunpack.c.h.b16 %v4260
    %v5980 = vunpack.c.l.b16 %v4261
    %v5981 = vunpack.c.h.b16 %v4261
    %v5982 = vunpack.c.l.b16 %v4262
    %v5983 = vunpack.c.l.b16 %v4263
    %v5984 = vunpack.c.h.b16 %v4263
    %v5985 = vunpack.c.l.b16 %v4264
    %v5986 = vunpack.c.h.b16 %v4264
    %v5987 = vunpack.c.l.b16 %v4265
    %v5988 = vunpack.c.h.b16 %v4265
    %v5989 = vunpack.c.l.b16 %v4266
    %v5990 = vunpack.c.l.b16 %v4267
    %v5991 = vunpack.c.h.b16 %v4267
    %v5992 = vunpack.c.l.b16 %v4268
    %v5993 = vunpack.c.h.b16 %v4268
    %v5994 = vunpack.c.l.b16 %v4269
    %v5995 = vunpack.c.h.b16 %v4269
    %v5996 = vunpack.c.l.b16 %v4270
    %v5997 = vunpack.c.l.b16 %v4271
    %v5998 = vunpack.c.h.b16 %v4271
    %v5999 = vunpack.c.l.b16 %v4272
    %v6000 = vunpack.c.h.b16 %v4272
    %v6001 = vunpack.c.l.b16 %v4273
    %v6002 = vunpack.c.h.b16 %v4273
    %v6003 = vunpack.c.l.b16 %v4274
    %v6004 = vunpack.c.l.b16 %v4275
    %v6005 = vunpack.c.h.b16 %v4275
    %v6006 = vunpack.c.l.b16 %v4276
    %v6007 = vunpack.c.h.b16 %v4276
    %v6008 = vunpack.c.l.b16 %v4277
    %v6009 = vunpack.c.h.b16 %v4277
    %v6010 = vunpack.c.l.b16 %v4278
    %v6011 = vunpack.c.l.b16 %v4279
    %v6012 = vunpack.c.h.b16 %v4279
    %v6013 = vunpack.c.l.b16 %v4280
    %v6014 = vunpack.c.h.b16 %v4280
    %v6015 = vunpack.c.l.b16 %v4281
    %v6016 = vunpack.c.h.b16 %v4281
    %v6017 = vunpack.c.l.b16 %v4282
    %v6018 = vunpack.c.l.b16 %v4283
    %v6019 = vunpack.c.h.b16 %v4283
    %v6020 = vunpack.c.l.b16 %v4284
    %v6021 = vunpack.c.h.b16 %v4284
    %v6022 = vunpack.c.l.b16 %v4285
    %v6023 = vunpack.c.h.b16 %v4285
    %v6024 = vunpack.c.l.b16 %v4286
    %v6025 = vunpack.c.l.b16 %v4287
    %v6026 = vunpack.c.h.b16 %v4287
    %v6027 = vunpack.c.l.b16 %v4288
    %v6028 = vunpack.c.h.b16 %v4288
    %v6029 = vunpack.c.l.b16 %v4289
    %v6030 = vunpack.c.h.b16 %v4289
    %v6031 = vunpack.c.l.b16 %v4290
    %v6032 = vunpack.c.l.b16 %v4291
    %v6033 = vunpack.c.h.b16 %v4291
    %v6034 = vunpack.c.l.b16 %v4292
    %v6035 = vunpack.c.h.b16 %v4292
    %v6036 = vunpack.c.l.b16 %v4293
    %v6037 = vunpack.c.h.b16 %v4293
    %v6038 = vunpack.c.l.b16 %v4294
    %v6039 = vunpack.c.l.b16 %v4295
    %v6040 = vunpack.c.h.b16 %v4295
    %v6041 = vunpack.c.l.b16 %v4296
    %v6042 = vunpack.c.h.b16 %v4296
    %v6043 = vunpack.c.l.b16 %v4297
    %v6044 = vunpack.c.h.b16 %v4297
    %v6045 = vunpack.c.l.b16 %v4298
    %v6046 = vunpack.c.l.b16 %v4299
    %v6047 = vunpack.c.h.b16 %v4299
    %v6048 = vunpack.c.l.b16 %v4300
    %v6049 = vunpack.c.h.b16 %v4300
    %v6050 = vunpack.c.l.b16 %v4301
    %v6051 = vunpack.c.h.b16 %v4301
    %v6052 = vunpack.c.l.b16 %v4302
    %v6053 = vunpack.c.l.b16 %v4303
    %v6054 = vunpack.c.h.b16 %v4303
    %v6055 = vunpack.c.l.b16 %v4304
    %v6056 = vunpack.c.h.b16 %v4304
    %v6057 = vunpack.c.l.b16 %v4305
    %v6058 = vunpack.c.h.b16 %v4305
    %v6059 = vunpack.c.l.b16 %v4306
    %v6060 = vunpack.c.l.b16 %v4307
    %v6061 = vunpack.c.h.b16 %v4307
    %v6062 = vunpack.c.l.b16 %v4308
    %v6063 = vunpack.c.h.b16 %v4308
    %v6064 = vunpack.c.l.b16 %v4309
    %v6065 = vunpack.c.h.b16 %v4309
    %v6066 = vunpack.c.l.b16 %v4310
    %v6067 = vunpack.c.l.b16 %v4311
    %v6068 = vunpack.c.h.b16 %v4311
    %v6069 = vunpack.c.l.b16 %v4312
    %v6070 = vunpack.c.h.b16 %v4312
    %v6071 = vunpack.c.l.b16 %v4313
    %v6072 = vunpack.c.h.b16 %v4313
    %v6073 = vunpack.c.l.b16 %v4314
    %v6074 = vunpack.c.l.b16 %v4315
    %v6075 = vunpack.c.h.b16 %v4315
    %v6076 = vunpack.c.l.b16 %v4316
    %v6077 = vunpack.c.h.b16 %v4316
    %v6078 = vunpack.c.l.b16 %v4317
    %v6079 = vunpack.c.h.b16 %v4317
    %v6080 = vunpack.c.l.b16 %v4318
    %v6081 = vunpack.c.l.b16 %v4319
    %v6082 = vunpack.c.h.b16 %v4319
    %v6083 = vunpack.c.l.b16 %v4320
    %v6084 = vunpack.c.h.b16 %v4320
    %v6085 = vunpack.c.l.b16 %v4321
    %v6086 = vunpack.c.h.b16 %v4321
    %v6087 = vunpack.c.l.b16 %v4322
    %v6088 = vunpack.c.l.b16 %v4323
    %v6089 = vunpack.c.h.b16 %v4323
    %v6090 = vunpack.c.l.b16 %v4324
    %v6091 = vunpack.c.h.b16 %v4324
    %v6092 = vunpack.c.l.b16 %v4325
    %v6093 = vunpack.c.h.b16 %v4325
    %v6094 = vunpack.c.l.b16 %v4326
    %v6095 = vunpack.c.l.b16 %v4327
    %v6096 = vunpack.c.h.b16 %v4327
    %v6097 = vunpack.c.l.b16 %v4328
    %v6098 = vunpack.c.h.b16 %v4328
    %v6099 = vunpack.c.l.b16 %v4329
    %v6100 = vunpack.c.h.b16 %v4329
    %v6101 = vunpack.c.l.b16 %v4330
    %v6102 = vunpack.c.l.b16 %v4331
    %v6103 = vunpack.c.h.b16 %v4331
    %v6104 = vunpack.c.l.b16 %v4332
    %v6105 = vunpack.c.h.b16 %v4332
    %v6106 = vunpack.c.l.b16 %v4333
    %v6107 = vunpack.c.h.b16 %v4333
    %v6108 = vunpack.c.l.b16 %v4334
    %v6109 = vunpack.c.l.b16 %v4335
    %v6110 = vunpack.c.h.b16 %v4335
    %v6111 = vunpack.c.l.b16 %v4336
    %v6112 = vunpack.c.h.b16 %v4336
    %v6113 = vunpack.c.l.b16 %v4337
    %v6114 = vunpack.c.h.b16 %v4337
    %v6115 = vunpack.c.l.b16 %v4338
    %v6116 = vunpack.c.l.b16 %v4339
    %v6117 = vunpack.c.h.b16 %v4339
    %v6118 = vunpack.c.l.b16 %v4340
    %v6119 = vunpack.c.h.b16 %v4340
    %v6120 = vunpack.c.l.b16 %v4341
    %v6121 = vunpack.c.h.b16 %v4341
    %v6122 = vunpack.c.l.b16 %v4342
    %v6123 = vunpack.c.l.b16 %v4343
    %v6124 = vunpack.c.h.b16 %v4343
    %v6125 = vunpack.c.l.b16 %v4344
    %v6126 = vunpack.c.h.b16 %v4344
    %v6127 = vunpack.c.l.b16 %v4345
    %v6128 = vunpack.c.h.b16 %v4345
    %v6129 = vunpack.c.l.b16 %v4346
    %v6130 = vunpack.c.l.b16 %v4347
    %v6131 = vunpack.c.h.b16 %v4347
    %v6132 = vunpack.c.l.b16 %v4348
    %v6133 = vunpack.c.h.b16 %v4348
    %v6134 = vunpack.c.l.b16 %v4349
    %v6135 = vunpack.c.h.b16 %v4349
    %v6136 = vunpack.c.l.b16 %v4350
    %v6137 = vunpack.c.l.b16 %v4351
    %v6138 = vunpack.c.h.b16 %v4351
    %v6139 = vunpack.c.l.b16 %v4352
    %v6140 = vunpack.c.h.b16 %v4352
    %v6141 = vunpack.c.l.b16 %v4353
    %v6142 = vunpack.c.h.b16 %v4353
    %v6143 = vunpack.c.l.b16 %v4354
    %v6144 = vunpack.c.l.b16 %v4355
    %v6145 = vunpack.c.h.b16 %v4355
    %v6146 = vunpack.c.l.b16 %v4356
    %v6147 = vunpack.c.h.b16 %v4356
    %v6148 = vunpack.c.l.b16 %v4357
    %v6149 = vunpack.c.h.b16 %v4357
    %v6150 = vunpack.c.l.b16 %v4358
    %v6151 = vunpack.c.l.b16 %v4359
    %v6152 = vunpack.c.h.b16 %v4359
    %v6153 = vunpack.c.l.b16 %v4360
    %v6154 = vunpack.c.h.b16 %v4360
    %v6155 = vunpack.c.l.b16 %v4361
    %v6156 = vunpack.c.h.b16 %v4361
    %v6157 = vunpack.c.l.b16 %v4362
    %v6158 = vunpack.c.l.b16 %v4363
    %v6159 = vunpack.c.h.b16 %v4363
    %v6160 = vunpack.c.l.b16 %v4364
    %v6161 = vunpack.c.h.b16 %v4364
    %v6162 = vunpack.c.l.b16 %v4365
    %v6163 = vunpack.c.h.b16 %v4365
    %v6164 = vunpack.c.l.b16 %v4366
    %v6165 = vunpack.c.l.b16 %v4367
    %v6166 = vunpack.c.h.b16 %v4367
    %v6167 = vunpack.c.l.b16 %v4368
    %v6168 = vunpack.c.h.b16 %v4368
    %v6169 = vunpack.c.l.b16 %v4369
    %v6170 = vunpack.c.h.b16 %v4369
    %v6171 = vunpack.c.l.b16 %v4370
    %v6172 = vunpack.c.l.b16 %v4371
    %v6173 = vunpack.c.h.b16 %v4371
    %v6174 = vunpack.c.l.b16 %v4372
    %v6175 = vunpack.c.h.b16 %v4372
    %v6176 = vunpack.c.l.b16 %v4373
    %v6177 = vunpack.c.h.b16 %v4373
    %v6178 = vunpack.c.l.b16 %v4374
    %v6179 = vunpack.c.l.b16 %v4375
    %v6180 = vunpack.c.h.b16 %v4375
    %v6181 = vunpack.c.l.b16 %v4376
    %v6182 = vunpack.c.h.b16 %v4376
    %v6183 = vunpack.c.l.b16 %v4377
    %v6184 = vunpack.c.h.b16 %v4377
    %v6185 = vunpack.c.l.b16 %v4378
    %v6186 = vunpack.c.l.b16 %v4379
    %v6187 = vunpack.c.h.b16 %v4379
    %v6188 = vunpack.c.l.b16 %v4380
    %v6189 = vunpack.c.h.b16 %v4380
    %v6190 = vunpack.c.l.b16 %v4381
    %v6191 = vunpack.c.h.b16 %v4381
    %v6192 = vunpack.c.l.b16 %v4382
    %v6193 = vunpack.c.l.b16 %v4383
    %v6194 = vunpack.c.h.b16 %v4383
    %v6195 = vunpack.c.l.b16 %v4384
    %v6196 = vunpack.c.h.b16 %v4384
    %v6197 = vunpack.c.l.b16 %v4385
    %v6198 = vunpack.c.h.b16 %v4385
    %v6199 = vunpack.c.l.b16 %v4386
    %v6200 = vunpack.c.l.b16 %v4387
    %v6201 = vunpack.c.h.b16 %v4387
    %v6202 = vunpack.c.l.b16 %v4388
    %v6203 = vunpack.c.h.b16 %v4388
    %v6204 = vunpack.c.l.b16 %v4389
    %v6205 = vunpack.c.h.b16 %v4389
    %v6206 = vunpack.c.l.b16 %v4390
    %v6207 = vunpack.c.l.b16 %v4391
    %v6208 = vunpack.c.h.b16 %v4391
    %v6209 = vunpack.c.l.b16 %v4392
    %v6210 = vunpack.c.h.b16 %v4392
    %v6211 = vunpack.c.l.b16 %v4393
    %v6212 = vunpack.c.h.b16 %v4393
    %v6213 = vunpack.c.l.b16 %v4394
    %v6214 = vunpack.c.l.b16 %v4395
    %v6215 = vunpack.c.h.b16 %v4395
    %v6216 = vunpack.c.l.b16 %v4396
    %v6217 = vunpack.c.h.b16 %v4396
    %v6218 = vunpack.c.l.b16 %v4397
    %v6219 = vunpack.c.h.b16 %v4397
    %v6220 = vunpack.c.l.b16 %v4398
    %v6221 = vunpack.c.l.b16 %v4399
    %v6222 = vunpack.c.h.b16 %v4399
    %v6223 = vunpack.c.l.b16 %v4400
    %v6224 = vunpack.c.h.b16 %v4400
    %v6225 = vunpack.c.l.b16 %v4401
    %v6226 = vunpack.c.h.b16 %v4401
    %v6227 = vunpack.c.l.b16 %v4402
    %v6228 = vunpack.c.l.b16 %v4403
    %v6229 = vunpack.c.h.b16 %v4403
    %v6230 = vunpack.c.l.b16 %v4404
    %v6231 = vunpack.c.h.b16 %v4404
    %v6232 = vunpack.c.l.b16 %v4405
    %v6233 = vunpack.c.h.b16 %v4405
    %v6234 = vunpack.c.l.b16 %v4406
    %v6235 = vunpack.c.l.b16 %v4407
    %v6236 = vunpack.c.h.b16 %v4407
    %v6237 = vunpack.c.l.b16 %v4408
    %v6238 = vunpack.c.h.b16 %v4408
    %v6239 = vunpack.c.l.b16 %v4409
    %v6240 = vunpack.c.h.b16 %v4409
    %v6241 = vunpack.c.l.b16 %v4410
    %v6242 = vunpack.c.l.b16 %v4411
    %v6243 = vunpack.c.h.b16 %v4411
    %v6244 = vunpack.c.l.b16 %v4412
    %v6245 = vunpack.c.h.b16 %v4412
    %v6246 = vunpack.c.l.b16 %v4413
    %v6247 = vunpack.c.h.b16 %v4413
    %v6248 = vunpack.c.l.b16 %v4414
    %v6249 = vunpack.c.l.b16 %v4415
    %v6250 = vunpack.c.h.b16 %v4415
    %v6251 = vunpack.c.l.b16 %v4416
    %v6252 = vunpack.c.h.b16 %v4416
    %v6253 = vunpack.c.l.b16 %v4417
    %v6254 = vunpack.c.h.b16 %v4417
    %v6255 = vunpack.c.l.b16 %v4418
    %v6256 = vunpack.c.l.b16 %v4419
    %v6257 = vunpack.c.h.b16 %v4419
    %v6258 = vunpack.c.l.b16 %v4420
    %v6259 = vunpack.c.h.b16 %v4420
    %v6260 = vunpack.c.l.b16 %v4421
    %v6261 = vunpack.c.h.b16 %v4421
    %v6262 = vunpack.c.l.b16 %v4422
    %v6263 = vunpack.c.l.b16 %v4423
    %v6264 = vunpack.c.h.b16 %v4423
    %v6265 = vunpack.c.l.b16 %v4424
    %v6266 = vunpack.c.h.b16 %v4424
    %v6267 = vunpack.c.l.b16 %v4425
    %v6268 = vunpack.c.h.b16 %v4425
    %v6269 = vunpack.c.l.b16 %v4426
    %v6270 = vunpack.c.l.b16 %v4427
    %v6271 = vunpack.c.h.b16 %v4427
    %v6272 = vunpack.c.l.b16 %v4428
    %v6273 = vunpack.c.h.b16 %v4428
    %v6274 = vunpack.c.l.b16 %v4429
    %v6275 = vunpack.c.h.b16 %v4429
    %v6276 = vunpack.c.l.b16 %v4430
    %v6277 = vunpack.c.l.b16 %v4431
    %v6278 = vunpack.c.h.b16 %v4431
    %v6279 = vunpack.c.l.b16 %v4432
    %v6280 = vunpack.c.h.b16 %v4432
    %v6281 = vunpack.c.l.b16 %v4433
    %v6282 = vunpack.c.h.b16 %v4433
    %v6283 = vunpack.c.l.b16 %v4434
    %v6284 = vunpack.c.l.b16 %v4435
    %v6285 = vunpack.c.h.b16 %v4435
    %v6286 = vunpack.c.l.b16 %v4436
    %v6287 = vunpack.c.h.b16 %v4436
    %v6288 = vunpack.c.l.b16 %v4437
    %v6289 = vunpack.c.h.b16 %v4437
    %v6290 = vunpack.c.l.b16 %v4438
    %v6291 = vunpack.c.l.b16 %v4439
    %v6292 = vunpack.c.h.b16 %v4439
    %v6293 = vunpack.c.l.b16 %v4440
    %v6294 = vunpack.c.h.b16 %v4440
    %v6295 = vunpack.c.l.b16 %v4441
    %v6296 = vunpack.c.h.b16 %v4441
    %v6297 = vunpack.c.l.b16 %v4442
    %v6298 = vunpack.c.l.b16 %v4443
    %v6299 = vunpack.c.h.b16 %v4443
    %v6300 = vunpack.c.l.b16 %v4444
    %v6301 = vunpack.c.h.b16 %v4444
    %v6302 = vunpack.c.l.b16 %v4445
    %v6303 = vunpack.c.h.b16 %v4445
    %v6304 = vunpack.c.l.b16 %v4446
    %v6305 = vunpack.c.l.b16 %v4447
    %v6306 = vunpack.c.h.b16 %v4447
    %v6307 = vunpack.c.l.b16 %v4448
    %v6308 = vunpack.c.h.b16 %v4448
    %v6309 = vunpack.c.l.b16 %v4449
    %v6310 = vunpack.c.h.b16 %v4449
    %v6311 = vunpack.c.l.b16 %v4450
    %v6312 = vunpack.c.l.b16 %v4451
    %v6313 = vunpack.c.h.b16 %v4451
    %v6314 = vunpack.c.l.b16 %v4452
    %v6315 = vunpack.c.h.b16 %v4452
    %v6316 = vunpack.c.l.b16 %v4453
    %v6317 = vunpack.c.h.b16 %v4453
    %v6318 = vunpack.c.l.b16 %v4454
    %v6319 = vunpack.c.l.b16 %v4455
    %v6320 = vunpack.c.h.b16 %v4455
    %v6321 = vunpack.c.l.b16 %v4456
    %v6322 = vunpack.c.h.b16 %v4456
    %v6323 = vunpack.c.l.b16 %v4457
    %v6324 = vunpack.c.h.b16 %v4457
    %v6325 = vunpack.c.l.b16 %v4458
    %v6326 = vunpack.c.l.b16 %v4459
    %v6327 = vunpack.c.h.b16 %v4459
    %v6328 = vunpack.c.l.b16 %v4460
    %v6329 = vunpack.c.h.b16 %v4460
    %v6330 = vunpack.c.l.b16 %v4461
    %v6331 = vunpack.c.h.b16 %v4461
    %v6332 = vunpack.c.l.b16 %v4462
    %v6333 = vunpack.c.l.b16 %v4463
    %v6334 = vunpack.c.h.b16 %v4463
    %v6335 = vunpack.c.l.b16 %v4464
    %v6336 = vunpack.c.h.b16 %v4464
    %v6337 = vunpack.c.l.b16 %v4465
    %v6338 = vunpack.c.h.b16 %v4465
    %v6339 = vunpack.c.l.b16 %v4466
    %v6340 = vunpack.c.l.b16 %v4467
    %v6341 = vunpack.c.h.b16 %v4467
    %v6342 = vunpack.c.l.b16 %v4468
    %v6343 = vunpack.c.h.b16 %v4468
    %v6344 = vunpack.c.l.b16 %v4469
    %v6345 = vunpack.c.h.b16 %v4469
    %v6346 = vunpack.c.l.b16 %v4470
    %v6347 = vunpack.c.l.b16 %v4471
    %v6348 = vunpack.c.h.b16 %v4471
    %v6349 = vunpack.c.l.b16 %v4472
    %v6350 = vunpack.c.h.b16 %v4472
    %v6351 = vunpack.c.l.b16 %v4473
    %v6352 = vunpack.c.h.b16 %v4473
    %v6353 = vunpack.c.l.b16 %v4474
    %v6354 = vunpack.c.l.b16 %v4475
    %v6355 = vunpack.c.h.b16 %v4475
    %v6356 = vunpack.c.l.b16 %v4476
    %v6357 = vunpack.c.h.b16 %v4476
    %v6358 = vunpack.c.l.b16 %v4477
    %v6359 = vunpack.c.h.b16 %v4477
    %v6360 = vunpack.c.l.b16 %v4478
    %v6361 = vunpack.c.l.b16 %v4479
    %v6362 = vunpack.c.h.b16 %v4479
    %v6363 = vunpack.c.l.b16 %v4480
    %v6364 = vunpack.c.h.b16 %v4480
    %v6365 = vunpack.c.l.b16 %v4481
    %v6366 = vunpack.c.h.b16 %v4481
    %v6367 = vunpack.c.l.b16 %v4482
    %v6368 = vpack.c.b16 %v5199, %v5192
    %v6369 = vpack.c.b16 %v5200, %v5193
    %v6370 = vpack.c.b16 %v5201, %v5194
    %v6371 = vpack.c.b16 %v5202, %v5195
    %v6372 = vpack.c.b16 %v5203, %v5196
    %v6373 = vpack.c.b16 %v5204, %v5197
    %v6374 = vpack.c.b16 %v5205, %v5198
    %v6375 = vpack.c.b16 %v5213, %v5206
    %v6376 = vpack.c.b16 %v5214, %v5207
    %v6377 = vpack.c.b16 %v5215, %v5208
    %v6378 = vpack.c.b16 %v5216, %v5209
    %v6379 = vpack.c.b16 %v5217, %v5210
    %v6380 = vpack.c.b16 %v5218, %v5211
    %v6381 = vpack.c.b16 %v5219, %v5212
    %v6382 = vpack.c.b16 %v5227, %v5220
    %v6383 = vpack.c.b16 %v5228, %v5221
    %v6384 = vpack.c.b16 %v5229, %v5222
    %v6385 = vpack.c.b16 %v5230, %v5223
    %v6386 = vpack.c.b16 %v5231, %v5224
    %v6387 = vpack.c.b16 %v5232, %v5225
    %v6388 = vpack.c.b16 %v5233, %v5226
    %v6389 = vpack.c.b16 %v5241, %v5234
    %v6390 = vpack.c.b16 %v5242, %v5235
    %v6391 = vpack.c.b16 %v5243, %v5236
    %v6392 = vpack.c.b16 %v5244, %v5237
    %v6393 = vpack.c.b16 %v5245, %v5238
    %v6394 = vpack.c.b16 %v5246, %v5239
    %v6395 = vpack.c.b16 %v5247, %v5240
    %v6396 = vpack.c.b16 %v5255, %v5248
    %v6397 = vpack.c.b16 %v5256, %v5249
    %v6398 = vpack.c.b16 %v5257, %v5250
    %v6399 = vpack.c.b16 %v5258, %v5251
    %v6400 = vpack.c.b16 %v5259, %v5252
    %v6401 = vpack.c.b16 %v5260, %v5253
    %v6402 = vpack.c.b16 %v5261, %v5254
    %v6403 = vpack.c.b16 %v5269, %v5262
    %v6404 = vpack.c.b16 %v5270, %v5263
    %v6405 = vpack.c.b16 %v5271, %v5264
    %v6406 = vpack.c.b16 %v5272, %v5265
    %v6407 = vpack.c.b16 %v5273, %v5266
    %v6408 = vpack.c.b16 %v5274, %v5267
    %v6409 = vpack.c.b16 %v5275, %v5268
    %v6410 = vpack.c.b16 %v5283, %v5276
    %v6411 = vpack.c.b16 %v5284, %v5277
    %v6412 = vpack.c.b16 %v5285, %v5278
    %v6413 = vpack.c.b16 %v5286, %v5279
    %v6414 = vpack.c.b16 %v5287, %v5280
    %v6415 = vpack.c.b16 %v5288, %v5281
    %v6416 = vpack.c.b16 %v5289, %v5282
    %v6417 = vpack.c.b16 %v5297, %v5290
    %v6418 = vpack.c.b16 %v5298, %v5291
    %v6419 = vpack.c.b16 %v5299, %v5292
    %v6420 = vpack.c.b16 %v5300, %v5293
    %v6421 = vpack.c.b16 %v5301, %v5294
    %v6422 = vpack.c.b16 %v5302, %v5295
    %v6423 = vpack.c.b16 %v5303, %v5296
    %v6424 = vpack.c.b16 %v5311, %v5304
    %v6425 = vpack.c.b16 %v5312, %v5305
    %v6426 = vpack.c.b16 %v5313, %v5306
    %v6427 = vpack.c.b16 %v5314, %v5307
    %v6428 = vpack.c.b16 %v5315, %v5308
    %v6429 = vpack.c.b16 %v5316, %v5309
    %v6430 = vpack.c.b16 %v5317, %v5310
    %v6431 = vpack.c.b16 %v5325, %v5318
    %v6432 = vpack.c.b16 %v5326, %v5319
    %v6433 = vpack.c.b16 %v5327, %v5320
    %v6434 = vpack.c.b16 %v5328, %v5321
    %v6435 = vpack.c.b16 %v5329, %v5322
    %v6436 = vpack.c.b16 %v5330, %v5323
    %v6437 = vpack.c.b16 %v5331, %v5324
    %v6438 = vpack.c.b16 %v5339, %v5332
    %v6439 = vpack.c.b16 %v5340, %v5333
    %v6440 = vpack.c.b16 %v5341, %v5334
    %v6441 = vpack.c.b16 %v5342, %v5335
    %v6442 = vpack.c.b16 %v5343, %v5336
    %v6443 = vpack.c.b16 %v5344, %v5337
    %v6444 = vpack.c.b16 %v5345, %v5338
    %v6445 = vpack.c.b16 %v5353, %v5346
    %v6446 = vpack.c.b16 %v5354, %v5347
    %v6447 = vpack.c.b16 %v5355, %v5348
    %v6448 = vpack.c.b16 %v5356, %v5349
    %v6449 = vpack.c.b16 %v5357, %v5350
    %v6450 = vpack.c.b16 %v5358, %v5351
    %v6451 = vpack.c.b16 %v5359, %v5352
    %v6452 = vpack.c.b16 %v5367, %v5360
    %v6453 = vpack.c.b16 %v5368, %v5361
    %v6454 = vpack.c.b16 %v5369, %v5362
    %v6455 = vpack.c.b16 %v5370, %v5363
    %v6456 = vpack.c.b16 %v5371, %v5364
    %v6457 = vpack.c.b16 %v5372, %v5365
    %v6458 = vpack.c.b16 %v5373, %v5366
    %v6459 = vpack.c.b16 %v5381, %v5374
    %v6460 = vpack.c.b16 %v5382, %v5375
    %v6461 = vpack.c.b16 %v5383, %v5376
    %v6462 = vpack.c.b16 %v5384, %v5377
    %v6463 = vpack.c.b16 %v5385, %v5378
    %v6464 = vpack.c.b16 %v5386, %v5379
    %v6465 = vpack.c.b16 %v5387, %v5380
    %v6466 = vpack.c.b16 %v5395, %v5388
    %v6467 = vpack.c.b16 %v5396, %v5389
    %v6468 = vpack.c.b16 %v5397, %v5390
    %v6469 = vpack.c.b16 %v5398, %v5391
    %v6470 = vpack.c.b16 %v5399, %v5392
    %v6471 = vpack.c.b16 %v5400, %v5393
    %v6472 = vpack.c.b16 %v5401, %v5394
    %v6473 = vpack.c.b16 %v5409, %v5402
    %v6474 = vpack.c.b16 %v5410, %v5403
    %v6475 = vpack.c.b16 %v5411, %v5404
    %v6476 = vpack.c.b16 %v5412, %v5405
    %v6477 = vpack.c.b16 %v5413, %v5406
    %v6478 = vpack.c.b16 %v5414, %v5407
    %v6479 = vpack.c.b16 %v5415, %v5408
    %v6480 = vpack.c.b16 %v5423, %v5416
    %v6481 = vpack.c.b16 %v5424, %v5417
    %v6482 = vpack.c.b16 %v5425, %v5418
    %v6483 = vpack.c.b16 %v5426, %v5419
    %v6484 = vpack.c.b16 %v5427, %v5420
    %v6485 = vpack.c.b16 %v5428, %v5421
    %v6486 = vpack.c.b16 %v5429, %v5422
    %v6487 = vpack.c.b16 %v5437, %v5430
    %v6488 = vpack.c.b16 %v5438, %v5431
    %v6489 = vpack.c.b16 %v5439, %v5432
    %v6490 = vpack.c.b16 %v5440, %v5433
    %v6491 = vpack.c.b16 %v5441, %v5434
    %v6492 = vpack.c.b16 %v5442, %v5435
    %v6493 = vpack.c.b16 %v5443, %v5436
    %v6494 = vpack.c.b16 %v5451, %v5444
    %v6495 = vpack.c.b16 %v5452, %v5445
    %v6496 = vpack.c.b16 %v5453, %v5446
    %v6497 = vpack.c.b16 %v5454, %v5447
    %v6498 = vpack.c.b16 %v5455, %v5448
    %v6499 = vpack.c.b16 %v5456, %v5449
    %v6500 = vpack.c.b16 %v5457, %v5450
    %v6501 = vpack.c.b16 %v5465, %v5458
    %v6502 = vpack.c.b16 %v5466, %v5459
    %v6503 = vpack.c.b16 %v5467, %v5460
    %v6504 = vpack.c.b16 %v5468, %v5461
    %v6505 = vpack.c.b16 %v5469, %v5462
    %v6506 = vpack.c.b16 %v5470, %v5463
    %v6507 = vpack.c.b16 %v5471, %v5464
    %v6508 = vpack.c.b16 %v5479, %v5472
    %v6509 = vpack.c.b16 %v5480, %v5473
    %v6510 = vpack.c.b16 %v5481, %v5474
    %v6511 = vpack.c.b16 %v5482, %v5475
    %v6512 = vpack.c.b16 %v5483, %v5476
    %v6513 = vpack.c.b16 %v5484, %v5477
    %v6514 = vpack.c.b16 %v5485, %v5478
    %v6515 = vpack.c.b16 %v5493, %v5486
    %v6516 = vpack.c.b16 %v5494, %v5487
    %v6517 = vpack.c.b16 %v5495, %v5488
    %v6518 = vpack.c.b16 %v5496, %v5489
    %v6519 = vpack.c.b16 %v5497, %v5490
    %v6520 = vpack.c.b16 %v5498, %v5491
    %v6521 = vpack.c.b16 %v5499, %v5492
    %v6522 = vpack.c.b16 %v5507, %v5500
    %v6523 = vpack.c.b16 %v5508, %v5501
    %v6524 = vpack.c.b16 %v5509, %v5502
    %v6525 = vpack.c.b16 %v5510, %v5503
    %v6526 = vpack.c.b16 %v5511, %v5504
    %v6527 = vpack.c.b16 %v5512, %v5505
    %v6528 = vpack.c.b16 %v5513, %v5506
    %v6529 = vpack.c.b16 %v5521, %v5514
    %v6530 = vpack.c.b16 %v5522, %v5515
    %v6531 = vpack.c.b16 %v5523, %v5516
    %v6532 = vpack.c.b16 %v5524, %v5517
    %v6533 = vpack.c.b16 %v5525, %v5518
    %v6534 = vpack.c.b16 %v5526, %v5519
    %v6535 = vpack.c.b16 %v5527, %v5520
    %v6536 = vpack.c.b16 %v5535, %v5528
    %v6537 = vpack.c.b16 %v5536, %v5529
    %v6538 = vpack.c.b16 %v5537, %v5530
    %v6539 = vpack.c.b16 %v5538, %v5531
    %v6540 = vpack.c.b16 %v5539, %v5532
    %v6541 = vpack.c.b16 %v5540, %v5533
    %v6542 = vpack.c.b16 %v5541, %v5534
    %v6543 = vpack.c.b16 %v5549, %v5542
    %v6544 = vpack.c.b16 %v5550, %v5543
    %v6545 = vpack.c.b16 %v5551, %v5544
    %v6546 = vpack.c.b16 %v5552, %v5545
    %v6547 = vpack.c.b16 %v5553, %v5546
    %v6548 = vpack.c.b16 %v5554, %v5547
    %v6549 = vpack.c.b16 %v5555, %v5548
    %v6550 = vpack.c.b16 %v5563, %v5556
    %v6551 = vpack.c.b16 %v5564, %v5557
    %v6552 = vpack.c.b16 %v5565, %v5558
    %v6553 = vpack.c.b16 %v5566, %v5559
    %v6554 = vpack.c.b16 %v5567, %v5560
    %v6555 = vpack.c.b16 %v5568, %v5561
    %v6556 = vpack.c.b16 %v5569, %v5562
    %v6557 = vpack.c.b16 %v5577, %v5570
    %v6558 = vpack.c.b16 %v5578, %v5571
    %v6559 = vpack.c.b16 %v5579, %v5572
    %v6560 = vpack.c.b16 %v5580, %v5573
    %v6561 = vpack.c.b16 %v5581, %v5574
    %v6562 = vpack.c.b16 %v5582, %v5575
    %v6563 = vpack.c.b16 %v5583, %v5576
    %v6564 = vpack.c.b16 %v5591, %v5584
    %v6565 = vpack.c.b16 %v5592, %v5585
    %v6566 = vpack.c.b16 %v5593, %v5586
    %v6567 = vpack.c.b16 %v5594, %v5587
    %v6568 = vpack.c.b16 %v5595, %v5588
    %v6569 = vpack.c.b16 %v5596, %v5589
    %v6570 = vpack.c.b16 %v5597, %v5590
    %v6571 = vpack.c.b16 %v5605, %v5598
    %v6572 = vpack.c.b16 %v5606, %v5599
    %v6573 = vpack.c.b16 %v5607, %v5600
    %v6574 = vpack.c.b16 %v5608, %v5601
    %v6575 = vpack.c.b16 %v5609, %v5602
    %v6576 = vpack.c.b16 %v5610, %v5603
    %v6577 = vpack.c.b16 %v5611, %v5604
    %v6578 = vpack.c.b16 %v5619, %v5612
    %v6579 = vpack.c.b16 %v5620, %v5613
    %v6580 = vpack.c.b16 %v5621, %v5614
    %v6581 = vpack.c.b16 %v5622, %v5615
    %v6582 = vpack.c.b16 %v5623, %v5616
    %v6583 = vpack.c.b16 %v5624, %v5617
    %v6584 = vpack.c.b16 %v5625, %v5618
    %v6585 = vpack.c.b16 %v5633, %v5626
    %v6586 = vpack.c.b16 %v5634, %v5627
    %v6587 = vpack.c.b16 %v5635, %v5628
    %v6588 = vpack.c.b16 %v5636, %v5629
    %v6589 = vpack.c.b16 %v5637, %v5630
    %v6590 = vpack.c.b16 %v5638, %v5631
    %v6591 = vpack.c.b16 %v5639, %v5632
    %v6592 = vpack.c.b16 %v5647, %v5640
    %v6593 = vpack.c.b16 %v5648, %v5641
    %v6594 = vpack.c.b16 %v5649, %v5642
    %v6595 = vpack.c.b16 %v5650, %v5643
    %v6596 = vpack.c.b16 %v5651, %v5644
    %v6597 = vpack.c.b16 %v5652, %v5645
    %v6598 = vpack.c.b16 %v5653, %v5646
    %v6599 = vpack.c.b16 %v5661, %v5654
    %v6600 = vpack.c.b16 %v5662, %v5655
    %v6601 = vpack.c.b16 %v5663, %v5656
    %v6602 = vpack.c.b16 %v5664, %v5657
    %v6603 = vpack.c.b16 %v5665, %v5658
    %v6604 = vpack.c.b16 %v5666, %v5659
    %v6605 = vpack.c.b16 %v5667, %v5660
    %v6606 = vpack.c.b16 %v5675, %v5668
    %v6607 = vpack.c.b16 %v5676, %v5669
    %v6608 = vpack.c.b16 %v5677, %v5670
    %v6609 = vpack.c.b16 %v5678, %v5671
    %v6610 = vpack.c.b16 %v5679, %v5672
    %v6611 = vpack.c.b16 %v5680, %v5673
    %v6612 = vpack.c.b16 %v5681, %v5674
    %v6613 = vpack.c.b16 %v5689, %v5682
    %v6614 = vpack.c.b16 %v5690, %v5683
    %v6615 = vpack.c.b16 %v5691, %v5684
    %v6616 = vpack.c.b16 %v5692, %v5685
    %v6617 = vpack.c.b16 %v5693, %v5686
    %v6618 = vpack.c.b16 %v5694, %v5687
    %v6619 = vpack.c.b16 %v5695, %v5688
    %v6620 = vpack.c.b16 %v5703, %v5696
    %v6621 = vpack.c.b16 %v5704, %v5697
    %v6622 = vpack.c.b16 %v5705, %v5698
    %v6623 = vpack.c.b16 %v5706, %v5699
    %v6624 = vpack.c.b16 %v5707, %v5700
    %v6625 = vpack.c.b16 %v5708, %v5701
    %v6626 = vpack.c.b16 %v5709, %v5702
    %v6627 = vpack.c.b16 %v5717, %v5710
    %v6628 = vpack.c.b16 %v5718, %v5711
    %v6629 = vpack.c.b16 %v5719, %v5712
    %v6630 = vpack.c.b16 %v5720, %v5713
    %v6631 = vpack.c.b16 %v5721, %v5714
    %v6632 = vpack.c.b16 %v5722, %v5715
    %v6633 = vpack.c.b16 %v5723, %v5716
    %v6634 = vpack.c.b16 %v5731, %v5724
    %v6635 = vpack.c.b16 %v5732, %v5725
    %v6636 = vpack.c.b16 %v5733, %v5726
    %v6637 = vpack.c.b16 %v5734, %v5727
    %v6638 = vpack.c.b16 %v5735, %v5728
    %v6639 = vpack.c.b16 %v5736, %v5729
    %v6640 = vpack.c.b16 %v5737, %v5730
    %v6641 = vpack.c.b16 %v5745, %v5738
    %v6642 = vpack.c.b16 %v5746, %v5739
    %v6643 = vpack.c.b16 %v5747, %v5740
    %v6644 = vpack.c.b16 %v5748, %v5741
    %v6645 = vpack.c.b16 %v5749, %v5742
    %v6646 = vpack.c.b16 %v5750, %v5743
    %v6647 = vpack.c.b16 %v5751, %v5744
    %v6648 = vpack.c.b16 %v5759, %v5752
    %v6649 = vpack.c.b16 %v5760, %v5753
    %v6650 = vpack.c.b16 %v5761, %v5754
    %v6651 = vpack.c.b16 %v5762, %v5755
    %v6652 = vpack.c.b16 %v5763, %v5756
    %v6653 = vpack.c.b16 %v5764, %v5757
    %v6654 = vpack.c.b16 %v5765, %v5758
    %v6655 = vpack.c.b16 %v5773, %v5766
    %v6656 = vpack.c.b16 %v5774, %v5767
    %v6657 = vpack.c.b16 %v5775, %v5768
    %v6658 = vpack.c.b16 %v5776, %v5769
    %v6659 = vpack.c.b16 %v5777, %v5770
    %v6660 = vpack.c.b16 %v5778, %v5771
    %v6661 = vpack.c.b16 %v5779, %v5772
    %v6662 = vpack.c.b16 %v5787, %v5780
    %v6663 = vpack.c.b16 %v5788, %v5781
    %v6664 = vpack.c.b16 %v5789, %v5782
    %v6665 = vpack.c.b16 %v5790, %v5783
    %v6666 = vpack.c.b16 %v5791, %v5784
    %v6667 = vpack.c.b16 %v5792, %v5785
    %v6668 = vpack.c.b16 %v5793, %v5786
    %v6669 = vpack.c.b16 %v5801, %v5794
    %v6670 = vpack.c.b16 %v5802, %v5795
    %v6671 = vpack.c.b16 %v5803, %v5796
    %v6672 = vpack.c.b16 %v5804, %v5797
    %v6673 = vpack.c.b16 %v5805, %v5798
    %v6674 = vpack.c.b16 %v5806, %v5799
    %v6675 = vpack.c.b16 %v5807, %v5800
    %v6676 = vpack.c.b16 %v5815, %v5808
    %v6677 = vpack.c.b16 %v5816, %v5809
    %v6678 = vpack.c.b16 %v5817, %v5810
    %v6679 = vpack.c.b16 %v5818, %v5811
    %v6680 = vpack.c.b16 %v5819, %v5812
    %v6681 = vpack.c.b16 %v5820, %v5813
    %v6682 = vpack.c.b16 %v5821, %v5814
    %v6683 = vpack.c.b16 %v5829, %v5822
    %v6684 = vpack.c.b16 %v5830, %v5823
    %v6685 = vpack.c.b16 %v5831, %v5824
    %v6686 = vpack.c.b16 %v5832, %v5825
    %v6687 = vpack.c.b16 %v5833, %v5826
    %v6688 = vpack.c.b16 %v5834, %v5827
    %v6689 = vpack.c.b16 %v5835, %v5828
    %v6690 = vpack.c.b16 %v5843, %v5836
    %v6691 = vpack.c.b16 %v5844, %v5837
    %v6692 = vpack.c.b16 %v5845, %v5838
    %v6693 = vpack.c.b16 %v5846, %v5839
    %v6694 = vpack.c.b16 %v5847, %v5840
    %v6695 = vpack.c.b16 %v5848, %v5841
    %v6696 = vpack.c.b16 %v5849, %v5842
    %v6697 = vpack.c.b16 %v5857, %v5850
    %v6698 = vpack.c.b16 %v5858, %v5851
    %v6699 = vpack.c.b16 %v5859, %v5852
    %v6700 = vpack.c.b16 %v5860, %v5853
    %v6701 = vpack.c.b16 %v5861, %v5854
    %v6702 = vpack.c.b16 %v5862, %v5855
    %v6703 = vpack.c.b16 %v5863, %v5856
    %v6704 = vpack.c.b16 %v5871, %v5864
    %v6705 = vpack.c.b16 %v5872, %v5865
    %v6706 = vpack.c.b16 %v5873, %v5866
    %v6707 = vpack.c.b16 %v5874, %v5867
    %v6708 = vpack.c.b16 %v5875, %v5868
    %v6709 = vpack.c.b16 %v5876, %v5869
    %v6710 = vpack.c.b16 %v5877, %v5870
    %v6711 = vpack.c.b16 %v5885, %v5878
    %v6712 = vpack.c.b16 %v5886, %v5879
    %v6713 = vpack.c.b16 %v5887, %v5880
    %v6714 = vpack.c.b16 %v5888, %v5881
    %v6715 = vpack.c.b16 %v5889, %v5882
    %v6716 = vpack.c.b16 %v5890, %v5883
    %v6717 = vpack.c.b16 %v5891, %v5884
    %v6718 = vpack.c.b16 %v5899, %v5892
    %v6719 = vpack.c.b16 %v5900, %v5893
    %v6720 = vpack.c.b16 %v5901, %v5894
    %v6721 = vpack.c.b16 %v5902, %v5895
    %v6722 = vpack.c.b16 %v5903, %v5896
    %v6723 = vpack.c.b16 %v5904, %v5897
    %v6724 = vpack.c.b16 %v5905, %v5898
    %v6725 = vpack.c.b16 %v5913, %v5906
    %v6726 = vpack.c.b16 %v5914, %v5907
    %v6727 = vpack.c.b16 %v5915, %v5908
    %v6728 = vpack.c.b16 %v5916, %v5909
    %v6729 = vpack.c.b16 %v5917, %v5910
    %v6730 = vpack.c.b16 %v5918, %v5911
    %v6731 = vpack.c.b16 %v5919, %v5912
    %v6732 = vpack.c.b16 %v5927, %v5920
    %v6733 = vpack.c.b16 %v5928, %v5921
    %v6734 = vpack.c.b16 %v5929, %v5922
    %v6735 = vpack.c.b16 %v5930, %v5923
    %v6736 = vpack.c.b16 %v5931, %v5924
    %v6737 = vpack.c.b16 %v5932, %v5925
    %v6738 = vpack.c.b16 %v5933, %v5926
    %v6739 = vpack.c.b16 %v5941, %v5934
    %v6740 = vpack.c.b16 %v5942, %v5935
    %v6741 = vpack.c.b16 %v5943, %v5936
    %v6742 = vpack.c.b16 %v5944, %v5937
    %v6743 = vpack.c.b16 %v5945, %v5938
    %v6744 = vpack.c.b16 %v5946, %v5939
    %v6745 = vpack.c.b16 %v5947, %v5940
    %v6746 = vpack.c.b16 %v5955, %v5948
    %v6747 = vpack.c.b16 %v5956, %v5949
    %v6748 = vpack.c.b16 %v5957, %v5950
    %v6749 = vpack.c.b16 %v5958, %v5951
    %v6750 = vpack.c.b16 %v5959, %v5952
    %v6751 = vpack.c.b16 %v5960, %v5953
    %v6752 = vpack.c.b16 %v5961, %v5954
    %v6753 = vpack.c.b16 %v5969, %v5962
    %v6754 = vpack.c.b16 %v5970, %v5963
    %v6755 = vpack.c.b16 %v5971, %v5964
    %v6756 = vpack.c.b16 %v5972, %v5965
    %v6757 = vpack.c.b16 %v5973, %v5966
    %v6758 = vpack.c.b16 %v5974, %v5967
    %v6759 = vpack.c.b16 %v5975, %v5968
    %v6760 = vpack.c.b16 %v5983, %v5976
    %v6761 = vpack.c.b16 %v5984, %v5977
    %v6762 = vpack.c.b16 %v5985, %v5978
    %v6763 = vpack.c.b16 %v5986, %v5979
    %v6764 = vpack.c.b16 %v5987, %v5980
    %v6765 = vpack.c.b16 %v5988, %v5981
    %v6766 = vpack.c.b16 %v5989, %v5982
    %v6767 = vpack.c.b16 %v5997, %v5990
    %v6768 = vpack.c.b16 %v5998, %v5991
    %v6769 = vpack.c.b16 %v5999, %v5992
    %v6770 = vpack.c.b16 %v6000, %v5993
    %v6771 = vpack.c.b16 %v6001, %v5994
    %v6772 = vpack.c.b16 %v6002, %v5995
    %v6773 = vpack.c.b16 %v6003, %v5996
    %v6774 = vpack.c.b16 %v6011, %v6004
    %v6775 = vpack.c.b16 %v6012, %v6005
    %v6776 = vpack.c.b16 %v6013, %v6006
    %v6777 = vpack.c.b16 %v6014, %v6007
    %v6778 = vpack.c.b16 %v6015, %v6008
    %v6779 = vpack.c.b16 %v6016, %v6009
    %v6780 = vpack.c.b16 %v6017, %v6010
    %v6781 = vpack.c.b16 %v6025, %v6018
    %v6782 = vpack.c.b16 %v6026, %v6019
    %v6783 = vpack.c.b16 %v6027, %v6020
    %v6784 = vpack.c.b16 %v6028, %v6021
    %v6785 = vpack.c.b16 %v6029, %v6022
    %v6786 = vpack.c.b16 %v6030, %v6023
    %v6787 = vpack.c.b16 %v6031, %v6024
    %v6788 = vpack.c.b16 %v6039, %v6032
    %v6789 = vpack.c.b16 %v6040, %v6033
    %v6790 = vpack.c.b16 %v6041, %v6034
    %v6791 = vpack.c.b16 %v6042, %v6035
    %v6792 = vpack.c.b16 %v6043, %v6036
    %v6793 = vpack.c.b16 %v6044, %v6037
    %v6794 = vpack.c.b16 %v6045, %v6038
    %v6795 = vpack.c.b16 %v6053, %v6046
    %v6796 = vpack.c.b16 %v6054, %v6047
    %v6797 = vpack.c.b16 %v6055, %v6048
    %v6798 = vpack.c.b16 %v6056, %v6049
    %v6799 = vpack.c.b16 %v6057, %v6050
    %v6800 = vpack.c.b16 %v6058, %v6051
    %v6801 = vpack.c.b16 %v6059, %v6052
    %v6802 = vpack.c.b16 %v6067, %v6060
    %v6803 = vpack.c.b16 %v6068, %v6061
    %v6804 = vpack.c.b16 %v6069, %v6062
    %v6805 = vpack.c.b16 %v6070, %v6063
    %v6806 = vpack.c.b16 %v6071, %v6064
    %v6807 = vpack.c.b16 %v6072, %v6065
    %v6808 = vpack.c.b16 %v6073, %v6066
    %v6809 = vpack.c.b16 %v6081, %v6074
    %v6810 = vpack.c.b16 %v6082, %v6075
    %v6811 = vpack.c.b16 %v6083, %v6076
    %v6812 = vpack.c.b16 %v6084, %v6077
    %v6813 = vpack.c.b16 %v6085, %v6078
    %v6814 = vpack.c.b16 %v6086, %v6079
    %v6815 = vpack.c.b16 %v6087, %v6080
    %v6816 = vpack.c.b16 %v6095, %v6088
    %v6817 = vpack.c.b16 %v6096, %v6089
    %v6818 = vpack.c.b16 %v6097, %v6090
    %v6819 = vpack.c.b16 %v6098, %v6091
    %v6820 = vpack.c.b16 %v6099, %v6092
    %v6821 = vpack.c.b16 %v6100, %v6093
    %v6822 = vpack.c.b16 %v6101, %v6094
    %v6823 = vpack.c.b16 %v6109, %v6102
    %v6824 = vpack.c.b16 %v6110, %v6103
    %v6825 = vpack.c.b16 %v6111, %v6104
    %v6826 = vpack.c.b16 %v6112, %v6105
    %v6827 = vpack.c.b16 %v6113, %v6106
    %v6828 = vpack.c.b16 %v6114, %v6107
    %v6829 = vpack.c.b16 %v6115, %v6108
    %v6830 = vpack.c.b16 %v6123, %v6116
    %v6831 = vpack.c.b16 %v6124, %v6117
    %v6832 = vpack.c.b16 %v6125, %v6118
    %v6833 = vpack.c.b16 %v6126, %v6119
    %v6834 = vpack.c.b16 %v6127, %v6120
    %v6835 = vpack.c.b16 %v6128, %v6121
    %v6836 = vpack.c.b16 %v6129, %v6122
    %v6837 = vpack.c.b16 %v6137, %v6130
    %v6838 = vpack.c.b16 %v6138, %v6131
    %v6839 = vpack.c.b16 %v6139, %v6132
    %v6840 = vpack.c.b16 %v6140, %v6133
    %v6841 = vpack.c.b16 %v6141, %v6134
    %v6842 = vpack.c.b16 %v6142, %v6135
    %v6843 = vpack.c.b16 %v6143, %v6136
    %v6844 = vpack.c.b16 %v6151, %v6144
    %v6845 = vpack.c.b16 %v6152, %v6145
    %v6846 = vpack.c.b16 %v6153, %v6146
    %v6847 = vpack.c.b16 %v6154, %v6147
    %v6848 = vpack.c.b16 %v6155, %v6148
    %v6849 = vpack.c.b16 %v6156, %v6149
    %v6850 = vpack.c.b16 %v6157, %v6150
    %v6851 = vpack.c.b16 %v6165, %v6158
    %v6852 = vpack.c.b16 %v6166, %v6159
    %v6853 = vpack.c.b16 %v6167, %v6160
    %v6854 = vpack.c.b16 %v6168, %v6161
    %v6855 = vpack.c.b16 %v6169, %v6162
    %v6856 = vpack.c.b16 %v6170, %v6163
    %v6857 = vpack.c.b16 %v6171, %v6164
    %v6858 = vpack.c.b16 %v6179, %v6172
    %v6859 = vpack.c.b16 %v6180, %v6173
    %v6860 = vpack.c.b16 %v6181, %v6174
    %v6861 = vpack.c.b16 %v6182, %v6175
    %v6862 = vpack.c.b16 %v6183, %v6176
    %v6863 = vpack.c.b16 %v6184, %v6177
    %v6864 = vpack.c.b16 %v6185, %v6178
    %v6865 = vpack.c.b16 %v6193, %v6186
    %v6866 = vpack.c.b16 %v6194, %v6187
    %v6867 = vpack.c.b16 %v6195, %v6188
    %v6868 = vpack.c.b16 %v6196, %v6189
    %v6869 = vpack.c.b16 %v6197, %v6190
    %v6870 = vpack.c.b16 %v6198, %v6191
    %v6871 = vpack.c.b16 %v6199, %v6192
    %v6872 = vpack.c.b16 %v6207, %v6200
    %v6873 = vpack.c.b16 %v6208, %v6201
    %v6874 = vpack.c.b16 %v6209, %v6202
    %v6875 = vpack.c.b16 %v6210, %v6203
    %v6876 = vpack.c.b16 %v6211, %v6204
    %v6877 = vpack.c.b16 %v6212, %v6205
    %v6878 = vpack.c.b16 %v6213, %v6206
    %v6879 = vpack.c.b16 %v6221, %v6214
    %v6880 = vpack.c.b16 %v6222, %v6215
    %v6881 = vpack.c.b16 %v6223, %v6216
    %v6882 = vpack.c.b16 %v6224, %v6217
    %v6883 = vpack.c.b16 %v6225, %v6218
    %v6884 = vpack.c.b16 %v6226, %v6219
    %v6885 = vpack.c.b16 %v6227, %v6220
    %v6886 = vpack.c.b16 %v6235, %v6228
    %v6887 = vpack.c.b16 %v6236, %v6229
    %v6888 = vpack.c.b16 %v6237, %v6230
    %v6889 = vpack.c.b16 %v6238, %v6231
    %v6890 = vpack.c.b16 %v6239, %v6232
    %v6891 = vpack.c.b16 %v6240, %v6233
    %v6892 = vpack.c.b16 %v6241, %v6234
    %v6893 = vpack.c.b16 %v6249, %v6242
    %v6894 = vpack.c.b16 %v6250, %v6243
    %v6895 = vpack.c.b16 %v6251, %v6244
    %v6896 = vpack.c.b16 %v6252, %v6245
    %v6897 = vpack.c.b16 %v6253, %v6246
    %v6898 = vpack.c.b16 %v6254, %v6247
    %v6899 = vpack.c.b16 %v6255, %v6248
    %v6900 = vpack.c.b16 %v6263, %v6256
    %v6901 = vpack.c.b16 %v6264, %v6257
    %v6902 = vpack.c.b16 %v6265, %v6258
    %v6903 = vpack.c.b16 %v6266, %v6259
    %v6904 = vpack.c.b16 %v6267, %v6260
    %v6905 = vpack.c.b16 %v6268, %v6261
    %v6906 = vpack.c.b16 %v6269, %v6262
    %v6907 = vpack.c.b16 %v6277, %v6270
    %v6908 = vpack.c.b16 %v6278, %v6271
    %v6909 = vpack.c.b16 %v6279, %v6272
    %v6910 = vpack.c.b16 %v6280, %v6273
    %v6911 = vpack.c.b16 %v6281, %v6274
    %v6912 = vpack.c.b16 %v6282, %v6275
    %v6913 = vpack.c.b16 %v6283, %v6276
    %v6914 = vpack.c.b16 %v6291, %v6284
    %v6915 = vpack.c.b16 %v6292, %v6285
    %v6916 = vpack.c.b16 %v6293, %v6286
    %v6917 = vpack.c.b16 %v6294, %v6287
    %v6918 = vpack.c.b16 %v6295, %v6288
    %v6919 = vpack.c.b16 %v6296, %v6289
    %v6920 = vpack.c.b16 %v6297, %v6290
    %v6921 = vpack.c.b16 %v6305, %v6298
    %v6922 = vpack.c.b16 %v6306, %v6299
    %v6923 = vpack.c.b16 %v6307, %v6300
    %v6924 = vpack.c.b16 %v6308, %v6301
    %v6925 = vpack.c.b16 %v6309, %v6302
    %v6926 = vpack.c.b16 %v6310, %v6303
    %v6927 = vpack.c.b16 %v6311, %v6304
    %v6928 = vpack.c.b16 %v6319, %v6312
    %v6929 = vpack.c.b16 %v6320, %v6313
    %v6930 = vpack.c.b16 %v6321, %v6314
    %v6931 = vpack.c.b16 %v6322, %v6315
    %v6932 = vpack.c.b16 %v6323, %v6316
    %v6933 = vpack.c.b16 %v6324, %v6317
    %v6934 = vpack.c.b16 %v6325, %v6318
    %v6935 = vpack.c.b16 %v6333, %v6326
    %v6936 = vpack.c.b16 %v6334, %v6327
    %v6937 = vpack.c.b16 %v6335, %v6328
    %v6938 = vpack.c.b16 %v6336, %v6329
    %v6939 = vpack.c.b16 %v6337, %v6330
    %v6940 = vpack.c.b16 %v6338, %v6331
    %v6941 = vpack.c.b16 %v6339, %v6332
    %v6942 = vpack.c.b16 %v6347, %v6340
    %v6943 = vpack.c.b16 %v6348, %v6341
    %v6944 = vpack.c.b16 %v6349, %v6342
    %v6945 = vpack.c.b16 %v6350, %v6343
    %v6946 = vpack.c.b16 %v6351, %v6344
    %v6947 = vpack.c.b16 %v6352, %v6345
    %v6948 = vpack.c.b16 %v6353, %v6346
    %v6949 = vpack.c.b16 %v6361, %v6354
    %v6950 = vpack.c.b16 %v6362, %v6355
    %v6951 = vpack.c.b16 %v6363, %v6356
    %v6952 = vpack.c.b16 %v6364, %v6357
    %v6953 = vpack.c.b16 %v6365, %v6358
    %v6954 = vpack.c.b16 %v6366, %v6359
    %v6955 = vpack.c.b16 %v6367, %v6360
    %v7545 = vsel %vm3388, %v3709, 0
    %v7548 = vsel %vm3388, %v3713, 0
    %v7551 = vsel %vm3388, %v3717, 0
    %v7554 = vsel %vm3388, %v3721, 0
    %7556 = vmatprep.subr.bf16.mxu0 %v6369
    %7557 = vmatpush1.bf16.msra.mxu0 %v6368
    %7558 = vmatprep.subr.bf16.mxu0 %v6376
    %7559 = vmatpush1.bf16.msra.mxu0 %v6375
    %7560 = vmatprep.subr.bf16.mxu0 %v6383
    %7561 = vmatpush1.bf16.msra.mxu0 %v6382
    %7562 = vmatprep.subr.bf16.mxu0 %v6390
    %7563 = vmatpush1.bf16.msra.mxu0 %v6389
    %7564 = vmatprep.subr.bf16.mxu0 %v6397
    %7565 = vmatpush1.bf16.msra.mxu0 %v6396
    %7566 = vmatprep.subr.bf16.mxu0 %v6404
    %7567 = vmatpush1.bf16.msra.mxu0 %v6403
    %7568 = vmatprep.subr.bf16.mxu0 %v6411
    %7569 = vmatpush1.bf16.msra.mxu0 %v6410
    %7570 = vmatprep.subr.bf16.mxu0 %v6418
    %7571 = vmatpush1.bf16.msra.mxu0 %v6417
    %7572 = vmatprep.subr.bf16.mxu0 %v6425
    %7573 = vmatpush1.bf16.msra.mxu0 %v6424
    %7574 = vmatprep.subr.bf16.mxu0 %v6432
    %7575 = vmatpush1.bf16.msra.mxu0 %v6431
    %7576 = vmatprep.subr.bf16.mxu0 %v6439
    %7577 = vmatpush1.bf16.msra.mxu0 %v6438
    %7578 = vmatprep.subr.bf16.mxu0 %v6446
    %7579 = vmatpush1.bf16.msra.mxu0 %v6445
    %7580 = vmatprep.subr.bf16.mxu0 %v6453
    %7581 = vmatpush1.bf16.msra.mxu0 %v6452
    %7582 = vmatprep.subr.bf16.mxu0 %v6460
    %7583 = vmatpush1.bf16.msra.mxu0 %v6459
    %7584 = vmatprep.subr.bf16.mxu0 %v6467
    %7585 = vmatpush1.bf16.msra.mxu0 %v6466
    %7586 = vmatprep.subr.bf16.mxu0 %v6474
    %7587 = vmatpush1.bf16.msra.mxu0 %v6473
    %7588 = vmatprep.mubr.bf16.mxu0 %v3627
    %7589 = vmatmul.mubr.bf16.gmra.mrb[0].mxu0 %v3626
    %v7590 = vpop.f32.mrb[0].mxu0
    %v7591 = vadd.f32 %v4488, %v7590
    %v7592 = vpop.f32.mrb[0].mxu0
    %v7593 = vadd.f32 %v4492, %v7592
    %v7594 = vpop.f32.mrb[0].mxu0
    %v7595 = vadd.f32 %v4488, %v7594
    %v7596 = vpop.f32.mrb[0].mxu0
    %v7597 = vadd.f32 %v4492, %v7596
    %7598 = vmatprep.mubr.bf16.mxu0 %v3631
    %7599 = vmatmul.mubr.bf16.gmra.mrb[0].mxu0 %v3630
    %v7600 = vpop.f32.mrb[0].mxu0
    %v7601 = vadd.f32 %v4488, %v7600
    %v7602 = vpop.f32.mrb[0].mxu0
    %v7603 = vadd.f32 %v4492, %v7602
    %v7604 = vpop.f32.mrb[0].mxu0
    %v7605 = vadd.f32 %v4488, %v7604
    %v7606 = vpop.f32.mrb[0].mxu0
    %v7607 = vadd.f32 %v4492, %v7606
    %7608 = vmatprep.mubr.bf16.mxu0 %v3635
    %7609 = vmatmul.mubr.bf16.gmra.mrb[0].mxu0 %v3634
    %v7610 = vpop.f32.mrb[0].mxu0
    %v7611 = vadd.f32 %v4488, %v7610
    %v7612 = vpop.f32.mrb[0].mxu0
    %v7613 = vadd.f32 %v4492, %v7612
    %v7614 = vpop.f32.mrb[0].mxu0
    %v7615 = vadd.f32 %v4488, %v7614
    %v7616 = vpop.f32.mrb[0].mxu0
    %v7617 = vadd.f32 %v4492, %v7616
    %7618 = vmatprep.mubr.bf16.mxu0 %v3639
    %7619 = vmatmul.mubr.bf16.gmra.mrb[0].mxu0 %v3638
    %v7620 = vpop.f32.mrb[0].mxu0
    %v7621 = vadd.f32 %v4488, %v7620
    %v7622 = vpop.f32.mrb[0].mxu0
    %v7623 = vadd.f32 %v4492, %v7622
    %v7624 = vpop.f32.mrb[0].mxu0
    %v7625 = vpop.f32.mrb[0].mxu0
    %7626 = vdwg.mxu0
    %7627 = vmatprep.subr.bf16.mxu0 %v6481
    %7628 = vmatpush1.bf16.msra.mxu0 %v6480
    %7629 = vmatprep.subr.bf16.mxu0 %v6488
    %7630 = vmatpush1.bf16.msra.mxu0 %v6487
    %7631 = vmatprep.subr.bf16.mxu0 %v6495
    %7632 = vmatpush1.bf16.msra.mxu0 %v6494
    %7633 = vmatprep.subr.bf16.mxu0 %v6502
    %7634 = vmatpush1.bf16.msra.mxu0 %v6501
    %7635 = vmatprep.subr.bf16.mxu0 %v6509
    %7636 = vmatpush1.bf16.msra.mxu0 %v6508
    %7637 = vmatprep.subr.bf16.mxu0 %v6516
    %7638 = vmatpush1.bf16.msra.mxu0 %v6515
    %7639 = vmatprep.subr.bf16.mxu0 %v6523
    %7640 = vmatpush1.bf16.msra.mxu0 %v6522
    %7641 = vmatprep.subr.bf16.mxu0 %v6530
    %7642 = vmatpush1.bf16.msra.mxu0 %v6529
    %7643 = vmatprep.subr.bf16.mxu0 %v6537
    %7644 = vmatpush1.bf16.msra.mxu0 %v6536
    %7645 = vmatprep.subr.bf16.mxu0 %v6544
    %7646 = vmatpush1.bf16.msra.mxu0 %v6543
    %7647 = vmatprep.subr.bf16.mxu0 %v6551
    %7648 = vmatpush1.bf16.msra.mxu0 %v6550
    %7649 = vmatprep.subr.bf16.mxu0 %v6558
    %7650 = vmatpush1.bf16.msra.mxu0 %v6557
    %7651 = vmatprep.subr.bf16.mxu0 %v6565
    %7652 = vmatpush1.bf16.msra.mxu0 %v6564
    %7653 = vmatprep.subr.bf16.mxu0 %v6572
    %7654 = vmatpush1.bf16.msra.mxu0 %v6571
    %7655 = vmatprep.subr.bf16.mxu0 %v6579
    %7656 = vmatpush1.bf16.msra.mxu0 %v6578
    %7657 = vmatprep.subr.bf16.mxu0 %v6586
    %7658 = vmatpush1.bf16.msra.mxu0 %v6585
    %7659 = vmatprep.mubr.bf16.mxu0 %v3797
    %7660 = vmatmul.mubr.bf16.gmra.mrb[0].mxu0 %v3628
    %v7661 = vpop.f32.mrb[0].mxu0
    %v7662 = vadd.f32 %v7591, %v7661
    %v7663 = vpop.f32.mrb[0].mxu0
    %v7664 = vadd.f32 %v7593, %v7663
    %v7665 = vpop.f32.mrb[0].mxu0
    %v7666 = vadd.f32 %v7595, %v7665
    %v7667 = vpop.f32.mrb[0].mxu0
    %v7668 = vadd.f32 %v7597, %v7667
    %7669 = vmatprep.mubr.bf16.mxu0 %v3801
    %7670 = vmatmul.mubr.bf16.gmra.mrb[0].mxu0 %v3632
    %v7671 = vpop.f32.mrb[0].mxu0
    %v7672 = vadd.f32 %v7601, %v7671
    %v7673 = vpop.f32.mrb[0].mxu0
    %v7674 = vadd.f32 %v7603, %v7673
    %v7675 = vpop.f32.mrb[0].mxu0
    %v7676 = vadd.f32 %v7605, %v7675
    %v7677 = vpop.f32.mrb[0].mxu0
    %v7678 = vadd.f32 %v7607, %v7677
    %7679 = vmatprep.mubr.bf16.mxu0 %v3805
    %7680 = vmatmul.mubr.bf16.gmra.mrb[0].mxu0 %v3636
    %v7681 = vpop.f32.mrb[0].mxu0
    %v7682 = vadd.f32 %v7611, %v7681
    %v7683 = vpop.f32.mrb[0].mxu0
    %v7684 = vadd.f32 %v7613, %v7683
    %v7685 = vpop.f32.mrb[0].mxu0
    %v7686 = vadd.f32 %v7615, %v7685
    %v7687 = vpop.f32.mrb[0].mxu0
    %v7688 = vadd.f32 %v7617, %v7687
    %7689 = vmatprep.mubr.bf16.mxu0 %v3809
    %7690 = vmatmul.mubr.bf16.gmra.mrb[0].mxu0 %v3640
    %v7691 = vpop.f32.mrb[0].mxu0
    %v7692 = vadd.f32 %v7621, %v7691
    %v7693 = vpop.f32.mrb[0].mxu0
    %v7694 = vadd.f32 %v7623, %v7693
    %v7695 = vpop.f32.mrb[0].mxu0
    %v7696 = vpop.f32.mrb[0].mxu0
    %7697 = vdwg.mxu0
    %7698 = vmatprep.subr.bf16.mxu0 %v6593
    %7699 = vmatpush1.bf16.msra.mxu0 %v6592
    %7700 = vmatprep.subr.bf16.mxu0 %v6600
    %7701 = vmatpush1.bf16.msra.mxu0 %v6599
    %7702 = vmatprep.subr.bf16.mxu0 %v6607
    %7703 = vmatpush1.bf16.msra.mxu0 %v6606
    %7704 = vmatprep.subr.bf16.mxu0 %v6614
    %7705 = vmatpush1.bf16.msra.mxu0 %v6613
    %7706 = vmatprep.subr.bf16.mxu0 %v6621
    %7707 = vmatpush1.bf16.msra.mxu0 %v6620
    %7708 = vmatprep.subr.bf16.mxu0 %v6628
    %7709 = vmatpush1.bf16.msra.mxu0 %v6627
    %7710 = vmatprep.subr.bf16.mxu0 %v6635
    %7711 = vmatpush1.bf16.msra.mxu0 %v6634
    %7712 = vmatprep.subr.bf16.mxu0 %v6642
    %7713 = vmatpush1.bf16.msra.mxu0 %v6641
    %7714 = vmatprep.subr.bf16.mxu0 %v6649
    %7715 = vmatpush1.bf16.msra.mxu0 %v6648
    %7716 = vmatprep.subr.bf16.mxu0 %v6656
    %7717 = vmatpush1.bf16.msra.mxu0 %v6655
    %7718 = vmatprep.subr.bf16.mxu0 %v6663
    %7719 = vmatpush1.bf16.msra.mxu0 %v6662
    %7720 = vmatprep.subr.bf16.mxu0 %v6670
    %7721 = vmatpush1.bf16.msra.mxu0 %v6669
    %7722 = vmatprep.subr.bf16.mxu0 %v6677
    %7723 = vmatpush1.bf16.msra.mxu0 %v6676
    %7724 = vmatprep.subr.bf16.mxu0 %v6684
    %7725 = vmatpush1.bf16.msra.mxu0 %v6683
    %7726 = vmatprep.subr.bf16.mxu0 %v6691
    %7727 = vmatpush1.bf16.msra.mxu0 %v6690
    %7728 = vmatprep.subr.bf16.mxu0 %v6698
    %7729 = vmatpush1.bf16.msra.mxu0 %v6697
    %7730 = vmatprep.mubr.bf16.mxu0 %v3772
    %7731 = vmatmul.mubr.bf16.gmra.mrb[0].mxu0 %v3771
    %v7732 = vpop.f32.mrb[0].mxu0
    %v7733 = vadd.f32 %v7662, %v7732
    %v7734 = vpop.f32.mrb[0].mxu0
    %v7735 = vadd.f32 %v7664, %v7734
    %v7736 = vpop.f32.mrb[0].mxu0
    %v7737 = vadd.f32 %v7666, %v7736
    %v7738 = vpop.f32.mrb[0].mxu0
    %v7739 = vadd.f32 %v7668, %v7738
    %7740 = vmatprep.mubr.bf16.mxu0 %v3775
    %7741 = vmatmul.mubr.bf16.gmra.mrb[0].mxu0 %v3774
    %v7742 = vpop.f32.mrb[0].mxu0
    %v7743 = vadd.f32 %v7672, %v7742
    %v7744 = vpop.f32.mrb[0].mxu0
    %v7745 = vadd.f32 %v7674, %v7744
    %v7746 = vpop.f32.mrb[0].mxu0
    %v7747 = vadd.f32 %v7676, %v7746
    %v7748 = vpop.f32.mrb[0].mxu0
    %v7749 = vadd.f32 %v7678, %v7748
    %7750 = vmatprep.mubr.bf16.mxu0 %v3778
    %7751 = vmatmul.mubr.bf16.gmra.mrb[0].mxu0 %v3777
    %v7752 = vpop.f32.mrb[0].mxu0
    %v7753 = vadd.f32 %v7682, %v7752
    %v7754 = vpop.f32.mrb[0].mxu0
    %v7755 = vadd.f32 %v7684, %v7754
    %v7756 = vpop.f32.mrb[0].mxu0
    %v7757 = vadd.f32 %v7686, %v7756
    %v7758 = vpop.f32.mrb[0].mxu0
    %v7759 = vadd.f32 %v7688, %v7758
    %7760 = vmatprep.mubr.bf16.mxu0 %v3781
    %7761 = vmatmul.mubr.bf16.gmra.mrb[0].mxu0 %v3780
    %v7762 = vpop.f32.mrb[0].mxu0
    %v7763 = vadd.f32 %v7692, %v7762
    %v7764 = vpop.f32.mrb[0].mxu0
    %v7765 = vadd.f32 %v7694, %v7764
    %v7766 = vpop.f32.mrb[0].mxu0
    %v7767 = vpop.f32.mrb[0].mxu0
    %7768 = vdwg.mxu0
    %7769 = vmatprep.subr.bf16.mxu0 %v6705
    %7770 = vmatpush1.bf16.msra.mxu0 %v6704
    %7771 = vmatprep.subr.bf16.mxu0 %v6712
    %7772 = vmatpush1.bf16.msra.mxu0 %v6711
    %7773 = vmatprep.subr.bf16.mxu0 %v6719
    %7774 = vmatpush1.bf16.msra.mxu0 %v6718
    %7775 = vmatprep.subr.bf16.mxu0 %v6726
    %7776 = vmatpush1.bf16.msra.mxu0 %v6725
    %7777 = vmatprep.subr.bf16.mxu0 %v6733
    %7778 = vmatpush1.bf16.msra.mxu0 %v6732
    %7779 = vmatprep.subr.bf16.mxu0 %v6740
    %7780 = vmatpush1.bf16.msra.mxu0 %v6739
    %7781 = vmatprep.subr.bf16.mxu0 %v6747
    %7782 = vmatpush1.bf16.msra.mxu0 %v6746
    %7783 = vmatprep.subr.bf16.mxu0 %v6754
    %7784 = vmatpush1.bf16.msra.mxu0 %v6753
    %7785 = vmatprep.subr.bf16.mxu0 %v6761
    %7786 = vmatpush1.bf16.msra.mxu0 %v6760
    %7787 = vmatprep.subr.bf16.mxu0 %v6768
    %7788 = vmatpush1.bf16.msra.mxu0 %v6767
    %7789 = vmatprep.subr.bf16.mxu0 %v6775
    %7790 = vmatpush1.bf16.msra.mxu0 %v6774
    %7791 = vmatprep.subr.bf16.mxu0 %v6782
    %7792 = vmatpush1.bf16.msra.mxu0 %v6781
    %7793 = vmatprep.subr.bf16.mxu0 %v6789
    %7794 = vmatpush1.bf16.msra.mxu0 %v6788
    %7795 = vmatprep.subr.bf16.mxu0 %v6796
    %7796 = vmatpush1.bf16.msra.mxu0 %v6795
    %7797 = vmatprep.subr.bf16.mxu0 %v6803
    %7798 = vmatpush1.bf16.msra.mxu0 %v6802
    %7799 = vmatprep.subr.bf16.mxu0 %v6810
    %7800 = vmatpush1.bf16.msra.mxu0 %v6809
    %7801 = vmatprep.mubr.bf16.mxu0 %v3706
    %7802 = vmatmul.mubr.bf16.gmra.mrb[0].mxu0 %v3773
    %v7803 = vpop.f32.mrb[0].mxu0
    %v7804 = vadd.f32 %v7733, %v7803
    %v7805 = vpop.f32.mrb[0].mxu0
    %v7806 = vadd.f32 %v7735, %v7805
    %v7807 = vpop.f32.mrb[0].mxu0
    %v7808 = vadd.f32 %v7737, %v7807
    %v7809 = vpop.f32.mrb[0].mxu0
    %v7810 = vadd.f32 %v7739, %v7809
    %7811 = vmatprep.mubr.bf16.mxu0 %v3710
    %7812 = vmatmul.mubr.bf16.gmra.mrb[0].mxu0 %v3776
    %v7813 = vpop.f32.mrb[0].mxu0
    %v7814 = vadd.f32 %v7743, %v7813
    %v7815 = vpop.f32.mrb[0].mxu0
    %v7816 = vadd.f32 %v7745, %v7815
    %v7817 = vpop.f32.mrb[0].mxu0
    %v7818 = vadd.f32 %v7747, %v7817
    %v7819 = vpop.f32.mrb[0].mxu0
    %v7820 = vadd.f32 %v7749, %v7819
    %7821 = vmatprep.mubr.bf16.mxu0 %v3714
    %7822 = vmatmul.mubr.bf16.gmra.mrb[0].mxu0 %v3779
    %v7823 = vpop.f32.mrb[0].mxu0
    %v7824 = vadd.f32 %v7753, %v7823
    %v7825 = vpop.f32.mrb[0].mxu0
    %v7826 = vadd.f32 %v7755, %v7825
    %v7827 = vpop.f32.mrb[0].mxu0
    %v7828 = vadd.f32 %v7757, %v7827
    %v7829 = vpop.f32.mrb[0].mxu0
    %v7830 = vadd.f32 %v7759, %v7829
    %7831 = vmatprep.mubr.bf16.mxu0 %v3718
    %7832 = vmatmul.mubr.bf16.gmra.mrb[0].mxu0 %v3782
    %v7833 = vpop.f32.mrb[0].mxu0
    %v7834 = vadd.f32 %v7763, %v7833
    %v7835 = vpop.f32.mrb[0].mxu0
    %v7836 = vadd.f32 %v7765, %v7835
    %v7837 = vpop.f32.mrb[0].mxu0
    %v7838 = vpop.f32.mrb[0].mxu0
    %7839 = vdwg.mxu0
    %7840 = vmatprep.subr.bf16.mxu0 %v6817
    %7841 = vmatpush1.bf16.msra.mxu0 %v6816
    %7842 = vmatprep.subr.bf16.mxu0 %v6824
    %7843 = vmatpush1.bf16.msra.mxu0 %v6823
    %7844 = vmatprep.subr.bf16.mxu0 %v6831
    %7845 = vmatpush1.bf16.msra.mxu0 %v6830
    %7846 = vmatprep.subr.bf16.mxu0 %v6838
    %7847 = vmatpush1.bf16.msra.mxu0 %v6837
    %7848 = vmatprep.subr.bf16.mxu0 %v6845
    %7849 = vmatpush1.bf16.msra.mxu0 %v6844
    %7850 = vmatprep.subr.bf16.mxu0 %v6852
    %7851 = vmatpush1.bf16.msra.mxu0 %v6851
    %7852 = vmatprep.subr.bf16.mxu0 %v6859
    %7853 = vmatpush1.bf16.msra.mxu0 %v6858
    %7854 = vmatprep.subr.bf16.mxu0 %v6866
    %7855 = vmatpush1.bf16.msra.mxu0 %v6865
    %7856 = vmatprep.subr.bf16.mxu0 %v6873
    %7857 = vmatpush1.bf16.msra.mxu0 %v6872
    %7858 = vmatprep.subr.bf16.mxu0 %v6880
    %7859 = vmatpush1.bf16.msra.mxu0 %v6879
    %7860 = vmatprep.subr.bf16.mxu0 %v6887
    %7861 = vmatpush1.bf16.msra.mxu0 %v6886
    %7862 = vmatprep.subr.bf16.mxu0 %v6894
    %7863 = vmatpush1.bf16.msra.mxu0 %v6893
    %7864 = vmatprep.subr.bf16.mxu0 %v6901
    %7865 = vmatpush1.bf16.msra.mxu0 %v6900
    %7866 = vmatprep.subr.bf16.mxu0 %v6908
    %7867 = vmatpush1.bf16.msra.mxu0 %v6907
    %7868 = vmatprep.subr.bf16.mxu0 %v6915
    %7869 = vmatpush1.bf16.msra.mxu0 %v6914
    %7870 = vmatprep.subr.bf16.mxu0 %v6922
    %7871 = vmatpush1.bf16.msra.mxu0 %v6921
    %7872 = vmatprep.mubr.bf16.mxu0 %v3708
    %7873 = vmatmul.mubr.bf16.gmra.mrb[0].mxu0 %v3707
    %v7874 = vpop.f32.mrb[0].mxu0
    %v7875 = vadd.f32 %v7804, %v7874
    %v7876 = vpop.f32.mrb[0].mxu0
    %v7877 = vadd.f32 %v7806, %v7876
    %v7878 = vpop.f32.mrb[0].mxu0
    %v7879 = vadd.f32 %v7808, %v7878
    %v7880 = vpop.f32.mrb[0].mxu0
    %v7881 = vadd.f32 %v7810, %v7880
    %7882 = vmatprep.mubr.bf16.mxu0 %v3712
    %7883 = vmatmul.mubr.bf16.gmra.mrb[0].mxu0 %v3711
    %v7884 = vpop.f32.mrb[0].mxu0
    %v7885 = vadd.f32 %v7814, %v7884
    %v7886 = vpop.f32.mrb[0].mxu0
    %v7887 = vadd.f32 %v7816, %v7886
    %v7888 = vpop.f32.mrb[0].mxu0
    %v7889 = vadd.f32 %v7818, %v7888
    %v7890 = vpop.f32.mrb[0].mxu0
    %v7891 = vadd.f32 %v7820, %v7890
    %7892 = vmatprep.mubr.bf16.mxu0 %v3716
    %7893 = vmatmul.mubr.bf16.gmra.mrb[0].mxu0 %v3715
    %v7894 = vpop.f32.mrb[0].mxu0
    %v7895 = vadd.f32 %v7824, %v7894
    %v7896 = vpop.f32.mrb[0].mxu0
    %v7897 = vadd.f32 %v7826, %v7896
    %v7898 = vpop.f32.mrb[0].mxu0
    %v7899 = vadd.f32 %v7828, %v7898
    %v7900 = vpop.f32.mrb[0].mxu0
    %v7901 = vadd.f32 %v7830, %v7900
    %7902 = vmatprep.mubr.bf16.mxu0 %v3720
    %7903 = vmatmul.mubr.bf16.gmra.mrb[0].mxu0 %v3719
    %v7904 = vpop.f32.mrb[0].mxu0
    %v7905 = vadd.f32 %v7834, %v7904
    %v7906 = vpop.f32.mrb[0].mxu0
    %v7907 = vadd.f32 %v7836, %v7906
    %v7908 = vpop.f32.mrb[0].mxu0
    %v7909 = vpop.f32.mrb[0].mxu0
    %7910 = vdwg.mxu0
    %7911 = vmatprep.subr.bf16.mxu0 %v6929
    %7912 = vmatpush1.bf16.msra.mxu0 %v6928
    %7913 = vmatprep.subr.bf16.mxu0 %v6936
    %7914 = vmatpush1.bf16.msra.mxu0 %v6935
    %7915 = vmatprep.subr.bf16.mxu0 %v6943
    %7916 = vmatpush1.bf16.msra.mxu0 %v6942
    %7917 = vmatprep.subr.bf16.mxu0 %v6950
    %7918 = vmatpush1.bf16.msra.mxu0 %v6949
    %7919 = vmatprep.subr.bf16.mxu0 0
    %7920 = vmatpush1.bf16.msra.mxu0 0
    %7921 = vmatprep.subr.bf16.mxu0 0
    %7922 = vmatpush1.bf16.msra.mxu0 0
    %7923 = vmatprep.subr.bf16.mxu0 0
    %7924 = vmatpush1.bf16.msra.mxu0 0
    %7925 = vmatprep.subr.bf16.mxu0 0
    %7926 = vmatpush1.bf16.msra.mxu0 0
    %7927 = vmatprep.subr.bf16.mxu0 0
    %7928 = vmatpush1.bf16.msra.mxu0 0
    %7929 = vmatprep.subr.bf16.mxu0 0
    %7930 = vmatpush1.bf16.msra.mxu0 0
    %7931 = vmatprep.subr.bf16.mxu0 0
    %7932 = vmatpush1.bf16.msra.mxu0 0
    %7933 = vmatprep.subr.bf16.mxu0 0
    %7934 = vmatpush1.bf16.msra.mxu0 0
    %7935 = vmatprep.subr.bf16.mxu0 0
    %7936 = vmatpush1.bf16.msra.mxu0 0
    %7937 = vmatprep.subr.bf16.mxu0 0
    %7938 = vmatpush1.bf16.msra.mxu0 0
    %7939 = vmatprep.subr.bf16.mxu0 0
    %7940 = vmatpush1.bf16.msra.mxu0 0
    %7941 = vmatprep.subr.bf16.mxu0 0
    %7942 = vmatpush1.bf16.msra.mxu0 0
    %7943 = vmatprep.mubr.bf16.mxu0 0
    %7944 = vmatmul.mubr.bf16.gmra.mrb[0].mxu0 %v7545
    %v7945 = vpop.f32.mrb[0].mxu0
    %v7946 = vadd.f32 %v7875, %v7945
    %v7947 = vpop.f32.mrb[0].mxu0
    %v7948 = vadd.f32 %v7877, %v7947
    %v7949 = vpop.f32.mrb[0].mxu0
    %v7950 = vadd.f32 %v7879, %v7949
    %v7951 = vpop.f32.mrb[0].mxu0
    %v7952 = vadd.f32 %v7881, %v7951
    %7953 = vmatprep.mubr.bf16.mxu0 0
    %7954 = vmatmul.mubr.bf16.gmra.mrb[0].mxu0 %v7548
    %v7955 = vpop.f32.mrb[0].mxu0
    %v7956 = vadd.f32 %v7885, %v7955
    %v7957 = vpop.f32.mrb[0].mxu0
    %v7958 = vadd.f32 %v7887, %v7957
    %v7959 = vpop.f32.mrb[0].mxu0
    %v7960 = vadd.f32 %v7889, %v7959
    %v7961 = vpop.f32.mrb[0].mxu0
    %v7962 = vadd.f32 %v7891, %v7961
    %7963 = vmatprep.mubr.bf16.mxu0 0
    %7964 = vmatmul.mubr.bf16.gmra.mrb[0].mxu0 %v7551
    %v7965 = vpop.f32.mrb[0].mxu0
    %v7966 = vadd.f32 %v7895, %v7965
    %v7967 = vpop.f32.mrb[0].mxu0
    %v7968 = vadd.f32 %v7897, %v7967
    %v7969 = vpop.f32.mrb[0].mxu0
    %v7970 = vadd.f32 %v7899, %v7969
    %v7971 = vpop.f32.mrb[0].mxu0
    %v7972 = vadd.f32 %v7901, %v7971
    %7973 = vmatprep.mubr.bf16.mxu0 0
    %7974 = vmatmul.mubr.bf16.gmra.mrb[0].mxu0 %v7554
    %v7975 = vpop.f32.mrb[0].mxu0
    %v7976 = vadd.f32 %v7905, %v7975
    %v7977 = vpop.f32.mrb[0].mxu0
    %v7978 = vadd.f32 %v7907, %v7977
    %v7979 = vpop.f32.mrb[0].mxu0
    %v7980 = vpop.f32.mrb[0].mxu0
    %7981 = vdwg.mxu0
    %7982 = vmatprep.subr.bf16.mxu0 %v6371
    %7983 = vmatpush1.bf16.msra.mxu0 %v6370
    %7984 = vmatprep.subr.bf16.mxu0 %v6378
    %7985 = vmatpush1.bf16.msra.mxu0 %v6377
    %7986 = vmatprep.subr.bf16.mxu0 %v6385
    %7987 = vmatpush1.bf16.msra.mxu0 %v6384
    %7988 = vmatprep.subr.bf16.mxu0 %v6392
    %7989 = vmatpush1.bf16.msra.mxu0 %v6391
    %7990 = vmatprep.subr.bf16.mxu0 %v6399
    %7991 = vmatpush1.bf16.msra.mxu0 %v6398
    %7992 = vmatprep.subr.bf16.mxu0 %v6406
    %7993 = vmatpush1.bf16.msra.mxu0 %v6405
    %7994 = vmatprep.subr.bf16.mxu0 %v6413
    %7995 = vmatpush1.bf16.msra.mxu0 %v6412
    %7996 = vmatprep.subr.bf16.mxu0 %v6420
    %7997 = vmatpush1.bf16.msra.mxu0 %v6419
    %7998 = vmatprep.subr.bf16.mxu0 %v6427
    %7999 = vmatpush1.bf16.msra.mxu0 %v6426
    %8000 = vmatprep.subr.bf16.mxu0 %v6434
    %8001 = vmatpush1.bf16.msra.mxu0 %v6433
    %8002 = vmatprep.subr.bf16.mxu0 %v6441
    %8003 = vmatpush1.bf16.msra.mxu0 %v6440
    %8004 = vmatprep.subr.bf16.mxu0 %v6448
    %8005 = vmatpush1.bf16.msra.mxu0 %v6447
    %8006 = vmatprep.subr.bf16.mxu0 %v6455
    %8007 = vmatpush1.bf16.msra.mxu0 %v6454
    %8008 = vmatprep.subr.bf16.mxu0 %v6462
    %8009 = vmatpush1.bf16.msra.mxu0 %v6461
    %8010 = vmatprep.subr.bf16.mxu0 %v6469
    %8011 = vmatpush1.bf16.msra.mxu0 %v6468
    %8012 = vmatprep.subr.bf16.mxu0 %v6476
    %8013 = vmatpush1.bf16.msra.mxu0 %v6475
    %8014 = vmatprep.mubr.bf16.mxu0 %v3627
    %8015 = vmatmul.mubr.bf16.gmra.mrb[0].mxu0 %v3626
    %v8016 = vpop.f32.mrb[0].mxu0
    %v8017 = vadd.f32 %v4496, %v8016
    %v8018 = vpop.f32.mrb[0].mxu0
    %v8019 = vadd.f32 %v4500, %v8018
    %v8020 = vpop.f32.mrb[0].mxu0
    %v8021 = vadd.f32 %v4496, %v8020
    %v8022 = vpop.f32.mrb[0].mxu0
    %v8023 = vadd.f32 %v4500, %v8022
    %8024 = vmatprep.mubr.bf16.mxu0 %v3631
    %8025 = vmatmul.mubr.bf16.gmra.mrb[0].mxu0 %v3630
    %v8026 = vpop.f32.mrb[0].mxu0
    %v8027 = vadd.f32 %v4496, %v8026
    %v8028 = vpop.f32.mrb[0].mxu0
    %v8029 = vadd.f32 %v4500, %v8028
    %v8030 = vpop.f32.mrb[0].mxu0
    %v8031 = vadd.f32 %v4496, %v8030
    %v8032 = vpop.f32.mrb[0].mxu0
    %v8033 = vadd.f32 %v4500, %v8032
    %8034 = vmatprep.mubr.bf16.mxu0 %v3635
    %8035 = vmatmul.mubr.bf16.gmra.mrb[0].mxu0 %v3634
    %v8036 = vpop.f32.mrb[0].mxu0
    %v8037 = vadd.f32 %v4496, %v8036
    %v8038 = vpop.f32.mrb[0].mxu0
    %v8039 = vadd.f32 %v4500, %v8038
    %v8040 = vpop.f32.mrb[0].mxu0
    %v8041 = vadd.f32 %v4496, %v8040
    %v8042 = vpop.f32.mrb[0].mxu0
    %v8043 = vadd.f32 %v4500, %v8042
    %8044 = vmatprep.mubr.bf16.mxu0 %v3639
    %8045 = vmatmul.mubr.bf16.gmra.mrb[0].mxu0 %v3638
    %v8046 = vpop.f32.mrb[0].mxu0
    %v8047 = vadd.f32 %v4496, %v8046
    %v8048 = vpop.f32.mrb[0].mxu0
    %v8049 = vadd.f32 %v4500, %v8048
    %v8050 = vpop.f32.mrb[0].mxu0
    %v8051 = vpop.f32.mrb[0].mxu0
    %8052 = vdwg.mxu0
    %8053 = vmatprep.subr.bf16.mxu0 %v6483
    %8054 = vmatpush1.bf16.msra.mxu0 %v6482
    %8055 = vmatprep.subr.bf16.mxu0 %v6490
    %8056 = vmatpush1.bf16.msra.mxu0 %v6489
    %8057 = vmatprep.subr.bf16.mxu0 %v6497
    %8058 = vmatpush1.bf16.msra.mxu0 %v6496
    %8059 = vmatprep.subr.bf16.mxu0 %v6504
    %8060 = vmatpush1.bf16.msra.mxu0 %v6503
    %8061 = vmatprep.subr.bf16.mxu0 %v6511
    %8062 = vmatpush1.bf16.msra.mxu0 %v6510
    %8063 = vmatprep.subr.bf16.mxu0 %v6518
    %8064 = vmatpush1.bf16.msra.mxu0 %v6517
    %8065 = vmatprep.subr.bf16.mxu0 %v6525
    %8066 = vmatpush1.bf16.msra.mxu0 %v6524
    %8067 = vmatprep.subr.bf16.mxu0 %v6532
    %8068 = vmatpush1.bf16.msra.mxu0 %v6531
    %8069 = vmatprep.subr.bf16.mxu0 %v6539
    %8070 = vmatpush1.bf16.msra.mxu0 %v6538
    %8071 = vmatprep.subr.bf16.mxu0 %v6546
    %8072 = vmatpush1.bf16.msra.mxu0 %v6545
    %8073 = vmatprep.subr.bf16.mxu0 %v6553
    %8074 = vmatpush1.bf16.msra.mxu0 %v6552
    %8075 = vmatprep.subr.bf16.mxu0 %v6560
    %8076 = vmatpush1.bf16.msra.mxu0 %v6559
    %8077 = vmatprep.subr.bf16.mxu0 %v6567
    %8078 = vmatpush1.bf16.msra.mxu0 %v6566
    %8079 = vmatprep.subr.bf16.mxu0 %v6574
    %8080 = vmatpush1.bf16.msra.mxu0 %v6573
    %8081 = vmatprep.subr.bf16.mxu0 %v6581
    %8082 = vmatpush1.bf16.msra.mxu0 %v6580
    %8083 = vmatprep.subr.bf16.mxu0 %v6588
    %8084 = vmatpush1.bf16.msra.mxu0 %v6587
    %8085 = vmatprep.mubr.bf16.mxu0 %v3797
    %8086 = vmatmul.mubr.bf16.gmra.mrb[0].mxu0 %v3628
    %v8087 = vpop.f32.mrb[0].mxu0
    %v8088 = vadd.f32 %v8017, %v8087
    %v8089 = vpop.f32.mrb[0].mxu0
    %v8090 = vadd.f32 %v8019, %v8089
    %v8091 = vpop.f32.mrb[0].mxu0
    %v8092 = vadd.f32 %v8021, %v8091
    %v8093 = vpop.f32.mrb[0].mxu0
    %v8094 = vadd.f32 %v8023, %v8093
    %8095 = vmatprep.mubr.bf16.mxu0 %v3801
    %8096 = vmatmul.mubr.bf16.gmra.mrb[0].mxu0 %v3632
    %v8097 = vpop.f32.mrb[0].mxu0
    %v8098 = vadd.f32 %v8027, %v8097
    %v8099 = vpop.f32.mrb[0].mxu0
    %v8100 = vadd.f32 %v8029, %v8099
    %v8101 = vpop.f32.mrb[0].mxu0
    %v8102 = vadd.f32 %v8031, %v8101
    %v8103 = vpop.f32.mrb[0].mxu0
    %v8104 = vadd.f32 %v8033, %v8103
    %8105 = vmatprep.mubr.bf16.mxu0 %v3805
    %8106 = vmatmul.mubr.bf16.gmra.mrb[0].mxu0 %v3636
    %v8107 = vpop.f32.mrb[0].mxu0
    %v8108 = vadd.f32 %v8037, %v8107
    %v8109 = vpop.f32.mrb[0].mxu0
    %v8110 = vadd.f32 %v8039, %v8109
    %v8111 = vpop.f32.mrb[0].mxu0
    %v8112 = vadd.f32 %v8041, %v8111
    %v8113 = vpop.f32.mrb[0].mxu0
    %v8114 = vadd.f32 %v8043, %v8113
    %8115 = vmatprep.mubr.bf16.mxu0 %v3809
    %8116 = vmatmul.mubr.bf16.gmra.mrb[0].mxu0 %v3640
    %v8117 = vpop.f32.mrb[0].mxu0
    %v8118 = vadd.f32 %v8047, %v8117
    %v8119 = vpop.f32.mrb[0].mxu0
    %v8120 = vadd.f32 %v8049, %v8119
    %v8121 = vpop.f32.mrb[0].mxu0
    %v8122 = vpop.f32.mrb[0].mxu0
    %8123 = vdwg.mxu0
    %8124 = vmatprep.subr.bf16.mxu0 %v6595
    %8125 = vmatpush1.bf16.msra.mxu0 %v6594
    %8126 = vmatprep.subr.bf16.mxu0 %v6602
    %8127 = vmatpush1.bf16.msra.mxu0 %v6601
    %8128 = vmatprep.subr.bf16.mxu0 %v6609
    %8129 = vmatpush1.bf16.msra.mxu0 %v6608
    %8130 = vmatprep.subr.bf16.mxu0 %v6616
    %8131 = vmatpush1.bf16.msra.mxu0 %v6615
    %8132 = vmatprep.subr.bf16.mxu0 %v6623
    %8133 = vmatpush1.bf16.msra.mxu0 %v6622
    %8134 = vmatprep.subr.bf16.mxu0 %v6630
    %8135 = vmatpush1.bf16.msra.mxu0 %v6629
    %8136 = vmatprep.subr.bf16.mxu0 %v6637
    %8137 = vmatpush1.bf16.msra.mxu0 %v6636
    %8138 = vmatprep.subr.bf16.mxu0 %v6644
    %8139 = vmatpush1.bf16.msra.mxu0 %v6643
    %8140 = vmatprep.subr.bf16.mxu0 %v6651
    %8141 = vmatpush1.bf16.msra.mxu0 %v6650
    %8142 = vmatprep.subr.bf16.mxu0 %v6658
    %8143 = vmatpush1.bf16.msra.mxu0 %v6657
    %8144 = vmatprep.subr.bf16.mxu0 %v6665
    %8145 = vmatpush1.bf16.msra.mxu0 %v6664
    %8146 = vmatprep.subr.bf16.mxu0 %v6672
    %8147 = vmatpush1.bf16.msra.mxu0 %v6671
    %8148 = vmatprep.subr.bf16.mxu0 %v6679
    %8149 = vmatpush1.bf16.msra.mxu0 %v6678
    %8150 = vmatprep.subr.bf16.mxu0 %v6686
    %8151 = vmatpush1.bf16.msra.mxu0 %v6685
    %8152 = vmatprep.subr.bf16.mxu0 %v6693
    %8153 = vmatpush1.bf16.msra.mxu0 %v6692
    %8154 = vmatprep.subr.bf16.mxu0 %v6700
    %8155 = vmatpush1.bf16.msra.mxu0 %v6699
    %8156 = vmatprep.mubr.bf16.mxu0 %v3772
    %8157 = vmatmul.mubr.bf16.gmra.mrb[0].mxu0 %v3771
    %v8158 = vpop.f32.mrb[0].mxu0
    %v8159 = vadd.f32 %v8088, %v8158
    %v8160 = vpop.f32.mrb[0].mxu0
    %v8161 = vadd.f32 %v8090, %v8160
    %v8162 = vpop.f32.mrb[0].mxu0
    %v8163 = vadd.f32 %v8092, %v8162
    %v8164 = vpop.f32.mrb[0].mxu0
    %v8165 = vadd.f32 %v8094, %v8164
    %8166 = vmatprep.mubr.bf16.mxu0 %v3775
    %8167 = vmatmul.mubr.bf16.gmra.mrb[0].mxu0 %v3774
    %v8168 = vpop.f32.mrb[0].mxu0
    %v8169 = vadd.f32 %v8098, %v8168
    %v8170 = vpop.f32.mrb[0].mxu0
    %v8171 = vadd.f32 %v8100, %v8170
    %v8172 = vpop.f32.mrb[0].mxu0
    %v8173 = vadd.f32 %v8102, %v8172
    %v8174 = vpop.f32.mrb[0].mxu0
    %v8175 = vadd.f32 %v8104, %v8174
    %8176 = vmatprep.mubr.bf16.mxu0 %v3778
    %8177 = vmatmul.mubr.bf16.gmra.mrb[0].mxu0 %v3777
    %v8178 = vpop.f32.mrb[0].mxu0
    %v8179 = vadd.f32 %v8108, %v8178
    %v8180 = vpop.f32.mrb[0].mxu0
    %v8181 = vadd.f32 %v8110, %v8180
    %v8182 = vpop.f32.mrb[0].mxu0
    %v8183 = vadd.f32 %v8112, %v8182
    %v8184 = vpop.f32.mrb[0].mxu0
    %v8185 = vadd.f32 %v8114, %v8184
    %8186 = vmatprep.mubr.bf16.mxu0 %v3781
    %8187 = vmatmul.mubr.bf16.gmra.mrb[0].mxu0 %v3780
    %v8188 = vpop.f32.mrb[0].mxu0
    %v8189 = vadd.f32 %v8118, %v8188
    %v8190 = vpop.f32.mrb[0].mxu0
    %v8191 = vadd.f32 %v8120, %v8190
    %v8192 = vpop.f32.mrb[0].mxu0
    %v8193 = vpop.f32.mrb[0].mxu0
    %8194 = vdwg.mxu0
    %8195 = vmatprep.subr.bf16.mxu0 %v6707
    %8196 = vmatpush1.bf16.msra.mxu0 %v6706
    %8197 = vmatprep.subr.bf16.mxu0 %v6714
    %8198 = vmatpush1.bf16.msra.mxu0 %v6713
    %8199 = vmatprep.subr.bf16.mxu0 %v6721
    %8200 = vmatpush1.bf16.msra.mxu0 %v6720
    %8201 = vmatprep.subr.bf16.mxu0 %v6728
    %8202 = vmatpush1.bf16.msra.mxu0 %v6727
    %8203 = vmatprep.subr.bf16.mxu0 %v6735
    %8204 = vmatpush1.bf16.msra.mxu0 %v6734
    %8205 = vmatprep.subr.bf16.mxu0 %v6742
    %8206 = vmatpush1.bf16.msra.mxu0 %v6741
    %8207 = vmatprep.subr.bf16.mxu0 %v6749
    %8208 = vmatpush1.bf16.msra.mxu0 %v6748
    %8209 = vmatprep.subr.bf16.mxu0 %v6756
    %8210 = vmatpush1.bf16.msra.mxu0 %v6755
    %8211 = vmatprep.subr.bf16.mxu0 %v6763
    %8212 = vmatpush1.bf16.msra.mxu0 %v6762
    %8213 = vmatprep.subr.bf16.mxu0 %v6770
    %8214 = vmatpush1.bf16.msra.mxu0 %v6769
    %8215 = vmatprep.subr.bf16.mxu0 %v6777
    %8216 = vmatpush1.bf16.msra.mxu0 %v6776
    %8217 = vmatprep.subr.bf16.mxu0 %v6784
    %8218 = vmatpush1.bf16.msra.mxu0 %v6783
    %8219 = vmatprep.subr.bf16.mxu0 %v6791
    %8220 = vmatpush1.bf16.msra.mxu0 %v6790
    %8221 = vmatprep.subr.bf16.mxu0 %v6798
    %8222 = vmatpush1.bf16.msra.mxu0 %v6797
    %8223 = vmatprep.subr.bf16.mxu0 %v6805
    %8224 = vmatpush1.bf16.msra.mxu0 %v6804
    %8225 = vmatprep.subr.bf16.mxu0 %v6812
    %8226 = vmatpush1.bf16.msra.mxu0 %v6811
    %8227 = vmatprep.mubr.bf16.mxu0 %v3706
    %8228 = vmatmul.mubr.bf16.gmra.mrb[0].mxu0 %v3773
    %v8229 = vpop.f32.mrb[0].mxu0
    %v8230 = vadd.f32 %v8159, %v8229
    %v8231 = vpop.f32.mrb[0].mxu0
    %v8232 = vadd.f32 %v8161, %v8231
    %v8233 = vpop.f32.mrb[0].mxu0
    %v8234 = vadd.f32 %v8163, %v8233
    %v8235 = vpop.f32.mrb[0].mxu0
    %v8236 = vadd.f32 %v8165, %v8235
    %8237 = vmatprep.mubr.bf16.mxu0 %v3710
    %8238 = vmatmul.mubr.bf16.gmra.mrb[0].mxu0 %v3776
    %v8239 = vpop.f32.mrb[0].mxu0
    %v8240 = vadd.f32 %v8169, %v8239
    %v8241 = vpop.f32.mrb[0].mxu0
    %v8242 = vadd.f32 %v8171, %v8241
    %v8243 = vpop.f32.mrb[0].mxu0
    %v8244 = vadd.f32 %v8173, %v8243
    %v8245 = vpop.f32.mrb[0].mxu0
    %v8246 = vadd.f32 %v8175, %v8245
    %8247 = vmatprep.mubr.bf16.mxu0 %v3714
    %8248 = vmatmul.mubr.bf16.gmra.mrb[0].mxu0 %v3779
    %v8249 = vpop.f32.mrb[0].mxu0
    %v8250 = vadd.f32 %v8179, %v8249
    %v8251 = vpop.f32.mrb[0].mxu0
    %v8252 = vadd.f32 %v8181, %v8251
    %v8253 = vpop.f32.mrb[0].mxu0
    %v8254 = vadd.f32 %v8183, %v8253
    %v8255 = vpop.f32.mrb[0].mxu0
    %v8256 = vadd.f32 %v8185, %v8255
    %8257 = vmatprep.mubr.bf16.mxu0 %v3718
    %8258 = vmatmul.mubr.bf16.gmra.mrb[0].mxu0 %v3782
    %v8259 = vpop.f32.mrb[0].mxu0
    %v8260 = vadd.f32 %v8189, %v8259
    %v8261 = vpop.f32.mrb[0].mxu0
    %v8262 = vadd.f32 %v8191, %v8261
    %v8263 = vpop.f32.mrb[0].mxu0
    %v8264 = vpop.f32.mrb[0].mxu0
    %8265 = vdwg.mxu0
    %8266 = vmatprep.subr.bf16.mxu0 %v6819
    %8267 = vmatpush1.bf16.msra.mxu0 %v6818
    %8268 = vmatprep.subr.bf16.mxu0 %v6826
    %8269 = vmatpush1.bf16.msra.mxu0 %v6825
    %8270 = vmatprep.subr.bf16.mxu0 %v6833
    %8271 = vmatpush1.bf16.msra.mxu0 %v6832
    %8272 = vmatprep.subr.bf16.mxu0 %v6840
    %8273 = vmatpush1.bf16.msra.mxu0 %v6839
    %8274 = vmatprep.subr.bf16.mxu0 %v6847
    %8275 = vmatpush1.bf16.msra.mxu0 %v6846
    %8276 = vmatprep.subr.bf16.mxu0 %v6854
    %8277 = vmatpush1.bf16.msra.mxu0 %v6853
    %8278 = vmatprep.subr.bf16.mxu0 %v6861
    %8279 = vmatpush1.bf16.msra.mxu0 %v6860
    %8280 = vmatprep.subr.bf16.mxu0 %v6868
    %8281 = vmatpush1.bf16.msra.mxu0 %v6867
    %8282 = vmatprep.subr.bf16.mxu0 %v6875
    %8283 = vmatpush1.bf16.msra.mxu0 %v6874
    %8284 = vmatprep.subr.bf16.mxu0 %v6882
    %8285 = vmatpush1.bf16.msra.mxu0 %v6881
    %8286 = vmatprep.subr.bf16.mxu0 %v6889
    %8287 = vmatpush1.bf16.msra.mxu0 %v6888
    %8288 = vmatprep.subr.bf16.mxu0 %v6896
    %8289 = vmatpush1.bf16.msra.mxu0 %v6895
    %8290 = vmatprep.subr.bf16.mxu0 %v6903
    %8291 = vmatpush1.bf16.msra.mxu0 %v6902
    %8292 = vmatprep.subr.bf16.mxu0 %v6910
    %8293 = vmatpush1.bf16.msra.mxu0 %v6909
    %8294 = vmatprep.subr.bf16.mxu0 %v6917
    %8295 = vmatpush1.bf16.msra.mxu0 %v6916
    %8296 = vmatprep.subr.bf16.mxu0 %v6924
    %8297 = vmatpush1.bf16.msra.mxu0 %v6923
    %8298 = vmatprep.mubr.bf16.mxu0 %v3708
    %8299 = vmatmul.mubr.bf16.gmra.mrb[0].mxu0 %v3707
    %v8300 = vpop.f32.mrb[0].mxu0
    %v8301 = vadd.f32 %v8230, %v8300
    %v8302 = vpop.f32.mrb[0].mxu0
    %v8303 = vadd.f32 %v8232, %v8302
    %v8304 = vpop.f32.mrb[0].mxu0
    %v8305 = vadd.f32 %v8234, %v8304
    %v8306 = vpop.f32.mrb[0].mxu0
    %v8307 = vadd.f32 %v8236, %v8306
    %8308 = vmatprep.mubr.bf16.mxu0 %v3712
    %8309 = vmatmul.mubr.bf16.gmra.mrb[0].mxu0 %v3711
    %v8310 = vpop.f32.mrb[0].mxu0
    %v8311 = vadd.f32 %v8240, %v8310
    %v8312 = vpop.f32.mrb[0].mxu0
    %v8313 = vadd.f32 %v8242, %v8312
    %v8314 = vpop.f32.mrb[0].mxu0
    %v8315 = vadd.f32 %v8244, %v8314
    %v8316 = vpop.f32.mrb[0].mxu0
    %v8317 = vadd.f32 %v8246, %v8316
    %8318 = vmatprep.mubr.bf16.mxu0 %v3716
    %8319 = vmatmul.mubr.bf16.gmra.mrb[0].mxu0 %v3715
    %v8320 = vpop.f32.mrb[0].mxu0
    %v8321 = vadd.f32 %v8250, %v8320
    %v8322 = vpop.f32.mrb[0].mxu0
    %v8323 = vadd.f32 %v8252, %v8322
    %v8324 = vpop.f32.mrb[0].mxu0
    %v8325 = vadd.f32 %v8254, %v8324
    %v8326 = vpop.f32.mrb[0].mxu0
    %v8327 = vadd.f32 %v8256, %v8326
    %8328 = vmatprep.mubr.bf16.mxu0 %v3720
    %8329 = vmatmul.mubr.bf16.gmra.mrb[0].mxu0 %v3719
    %v8330 = vpop.f32.mrb[0].mxu0
    %v8331 = vadd.f32 %v8260, %v8330
    %v8332 = vpop.f32.mrb[0].mxu0
    %v8333 = vadd.f32 %v8262, %v8332
    %v8334 = vpop.f32.mrb[0].mxu0
    %v8335 = vpop.f32.mrb[0].mxu0
    %8336 = vdwg.mxu0
    %8337 = vmatprep.subr.bf16.mxu0 %v6931
    %8338 = vmatpush1.bf16.msra.mxu0 %v6930
    %8339 = vmatprep.subr.bf16.mxu0 %v6938
    %8340 = vmatpush1.bf16.msra.mxu0 %v6937
    %8341 = vmatprep.subr.bf16.mxu0 %v6945
    %8342 = vmatpush1.bf16.msra.mxu0 %v6944
    %8343 = vmatprep.subr.bf16.mxu0 %v6952
    %8344 = vmatpush1.bf16.msra.mxu0 %v6951
    %8345 = vmatprep.subr.bf16.mxu0 0
    %8346 = vmatpush1.bf16.msra.mxu0 0
    %8347 = vmatprep.subr.bf16.mxu0 0
    %8348 = vmatpush1.bf16.msra.mxu0 0
    %8349 = vmatprep.subr.bf16.mxu0 0
    %8350 = vmatpush1.bf16.msra.mxu0 0
    %8351 = vmatprep.subr.bf16.mxu0 0
    %8352 = vmatpush1.bf16.msra.mxu0 0
    %8353 = vmatprep.subr.bf16.mxu0 0
    %8354 = vmatpush1.bf16.msra.mxu0 0
    %8355 = vmatprep.subr.bf16.mxu0 0
    %8356 = vmatpush1.bf16.msra.mxu0 0
    %8357 = vmatprep.subr.bf16.mxu0 0
    %8358 = vmatpush1.bf16.msra.mxu0 0
    %8359 = vmatprep.subr.bf16.mxu0 0
    %8360 = vmatpush1.bf16.msra.mxu0 0
    %8361 = vmatprep.subr.bf16.mxu0 0
    %8362 = vmatpush1.bf16.msra.mxu0 0
    %8363 = vmatprep.subr.bf16.mxu0 0
    %8364 = vmatpush1.bf16.msra.mxu0 0
    %8365 = vmatprep.subr.bf16.mxu0 0
    %8366 = vmatpush1.bf16.msra.mxu0 0
    %8367 = vmatprep.subr.bf16.mxu0 0
    %8368 = vmatpush1.bf16.msra.mxu0 0
    %8369 = vmatprep.mubr.bf16.mxu0 0
    %8370 = vmatmul.mubr.bf16.gmra.mrb[0].mxu0 %v7545
    %v8371 = vpop.f32.mrb[0].mxu0
    %v8372 = vadd.f32 %v8301, %v8371
    %v8373 = vpop.f32.mrb[0].mxu0
    %v8374 = vadd.f32 %v8303, %v8373
    %v8375 = vpop.f32.mrb[0].mxu0
    %v8376 = vadd.f32 %v8305, %v8375
    %v8377 = vpop.f32.mrb[0].mxu0
    %v8378 = vadd.f32 %v8307, %v8377
    %8379 = vmatprep.mubr.bf16.mxu0 0
    %8380 = vmatmul.mubr.bf16.gmra.mrb[0].mxu0 %v7548
    %v8381 = vpop.f32.mrb[0].mxu0
    %v8382 = vadd.f32 %v8311, %v8381
    %v8383 = vpop.f32.mrb[0].mxu0
    %v8384 = vadd.f32 %v8313, %v8383
    %v8385 = vpop.f32.mrb[0].mxu0
    %v8386 = vadd.f32 %v8315, %v8385
    %v8387 = vpop.f32.mrb[0].mxu0
    %v8388 = vadd.f32 %v8317, %v8387
    %8389 = vmatprep.mubr.bf16.mxu0 0
    %8390 = vmatmul.mubr.bf16.gmra.mrb[0].mxu0 %v7551
    %v8391 = vpop.f32.mrb[0].mxu0
    %v8392 = vadd.f32 %v8321, %v8391
    %v8393 = vpop.f32.mrb[0].mxu0
    %v8394 = vadd.f32 %v8323, %v8393
    %v8395 = vpop.f32.mrb[0].mxu0
    %v8396 = vadd.f32 %v8325, %v8395
    %v8397 = vpop.f32.mrb[0].mxu0
    %v8398 = vadd.f32 %v8327, %v8397
    %8399 = vmatprep.mubr.bf16.mxu0 0
    %8400 = vmatmul.mubr.bf16.gmra.mrb[0].mxu0 %v7554
    %v8401 = vpop.f32.mrb[0].mxu0
    %v8402 = vadd.f32 %v8331, %v8401
    %v8403 = vpop.f32.mrb[0].mxu0
    %v8404 = vadd.f32 %v8333, %v8403
    %v8405 = vpop.f32.mrb[0].mxu0
    %v8406 = vpop.f32.mrb[0].mxu0
    %8407 = vdwg.mxu0
    %8408 = vmatprep.subr.bf16.mxu0 %v6373
    %8409 = vmatpush1.bf16.msra.mxu0 %v6372
    %8410 = vmatprep.subr.bf16.mxu0 %v6380
    %8411 = vmatpush1.bf16.msra.mxu0 %v6379
    %8412 = vmatprep.subr.bf16.mxu0 %v6387
    %8413 = vmatpush1.bf16.msra.mxu0 %v6386
    %8414 = vmatprep.subr.bf16.mxu0 %v6394
    %8415 = vmatpush1.bf16.msra.mxu0 %v6393
    %8416 = vmatprep.subr.bf16.mxu0 %v6401
    %8417 = vmatpush1.bf16.msra.mxu0 %v6400
    %8418 = vmatprep.subr.bf16.mxu0 %v6408
    %8419 = vmatpush1.bf16.msra.mxu0 %v6407
    %8420 = vmatprep.subr.bf16.mxu0 %v6415
    %8421 = vmatpush1.bf16.msra.mxu0 %v6414
    %8422 = vmatprep.subr.bf16.mxu0 %v6422
    %8423 = vmatpush1.bf16.msra.mxu0 %v6421
    %8424 = vmatprep.subr.bf16.mxu0 %v6429
    %8425 = vmatpush1.bf16.msra.mxu0 %v6428
    %8426 = vmatprep.subr.bf16.mxu0 %v6436
    %8427 = vmatpush1.bf16.msra.mxu0 %v6435
    %8428 = vmatprep.subr.bf16.mxu0 %v6443
    %8429 = vmatpush1.bf16.msra.mxu0 %v6442
    %8430 = vmatprep.subr.bf16.mxu0 %v6450
    %8431 = vmatpush1.bf16.msra.mxu0 %v6449
    %8432 = vmatprep.subr.bf16.mxu0 %v6457
    %8433 = vmatpush1.bf16.msra.mxu0 %v6456
    %8434 = vmatprep.subr.bf16.mxu0 %v6464
    %8435 = vmatpush1.bf16.msra.mxu0 %v6463
    %8436 = vmatprep.subr.bf16.mxu0 %v6471
    %8437 = vmatpush1.bf16.msra.mxu0 %v6470
    %8438 = vmatprep.subr.bf16.mxu0 %v6478
    %8439 = vmatpush1.bf16.msra.mxu0 %v6477
    %8440 = vmatprep.mubr.bf16.mxu0 %v3627
    %8441 = vmatmul.mubr.bf16.gmra.mrb[0].mxu0 %v3626
    %v8442 = vpop.f32.mrb[0].mxu0
    %v8443 = vadd.f32 %v4504, %v8442
    %v8444 = vpop.f32.mrb[0].mxu0
    %v8445 = vadd.f32 %v4508, %v8444
    %v8446 = vpop.f32.mrb[0].mxu0
    %v8447 = vadd.f32 %v4504, %v8446
    %v8448 = vpop.f32.mrb[0].mxu0
    %v8449 = vadd.f32 %v4508, %v8448
    %8450 = vmatprep.mubr.bf16.mxu0 %v3631
    %8451 = vmatmul.mubr.bf16.gmra.mrb[0].mxu0 %v3630
    %v8452 = vpop.f32.mrb[0].mxu0
    %v8453 = vadd.f32 %v4504, %v8452
    %v8454 = vpop.f32.mrb[0].mxu0
    %v8455 = vadd.f32 %v4508, %v8454
    %v8456 = vpop.f32.mrb[0].mxu0
    %v8457 = vadd.f32 %v4504, %v8456
    %v8458 = vpop.f32.mrb[0].mxu0
    %v8459 = vadd.f32 %v4508, %v8458
    %8460 = vmatprep.mubr.bf16.mxu0 %v3635
    %8461 = vmatmul.mubr.bf16.gmra.mrb[0].mxu0 %v3634
    %v8462 = vpop.f32.mrb[0].mxu0
    %v8463 = vadd.f32 %v4504, %v8462
    %v8464 = vpop.f32.mrb[0].mxu0
    %v8465 = vadd.f32 %v4508, %v8464
    %v8466 = vpop.f32.mrb[0].mxu0
    %v8467 = vadd.f32 %v4504, %v8466
    %v8468 = vpop.f32.mrb[0].mxu0
    %v8469 = vadd.f32 %v4508, %v8468
    %8470 = vmatprep.mubr.bf16.mxu0 %v3639
    %8471 = vmatmul.mubr.bf16.gmra.mrb[0].mxu0 %v3638
    %v8472 = vpop.f32.mrb[0].mxu0
    %v8473 = vadd.f32 %v4504, %v8472
    %v8474 = vpop.f32.mrb[0].mxu0
    %v8475 = vadd.f32 %v4508, %v8474
    %v8476 = vpop.f32.mrb[0].mxu0
    %v8477 = vpop.f32.mrb[0].mxu0
    %8478 = vdwg.mxu0
    %8479 = vmatprep.subr.bf16.mxu0 %v6485
    %8480 = vmatpush1.bf16.msra.mxu0 %v6484
    %8481 = vmatprep.subr.bf16.mxu0 %v6492
    %8482 = vmatpush1.bf16.msra.mxu0 %v6491
    %8483 = vmatprep.subr.bf16.mxu0 %v6499
    %8484 = vmatpush1.bf16.msra.mxu0 %v6498
    %8485 = vmatprep.subr.bf16.mxu0 %v6506
    %8486 = vmatpush1.bf16.msra.mxu0 %v6505
    %8487 = vmatprep.subr.bf16.mxu0 %v6513
    %8488 = vmatpush1.bf16.msra.mxu0 %v6512
    %8489 = vmatprep.subr.bf16.mxu0 %v6520
    %8490 = vmatpush1.bf16.msra.mxu0 %v6519
    %8491 = vmatprep.subr.bf16.mxu0 %v6527
    %8492 = vmatpush1.bf16.msra.mxu0 %v6526
    %8493 = vmatprep.subr.bf16.mxu0 %v6534
    %8494 = vmatpush1.bf16.msra.mxu0 %v6533
    %8495 = vmatprep.subr.bf16.mxu0 %v6541
    %8496 = vmatpush1.bf16.msra.mxu0 %v6540
    %8497 = vmatprep.subr.bf16.mxu0 %v6548
    %8498 = vmatpush1.bf16.msra.mxu0 %v6547
    %8499 = vmatprep.subr.bf16.mxu0 %v6555
    %8500 = vmatpush1.bf16.msra.mxu0 %v6554
    %8501 = vmatprep.subr.bf16.mxu0 %v6562
    %8502 = vmatpush1.bf16.msra.mxu0 %v6561
    %8503 = vmatprep.subr.bf16.mxu0 %v6569
    %8504 = vmatpush1.bf16.msra.mxu0 %v6568
    %8505 = vmatprep.subr.bf16.mxu0 %v6576
    %8506 = vmatpush1.bf16.msra.mxu0 %v6575
    %8507 = vmatprep.subr.bf16.mxu0 %v6583
    %8508 = vmatpush1.bf16.msra.mxu0 %v6582
    %8509 = vmatprep.subr.bf16.mxu0 %v6590
    %8510 = vmatpush1.bf16.msra.mxu0 %v6589
    %8511 = vmatprep.mubr.bf16.mxu0 %v3797
    %8512 = vmatmul.mubr.bf16.gmra.mrb[0].mxu0 %v3628
    %v8513 = vpop.f32.mrb[0].mxu0
    %v8514 = vadd.f32 %v8443, %v8513
    %v8515 = vpop.f32.mrb[0].mxu0
    %v8516 = vadd.f32 %v8445, %v8515
    %v8517 = vpop.f32.mrb[0].mxu0
    %v8518 = vadd.f32 %v8447, %v8517
    %v8519 = vpop.f32.mrb[0].mxu0
    %v8520 = vadd.f32 %v8449, %v8519
    %8521 = vmatprep.mubr.bf16.mxu0 %v3801
    %8522 = vmatmul.mubr.bf16.gmra.mrb[0].mxu0 %v3632
    %v8523 = vpop.f32.mrb[0].mxu0
    %v8524 = vadd.f32 %v8453, %v8523
    %v8525 = vpop.f32.mrb[0].mxu0
    %v8526 = vadd.f32 %v8455, %v8525
    %v8527 = vpop.f32.mrb[0].mxu0
    %v8528 = vadd.f32 %v8457, %v8527
    %v8529 = vpop.f32.mrb[0].mxu0
    %v8530 = vadd.f32 %v8459, %v8529
    %8531 = vmatprep.mubr.bf16.mxu0 %v3805
    %8532 = vmatmul.mubr.bf16.gmra.mrb[0].mxu0 %v3636
    %v8533 = vpop.f32.mrb[0].mxu0
    %v8534 = vadd.f32 %v8463, %v8533
    %v8535 = vpop.f32.mrb[0].mxu0
    %v8536 = vadd.f32 %v8465, %v8535
    %v8537 = vpop.f32.mrb[0].mxu0
    %v8538 = vadd.f32 %v8467, %v8537
    %v8539 = vpop.f32.mrb[0].mxu0
    %v8540 = vadd.f32 %v8469, %v8539
    %8541 = vmatprep.mubr.bf16.mxu0 %v3809
    %8542 = vmatmul.mubr.bf16.gmra.mrb[0].mxu0 %v3640
    %v8543 = vpop.f32.mrb[0].mxu0
    %v8544 = vadd.f32 %v8473, %v8543
    %v8545 = vpop.f32.mrb[0].mxu0
    %v8546 = vadd.f32 %v8475, %v8545
    %v8547 = vpop.f32.mrb[0].mxu0
    %v8548 = vpop.f32.mrb[0].mxu0
    %8549 = vdwg.mxu0
    %8550 = vmatprep.subr.bf16.mxu0 %v6597
    %8551 = vmatpush1.bf16.msra.mxu0 %v6596
    %8552 = vmatprep.subr.bf16.mxu0 %v6604
    %8553 = vmatpush1.bf16.msra.mxu0 %v6603
    %8554 = vmatprep.subr.bf16.mxu0 %v6611
    %8555 = vmatpush1.bf16.msra.mxu0 %v6610
    %8556 = vmatprep.subr.bf16.mxu0 %v6618
    %8557 = vmatpush1.bf16.msra.mxu0 %v6617
    %8558 = vmatprep.subr.bf16.mxu0 %v6625
    %8559 = vmatpush1.bf16.msra.mxu0 %v6624
    %8560 = vmatprep.subr.bf16.mxu0 %v6632
    %8561 = vmatpush1.bf16.msra.mxu0 %v6631
    %8562 = vmatprep.subr.bf16.mxu0 %v6639
    %8563 = vmatpush1.bf16.msra.mxu0 %v6638
    %8564 = vmatprep.subr.bf16.mxu0 %v6646
    %8565 = vmatpush1.bf16.msra.mxu0 %v6645
    %8566 = vmatprep.subr.bf16.mxu0 %v6653
    %8567 = vmatpush1.bf16.msra.mxu0 %v6652
    %8568 = vmatprep.subr.bf16.mxu0 %v6660
    %8569 = vmatpush1.bf16.msra.mxu0 %v6659
    %8570 = vmatprep.subr.bf16.mxu0 %v6667
    %8571 = vmatpush1.bf16.msra.mxu0 %v6666
    %8572 = vmatprep.subr.bf16.mxu0 %v6674
    %8573 = vmatpush1.bf16.msra.mxu0 %v6673
    %8574 = vmatprep.subr.bf16.mxu0 %v6681
    %8575 = vmatpush1.bf16.msra.mxu0 %v6680
    %8576 = vmatprep.subr.bf16.mxu0 %v6688
    %8577 = vmatpush1.bf16.msra.mxu0 %v6687
    %8578 = vmatprep.subr.bf16.mxu0 %v6695
    %8579 = vmatpush1.bf16.msra.mxu0 %v6694
    %8580 = vmatprep.subr.bf16.mxu0 %v6702
    %8581 = vmatpush1.bf16.msra.mxu0 %v6701
    %8582 = vmatprep.mubr.bf16.mxu0 %v3772
    %8583 = vmatmul.mubr.bf16.gmra.mrb[0].mxu0 %v3771
    %v8584 = vpop.f32.mrb[0].mxu0
    %v8585 = vadd.f32 %v8514, %v8584
    %v8586 = vpop.f32.mrb[0].mxu0
    %v8587 = vadd.f32 %v8516, %v8586
    %v8588 = vpop.f32.mrb[0].mxu0
    %v8589 = vadd.f32 %v8518, %v8588
    %v8590 = vpop.f32.mrb[0].mxu0
    %v8591 = vadd.f32 %v8520, %v8590
    %8592 = vmatprep.mubr.bf16.mxu0 %v3775
    %8593 = vmatmul.mubr.bf16.gmra.mrb[0].mxu0 %v3774
    %v8594 = vpop.f32.mrb[0].mxu0
    %v8595 = vadd.f32 %v8524, %v8594
    %v8596 = vpop.f32.mrb[0].mxu0
    %v8597 = vadd.f32 %v8526, %v8596
    %v8598 = vpop.f32.mrb[0].mxu0
    %v8599 = vadd.f32 %v8528, %v8598
    %v8600 = vpop.f32.mrb[0].mxu0
    %v8601 = vadd.f32 %v8530, %v8600
    %8602 = vmatprep.mubr.bf16.mxu0 %v3778
    %8603 = vmatmul.mubr.bf16.gmra.mrb[0].mxu0 %v3777
    %v8604 = vpop.f32.mrb[0].mxu0
    %v8605 = vadd.f32 %v8534, %v8604
    %v8606 = vpop.f32.mrb[0].mxu0
    %v8607 = vadd.f32 %v8536, %v8606
    %v8608 = vpop.f32.mrb[0].mxu0
    %v8609 = vadd.f32 %v8538, %v8608
    %v8610 = vpop.f32.mrb[0].mxu0
    %v8611 = vadd.f32 %v8540, %v8610
    %8612 = vmatprep.mubr.bf16.mxu0 %v3781
    %8613 = vmatmul.mubr.bf16.gmra.mrb[0].mxu0 %v3780
    %v8614 = vpop.f32.mrb[0].mxu0
    %v8615 = vadd.f32 %v8544, %v8614
    %v8616 = vpop.f32.mrb[0].mxu0
    %v8617 = vadd.f32 %v8546, %v8616
    %v8618 = vpop.f32.mrb[0].mxu0
    %v8619 = vpop.f32.mrb[0].mxu0
    %8620 = vdwg.mxu0
    %8621 = vmatprep.subr.bf16.mxu0 %v6709
    %8622 = vmatpush1.bf16.msra.mxu0 %v6708
    %8623 = vmatprep.subr.bf16.mxu0 %v6716
    %8624 = vmatpush1.bf16.msra.mxu0 %v6715
    %8625 = vmatprep.subr.bf16.mxu0 %v6723
    %8626 = vmatpush1.bf16.msra.mxu0 %v6722
    %8627 = vmatprep.subr.bf16.mxu0 %v6730
    %8628 = vmatpush1.bf16.msra.mxu0 %v6729
    %8629 = vmatprep.subr.bf16.mxu0 %v6737
    %8630 = vmatpush1.bf16.msra.mxu0 %v6736
    %8631 = vmatprep.subr.bf16.mxu0 %v6744
    %8632 = vmatpush1.bf16.msra.mxu0 %v6743
    %8633 = vmatprep.subr.bf16.mxu0 %v6751
    %8634 = vmatpush1.bf16.msra.mxu0 %v6750
    %8635 = vmatprep.subr.bf16.mxu0 %v6758
    %8636 = vmatpush1.bf16.msra.mxu0 %v6757
    %8637 = vmatprep.subr.bf16.mxu0 %v6765
    %8638 = vmatpush1.bf16.msra.mxu0 %v6764
    %8639 = vmatprep.subr.bf16.mxu0 %v6772
    %8640 = vmatpush1.bf16.msra.mxu0 %v6771
    %8641 = vmatprep.subr.bf16.mxu0 %v6779
    %8642 = vmatpush1.bf16.msra.mxu0 %v6778
    %8643 = vmatprep.subr.bf16.mxu0 %v6786
    %8644 = vmatpush1.bf16.msra.mxu0 %v6785
    %8645 = vmatprep.subr.bf16.mxu0 %v6793
    %8646 = vmatpush1.bf16.msra.mxu0 %v6792
    %8647 = vmatprep.subr.bf16.mxu0 %v6800
    %8648 = vmatpush1.bf16.msra.mxu0 %v6799
    %8649 = vmatprep.subr.bf16.mxu0 %v6807
    %8650 = vmatpush1.bf16.msra.mxu0 %v6806
    %8651 = vmatprep.subr.bf16.mxu0 %v6814
    %8652 = vmatpush1.bf16.msra.mxu0 %v6813
    %8653 = vmatprep.mubr.bf16.mxu0 %v3706
    %8654 = vmatmul.mubr.bf16.gmra.mrb[0].mxu0 %v3773
    %v8655 = vpop.f32.mrb[0].mxu0
    %v8656 = vadd.f32 %v8585, %v8655
    %v8657 = vpop.f32.mrb[0].mxu0
    %v8658 = vadd.f32 %v8587, %v8657
    %v8659 = vpop.f32.mrb[0].mxu0
    %v8660 = vadd.f32 %v8589, %v8659
    %v8661 = vpop.f32.mrb[0].mxu0
    %v8662 = vadd.f32 %v8591, %v8661
    %8663 = vmatprep.mubr.bf16.mxu0 %v3710
    %8664 = vmatmul.mubr.bf16.gmra.mrb[0].mxu0 %v3776
    %v8665 = vpop.f32.mrb[0].mxu0
    %v8666 = vadd.f32 %v8595, %v8665
    %v8667 = vpop.f32.mrb[0].mxu0
    %v8668 = vadd.f32 %v8597, %v8667
    %v8669 = vpop.f32.mrb[0].mxu0
    %v8670 = vadd.f32 %v8599, %v8669
    %v8671 = vpop.f32.mrb[0].mxu0
    %v8672 = vadd.f32 %v8601, %v8671
    %8673 = vmatprep.mubr.bf16.mxu0 %v3714
    %8674 = vmatmul.mubr.bf16.gmra.mrb[0].mxu0 %v3779
    %v8675 = vpop.f32.mrb[0].mxu0
    %v8676 = vadd.f32 %v8605, %v8675
    %v8677 = vpop.f32.mrb[0].mxu0
    %v8678 = vadd.f32 %v8607, %v8677
    %v8679 = vpop.f32.mrb[0].mxu0
    %v8680 = vadd.f32 %v8609, %v8679
    %v8681 = vpop.f32.mrb[0].mxu0
    %v8682 = vadd.f32 %v8611, %v8681
    %8683 = vmatprep.mubr.bf16.mxu0 %v3718
    %8684 = vmatmul.mubr.bf16.gmra.mrb[0].mxu0 %v3782
    %v8685 = vpop.f32.mrb[0].mxu0
    %v8686 = vadd.f32 %v8615, %v8685
    %v8687 = vpop.f32.mrb[0].mxu0
    %v8688 = vadd.f32 %v8617, %v8687
    %v8689 = vpop.f32.mrb[0].mxu0
    %v8690 = vpop.f32.mrb[0].mxu0
    %8691 = vdwg.mxu0
    %8692 = vmatprep.subr.bf16.mxu0 %v6821
    %8693 = vmatpush1.bf16.msra.mxu0 %v6820
    %8694 = vmatprep.subr.bf16.mxu0 %v6828
    %8695 = vmatpush1.bf16.msra.mxu0 %v6827
    %8696 = vmatprep.subr.bf16.mxu0 %v6835
    %8697 = vmatpush1.bf16.msra.mxu0 %v6834
    %8698 = vmatprep.subr.bf16.mxu0 %v6842
    %8699 = vmatpush1.bf16.msra.mxu0 %v6841
    %8700 = vmatprep.subr.bf16.mxu0 %v6849
    %8701 = vmatpush1.bf16.msra.mxu0 %v6848
    %8702 = vmatprep.subr.bf16.mxu0 %v6856
    %8703 = vmatpush1.bf16.msra.mxu0 %v6855
    %8704 = vmatprep.subr.bf16.mxu0 %v6863
    %8705 = vmatpush1.bf16.msra.mxu0 %v6862
    %8706 = vmatprep.subr.bf16.mxu0 %v6870
    %8707 = vmatpush1.bf16.msra.mxu0 %v6869
    %8708 = vmatprep.subr.bf16.mxu0 %v6877
    %8709 = vmatpush1.bf16.msra.mxu0 %v6876
    %8710 = vmatprep.subr.bf16.mxu0 %v6884
    %8711 = vmatpush1.bf16.msra.mxu0 %v6883
    %8712 = vmatprep.subr.bf16.mxu0 %v6891
    %8713 = vmatpush1.bf16.msra.mxu0 %v6890
    %8714 = vmatprep.subr.bf16.mxu0 %v6898
    %8715 = vmatpush1.bf16.msra.mxu0 %v6897
    %8716 = vmatprep.subr.bf16.mxu0 %v6905
    %8717 = vmatpush1.bf16.msra.mxu0 %v6904
    %8718 = vmatprep.subr.bf16.mxu0 %v6912
    %8719 = vmatpush1.bf16.msra.mxu0 %v6911
    %8720 = vmatprep.subr.bf16.mxu0 %v6919
    %8721 = vmatpush1.bf16.msra.mxu0 %v6918
    %8722 = vmatprep.subr.bf16.mxu0 %v6926
    %8723 = vmatpush1.bf16.msra.mxu0 %v6925
    %8724 = vmatprep.mubr.bf16.mxu0 %v3708
    %8725 = vmatmul.mubr.bf16.gmra.mrb[0].mxu0 %v3707
    %v8726 = vpop.f32.mrb[0].mxu0
    %v8727 = vadd.f32 %v8656, %v8726
    %v8728 = vpop.f32.mrb[0].mxu0
    %v8729 = vadd.f32 %v8658, %v8728
    %v8730 = vpop.f32.mrb[0].mxu0
    %v8731 = vadd.f32 %v8660, %v8730
    %v8732 = vpop.f32.mrb[0].mxu0
    %v8733 = vadd.f32 %v8662, %v8732
    %8734 = vmatprep.mubr.bf16.mxu0 %v3712
    %8735 = vmatmul.mubr.bf16.gmra.mrb[0].mxu0 %v3711
    %v8736 = vpop.f32.mrb[0].mxu0
    %v8737 = vadd.f32 %v8666, %v8736
    %v8738 = vpop.f32.mrb[0].mxu0
    %v8739 = vadd.f32 %v8668, %v8738
    %v8740 = vpop.f32.mrb[0].mxu0
    %v8741 = vadd.f32 %v8670, %v8740
    %v8742 = vpop.f32.mrb[0].mxu0
    %v8743 = vadd.f32 %v8672, %v8742
    %8744 = vmatprep.mubr.bf16.mxu0 %v3716
    %8745 = vmatmul.mubr.bf16.gmra.mrb[0].mxu0 %v3715
    %v8746 = vpop.f32.mrb[0].mxu0
    %v8747 = vadd.f32 %v8676, %v8746
    %v8748 = vpop.f32.mrb[0].mxu0
    %v8749 = vadd.f32 %v8678, %v8748
    %v8750 = vpop.f32.mrb[0].mxu0
    %v8751 = vadd.f32 %v8680, %v8750
    %v8752 = vpop.f32.mrb[0].mxu0
    %v8753 = vadd.f32 %v8682, %v8752
    %8754 = vmatprep.mubr.bf16.mxu0 %v3720
    %8755 = vmatmul.mubr.bf16.gmra.mrb[0].mxu0 %v3719
    %v8756 = vpop.f32.mrb[0].mxu0
    %v8757 = vadd.f32 %v8686, %v8756
    %v8758 = vpop.f32.mrb[0].mxu0
    %v8759 = vadd.f32 %v8688, %v8758
    %v8760 = vpop.f32.mrb[0].mxu0
    %v8761 = vpop.f32.mrb[0].mxu0
    %8762 = vdwg.mxu0
    %8763 = vmatprep.subr.bf16.mxu0 %v6933
    %8764 = vmatpush1.bf16.msra.mxu0 %v6932
    %8765 = vmatprep.subr.bf16.mxu0 %v6940
    %8766 = vmatpush1.bf16.msra.mxu0 %v6939
    %8767 = vmatprep.subr.bf16.mxu0 %v6947
    %8768 = vmatpush1.bf16.msra.mxu0 %v6946
    %8769 = vmatprep.subr.bf16.mxu0 %v6954
    %8770 = vmatpush1.bf16.msra.mxu0 %v6953
    %8771 = vmatprep.subr.bf16.mxu0 0
    %8772 = vmatpush1.bf16.msra.mxu0 0
    %8773 = vmatprep.subr.bf16.mxu0 0
    %8774 = vmatpush1.bf16.msra.mxu0 0
    %8775 = vmatprep.subr.bf16.mxu0 0
    %8776 = vmatpush1.bf16.msra.mxu0 0
    %8777 = vmatprep.subr.bf16.mxu0 0
    %8778 = vmatpush1.bf16.msra.mxu0 0
    %8779 = vmatprep.subr.bf16.mxu0 0
    %8780 = vmatpush1.bf16.msra.mxu0 0
    %8781 = vmatprep.subr.bf16.mxu0 0
    %8782 = vmatpush1.bf16.msra.mxu0 0
    %8783 = vmatprep.subr.bf16.mxu0 0
    %8784 = vmatpush1.bf16.msra.mxu0 0
    %8785 = vmatprep.subr.bf16.mxu0 0
    %8786 = vmatpush1.bf16.msra.mxu0 0
    %8787 = vmatprep.subr.bf16.mxu0 0
    %8788 = vmatpush1.bf16.msra.mxu0 0
    %8789 = vmatprep.subr.bf16.mxu0 0
    %8790 = vmatpush1.bf16.msra.mxu0 0
    %8791 = vmatprep.subr.bf16.mxu0 0
    %8792 = vmatpush1.bf16.msra.mxu0 0
    %8793 = vmatprep.subr.bf16.mxu0 0
    %8794 = vmatpush1.bf16.msra.mxu0 0
    %8795 = vmatprep.mubr.bf16.mxu0 0
    %8796 = vmatmul.mubr.bf16.gmra.mrb[0].mxu0 %v7545
    %v8797 = vpop.f32.mrb[0].mxu0
    %v8798 = vadd.f32 %v8727, %v8797
    %v8799 = vpop.f32.mrb[0].mxu0
    %v8800 = vadd.f32 %v8729, %v8799
    %v8801 = vpop.f32.mrb[0].mxu0
    %v8802 = vadd.f32 %v8731, %v8801
    %v8803 = vpop.f32.mrb[0].mxu0
    %v8804 = vadd.f32 %v8733, %v8803
    %8805 = vmatprep.mubr.bf16.mxu0 0
    %8806 = vmatmul.mubr.bf16.gmra.mrb[0].mxu0 %v7548
    %v8807 = vpop.f32.mrb[0].mxu0
    %v8808 = vadd.f32 %v8737, %v8807
    %v8809 = vpop.f32.mrb[0].mxu0
    %v8810 = vadd.f32 %v8739, %v8809
    %v8811 = vpop.f32.mrb[0].mxu0
    %v8812 = vadd.f32 %v8741, %v8811
    %v8813 = vpop.f32.mrb[0].mxu0
    %v8814 = vadd.f32 %v8743, %v8813
    %8815 = vmatprep.mubr.bf16.mxu0 0
    %8816 = vmatmul.mubr.bf16.gmra.mrb[0].mxu0 %v7551
    %v8817 = vpop.f32.mrb[0].mxu0
    %v8818 = vadd.f32 %v8747, %v8817
    %v8819 = vpop.f32.mrb[0].mxu0
    %v8820 = vadd.f32 %v8749, %v8819
    %v8821 = vpop.f32.mrb[0].mxu0
    %v8822 = vadd.f32 %v8751, %v8821
    %v8823 = vpop.f32.mrb[0].mxu0
    %v8824 = vadd.f32 %v8753, %v8823
    %8825 = vmatprep.mubr.bf16.mxu0 0
    %8826 = vmatmul.mubr.bf16.gmra.mrb[0].mxu0 %v7554
    %v8827 = vpop.f32.mrb[0].mxu0
    %v8828 = vadd.f32 %v8757, %v8827
    %v8829 = vpop.f32.mrb[0].mxu0
    %v8830 = vadd.f32 %v8759, %v8829
    %v8831 = vpop.f32.mrb[0].mxu0
    %v8832 = vpop.f32.mrb[0].mxu0
    %8833 = vdwg.mxu0
    %8834 = vmatprep.subr.bf16.mxu0 0
    %8835 = vmatpush1.bf16.msra.mxu0 %v6374
    %8836 = vmatprep.subr.bf16.mxu0 0
    %8837 = vmatpush1.bf16.msra.mxu0 %v6381
    %8838 = vmatprep.subr.bf16.mxu0 0
    %8839 = vmatpush1.bf16.msra.mxu0 %v6388
    %8840 = vmatprep.subr.bf16.mxu0 0
    %8841 = vmatpush1.bf16.msra.mxu0 %v6395
    %8842 = vmatprep.subr.bf16.mxu0 0
    %8843 = vmatpush1.bf16.msra.mxu0 %v6402
    %8844 = vmatprep.subr.bf16.mxu0 0
    %8845 = vmatpush1.bf16.msra.mxu0 %v6409
    %8846 = vmatprep.subr.bf16.mxu0 0
    %8847 = vmatpush1.bf16.msra.mxu0 %v6416
    %8848 = vmatprep.subr.bf16.mxu0 0
    %8849 = vmatpush1.bf16.msra.mxu0 %v6423
    %8850 = vmatprep.subr.bf16.mxu0 0
    %8851 = vmatpush1.bf16.msra.mxu0 %v6430
    %8852 = vmatprep.subr.bf16.mxu0 0
    %8853 = vmatpush1.bf16.msra.mxu0 %v6437
    %8854 = vmatprep.subr.bf16.mxu0 0
    %8855 = vmatpush1.bf16.msra.mxu0 %v6444
    %8856 = vmatprep.subr.bf16.mxu0 0
    %8857 = vmatpush1.bf16.msra.mxu0 %v6451
    %8858 = vmatprep.subr.bf16.mxu0 0
    %8859 = vmatpush1.bf16.msra.mxu0 %v6458
    %8860 = vmatprep.subr.bf16.mxu0 0
    %8861 = vmatpush1.bf16.msra.mxu0 %v6465
    %8862 = vmatprep.subr.bf16.mxu0 0
    %8863 = vmatpush1.bf16.msra.mxu0 %v6472
    %8864 = vmatprep.subr.bf16.mxu0 0
    %8865 = vmatpush1.bf16.msra.mxu0 %v6479
    %8866 = vmatprep.mubr.bf16.mxu0 %v3627
    %8867 = vmatmul.mubr.bf16.gmra.mrb[0].mxu0 %v3626
    %v8868 = vpop.f32.mrb[0].mxu0
    %v8869 = vadd.f32 %v4512, %v8868
    %v8870 = vpop.f32.mrb[0].mxu0
    %v8871 = vpop.f32.mrb[0].mxu0
    %v8872 = vadd.f32 %v4512, %v8871
    %v8873 = vpop.f32.mrb[0].mxu0
    %8874 = vmatprep.mubr.bf16.mxu0 %v3631
    %8875 = vmatmul.mubr.bf16.gmra.mrb[0].mxu0 %v3630
    %v8876 = vpop.f32.mrb[0].mxu0
    %v8877 = vadd.f32 %v4512, %v8876
    %v8878 = vpop.f32.mrb[0].mxu0
    %v8879 = vpop.f32.mrb[0].mxu0
    %v8880 = vadd.f32 %v4512, %v8879
    %v8881 = vpop.f32.mrb[0].mxu0
    %8882 = vmatprep.mubr.bf16.mxu0 %v3635
    %8883 = vmatmul.mubr.bf16.gmra.mrb[0].mxu0 %v3634
    %v8884 = vpop.f32.mrb[0].mxu0
    %v8885 = vadd.f32 %v4512, %v8884
    %v8886 = vpop.f32.mrb[0].mxu0
    %v8887 = vpop.f32.mrb[0].mxu0
    %v8888 = vadd.f32 %v4512, %v8887
    %v8889 = vpop.f32.mrb[0].mxu0
    %8890 = vmatprep.mubr.bf16.mxu0 %v3639
    %8891 = vmatmul.mubr.bf16.gmra.mrb[0].mxu0 %v3638
    %v8892 = vpop.f32.mrb[0].mxu0
    %v8893 = vadd.f32 %v4512, %v8892
    %v8894 = vpop.f32.mrb[0].mxu0
    %v8895 = vpop.f32.mrb[0].mxu0
    %v8896 = vpop.f32.mrb[0].mxu0
    %8897 = vdwg.mxu0
    %8898 = vmatprep.subr.bf16.mxu0 0
    %8899 = vmatpush1.bf16.msra.mxu0 %v6486
    %8900 = vmatprep.subr.bf16.mxu0 0
    %8901 = vmatpush1.bf16.msra.mxu0 %v6493
    %8902 = vmatprep.subr.bf16.mxu0 0
    %8903 = vmatpush1.bf16.msra.mxu0 %v6500
    %8904 = vmatprep.subr.bf16.mxu0 0
    %8905 = vmatpush1.bf16.msra.mxu0 %v6507
    %8906 = vmatprep.subr.bf16.mxu0 0
    %8907 = vmatpush1.bf16.msra.mxu0 %v6514
    %8908 = vmatprep.subr.bf16.mxu0 0
    %8909 = vmatpush1.bf16.msra.mxu0 %v6521
    %8910 = vmatprep.subr.bf16.mxu0 0
    %8911 = vmatpush1.bf16.msra.mxu0 %v6528
    %8912 = vmatprep.subr.bf16.mxu0 0
    %8913 = vmatpush1.bf16.msra.mxu0 %v6535
    %8914 = vmatprep.subr.bf16.mxu0 0
    %8915 = vmatpush1.bf16.msra.mxu0 %v6542
    %8916 = vmatprep.subr.bf16.mxu0 0
    %8917 = vmatpush1.bf16.msra.mxu0 %v6549
    %8918 = vmatprep.subr.bf16.mxu0 0
    %8919 = vmatpush1.bf16.msra.mxu0 %v6556
    %8920 = vmatprep.subr.bf16.mxu0 0
    %8921 = vmatpush1.bf16.msra.mxu0 %v6563
    %8922 = vmatprep.subr.bf16.mxu0 0
    %8923 = vmatpush1.bf16.msra.mxu0 %v6570
    %8924 = vmatprep.subr.bf16.mxu0 0
    %8925 = vmatpush1.bf16.msra.mxu0 %v6577
    %8926 = vmatprep.subr.bf16.mxu0 0
    %8927 = vmatpush1.bf16.msra.mxu0 %v6584
    %8928 = vmatprep.subr.bf16.mxu0 0
    %8929 = vmatpush1.bf16.msra.mxu0 %v6591
    %8930 = vmatprep.mubr.bf16.mxu0 %v3797
    %8931 = vmatmul.mubr.bf16.gmra.mrb[0].mxu0 %v3628
    %v8932 = vpop.f32.mrb[0].mxu0
    %v8933 = vadd.f32 %v8869, %v8932
    %v8934 = vpop.f32.mrb[0].mxu0
    %v8935 = vpop.f32.mrb[0].mxu0
    %v8936 = vadd.f32 %v8872, %v8935
    %v8937 = vpop.f32.mrb[0].mxu0
    %8938 = vmatprep.mubr.bf16.mxu0 %v3801
    %8939 = vmatmul.mubr.bf16.gmra.mrb[0].mxu0 %v3632
    %v8940 = vpop.f32.mrb[0].mxu0
    %v8941 = vadd.f32 %v8877, %v8940
    %v8942 = vpop.f32.mrb[0].mxu0
    %v8943 = vpop.f32.mrb[0].mxu0
    %v8944 = vadd.f32 %v8880, %v8943
    %v8945 = vpop.f32.mrb[0].mxu0
    %8946 = vmatprep.mubr.bf16.mxu0 %v3805
    %8947 = vmatmul.mubr.bf16.gmra.mrb[0].mxu0 %v3636
    %v8948 = vpop.f32.mrb[0].mxu0
    %v8949 = vadd.f32 %v8885, %v8948
    %v8950 = vpop.f32.mrb[0].mxu0
    %v8951 = vpop.f32.mrb[0].mxu0
    %v8952 = vadd.f32 %v8888, %v8951
    %v8953 = vpop.f32.mrb[0].mxu0
    %8954 = vmatprep.mubr.bf16.mxu0 %v3809
    %8955 = vmatmul.mubr.bf16.gmra.mrb[0].mxu0 %v3640
    %v8956 = vpop.f32.mrb[0].mxu0
    %v8957 = vadd.f32 %v8893, %v8956
    %v8958 = vpop.f32.mrb[0].mxu0
    %v8959 = vpop.f32.mrb[0].mxu0
    %v8960 = vpop.f32.mrb[0].mxu0
    %8961 = vdwg.mxu0
    %8962 = vmatprep.subr.bf16.mxu0 0
    %8963 = vmatpush1.bf16.msra.mxu0 %v6598
    %8964 = vmatprep.subr.bf16.mxu0 0
    %8965 = vmatpush1.bf16.msra.mxu0 %v6605
    %8966 = vmatprep.subr.bf16.mxu0 0
    %8967 = vmatpush1.bf16.msra.mxu0 %v6612
    %8968 = vmatprep.subr.bf16.mxu0 0
    %8969 = vmatpush1.bf16.msra.mxu0 %v6619
    %8970 = vmatprep.subr.bf16.mxu0 0
    %8971 = vmatpush1.bf16.msra.mxu0 %v6626
    %8972 = vmatprep.subr.bf16.mxu0 0
    %8973 = vmatpush1.bf16.msra.mxu0 %v6633
    %8974 = vmatprep.subr.bf16.mxu0 0
    %8975 = vmatpush1.bf16.msra.mxu0 %v6640
    %8976 = vmatprep.subr.bf16.mxu0 0
    %8977 = vmatpush1.bf16.msra.mxu0 %v6647
    %8978 = vmatprep.subr.bf16.mxu0 0
    %8979 = vmatpush1.bf16.msra.mxu0 %v6654
    %8980 = vmatprep.subr.bf16.mxu0 0
    %8981 = vmatpush1.bf16.msra.mxu0 %v6661
    %8982 = vmatprep.subr.bf16.mxu0 0
    %8983 = vmatpush1.bf16.msra.mxu0 %v6668
    %8984 = vmatprep.subr.bf16.mxu0 0
    %8985 = vmatpush1.bf16.msra.mxu0 %v6675
    %8986 = vmatprep.subr.bf16.mxu0 0
    %8987 = vmatpush1.bf16.msra.mxu0 %v6682
    %8988 = vmatprep.subr.bf16.mxu0 0
    %8989 = vmatpush1.bf16.msra.mxu0 %v6689
    %8990 = vmatprep.subr.bf16.mxu0 0
    %8991 = vmatpush1.bf16.msra.mxu0 %v6696
    %8992 = vmatprep.subr.bf16.mxu0 0
    %8993 = vmatpush1.bf16.msra.mxu0 %v6703
    %8994 = vmatprep.mubr.bf16.mxu0 %v3772
    %8995 = vmatmul.mubr.bf16.gmra.mrb[0].mxu0 %v3771
    %v8996 = vpop.f32.mrb[0].mxu0
    %v8997 = vadd.f32 %v8933, %v8996
    %v8998 = vpop.f32.mrb[0].mxu0
    %v8999 = vpop.f32.mrb[0].mxu0
    %v9000 = vadd.f32 %v8936, %v8999
    %v9001 = vpop.f32.mrb[0].mxu0
    %9002 = vmatprep.mubr.bf16.mxu0 %v3775
    %9003 = vmatmul.mubr.bf16.gmra.mrb[0].mxu0 %v3774
    %v9004 = vpop.f32.mrb[0].mxu0
    %v9005 = vadd.f32 %v8941, %v9004
    %v9006 = vpop.f32.mrb[0].mxu0
    %v9007 = vpop.f32.mrb[0].mxu0
    %v9008 = vadd.f32 %v8944, %v9007
    %v9009 = vpop.f32.mrb[0].mxu0
    %9010 = vmatprep.mubr.bf16.mxu0 %v3778
    %9011 = vmatmul.mubr.bf16.gmra.mrb[0].mxu0 %v3777
    %v9012 = vpop.f32.mrb[0].mxu0
    %v9013 = vadd.f32 %v8949, %v9012
    %v9014 = vpop.f32.mrb[0].mxu0
    %v9015 = vpop.f32.mrb[0].mxu0
    %v9016 = vadd.f32 %v8952, %v9015
    %v9017 = vpop.f32.mrb[0].mxu0
    %9018 = vmatprep.mubr.bf16.mxu0 %v3781
    %9019 = vmatmul.mubr.bf16.gmra.mrb[0].mxu0 %v3780
    %v9020 = vpop.f32.mrb[0].mxu0
    %v9021 = vadd.f32 %v8957, %v9020
    %v9022 = vpop.f32.mrb[0].mxu0
    %v9023 = vpop.f32.mrb[0].mxu0
    %v9024 = vpop.f32.mrb[0].mxu0
    %9025 = vdwg.mxu0
    %9026 = vmatprep.subr.bf16.mxu0 0
    %9027 = vmatpush1.bf16.msra.mxu0 %v6710
    %9028 = vmatprep.subr.bf16.mxu0 0
    %9029 = vmatpush1.bf16.msra.mxu0 %v6717
    %9030 = vmatprep.subr.bf16.mxu0 0
    %9031 = vmatpush1.bf16.msra.mxu0 %v6724
    %9032 = vmatprep.subr.bf16.mxu0 0
    %9033 = vmatpush1.bf16.msra.mxu0 %v6731
    %9034 = vmatprep.subr.bf16.mxu0 0
    %9035 = vmatpush1.bf16.msra.mxu0 %v6738
    %9036 = vmatprep.subr.bf16.mxu0 0
    %9037 = vmatpush1.bf16.msra.mxu0 %v6745
    %9038 = vmatprep.subr.bf16.mxu0 0
    %9039 = vmatpush1.bf16.msra.mxu0 %v6752
    %9040 = vmatprep.subr.bf16.mxu0 0
    %9041 = vmatpush1.bf16.msra.mxu0 %v6759
    %9042 = vmatprep.subr.bf16.mxu0 0
    %9043 = vmatpush1.bf16.msra.mxu0 %v6766
    %9044 = vmatprep.subr.bf16.mxu0 0
    %9045 = vmatpush1.bf16.msra.mxu0 %v6773
    %9046 = vmatprep.subr.bf16.mxu0 0
    %9047 = vmatpush1.bf16.msra.mxu0 %v6780
    %9048 = vmatprep.subr.bf16.mxu0 0
    %9049 = vmatpush1.bf16.msra.mxu0 %v6787
    %9050 = vmatprep.subr.bf16.mxu0 0
    %9051 = vmatpush1.bf16.msra.mxu0 %v6794
    %9052 = vmatprep.subr.bf16.mxu0 0
    %9053 = vmatpush1.bf16.msra.mxu0 %v6801
    %9054 = vmatprep.subr.bf16.mxu0 0
    %9055 = vmatpush1.bf16.msra.mxu0 %v6808
    %9056 = vmatprep.subr.bf16.mxu0 0
    %9057 = vmatpush1.bf16.msra.mxu0 %v6815
    %9058 = vmatprep.mubr.bf16.mxu0 %v3706
    %9059 = vmatmul.mubr.bf16.gmra.mrb[0].mxu0 %v3773
    %v9060 = vpop.f32.mrb[0].mxu0
    %v9061 = vadd.f32 %v8997, %v9060
    %v9062 = vpop.f32.mrb[0].mxu0
    %v9063 = vpop.f32.mrb[0].mxu0
    %v9064 = vadd.f32 %v9000, %v9063
    %v9065 = vpop.f32.mrb[0].mxu0
    %9066 = vmatprep.mubr.bf16.mxu0 %v3710
    %9067 = vmatmul.mubr.bf16.gmra.mrb[0].mxu0 %v3776
    %v9068 = vpop.f32.mrb[0].mxu0
    %v9069 = vadd.f32 %v9005, %v9068
    %v9070 = vpop.f32.mrb[0].mxu0
    %v9071 = vpop.f32.mrb[0].mxu0
    %v9072 = vadd.f32 %v9008, %v9071
    %v9073 = vpop.f32.mrb[0].mxu0
    %9074 = vmatprep.mubr.bf16.mxu0 %v3714
    %9075 = vmatmul.mubr.bf16.gmra.mrb[0].mxu0 %v3779
    %v9076 = vpop.f32.mrb[0].mxu0
    %v9077 = vadd.f32 %v9013, %v9076
    %v9078 = vpop.f32.mrb[0].mxu0
    %v9079 = vpop.f32.mrb[0].mxu0
    %v9080 = vadd.f32 %v9016, %v9079
    %v9081 = vpop.f32.mrb[0].mxu0
    %9082 = vmatprep.mubr.bf16.mxu0 %v3718
    %9083 = vmatmul.mubr.bf16.gmra.mrb[0].mxu0 %v3782
    %v9084 = vpop.f32.mrb[0].mxu0
    %v9085 = vadd.f32 %v9021, %v9084
    %v9086 = vpop.f32.mrb[0].mxu0
    %v9087 = vpop.f32.mrb[0].mxu0
    %v9088 = vpop.f32.mrb[0].mxu0
    %9089 = vdwg.mxu0
    %9090 = vmatprep.subr.bf16.mxu0 0
    %9091 = vmatpush1.bf16.msra.mxu0 %v6822
    %9092 = vmatprep.subr.bf16.mxu0 0
    %9093 = vmatpush1.bf16.msra.mxu0 %v6829
    %9094 = vmatprep.subr.bf16.mxu0 0
    %9095 = vmatpush1.bf16.msra.mxu0 %v6836
    %9096 = vmatprep.subr.bf16.mxu0 0
    %9097 = vmatpush1.bf16.msra.mxu0 %v6843
    %9098 = vmatprep.subr.bf16.mxu0 0
    %9099 = vmatpush1.bf16.msra.mxu0 %v6850
    %9100 = vmatprep.subr.bf16.mxu0 0
    %9101 = vmatpush1.bf16.msra.mxu0 %v6857
    %9102 = vmatprep.subr.bf16.mxu0 0
    %9103 = vmatpush1.bf16.msra.mxu0 %v6864
    %9104 = vmatprep.subr.bf16.mxu0 0
    %9105 = vmatpush1.bf16.msra.mxu0 %v6871
    %9106 = vmatprep.subr.bf16.mxu0 0
    %9107 = vmatpush1.bf16.msra.mxu0 %v6878
    %9108 = vmatprep.subr.bf16.mxu0 0
    %9109 = vmatpush1.bf16.msra.mxu0 %v6885
    %9110 = vmatprep.subr.bf16.mxu0 0
    %9111 = vmatpush1.bf16.msra.mxu0 %v6892
    %9112 = vmatprep.subr.bf16.mxu0 0
    %9113 = vmatpush1.bf16.msra.mxu0 %v6899
    %9114 = vmatprep.subr.bf16.mxu0 0
    %9115 = vmatpush1.bf16.msra.mxu0 %v6906
    %9116 = vmatprep.subr.bf16.mxu0 0
    %9117 = vmatpush1.bf16.msra.mxu0 %v6913
    %9118 = vmatprep.subr.bf16.mxu0 0
    %9119 = vmatpush1.bf16.msra.mxu0 %v6920
    %9120 = vmatprep.subr.bf16.mxu0 0
    %9121 = vmatpush1.bf16.msra.mxu0 %v6927
    %9122 = vmatprep.mubr.bf16.mxu0 %v3708
    %9123 = vmatmul.mubr.bf16.gmra.mrb[0].mxu0 %v3707
    %v9124 = vpop.f32.mrb[0].mxu0
    %v9125 = vadd.f32 %v9061, %v9124
    %v9126 = vpop.f32.mrb[0].mxu0
    %v9127 = vpop.f32.mrb[0].mxu0
    %v9128 = vadd.f32 %v9064, %v9127
    %v9129 = vpop.f32.mrb[0].mxu0
    %9130 = vmatprep.mubr.bf16.mxu0 %v3712
    %9131 = vmatmul.mubr.bf16.gmra.mrb[0].mxu0 %v3711
    %v9132 = vpop.f32.mrb[0].mxu0
    %v9133 = vadd.f32 %v9069, %v9132
    %v9134 = vpop.f32.mrb[0].mxu0
    %v9135 = vpop.f32.mrb[0].mxu0
    %v9136 = vadd.f32 %v9072, %v9135
    %v9137 = vpop.f32.mrb[0].mxu0
    %9138 = vmatprep.mubr.bf16.mxu0 %v3716
    %9139 = vmatmul.mubr.bf16.gmra.mrb[0].mxu0 %v3715
    %v9140 = vpop.f32.mrb[0].mxu0
    %v9141 = vadd.f32 %v9077, %v9140
    %v9142 = vpop.f32.mrb[0].mxu0
    %v9143 = vpop.f32.mrb[0].mxu0
    %v9144 = vadd.f32 %v9080, %v9143
    %v9145 = vpop.f32.mrb[0].mxu0
    %9146 = vmatprep.mubr.bf16.mxu0 %v3720
    %9147 = vmatmul.mubr.bf16.gmra.mrb[0].mxu0 %v3719
    %v9148 = vpop.f32.mrb[0].mxu0
    %v9149 = vadd.f32 %v9085, %v9148
    %v9150 = vpop.f32.mrb[0].mxu0
    %v9151 = vpop.f32.mrb[0].mxu0
    %v9152 = vpop.f32.mrb[0].mxu0
    %9153 = vdwg.mxu0
    %9154 = vmatprep.subr.bf16.mxu0 0
    %9155 = vmatpush1.bf16.msra.mxu0 %v6934
    %9156 = vmatprep.subr.bf16.mxu0 0
    %9157 = vmatpush1.bf16.msra.mxu0 %v6941
    %9158 = vmatprep.subr.bf16.mxu0 0
    %9159 = vmatpush1.bf16.msra.mxu0 %v6948
    %9160 = vmatprep.subr.bf16.mxu0 0
    %9161 = vmatpush1.bf16.msra.mxu0 %v6955
    %9162 = vmatprep.subr.bf16.mxu0 0
    %9163 = vmatpush1.bf16.msra.mxu0 0
    %9164 = vmatprep.subr.bf16.mxu0 0
    %9165 = vmatpush1.bf16.msra.mxu0 0
    %9166 = vmatprep.subr.bf16.mxu0 0
    %9167 = vmatpush1.bf16.msra.mxu0 0
    %9168 = vmatprep.subr.bf16.mxu0 0
    %9169 = vmatpush1.bf16.msra.mxu0 0
    %9170 = vmatprep.subr.bf16.mxu0 0
    %9171 = vmatpush1.bf16.msra.mxu0 0
    %9172 = vmatprep.subr.bf16.mxu0 0
    %9173 = vmatpush1.bf16.msra.mxu0 0
    %9174 = vmatprep.subr.bf16.mxu0 0
    %9175 = vmatpush1.bf16.msra.mxu0 0
    %9176 = vmatprep.subr.bf16.mxu0 0
    %9177 = vmatpush1.bf16.msra.mxu0 0
    %9178 = vmatprep.subr.bf16.mxu0 0
    %9179 = vmatpush1.bf16.msra.mxu0 0
    %9180 = vmatprep.subr.bf16.mxu0 0
    %9181 = vmatpush1.bf16.msra.mxu0 0
    %9182 = vmatprep.subr.bf16.mxu0 0
    %9183 = vmatpush1.bf16.msra.mxu0 0
    %9184 = vmatprep.subr.bf16.mxu0 0
    %9185 = vmatpush1.bf16.msra.mxu0 0
    %9186 = vmatprep.mubr.bf16.mxu0 0
    %9187 = vmatmul.mubr.bf16.gmra.mrb[0].mxu0 %v7545
    %v9188 = vpop.f32.mrb[0].mxu0
    %v9189 = vadd.f32 %v9125, %v9188
    %v9190 = vpop.f32.mrb[0].mxu0
    %v9191 = vpop.f32.mrb[0].mxu0
    %v9192 = vadd.f32 %v9128, %v9191
    %v9193 = vpop.f32.mrb[0].mxu0
    %9194 = vmatprep.mubr.bf16.mxu0 0
    %9195 = vmatmul.mubr.bf16.gmra.mrb[0].mxu0 %v7548
    %v9196 = vpop.f32.mrb[0].mxu0
    %v9197 = vadd.f32 %v9133, %v9196
    %v9198 = vpop.f32.mrb[0].mxu0
    %v9199 = vpop.f32.mrb[0].mxu0
    %v9200 = vadd.f32 %v9136, %v9199
    %v9201 = vpop.f32.mrb[0].mxu0
    %9202 = vmatprep.mubr.bf16.mxu0 0
    %9203 = vmatmul.mubr.bf16.gmra.mrb[0].mxu0 %v7551
    %v9204 = vpop.f32.mrb[0].mxu0
    %v9205 = vadd.f32 %v9141, %v9204
    %v9206 = vpop.f32.mrb[0].mxu0
    %v9207 = vpop.f32.mrb[0].mxu0
    %v9208 = vadd.f32 %v9144, %v9207
    %v9209 = vpop.f32.mrb[0].mxu0
    %9210 = vmatprep.mubr.bf16.mxu0 0
    %9211 = vmatmul.mubr.bf16.gmra.mrb[0].mxu0 %v7554
    %v9212 = vpop.f32.mrb[0].mxu0
    %v9213 = vadd.f32 %v9149, %v9212
    %v9214 = vpop.f32.mrb[0].mxu0
    %v9215 = vpop.f32.mrb[0].mxu0
    %v9216 = vpop.f32.mrb[0].mxu0
    %9217 = vdwg.mxu0
    %v9218 = vmax.f32 %v7946, 0.0
    %v9219 = vmax.f32 %v7948, 0.0
    %v9220 = vmax.f32 %v8372, 0.0
    %v9221 = vmax.f32 %v8374, 0.0
    %v9222 = vmax.f32 %v8798, 0.0
    %v9223 = vmax.f32 %v8800, 0.0
    %v9224 = vmax.f32 %v9189, 0.0
    %v9225 = vmax.f32 %v7950, 0.0
    %v9226 = vmax.f32 %v7952, 0.0
    %v9227 = vmax.f32 %v8376, 0.0
    %v9228 = vmax.f32 %v8378, 0.0
    %v9229 = vmax.f32 %v8802, 0.0
    %v9230 = vmax.f32 %v8804, 0.0
    %v9231 = vmax.f32 %v9192, 0.0
    %v9232 = vmax.f32 %v7956, 0.0
    %v9233 = vmax.f32 %v7958, 0.0
    %v9234 = vmax.f32 %v8382, 0.0
    %v9235 = vmax.f32 %v8384, 0.0
    %v9236 = vmax.f32 %v8808, 0.0
    %v9237 = vmax.f32 %v8810, 0.0
    %v9238 = vmax.f32 %v9197, 0.0
    %v9239 = vmax.f32 %v7960, 0.0
    %v9240 = vmax.f32 %v7962, 0.0
    %v9241 = vmax.f32 %v8386, 0.0
    %v9242 = vmax.f32 %v8388, 0.0
    %v9243 = vmax.f32 %v8812, 0.0
    %v9244 = vmax.f32 %v8814, 0.0
    %v9245 = vmax.f32 %v9200, 0.0
    %v9246 = vmax.f32 %v7966, 0.0
    %v9247 = vmax.f32 %v7968, 0.0
    %v9248 = vmax.f32 %v8392, 0.0
    %v9249 = vmax.f32 %v8394, 0.0
    %v9250 = vmax.f32 %v8818, 0.0
    %v9251 = vmax.f32 %v8820, 0.0
    %v9252 = vmax.f32 %v9205, 0.0
    %v9253 = vmax.f32 %v7970, 0.0
    %v9254 = vmax.f32 %v7972, 0.0
    %v9255 = vmax.f32 %v8396, 0.0
    %v9256 = vmax.f32 %v8398, 0.0
    %v9257 = vmax.f32 %v8822, 0.0
    %v9258 = vmax.f32 %v8824, 0.0
    %v9259 = vmax.f32 %v9208, 0.0
    %v9260 = vmax.f32 %v7976, 0.0
    %v9261 = vmax.f32 %v7978, 0.0
    %v9262 = vmax.f32 %v8402, 0.0
    %v9263 = vmax.f32 %v8404, 0.0
    %v9264 = vmax.f32 %v8828, 0.0
    %v9265 = vmax.f32 %v8830, 0.0
    %v9266 = vmax.f32 %v9213, 0.0
    %9295 = vrot.lane.b32.xlu0 %v9221, 64
    %v9296 = vpop.permute.xlu0 %9295
    %9297 = vrot.lane.b32.xlu0 %v9222, 64
    %v9298 = vpop.permute.xlu0 %9297
    %9299 = vrot.lane.b32.xlu0 %v9223, 64
    %v9300 = vpop.permute.xlu0 %9299
    %9301 = vrot.lane.b32.xlu0 %v9224, 64
    %v9302 = vpop.permute.xlu0 %9301
    %9303 = vrot.lane.b32.xlu0 %v9228, 64
    %v9304 = vpop.permute.xlu0 %9303
    %9305 = vrot.lane.b32.xlu0 %v9229, 64
    %v9306 = vpop.permute.xlu0 %9305
    %9307 = vrot.lane.b32.xlu0 %v9230, 64
    %v9308 = vpop.permute.xlu0 %9307
    %9309 = vrot.lane.b32.xlu0 %v9231, 64
    %v9310 = vpop.permute.xlu0 %9309
    %9311 = vrot.lane.b32.xlu0 %v9235, 64
    %v9312 = vpop.permute.xlu0 %9311
    %9313 = vrot.lane.b32.xlu0 %v9236, 64
    %v9314 = vpop.permute.xlu0 %9313
    %9315 = vrot.lane.b32.xlu0 %v9237, 64
    %v9316 = vpop.permute.xlu0 %9315
    %9317 = vrot.lane.b32.xlu0 %v9238, 64
    %v9318 = vpop.permute.xlu0 %9317
    %9319 = vrot.lane.b32.xlu0 %v9242, 64
    %v9320 = vpop.permute.xlu0 %9319
    %9321 = vrot.lane.b32.xlu0 %v9243, 64
    %v9322 = vpop.permute.xlu0 %9321
    %9323 = vrot.lane.b32.xlu0 %v9244, 64
    %v9324 = vpop.permute.xlu0 %9323
    %9325 = vrot.lane.b32.xlu0 %v9245, 64
    %v9326 = vpop.permute.xlu0 %9325
    %9327 = vrot.lane.b32.xlu0 %v9249, 64
    %v9328 = vpop.permute.xlu0 %9327
    %9329 = vrot.lane.b32.xlu0 %v9250, 64
    %v9330 = vpop.permute.xlu0 %9329
    %9331 = vrot.lane.b32.xlu0 %v9251, 64
    %v9332 = vpop.permute.xlu0 %9331
    %9333 = vrot.lane.b32.xlu0 %v9252, 64
    %v9334 = vpop.permute.xlu0 %9333
    %9335 = vrot.lane.b32.xlu0 %v9256, 64
    %v9336 = vpop.permute.xlu0 %9335
    %9337 = vrot.lane.b32.xlu0 %v9257, 64
    %v9338 = vpop.permute.xlu0 %9337
    %9339 = vrot.lane.b32.xlu0 %v9258, 64
    %v9340 = vpop.permute.xlu0 %9339
    %9341 = vrot.lane.b32.xlu0 %v9259, 64
    %v9342 = vpop.permute.xlu0 %9341
    %9343 = vrot.lane.b32.xlu0 %v9263, 64
    %v9344 = vpop.permute.xlu0 %9343
    %9345 = vrot.lane.b32.xlu0 %v9264, 64
    %v9346 = vpop.permute.xlu0 %9345
    %9347 = vrot.lane.b32.xlu0 %v9265, 64
    %v9348 = vpop.permute.xlu0 %9347
    %9349 = vrot.lane.b32.xlu0 %v9266, 64
    %v9350 = vpop.permute.xlu0 %9349
    %v9351 = vsel %vm3388, %v9296, %v9298
    %v9352 = vsel %vm3388, %v9298, %v9300
    %v9353 = vsel %vm3388, %v9300, %v9302
    %v9354 = vsel %vm3388, %v9304, %v9306
    %v9355 = vsel %vm3388, %v9306, %v9308
    %v9356 = vsel %vm3388, %v9308, %v9310
    %v9357 = vsel %vm3388, %v9312, %v9314
    %v9358 = vsel %vm3388, %v9314, %v9316
    %v9359 = vsel %vm3388, %v9316, %v9318
    %v9360 = vsel %vm3388, %v9320, %v9322
    %v9361 = vsel %vm3388, %v9322, %v9324
    %v9362 = vsel %vm3388, %v9324, %v9326
    %v9363 = vsel %vm3388, %v9328, %v9330
    %v9364 = vsel %vm3388, %v9330, %v9332
    %v9365 = vsel %vm3388, %v9332, %v9334
    %v9366 = vsel %vm3388, %v9336, %v9338
    %v9367 = vsel %vm3388, %v9338, %v9340
    %v9368 = vsel %vm3388, %v9340, %v9342
    %v9369 = vsel %vm3388, %v9344, %v9346
    %v9370 = vsel %vm3388, %v9346, %v9348
    %v9371 = vsel %vm3388, %v9348, %v9350
    %v9400 = vmax.f32 %v9218, %v9351
    %v9401 = vmax.f32 %v9219, %v9352
    %v9402 = vmax.f32 %v9220, %v9353
    %v9403 = vmax.f32 %v9221, %v9302
    %v9404 = vmax.f32 %v9225, %v9354
    %v9405 = vmax.f32 %v9226, %v9355
    %v9406 = vmax.f32 %v9227, %v9356
    %v9407 = vmax.f32 %v9228, %v9310
    %v9408 = vmax.f32 %v9232, %v9357
    %v9409 = vmax.f32 %v9233, %v9358
    %v9410 = vmax.f32 %v9234, %v9359
    %v9411 = vmax.f32 %v9235, %v9318
    %v9412 = vmax.f32 %v9239, %v9360
    %v9413 = vmax.f32 %v9240, %v9361
    %v9414 = vmax.f32 %v9241, %v9362
    %v9415 = vmax.f32 %v9242, %v9326
    %v9416 = vmax.f32 %v9246, %v9363
    %v9417 = vmax.f32 %v9247, %v9364
    %v9418 = vmax.f32 %v9248, %v9365
    %v9419 = vmax.f32 %v9249, %v9334
    %v9420 = vmax.f32 %v9253, %v9366
    %v9421 = vmax.f32 %v9254, %v9367
    %v9422 = vmax.f32 %v9255, %v9368
    %v9423 = vmax.f32 %v9256, %v9342
    %v9424 = vmax.f32 %v9260, %v9369
    %v9425 = vmax.f32 %v9261, %v9370
    %v9426 = vmax.f32 %v9262, %v9371
    %v9427 = vmax.f32 %v9263, %v9350
    %9449 = vrot.lane.b32.xlu0 %v9401, 32
    %v9450 = vpop.permute.xlu0 %9449
    %9451 = vrot.lane.b32.xlu0 %v9402, 32
    %v9452 = vpop.permute.xlu0 %9451
    %9453 = vrot.lane.b32.xlu0 %v9403, 32
    %v9454 = vpop.permute.xlu0 %9453
    %9455 = vrot.lane.b32.xlu0 %v9405, 32
    %v9456 = vpop.permute.xlu0 %9455
    %9457 = vrot.lane.b32.xlu0 %v9406, 32
    %v9458 = vpop.permute.xlu0 %9457
    %9459 = vrot.lane.b32.xlu0 %v9407, 32
    %v9460 = vpop.permute.xlu0 %9459
    %9461 = vrot.lane.b32.xlu0 %v9409, 32
    %v9462 = vpop.permute.xlu0 %9461
    %9463 = vrot.lane.b32.xlu0 %v9410, 32
    %v9464 = vpop.permute.xlu0 %9463
    %9465 = vrot.lane.b32.xlu0 %v9411, 32
    %v9466 = vpop.permute.xlu0 %9465
    %9467 = vrot.lane.b32.xlu0 %v9413, 32
    %v9468 = vpop.permute.xlu0 %9467
    %9469 = vrot.lane.b32.xlu0 %v9414, 32
    %v9470 = vpop.permute.xlu0 %9469
    %9471 = vrot.lane.b32.xlu0 %v9415, 32
    %v9472 = vpop.permute.xlu0 %9471
    %9473 = vrot.lane.b32.xlu0 %v9417, 32
    %v9474 = vpop.permute.xlu0 %9473
    %9475 = vrot.lane.b32.xlu0 %v9418, 32
    %v9476 = vpop.permute.xlu0 %9475
    %9477 = vrot.lane.b32.xlu0 %v9419, 32
    %v9478 = vpop.permute.xlu0 %9477
    %9479 = vrot.lane.b32.xlu0 %v9421, 32
    %v9480 = vpop.permute.xlu0 %9479
    %9481 = vrot.lane.b32.xlu0 %v9422, 32
    %v9482 = vpop.permute.xlu0 %9481
    %9483 = vrot.lane.b32.xlu0 %v9423, 32
    %v9484 = vpop.permute.xlu0 %9483
    %9485 = vrot.lane.b32.xlu0 %v9425, 32
    %v9486 = vpop.permute.xlu0 %9485
    %9487 = vrot.lane.b32.xlu0 %v9426, 32
    %v9488 = vpop.permute.xlu0 %9487
    %9489 = vrot.lane.b32.xlu0 %v9427, 32
    %v9490 = vpop.permute.xlu0 %9489
    %vm9491 = vcmask 261120
    %v9492 = vsel %vm9491, %v9450, %v9452
    %v9493 = vsel %vm9491, %v9452, %v9454
    %v9494 = vsel %vm9491, %v9456, %v9458
    %v9495 = vsel %vm9491, %v9458, %v9460
    %v9496 = vsel %vm9491, %v9462, %v9464
    %v9497 = vsel %vm9491, %v9464, %v9466
    %v9498 = vsel %vm9491, %v9468, %v9470
    %v9499 = vsel %vm9491, %v9470, %v9472
    %v9500 = vsel %vm9491, %v9474, %v9476
    %v9501 = vsel %vm9491, %v9476, %v9478
    %v9502 = vsel %vm9491, %v9480, %v9482
    %v9503 = vsel %vm9491, %v9482, %v9484
    %v9504 = vsel %vm9491, %v9486, %v9488
    %v9505 = vsel %vm9491, %v9488, %v9490
    %v9520 = vmax.f32 %v9400, %v9492
    %v9521 = vmax.f32 %v9401, %v9493
    %v9522 = vmax.f32 %v9404, %v9494
    %v9523 = vmax.f32 %v9405, %v9495
    %v9524 = vmax.f32 %v9408, %v9496
    %v9525 = vmax.f32 %v9409, %v9497
    %v9526 = vmax.f32 %v9412, %v9498
    %v9527 = vmax.f32 %v9413, %v9499
    %v9528 = vmax.f32 %v9416, %v9500
    %v9529 = vmax.f32 %v9417, %v9501
    %v9530 = vmax.f32 %v9420, %v9502
    %v9531 = vmax.f32 %v9421, %v9503
    %v9532 = vmax.f32 %v9424, %v9504
    %v9533 = vmax.f32 %v9425, %v9505
    %v9534 = vpack.c.bf16 %v9522, %v9520
    %v9535 = vpack.c.bf16 %v9523, %v9521
    %v9536 = vpack.c.bf16 %v9526, %v9524
    %v9537 = vpack.c.bf16 %v9527, %v9525
    %v9538 = vpack.c.bf16 %v9530, %v9528
    %v9539 = vpack.c.bf16 %v9531, %v9529
    %v9540 = vpack.c.bf16 %v9532, %v9532
    %v9541 = vpack.c.bf16 %v9533, %v9533
    %v9543 = vshrl.u32 %v9534, 16
    %v9545 = vshll.u32 %v9534, 16
    %v9547 = vrot.slane %v9545, 1
    %v9548 = vor.u32 %v9543, %v9547
    %v9550 = vshll.u32 %v9536, 16
    %v9552 = vrot.slane %v9550, 1
    %v9553 = vsel %vm218, %v9548, %v9552
    %v9555 = vshrl.u32 %v9535, 16
    %v9557 = vshll.u32 %v9535, 16
    %v9559 = vrot.slane %v9557, 1
    %v9560 = vor.u32 %v9555, %v9559
    %v9562 = vshll.u32 %v9537, 16
    %v9564 = vrot.slane %v9562, 1
    %v9565 = vsel %vm218, %v9560, %v9564
    %v9566 = vshrl.u32 %v9536, 16
    %v9568 = vor.u32 %v9566, %v9552
    %v9570 = vshll.u32 %v9538, 16
    %v9572 = vrot.slane %v9570, 1
    %v9573 = vsel %vm218, %v9568, %v9572
    %v9574 = vshrl.u32 %v9537, 16
    %v9576 = vor.u32 %v9574, %v9564
    %v9578 = vshll.u32 %v9539, 16
    %v9580 = vrot.slane %v9578, 1
    %v9581 = vsel %vm218, %v9576, %v9580
    %v9582 = vshrl.u32 %v9538, 16
    %v9584 = vor.u32 %v9582, %v9572
    %v9586 = vshll.u32 %v9540, 16
    %v9588 = vrot.slane %v9586, 1
    %v9589 = vsel %vm218, %v9584, %v9588
    %v9590 = vshrl.u32 %v9539, 16
    %v9592 = vor.u32 %v9590, %v9580
    %v9594 = vshll.u32 %v9541, 16
    %v9596 = vrot.slane %v9594, 1
    %v9597 = vsel %vm218, %v9592, %v9596
    %v9598 = vshrl.u32 %v9540, 16
    %v9600 = vor.u32 %v9598, %v9588
    %v9601 = vshrl.u32 %v9541, 16
    %v9603 = vor.u32 %v9601, %v9596
    %v9606 = vsel %vm236, %v9600, 0
    %v9607 = vsel %vm236, %v9603, 0
    %vm9616 = vcmask 1046528
    %v9617 = vrot.slane %v9534, 1
    %v9618 = vrot.slane %v9536, 1
    %v9619 = vsel %vm9616, %v9617, %v9618
    %v9620 = vrot.slane %v9535, 1
    %v9621 = vrot.slane %v9537, 1
    %v9622 = vsel %vm9616, %v9620, %v9621
    %v9623 = vrot.slane %v9538, 1
    %v9624 = vsel %vm9616, %v9618, %v9623
    %v9625 = vrot.slane %v9539, 1
    %v9626 = vsel %vm9616, %v9621, %v9625
    %v9627 = vrot.slane %v9540, 1
    %v9628 = vsel %vm9616, %v9623, %v9627
    %v9629 = vrot.slane %v9541, 1
    %v9630 = vsel %vm9616, %v9625, %v9629
    %vm9631 = vcmask 1042432
    %v9634 = vsel %vm9631, %v9627, 0
    %v9636 = vsel %vm9631, %v9629, 0
    %vm9637 = vsmask.f32 6400
    %v9638 = vrot.slane %v9543, 1
    %v9639 = vrot.slane %v9545, 2
    %v9640 = vor.u32 %v9638, %v9639
    %v9641 = vrot.slane %v9566, 1
    %v9642 = vrot.slane %v9550, 2
    %v9643 = vor.u32 %v9641, %v9642
    %v9644 = vsel %vm9637, %v9640, %v9643
    %v9645 = vrot.slane %v9555, 1
    %v9646 = vrot.slane %v9557, 2
    %v9647 = vor.u32 %v9645, %v9646
    %v9648 = vrot.slane %v9574, 1
    %v9649 = vrot.slane %v9562, 2
    %v9650 = vor.u32 %v9648, %v9649
    %v9651 = vsel %vm9637, %v9647, %v9650
    %v9652 = vrot.slane %v9582, 1
    %v9653 = vrot.slane %v9570, 2
    %v9654 = vor.u32 %v9652, %v9653
    %v9655 = vsel %vm9637, %v9643, %v9654
    %v9656 = vrot.slane %v9590, 1
    %v9657 = vrot.slane %v9578, 2
    %v9658 = vor.u32 %v9656, %v9657
    %v9659 = vsel %vm9637, %v9650, %v9658
    %v9660 = vrot.slane %v9598, 1
    %v9661 = vrot.slane %v9586, 2
    %v9662 = vor.u32 %v9660, %v9661
    %v9663 = vsel %vm9637, %v9654, %v9662
    %v9664 = vrot.slane %v9601, 1
    %v9665 = vrot.slane %v9594, 2
    %v9666 = vor.u32 %v9664, %v9665
    %v9667 = vsel %vm9637, %v9658, %v9666
    %vm9670 = vcmask 1042432
    %vm9671 = vsmask.f32 2304
    %vm9672 = vmand %vm9670, %vm9671
    %v9673 = vsel %vm9672, %v9662, 0
    %v9674 = vsel %vm9672, %v9666, 0
    %vm9675 = vcmask 1045504
    %v9676 = vrot.slane %v9534, 2
    %v9677 = vrot.slane %v9536, 2
    %v9678 = vsel %vm9675, %v9676, %v9677
    %v9679 = vrot.slane %v9535, 2
    %v9680 = vrot.slane %v9537, 2
    %v9681 = vsel %vm9675, %v9679, %v9680
    %v9682 = vrot.slane %v9538, 2
    %v9683 = vsel %vm9675, %v9677, %v9682
    %v9684 = vrot.slane %v9539, 2
    %v9685 = vsel %vm9675, %v9680, %v9684
    %v9686 = vrot.slane %v9540, 2
    %v9687 = vsel %vm9675, %v9682, %v9686
    %v9688 = vrot.slane %v9541, 2
    %v9689 = vsel %vm9675, %v9684, %v9688
    %vm9693 = vcmask 1041408
    %v9695 = vsel %vm9693, %v9686, 0
    %v9698 = vsel %vm9693, %v9688, 0
    %vm9699 = vsmask.f32 5376
    %v9700 = vrot.slane %v9543, 2
    %v9701 = vrot.slane %v9545, 3
    %v9702 = vor.u32 %v9700, %v9701
    %v9703 = vrot.slane %v9566, 2
    %v9704 = vrot.slane %v9550, 3
    %v9705 = vor.u32 %v9703, %v9704
    %v9706 = vsel %vm9699, %v9702, %v9705
    %v9707 = vrot.slane %v9555, 2
    %v9708 = vrot.slane %v9557, 3
    %v9709 = vor.u32 %v9707, %v9708
    %v9710 = vrot.slane %v9574, 2
    %v9711 = vrot.slane %v9562, 3
    %v9712 = vor.u32 %v9710, %v9711
    %v9713 = vsel %vm9699, %v9709, %v9712
    %v9714 = vrot.slane %v9582, 2
    %v9715 = vrot.slane %v9570, 3
    %v9716 = vor.u32 %v9714, %v9715
    %v9717 = vsel %vm9699, %v9705, %v9716
    %v9718 = vrot.slane %v9590, 2
    %v9719 = vrot.slane %v9578, 3
    %v9720 = vor.u32 %v9718, %v9719
    %v9721 = vsel %vm9699, %v9712, %v9720
    %v9722 = vrot.slane %v9598, 2
    %v9723 = vrot.slane %v9586, 3
    %v9724 = vor.u32 %v9722, %v9723
    %v9725 = vsel %vm9699, %v9716, %v9724
    %v9726 = vrot.slane %v9601, 2
    %v9727 = vrot.slane %v9594, 3
    %v9728 = vor.u32 %v9726, %v9727
    %v9729 = vsel %vm9699, %v9720, %v9728
    %vm9732 = vcmask 1041408
    %vm9733 = vsmask.f32 1280
    %vm9734 = vmand %vm9732, %vm9733
    %v9735 = vsel %vm9734, %v9724, 0
    %v9736 = vsel %vm9734, %v9728, 0
    %vm9737 = vcmask 1044480
    %v9738 = vrot.slane %v9534, 3
    %v9739 = vrot.slane %v9536, 3
    %v9740 = vsel %vm9737, %v9738, %v9739
    %v9741 = vrot.slane %v9535, 3
    %v9742 = vrot.slane %v9537, 3
    %v9743 = vsel %vm9737, %v9741, %v9742
    %v9744 = vrot.slane %v9538, 3
    %v9745 = vsel %vm9737, %v9739, %v9744
    %v9746 = vrot.slane %v9539, 3
    %v9747 = vsel %vm9737, %v9742, %v9746
    %v9748 = vrot.slane %v9540, 3
    %v9749 = vsel %vm9737, %v9744, %v9748
    %v9750 = vrot.slane %v9541, 3
    %v9751 = vsel %vm9737, %v9746, %v9750
    %vm9752 = vcmask 1040384
    %v9754 = vsel %vm9752, %v9748, 0
    %v9756 = vsel %vm9752, %v9750, 0
    %9759 = vrot.lane.b32.xlu0 %v9553, 96
    %v9760 = vpop.permute.xlu0 %9759
    %9761 = vrot.lane.b32.xlu0 %v9565, 96
    %v9762 = vpop.permute.xlu0 %9761
    %9763 = vrot.lane.b32.xlu0 %v9573, 96
    %v9764 = vpop.permute.xlu0 %9763
    %9765 = vrot.lane.b32.xlu0 %v9581, 96
    %v9766 = vpop.permute.xlu0 %9765
    %9767 = vrot.lane.b32.xlu0 %v9589, 96
    %v9768 = vpop.permute.xlu0 %9767
    %9769 = vrot.lane.b32.xlu0 %v9597, 96
    %v9770 = vpop.permute.xlu0 %9769
    %9771 = vrot.lane.b32.xlu0 %v9606, 96
    %v9772 = vpop.permute.xlu0 %9771
    %9773 = vrot.lane.b32.xlu0 %v9607, 96
    %v9774 = vpop.permute.xlu0 %9773
    %vm9775 = vcmask 785408
    %v9776 = vsel %vm9775, %v9760, %v9762
    %v9777 = vsel %vm9775, %v9764, %v9766
    %v9778 = vsel %vm9775, %v9768, %v9770
    %v9779 = vsel %vm9775, %v9772, %v9774
    %9786 = vrot.lane.b32.xlu0 %v9619, 64
    %v9787 = vpop.permute.xlu0 %9786
    %9788 = vrot.lane.b32.xlu0 %v9622, 64
    %v9789 = vpop.permute.xlu0 %9788
    %9790 = vrot.lane.b32.xlu0 %v9624, 64
    %v9791 = vpop.permute.xlu0 %9790
    %9792 = vrot.lane.b32.xlu0 %v9626, 64
    %v9793 = vpop.permute.xlu0 %9792
    %9794 = vrot.lane.b32.xlu0 %v9628, 64
    %v9795 = vpop.permute.xlu0 %9794
    %9796 = vrot.lane.b32.xlu0 %v9630, 64
    %v9797 = vpop.permute.xlu0 %9796
    %9798 = vrot.lane.b32.xlu0 %v9634, 64
    %v9799 = vpop.permute.xlu0 %9798
    %9800 = vrot.lane.b32.xlu0 %v9636, 64
    %v9801 = vpop.permute.xlu0 %9800
    %v9802 = vsel %vm3770, %v9787, %v9789
    %v9803 = vsel %vm3770, %v9791, %v9793
    %v9804 = vsel %vm3770, %v9795, %v9797
    %v9805 = vsel %vm3770, %v9799, %v9801
    %9812 = vrot.lane.b32.xlu0 %v9644, 32
    %v9813 = vpop.permute.xlu0 %9812
    %9814 = vrot.lane.b32.xlu0 %v9651, 32
    %v9815 = vpop.permute.xlu0 %9814
    %9816 = vrot.lane.b32.xlu0 %v9655, 32
    %v9817 = vpop.permute.xlu0 %9816
    %9818 = vrot.lane.b32.xlu0 %v9659, 32
    %v9819 = vpop.permute.xlu0 %9818
    %9820 = vrot.lane.b32.xlu0 %v9663, 32
    %v9821 = vpop.permute.xlu0 %9820
    %9822 = vrot.lane.b32.xlu0 %v9667, 32
    %v9823 = vpop.permute.xlu0 %9822
    %9824 = vrot.lane.b32.xlu0 %v9673, 32
    %v9825 = vpop.permute.xlu0 %9824
    %9826 = vrot.lane.b32.xlu0 %v9674, 32
    %v9827 = vpop.permute.xlu0 %9826
    %vm9828 = vcmask 261120
    %v9829 = vsel %vm9828, %v9813, %v9815
    %v9830 = vsel %vm9828, %v9817, %v9819
    %v9831 = vsel %vm9828, %v9821, %v9823
    %v9832 = vsel %vm9828, %v9825, %v9827
    %9839 = vrot.lane.b32.xlu0 %v9706, 96
    %v9840 = vpop.permute.xlu0 %9839
    %9841 = vrot.lane.b32.xlu0 %v9713, 96
    %v9842 = vpop.permute.xlu0 %9841
    %9843 = vrot.lane.b32.xlu0 %v9717, 96
    %v9844 = vpop.permute.xlu0 %9843
    %9845 = vrot.lane.b32.xlu0 %v9721, 96
    %v9846 = vpop.permute.xlu0 %9845
    %9847 = vrot.lane.b32.xlu0 %v9725, 96
    %v9848 = vpop.permute.xlu0 %9847
    %9849 = vrot.lane.b32.xlu0 %v9729, 96
    %v9850 = vpop.permute.xlu0 %9849
    %9851 = vrot.lane.b32.xlu0 %v9735, 96
    %v9852 = vpop.permute.xlu0 %9851
    %9853 = vrot.lane.b32.xlu0 %v9736, 96
    %v9854 = vpop.permute.xlu0 %9853
    %v9855 = vsel %vm9775, %v9840, %v9842
    %v9856 = vsel %vm9775, %v9844, %v9846
    %v9857 = vsel %vm9775, %v9848, %v9850
    %v9858 = vsel %vm9775, %v9852, %v9854
    %9865 = vrot.lane.b32.xlu0 %v9740, 64
    %v9866 = vpop.permute.xlu0 %9865
    %9867 = vrot.lane.b32.xlu0 %v9743, 64
    %v9868 = vpop.permute.xlu0 %9867
    %9869 = vrot.lane.b32.xlu0 %v9745, 64
    %v9870 = vpop.permute.xlu0 %9869
    %9871 = vrot.lane.b32.xlu0 %v9747, 64
    %v9872 = vpop.permute.xlu0 %9871
    %9873 = vrot.lane.b32.xlu0 %v9749, 64
    %v9874 = vpop.permute.xlu0 %9873
    %9875 = vrot.lane.b32.xlu0 %v9751, 64
    %v9876 = vpop.permute.xlu0 %9875
    %9877 = vrot.lane.b32.xlu0 %v9754, 64
    %v9878 = vpop.permute.xlu0 %9877
    %9879 = vrot.lane.b32.xlu0 %v9756, 64
    %v9880 = vpop.permute.xlu0 %9879
    %v9881 = vsel %vm3770, %v9866, %v9868
    %v9882 = vsel %vm3770, %v9870, %v9872
    %v9883 = vsel %vm3770, %v9874, %v9876
    %v9884 = vsel %vm3770, %v9878, %v9880
    %v9890 = vsel %vm303, %v9535, %v9760
    %v9893 = vsel %vm303, %v9537, %v9764
    %v9896 = vsel %vm303, %v9539, %v9768
    %v9899 = vsel %vm303, %v9541, %v9772
    %v9903 = vsel %vm3388, %v9762, %v9787
    %v9907 = vsel %vm3388, %v9766, %v9791
    %v9911 = vsel %vm3388, %v9770, %v9795
    %v9915 = vsel %vm3388, %v9774, %v9799
    %v9919 = vsel %vm9491, %v9789, %v9813
    %v9923 = vsel %vm9491, %v9793, %v9817
    %v9927 = vsel %vm9491, %v9797, %v9821
    %v9931 = vsel %vm9491, %v9801, %v9825
    %v9935 = vsel %vm303, %v9681, %v9840
    %v9939 = vsel %vm303, %v9685, %v9844
    %v9943 = vsel %vm303, %v9689, %v9848
    %v9946 = vsel %vm303, %v9698, %v9852
    %v9950 = vsel %vm3388, %v9842, %v9866
    %v9954 = vsel %vm3388, %v9846, %v9870
    %v9958 = vsel %vm3388, %v9850, %v9874
    %v9962 = vsel %vm3388, %v9854, %v9878
    %v9964 = vld [vmem:[%s7] sm:$0xf]
    %v9965 = vld [vmem:[%s7 + $0x4] sm:$0xf]
    %v9966 = vld [vmem:[%s7 + $0x8] sm:$0xf]
    %v9967 = vld [vmem:[%s7 + $0xc] sm:$0xf]
    %v9968 = vld [vmem:[%s7 + $0x10] sm:$0xf]
    %v9969 = vld [vmem:[%s7 + $0x14] sm:$0xf]
    %v9970 = vld [vmem:[%s7 + $0x18] sm:$0xf]
    %v9971 = vld [vmem:[%s7 + $0x1c] sm:$0xf]
    %v9972 = vld [vmem:[%s7 + $0x20] sm:$0xf]
    %v9973 = vld [vmem:[%s7 + $0x24] sm:$0xf]
    %v9974 = vld [vmem:[%s7 + $0x28] sm:$0xf]
    %v9975 = vld [vmem:[%s7 + $0x2c] sm:$0xf]
    %v9976 = vld [vmem:[%s7 + $0x30] sm:$0xf]
    %v9977 = vld [vmem:[%s7 + $0x34] sm:$0xf]
    %v9978 = vld [vmem:[%s7 + $0x38] sm:$0xf]
    %v9979 = vld [vmem:[%s7 + $0x3c] sm:$0xf]
    %v9980 = vld [vmem:[%s7 + $0x40] sm:$0xf]
    %v9981 = vld [vmem:[%s7 + $0x44] sm:$0xf]
    %v9982 = vld [vmem:[%s7 + $0x48] sm:$0xf]
    %v9983 = vld [vmem:[%s7 + $0x4c] sm:$0xf]
    %v9984 = vld [vmem:[%s7 + $0x50] sm:$0xf]
    %v9985 = vld [vmem:[%s7 + $0x54] sm:$0xf]
    %v9986 = vld [vmem:[%s7 + $0x58] sm:$0xf]
    %v9987 = vld [vmem:[%s7 + $0x5c] sm:$0xf]
    %v9988 = vld [vmem:[%s7 + $0x60] sm:$0xf]
    %v9989 = vld [vmem:[%s7 + $0x64] sm:$0xf]
    %v9990 = vld [vmem:[%s7 + $0x68] sm:$0xf]
    %v9991 = vld [vmem:[%s7 + $0x6c] sm:$0xf]
    %v9992 = vld [vmem:[%s7 + $0x70] sm:$0xf]
    %v9993 = vld [vmem:[%s7 + $0x74] sm:$0xf]
    %v9994 = vld [vmem:[%s7 + $0x78] sm:$0xf]
    %v9995 = vld [vmem:[%s7 + $0x7c] sm:$0xf]
    %v9996 = vld [vmem:[%s7 + $0x80] sm:$0xf]
    %v9997 = vld [vmem:[%s7 + $0x84] sm:$0xf]
    %v9998 = vld [vmem:[%s7 + $0x88] sm:$0xf]
    %v9999 = vld [vmem:[%s7 + $0x8c] sm:$0xf]
    %v10000 = vld [vmem:[%s7 + $0x90] sm:$0xf]
    %v10001 = vld [vmem:[%s7 + $0x94] sm:$0xf]
    %v10002 = vld [vmem:[%s7 + $0x98] sm:$0xf]
    %v10003 = vld [vmem:[%s7 + $0x9c] sm:$0xf]
    %v10004 = vld [vmem:[%s7 + $0xa0] sm:$0xf]
    %v10005 = vld [vmem:[%s7 + $0xa4] sm:$0xf]
    %v10006 = vld [vmem:[%s7 + $0xa8] sm:$0xf]
    %v10007 = vld [vmem:[%s7 + $0xac] sm:$0xf]
    %v10008 = vld [vmem:[%s7 + $0xb0] sm:$0xf]
    %v10009 = vld [vmem:[%s7 + $0xb4] sm:$0xf]
    %v10010 = vld [vmem:[%s7 + $0xb8] sm:$0xf]
    %v10011 = vld [vmem:[%s7 + $0xbc] sm:$0xf]
    %v10012 = vld [vmem:[%s7 + $0xc0] sm:$0xf]
    %v10013 = vld [vmem:[%s7 + $0xc4] sm:$0xf]
    %v10014 = vld [vmem:[%s7 + $0xc8] sm:$0xf]
    %v10015 = vld [vmem:[%s7 + $0xcc] sm:$0xf]
    %v10016 = vld [vmem:[%s7 + $0xd0] sm:$0xf]
    %v10017 = vld [vmem:[%s7 + $0xd4] sm:$0xf]
    %v10018 = vld [vmem:[%s7 + $0xd8] sm:$0xf]
    %v10019 = vld [vmem:[%s7 + $0xdc] sm:$0xf]
    %v10020 = vld [vmem:[%s7 + $0xe0] sm:$0xf]
    %v10021 = vld [vmem:[%s7 + $0xe4] sm:$0xf]
    %v10022 = vld [vmem:[%s7 + $0xe8] sm:$0xf]
    %v10023 = vld [vmem:[%s7 + $0xec] sm:$0xf]
    %v10024 = vld [vmem:[%s7 + $0xf0] sm:$0xf]
    %v10025 = vld [vmem:[%s7 + $0xf4] sm:$0xf]
    %v10026 = vld [vmem:[%s7 + $0xf8] sm:$0xf]
    %v10027 = vld [vmem:[%s7 + $0xfc] sm:$0xf]
    %v10028 = vld [vmem:[%s7 + $0x100] sm:$0xf]
    %v10029 = vld [vmem:[%s7 + $0x104] sm:$0xf]
    %v10030 = vld [vmem:[%s7 + $0x108] sm:$0xf]
    %v10031 = vld [vmem:[%s7 + $0x10c] sm:$0xf]
    %v10032 = vld [vmem:[%s7 + $0x110] sm:$0xf]
    %v10033 = vld [vmem:[%s7 + $0x114] sm:$0xf]
    %v10034 = vld [vmem:[%s7 + $0x118] sm:$0xf]
    %v10035 = vld [vmem:[%s7 + $0x11c] sm:$0xf]
    %v10036 = vld [vmem:[%s7 + $0x120] sm:$0xf]
    %v10037 = vld [vmem:[%s7 + $0x124] sm:$0xf]
    %v10038 = vld [vmem:[%s7 + $0x128] sm:$0xf]
    %v10039 = vld [vmem:[%s7 + $0x12c] sm:$0xf]
    %v10040 = vld [vmem:[%s7 + $0x130] sm:$0xf]
    %v10041 = vld [vmem:[%s7 + $0x134] sm:$0xf]
    %v10042 = vld [vmem:[%s7 + $0x138] sm:$0xf]
    %v10043 = vld [vmem:[%s7 + $0x13c] sm:$0xf]
    %v10044 = vld [vmem:[%s7 + $0x140] sm:$0xf]
    %v10045 = vld [vmem:[%s7 + $0x144] sm:$0xf]
    %v10046 = vld [vmem:[%s7 + $0x148] sm:$0xf]
    %v10047 = vld [vmem:[%s7 + $0x14c] sm:$0xf]
    %v10048 = vld [vmem:[%s7 + $0x150] sm:$0xf]
    %v10049 = vld [vmem:[%s7 + $0x154] sm:$0xf]
    %v10050 = vld [vmem:[%s7 + $0x158] sm:$0xf]
    %v10051 = vld [vmem:[%s7 + $0x15c] sm:$0xf]
    %v10052 = vld [vmem:[%s7 + $0x160] sm:$0xf]
    %v10053 = vld [vmem:[%s7 + $0x164] sm:$0xf]
    %v10054 = vld [vmem:[%s7 + $0x168] sm:$0xf]
    %v10055 = vld [vmem:[%s7 + $0x16c] sm:$0xf]
    %v10056 = vld [vmem:[%s7 + $0x170] sm:$0xf]
    %v10057 = vld [vmem:[%s7 + $0x174] sm:$0xf]
    %v10058 = vld [vmem:[%s7 + $0x178] sm:$0xf]
    %v10059 = vld [vmem:[%s7 + $0x17c] sm:$0xf]
    %v10060 = vld [vmem:[%s7 + $0x180] sm:$0xf]
    %v10061 = vld [vmem:[%s7 + $0x184] sm:$0xf]
    %v10062 = vld [vmem:[%s7 + $0x188] sm:$0xf]
    %v10063 = vld [vmem:[%s7 + $0x18c] sm:$0xf]
    %v10064 = vld [vmem:[%s7 + $0x190] sm:$0xf]
    %v10065 = vld [vmem:[%s7 + $0x194] sm:$0xf]
    %v10066 = vld [vmem:[%s7 + $0x198] sm:$0xf]
    %v10067 = vld [vmem:[%s7 + $0x19c] sm:$0xf]
    %v10068 = vld [vmem:[%s7 + $0x1a0] sm:$0xf]
    %v10069 = vld [vmem:[%s7 + $0x1a4] sm:$0xf]
    %v10070 = vld [vmem:[%s7 + $0x1a8] sm:$0xf]
    %v10071 = vld [vmem:[%s7 + $0x1ac] sm:$0xf]
    %v10072 = vld [vmem:[%s7 + $0x1b0] sm:$0xf]
    %v10073 = vld [vmem:[%s7 + $0x1b4] sm:$0xf]
    %v10074 = vld [vmem:[%s7 + $0x1b8] sm:$0xf]
    %v10075 = vld [vmem:[%s7 + $0x1bc] sm:$0xf]
    %v10076 = vld [vmem:[%s7 + $0x1c0] sm:$0xf]
    %v10077 = vld [vmem:[%s7 + $0x1c4] sm:$0xf]
    %v10078 = vld [vmem:[%s7 + $0x1c8] sm:$0xf]
    %v10079 = vld [vmem:[%s7 + $0x1cc] sm:$0xf]
    %v10080 = vld [vmem:[%s7 + $0x1d0] sm:$0xf]
    %v10081 = vld [vmem:[%s7 + $0x1d4] sm:$0xf]
    %v10082 = vld [vmem:[%s7 + $0x1d8] sm:$0xf]
    %v10083 = vld [vmem:[%s7 + $0x1dc] sm:$0xf]
    %v10084 = vld [vmem:[%s7 + $0x1e0] sm:$0xf]
    %v10085 = vld [vmem:[%s7 + $0x1e4] sm:$0xf]
    %v10086 = vld [vmem:[%s7 + $0x1e8] sm:$0xf]
    %v10087 = vld [vmem:[%s7 + $0x1ec] sm:$0xf]
    %v10088 = vld [vmem:[%s7 + $0x1f0] sm:$0xf]
    %v10089 = vld [vmem:[%s7 + $0x1f4] sm:$0xf]
    %v10090 = vld [vmem:[%s7 + $0x1f8] sm:$0xf]
    %v10091 = vld [vmem:[%s7 + $0x1fc] sm:$0xf]
    %v10092 = vld [vmem:[%s7 + $0x200] sm:$0xf]
    %v10093 = vld [vmem:[%s7 + $0x204] sm:$0xf]
    %v10094 = vld [vmem:[%s7 + $0x208] sm:$0xf]
    %v10095 = vld [vmem:[%s7 + $0x20c] sm:$0xf]
    %v10096 = vld [vmem:[%s7 + $0x210] sm:$0xf]
    %v10097 = vld [vmem:[%s7 + $0x214] sm:$0xf]
    %v10098 = vld [vmem:[%s7 + $0x218] sm:$0xf]
    %v10099 = vld [vmem:[%s7 + $0x21c] sm:$0xf]
    %v10100 = vld [vmem:[%s7 + $0x220] sm:$0xf]
    %v10101 = vld [vmem:[%s7 + $0x224] sm:$0xf]
    %v10102 = vld [vmem:[%s7 + $0x228] sm:$0xf]
    %v10103 = vld [vmem:[%s7 + $0x22c] sm:$0xf]
    %v10104 = vld [vmem:[%s7 + $0x230] sm:$0xf]
    %v10105 = vld [vmem:[%s7 + $0x234] sm:$0xf]
    %v10106 = vld [vmem:[%s7 + $0x238] sm:$0xf]
    %v10107 = vld [vmem:[%s7 + $0x23c] sm:$0xf]
    %v10108 = vld [vmem:[%s7 + $0x240] sm:$0xf]
    %v10109 = vld [vmem:[%s7 + $0x244] sm:$0xf]
    %v10110 = vld [vmem:[%s7 + $0x248] sm:$0xf]
    %v10111 = vld [vmem:[%s7 + $0x24c] sm:$0xf]
    %v10112 = vld [vmem:[%s7 + $0x250] sm:$0xf]
    %v10113 = vld [vmem:[%s7 + $0x254] sm:$0xf]
    %v10114 = vld [vmem:[%s7 + $0x258] sm:$0xf]
    %v10115 = vld [vmem:[%s7 + $0x25c] sm:$0xf]
    %v10116 = vld [vmem:[%s7 + $0x260] sm:$0xf]
    %v10117 = vld [vmem:[%s7 + $0x264] sm:$0xf]
    %v10118 = vld [vmem:[%s7 + $0x268] sm:$0xf]
    %v10119 = vld [vmem:[%s7 + $0x26c] sm:$0xf]
    %v10120 = vld [vmem:[%s7 + $0x270] sm:$0xf]
    %v10121 = vld [vmem:[%s7 + $0x274] sm:$0xf]
    %v10122 = vld [vmem:[%s7 + $0x278] sm:$0xf]
    %v10123 = vld [vmem:[%s7 + $0x27c] sm:$0xf]
    %v10124 = vld [vmem:[%s7 + $0x280] sm:$0xf]
    %v10125 = vld [vmem:[%s7 + $0x284] sm:$0xf]
    %v10126 = vld [vmem:[%s7 + $0x288] sm:$0xf]
    %v10127 = vld [vmem:[%s7 + $0x28c] sm:$0xf]
    %v10128 = vld [vmem:[%s7 + $0x290] sm:$0xf]
    %v10129 = vld [vmem:[%s7 + $0x294] sm:$0xf]
    %v10130 = vld [vmem:[%s7 + $0x298] sm:$0xf]
    %v10131 = vld [vmem:[%s7 + $0x29c] sm:$0xf]
    %v10132 = vld [vmem:[%s7 + $0x2a0] sm:$0xf]
    %v10133 = vld [vmem:[%s7 + $0x2a4] sm:$0xf]
    %v10134 = vld [vmem:[%s7 + $0x2a8] sm:$0xf]
    %v10135 = vld [vmem:[%s7 + $0x2ac] sm:$0xf]
    %v10136 = vld [vmem:[%s7 + $0x2b0] sm:$0xf]
    %v10137 = vld [vmem:[%s7 + $0x2b4] sm:$0xf]
    %v10138 = vld [vmem:[%s7 + $0x2b8] sm:$0xf]
    %v10139 = vld [vmem:[%s7 + $0x2bc] sm:$0xf]
    %v10140 = vld [vmem:[%s7 + $0x2c0] sm:$0xf]
    %v10141 = vld [vmem:[%s7 + $0x2c4] sm:$0xf]
    %v10142 = vld [vmem:[%s7 + $0x2c8] sm:$0xf]
    %v10143 = vld [vmem:[%s7 + $0x2cc] sm:$0xf]
    %v10144 = vld [vmem:[%s7 + $0x2d0] sm:$0xf]
    %v10145 = vld [vmem:[%s7 + $0x2d4] sm:$0xf]
    %v10146 = vld [vmem:[%s7 + $0x2d8] sm:$0xf]
    %v10147 = vld [vmem:[%s7 + $0x2dc] sm:$0xf]
    %v10148 = vld [vmem:[%s7 + $0x2e0] sm:$0xf]
    %v10149 = vld [vmem:[%s7 + $0x2e4] sm:$0xf]
    %v10150 = vld [vmem:[%s7 + $0x2e8] sm:$0xf]
    %v10151 = vld [vmem:[%s7 + $0x2ec] sm:$0xf]
    %v10152 = vld [vmem:[%s7 + $0x2f0] sm:$0xf]
    %v10153 = vld [vmem:[%s7 + $0x2f4] sm:$0xf]
    %v10154 = vld [vmem:[%s7 + $0x2f8] sm:$0xf]
    %v10155 = vld [vmem:[%s7 + $0x2fc] sm:$0xf]
    %v10156 = vld [vmem:[%s7 + $0x300] sm:$0xf]
    %v10157 = vld [vmem:[%s7 + $0x304] sm:$0xf]
    %v10158 = vld [vmem:[%s7 + $0x308] sm:$0xf]
    %v10159 = vld [vmem:[%s7 + $0x30c] sm:$0xf]
    %v10160 = vld [vmem:[#allocation12] sm:$0x1]
    %v10162 = vlaneseq
    %v10163 = vshrl.u32 %v10162, 7
    %v10164 = vsub.s32 0, %v10163
    %v10165 = vrot.slane %v10160, %v10164
    %v10363 = vunpack.c.l.b16 %v9964
    %v10364 = vunpack.c.l.b16 %v9965
    %v10365 = vunpack.c.l.b16 %v9966
    %v10366 = vunpack.c.l.b16 %v9967
    %v10367 = vunpack.c.l.b16 %v9968
    %v10368 = vunpack.c.l.b16 %v9969
    %v10369 = vunpack.c.l.b16 %v9970
    %v10370 = vunpack.c.l.b16 %v9971
    %v10371 = vunpack.c.l.b16 %v9972
    %v10372 = vunpack.c.l.b16 %v9973
    %v10373 = vunpack.c.l.b16 %v9974
    %v10374 = vunpack.c.l.b16 %v9975
    %v10375 = vunpack.c.l.b16 %v9976
    %v10376 = vunpack.c.l.b16 %v9977
    %v10377 = vunpack.c.l.b16 %v9978
    %v10378 = vunpack.c.l.b16 %v9979
    %v10379 = vunpack.c.l.b16 %v9980
    %v10380 = vunpack.c.l.b16 %v9981
    %v10381 = vunpack.c.l.b16 %v9982
    %v10382 = vunpack.c.l.b16 %v9983
    %v10383 = vunpack.c.l.b16 %v9984
    %v10384 = vunpack.c.l.b16 %v9985
    %v10385 = vunpack.c.l.b16 %v9986
    %v10386 = vunpack.c.l.b16 %v9987
    %v10387 = vunpack.c.l.b16 %v9988
    %v10388 = vunpack.c.l.b16 %v9989
    %v10389 = vunpack.c.l.b16 %v9990
    %v10390 = vunpack.c.l.b16 %v9991
    %v10391 = vunpack.c.l.b16 %v9992
    %v10392 = vunpack.c.l.b16 %v9993
    %v10393 = vunpack.c.l.b16 %v9994
    %v10394 = vunpack.c.l.b16 %v9995
    %v10395 = vunpack.c.l.b16 %v9996
    %v10396 = vunpack.c.l.b16 %v9997
    %v10397 = vunpack.c.l.b16 %v9998
    %v10398 = vunpack.c.l.b16 %v9999
    %v10399 = vunpack.c.l.b16 %v10000
    %v10400 = vunpack.c.l.b16 %v10001
    %v10401 = vunpack.c.l.b16 %v10002
    %v10402 = vunpack.c.l.b16 %v10003
    %v10403 = vunpack.c.l.b16 %v10004
    %v10404 = vunpack.c.l.b16 %v10005
    %v10405 = vunpack.c.l.b16 %v10006
    %v10406 = vunpack.c.l.b16 %v10007
    %v10407 = vunpack.c.l.b16 %v10008
    %v10408 = vunpack.c.l.b16 %v10009
    %v10409 = vunpack.c.l.b16 %v10010
    %v10410 = vunpack.c.l.b16 %v10011
    %v10411 = vunpack.c.l.b16 %v10012
    %v10412 = vunpack.c.l.b16 %v10013
    %v10413 = vunpack.c.l.b16 %v10014
    %v10414 = vunpack.c.l.b16 %v10015
    %v10415 = vunpack.c.l.b16 %v10016
    %v10416 = vunpack.c.l.b16 %v10017
    %v10417 = vunpack.c.l.b16 %v10018
    %v10418 = vunpack.c.l.b16 %v10019
    %v10419 = vunpack.c.l.b16 %v10020
    %v10420 = vunpack.c.l.b16 %v10021
    %v10421 = vunpack.c.l.b16 %v10022
    %v10422 = vunpack.c.l.b16 %v10023
    %v10423 = vunpack.c.l.b16 %v10024
    %v10424 = vunpack.c.l.b16 %v10025
    %v10425 = vunpack.c.l.b16 %v10026
    %v10426 = vunpack.c.l.b16 %v10027
    %v10427 = vunpack.c.l.b16 %v10028
    %v10428 = vunpack.c.l.b16 %v10029
    %v10429 = vunpack.c.l.b16 %v10030
    %v10430 = vunpack.c.l.b16 %v10031
    %v10431 = vunpack.c.l.b16 %v10032
    %v10432 = vunpack.c.l.b16 %v10033
    %v10433 = vunpack.c.l.b16 %v10034
    %v10434 = vunpack.c.l.b16 %v10035
    %v10435 = vunpack.c.l.b16 %v10036
    %v10436 = vunpack.c.l.b16 %v10037
    %v10437 = vunpack.c.l.b16 %v10038
    %v10438 = vunpack.c.l.b16 %v10039
    %v10439 = vunpack.c.l.b16 %v10040
    %v10440 = vunpack.c.l.b16 %v10041
    %v10441 = vunpack.c.l.b16 %v10042
    %v10442 = vunpack.c.l.b16 %v10043
    %v10443 = vunpack.c.l.b16 %v10044
    %v10444 = vunpack.c.l.b16 %v10045
    %v10445 = vunpack.c.l.b16 %v10046
    %v10446 = vunpack.c.l.b16 %v10047
    %v10447 = vunpack.c.l.b16 %v10048
    %v10448 = vunpack.c.l.b16 %v10049
    %v10449 = vunpack.c.l.b16 %v10050
    %v10450 = vunpack.c.l.b16 %v10051
    %v10451 = vunpack.c.l.b16 %v10052
    %v10452 = vunpack.c.l.b16 %v10053
    %v10453 = vunpack.c.l.b16 %v10054
    %v10454 = vunpack.c.l.b16 %v10055
    %v10455 = vunpack.c.l.b16 %v10056
    %v10456 = vunpack.c.l.b16 %v10057
    %v10457 = vunpack.c.l.b16 %v10058
    %v10458 = vunpack.c.l.b16 %v10059
    %v10459 = vunpack.c.l.b16 %v10060
    %v10460 = vunpack.c.l.b16 %v10061
    %v10461 = vunpack.c.l.b16 %v10062
    %v10462 = vunpack.c.l.b16 %v10063
    %v10463 = vunpack.c.l.b16 %v10064
    %v10464 = vunpack.c.l.b16 %v10065
    %v10465 = vunpack.c.l.b16 %v10066
    %v10466 = vunpack.c.l.b16 %v10067
    %v10467 = vunpack.c.l.b16 %v10068
    %v10468 = vunpack.c.l.b16 %v10069
    %v10469 = vunpack.c.l.b16 %v10070
    %v10470 = vunpack.c.l.b16 %v10071
    %v10471 = vunpack.c.l.b16 %v10072
    %v10472 = vunpack.c.l.b16 %v10073
    %v10473 = vunpack.c.l.b16 %v10074
    %v10474 = vunpack.c.l.b16 %v10075
    %v10475 = vunpack.c.l.b16 %v10076
    %v10476 = vunpack.c.l.b16 %v10077
    %v10477 = vunpack.c.l.b16 %v10078
    %v10478 = vunpack.c.l.b16 %v10079
    %v10479 = vunpack.c.l.b16 %v10080
    %v10480 = vunpack.c.l.b16 %v10081
    %v10481 = vunpack.c.l.b16 %v10082
    %v10482 = vunpack.c.l.b16 %v10083
    %v10483 = vunpack.c.l.b16 %v10084
    %v10484 = vunpack.c.l.b16 %v10085
    %v10485 = vunpack.c.l.b16 %v10086
    %v10486 = vunpack.c.l.b16 %v10087
    %v10487 = vunpack.c.l.b16 %v10088
    %v10488 = vunpack.c.l.b16 %v10089
    %v10489 = vunpack.c.l.b16 %v10090
    %v10490 = vunpack.c.l.b16 %v10091
    %v10491 = vunpack.c.l.b16 %v10092
    %v10492 = vunpack.c.l.b16 %v10093
    %v10493 = vunpack.c.l.b16 %v10094
    %v10494 = vunpack.c.l.b16 %v10095
    %v10495 = vunpack.c.l.b16 %v10096
    %v10496 = vunpack.c.l.b16 %v10097
    %v10497 = vunpack.c.l.b16 %v10098
    %v10498 = vunpack.c.l.b16 %v10099
    %v10499 = vunpack.c.l.b16 %v10100
    %v10500 = vunpack.c.l.b16 %v10101
    %v10501 = vunpack.c.l.b16 %v10102
    %v10502 = vunpack.c.l.b16 %v10103
    %v10503 = vunpack.c.l.b16 %v10104
    %v10504 = vunpack.c.l.b16 %v10105
    %v10505 = vunpack.c.l.b16 %v10106
    %v10506 = vunpack.c.l.b16 %v10107
    %v10507 = vunpack.c.l.b16 %v10108
    %v10508 = vunpack.c.l.b16 %v10109
    %v10509 = vunpack.c.l.b16 %v10110
    %v10510 = vunpack.c.l.b16 %v10111
    %v10511 = vunpack.c.l.b16 %v10112
    %v10512 = vunpack.c.l.b16 %v10113
    %v10513 = vunpack.c.l.b16 %v10114
    %v10514 = vunpack.c.l.b16 %v10115
    %v10515 = vunpack.c.l.b16 %v10116
    %v10516 = vunpack.c.l.b16 %v10117
    %v10517 = vunpack.c.l.b16 %v10118
    %v10518 = vunpack.c.l.b16 %v10119
    %v10519 = vunpack.c.l.b16 %v10120
    %v10520 = vunpack.c.l.b16 %v10121
    %v10521 = vunpack.c.l.b16 %v10122
    %v10522 = vunpack.c.l.b16 %v10123
    %v10523 = vunpack.c.l.b16 %v10124
    %v10524 = vunpack.c.l.b16 %v10125
    %v10525 = vunpack.c.l.b16 %v10126
    %v10526 = vunpack.c.l.b16 %v10127
    %v10527 = vunpack.c.l.b16 %v10128
    %v10528 = vunpack.c.l.b16 %v10129
    %v10529 = vunpack.c.l.b16 %v10130
    %v10530 = vunpack.c.l.b16 %v10131
    %v10531 = vunpack.c.l.b16 %v10132
    %v10532 = vunpack.c.l.b16 %v10133
    %v10533 = vunpack.c.l.b16 %v10134
    %v10534 = vunpack.c.l.b16 %v10135
    %v10535 = vunpack.c.l.b16 %v10136
    %v10536 = vunpack.c.l.b16 %v10137
    %v10537 = vunpack.c.l.b16 %v10138
    %v10538 = vunpack.c.l.b16 %v10139
    %v10539 = vunpack.c.l.b16 %v10140
    %v10540 = vunpack.c.l.b16 %v10141
    %v10541 = vunpack.c.l.b16 %v10142
    %v10542 = vunpack.c.l.b16 %v10143
    %v10543 = vunpack.c.l.b16 %v10144
    %v10544 = vunpack.c.l.b16 %v10145
    %v10545 = vunpack.c.l.b16 %v10146
    %v10546 = vunpack.c.l.b16 %v10147
    %v10547 = vunpack.c.l.b16 %v10148
    %v10548 = vunpack.c.l.b16 %v10149
    %v10549 = vunpack.c.l.b16 %v10150
    %v10550 = vunpack.c.l.b16 %v10151
    %v10551 = vunpack.c.l.b16 %v10152
    %v10552 = vunpack.c.l.b16 %v10153
    %v10553 = vunpack.c.l.b16 %v10154
    %v10554 = vunpack.c.l.b16 %v10155
    %v10555 = vunpack.c.l.b16 %v10156
    %v10556 = vunpack.c.l.b16 %v10157
    %v10557 = vunpack.c.l.b16 %v10158
    %v10558 = vunpack.c.l.b16 %v10159
    %v10559 = vpack.c.b16 %v10364, %v10363
    %v10560 = vpack.c.b16 %v10366, %v10365
    %v10561 = vpack.c.b16 %v10368, %v10367
    %v10562 = vpack.c.b16 %v10370, %v10369
    %v10563 = vpack.c.b16 %v10372, %v10371
    %v10564 = vpack.c.b16 %v10374, %v10373
    %v10565 = vpack.c.b16 %v10376, %v10375
    %v10566 = vpack.c.b16 %v10378, %v10377
    %v10567 = vpack.c.b16 %v10380, %v10379
    %v10568 = vpack.c.b16 %v10382, %v10381
    %v10569 = vpack.c.b16 %v10384, %v10383
    %v10570 = vpack.c.b16 %v10386, %v10385
    %v10571 = vpack.c.b16 %v10388, %v10387
    %v10572 = vpack.c.b16 %v10390, %v10389
    %v10573 = vpack.c.b16 %v10392, %v10391
    %v10574 = vpack.c.b16 %v10394, %v10393
    %v10575 = vpack.c.b16 %v10396, %v10395
    %v10576 = vpack.c.b16 %v10398, %v10397
    %v10577 = vpack.c.b16 %v10400, %v10399
    %v10578 = vpack.c.b16 %v10402, %v10401
    %v10579 = vpack.c.b16 %v10404, %v10403
    %v10580 = vpack.c.b16 %v10406, %v10405
    %v10581 = vpack.c.b16 %v10408, %v10407
    %v10582 = vpack.c.b16 %v10410, %v10409
    %v10583 = vpack.c.b16 %v10412, %v10411
    %v10584 = vpack.c.b16 %v10414, %v10413
    %v10585 = vpack.c.b16 %v10416, %v10415
    %v10586 = vpack.c.b16 %v10418, %v10417
    %v10587 = vpack.c.b16 %v10420, %v10419
    %v10588 = vpack.c.b16 %v10422, %v10421
    %v10589 = vpack.c.b16 %v10424, %v10423
    %v10590 = vpack.c.b16 %v10426, %v10425
    %v10591 = vpack.c.b16 %v10428, %v10427
    %v10592 = vpack.c.b16 %v10430, %v10429
    %v10593 = vpack.c.b16 %v10432, %v10431
    %v10594 = vpack.c.b16 %v10434, %v10433
    %v10595 = vpack.c.b16 %v10436, %v10435
    %v10596 = vpack.c.b16 %v10438, %v10437
    %v10597 = vpack.c.b16 %v10440, %v10439
    %v10598 = vpack.c.b16 %v10442, %v10441
    %v10599 = vpack.c.b16 %v10444, %v10443
    %v10600 = vpack.c.b16 %v10446, %v10445
    %v10601 = vpack.c.b16 %v10448, %v10447
    %v10602 = vpack.c.b16 %v10450, %v10449
    %v10603 = vpack.c.b16 %v10452, %v10451
    %v10604 = vpack.c.b16 %v10454, %v10453
    %v10605 = vpack.c.b16 %v10456, %v10455
    %v10606 = vpack.c.b16 %v10458, %v10457
    %v10607 = vpack.c.b16 %v10460, %v10459
    %v10608 = vpack.c.b16 %v10462, %v10461
    %v10609 = vpack.c.b16 %v10464, %v10463
    %v10610 = vpack.c.b16 %v10466, %v10465
    %v10611 = vpack.c.b16 %v10468, %v10467
    %v10612 = vpack.c.b16 %v10470, %v10469
    %v10613 = vpack.c.b16 %v10472, %v10471
    %v10614 = vpack.c.b16 %v10474, %v10473
    %v10615 = vpack.c.b16 %v10476, %v10475
    %v10616 = vpack.c.b16 %v10478, %v10477
    %v10617 = vpack.c.b16 %v10480, %v10479
    %v10618 = vpack.c.b16 %v10482, %v10481
    %v10619 = vpack.c.b16 %v10484, %v10483
    %v10620 = vpack.c.b16 %v10486, %v10485
    %v10621 = vpack.c.b16 %v10488, %v10487
    %v10622 = vpack.c.b16 %v10490, %v10489
    %v10623 = vpack.c.b16 %v10492, %v10491
    %v10624 = vpack.c.b16 %v10494, %v10493
    %v10625 = vpack.c.b16 %v10496, %v10495
    %v10626 = vpack.c.b16 %v10498, %v10497
    %v10627 = vpack.c.b16 %v10500, %v10499
    %v10628 = vpack.c.b16 %v10502, %v10501
    %v10629 = vpack.c.b16 %v10504, %v10503
    %v10630 = vpack.c.b16 %v10506, %v10505
    %v10631 = vpack.c.b16 %v10508, %v10507
    %v10632 = vpack.c.b16 %v10510, %v10509
    %v10633 = vpack.c.b16 %v10512, %v10511
    %v10634 = vpack.c.b16 %v10514, %v10513
    %v10635 = vpack.c.b16 %v10516, %v10515
    %v10636 = vpack.c.b16 %v10518, %v10517
    %v10637 = vpack.c.b16 %v10520, %v10519
    %v10638 = vpack.c.b16 %v10522, %v10521
    %v10639 = vpack.c.b16 %v10524, %v10523
    %v10640 = vpack.c.b16 %v10526, %v10525
    %v10641 = vpack.c.b16 %v10528, %v10527
    %v10642 = vpack.c.b16 %v10530, %v10529
    %v10643 = vpack.c.b16 %v10532, %v10531
    %v10644 = vpack.c.b16 %v10534, %v10533
    %v10645 = vpack.c.b16 %v10536, %v10535
    %v10646 = vpack.c.b16 %v10538, %v10537
    %v10647 = vpack.c.b16 %v10540, %v10539
    %v10648 = vpack.c.b16 %v10542, %v10541
    %v10649 = vpack.c.b16 %v10544, %v10543
    %v10650 = vpack.c.b16 %v10546, %v10545
    %v10651 = vpack.c.b16 %v10548, %v10547
    %v10652 = vpack.c.b16 %v10550, %v10549
    %v10653 = vpack.c.b16 %v10552, %v10551
    %v10654 = vpack.c.b16 %v10554, %v10553
    %v10655 = vpack.c.b16 %v10556, %v10555
    %v10656 = vpack.c.b16 %v10558, %v10557
    %v10756 = vsel %vm9491, %v9868, 0
    %v10759 = vsel %vm9491, %v9872, 0
    %v10762 = vsel %vm9491, %v9876, 0
    %v10765 = vsel %vm9491, %v9880, 0
    %10767 = vmatprep.subr.bf16.mxu0 0
    %10768 = vmatpush1.bf16.msra.mxu0 %v10559
    %10769 = vmatprep.subr.bf16.mxu0 0
    %10770 = vmatpush1.bf16.msra.mxu0 %v10560
    %10771 = vmatprep.subr.bf16.mxu0 0
    %10772 = vmatpush1.bf16.msra.mxu0 %v10561
    %10773 = vmatprep.subr.bf16.mxu0 0
    %10774 = vmatpush1.bf16.msra.mxu0 %v10562
    %10775 = vmatprep.subr.bf16.mxu0 0
    %10776 = vmatpush1.bf16.msra.mxu0 %v10563
    %10777 = vmatprep.subr.bf16.mxu0 0
    %10778 = vmatpush1.bf16.msra.mxu0 %v10564
    %10779 = vmatprep.subr.bf16.mxu0 0
    %10780 = vmatpush1.bf16.msra.mxu0 %v10565
    %10781 = vmatprep.subr.bf16.mxu0 0
    %10782 = vmatpush1.bf16.msra.mxu0 %v10566
    %10783 = vmatprep.subr.bf16.mxu0 0
    %10784 = vmatpush1.bf16.msra.mxu0 %v10567
    %10785 = vmatprep.subr.bf16.mxu0 0
    %10786 = vmatpush1.bf16.msra.mxu0 %v10568
    %10787 = vmatprep.subr.bf16.mxu0 0
    %10788 = vmatpush1.bf16.msra.mxu0 %v10569
    %10789 = vmatprep.subr.bf16.mxu0 0
    %10790 = vmatpush1.bf16.msra.mxu0 %v10570
    %10791 = vmatprep.subr.bf16.mxu0 0
    %10792 = vmatpush1.bf16.msra.mxu0 %v10571
    %10793 = vmatprep.subr.bf16.mxu0 0
    %10794 = vmatpush1.bf16.msra.mxu0 %v10572
    %10795 = vmatprep.subr.bf16.mxu0 0
    %10796 = vmatpush1.bf16.msra.mxu0 %v10573
    %10797 = vmatprep.subr.bf16.mxu0 0
    %10798 = vmatpush1.bf16.msra.mxu0 %v10574
    %10799 = vmatprep.mubr.bf16.mxu0 %v9890
    %10800 = vmatmul.mubr.bf16.gmra.mrb[0].mxu0 %v9534
    %v10801 = vpop.f32.mrb[0].mxu0
    %v10802 = vadd.f32 %v10165, %v10801
    %v10803 = vpop.f32.mrb[0].mxu0
    %v10804 = vpop.f32.mrb[0].mxu0
    %v10805 = vadd.f32 %v10165, %v10804
    %v10806 = vpop.f32.mrb[0].mxu0
    %10807 = vmatprep.mubr.bf16.mxu0 %v9893
    %10808 = vmatmul.mubr.bf16.gmra.mrb[0].mxu0 %v9536
    %v10809 = vpop.f32.mrb[0].mxu0
    %v10810 = vadd.f32 %v10165, %v10809
    %v10811 = vpop.f32.mrb[0].mxu0
    %v10812 = vpop.f32.mrb[0].mxu0
    %v10813 = vadd.f32 %v10165, %v10812
    %v10814 = vpop.f32.mrb[0].mxu0
    %10815 = vmatprep.mubr.bf16.mxu0 %v9896
    %10816 = vmatmul.mubr.bf16.gmra.mrb[0].mxu0 %v9538
    %v10817 = vpop.f32.mrb[0].mxu0
    %v10818 = vadd.f32 %v10165, %v10817
    %v10819 = vpop.f32.mrb[0].mxu0
    %v10820 = vpop.f32.mrb[0].mxu0
    %v10821 = vadd.f32 %v10165, %v10820
    %v10822 = vpop.f32.mrb[0].mxu0
    %10823 = vmatprep.mubr.bf16.mxu0 %v9899
    %10824 = vmatmul.mubr.bf16.gmra.mrb[0].mxu0 %v9540
    %v10825 = vpop.f32.mrb[0].mxu0
    %v10826 = vadd.f32 %v10165, %v10825
    %v10827 = vpop.f32.mrb[0].mxu0
    %v10828 = vpop.f32.mrb[0].mxu0
    %v10829 = vpop.f32.mrb[0].mxu0
    %10830 = vdwg.mxu0
    %10831 = vmatprep.subr.bf16.mxu0 0
    %10832 = vmatpush1.bf16.msra.mxu0 %v10575
    %10833 = vmatprep.subr.bf16.mxu0 0
    %10834 = vmatpush1.bf16.msra.mxu0 %v10576
    %10835 = vmatprep.subr.bf16.mxu0 0
    %10836 = vmatpush1.bf16.msra.mxu0 %v10577
    %10837 = vmatprep.subr.bf16.mxu0 0
    %10838 = vmatpush1.bf16.msra.mxu0 %v10578
    %10839 = vmatprep.subr.bf16.mxu0 0
    %10840 = vmatpush1.bf16.msra.mxu0 %v10579
    %10841 = vmatprep.subr.bf16.mxu0 0
    %10842 = vmatpush1.bf16.msra.mxu0 %v10580
    %10843 = vmatprep.subr.bf16.mxu0 0
    %10844 = vmatpush1.bf16.msra.mxu0 %v10581
    %10845 = vmatprep.subr.bf16.mxu0 0
    %10846 = vmatpush1.bf16.msra.mxu0 %v10582
    %10847 = vmatprep.subr.bf16.mxu0 0
    %10848 = vmatpush1.bf16.msra.mxu0 %v10583
    %10849 = vmatprep.subr.bf16.mxu0 0
    %10850 = vmatpush1.bf16.msra.mxu0 %v10584
    %10851 = vmatprep.subr.bf16.mxu0 0
    %10852 = vmatpush1.bf16.msra.mxu0 %v10585
    %10853 = vmatprep.subr.bf16.mxu0 0
    %10854 = vmatpush1.bf16.msra.mxu0 %v10586
    %10855 = vmatprep.subr.bf16.mxu0 0
    %10856 = vmatpush1.bf16.msra.mxu0 %v10587
    %10857 = vmatprep.subr.bf16.mxu0 0
    %10858 = vmatpush1.bf16.msra.mxu0 %v10588
    %10859 = vmatprep.subr.bf16.mxu0 0
    %10860 = vmatpush1.bf16.msra.mxu0 %v10589
    %10861 = vmatprep.subr.bf16.mxu0 0
    %10862 = vmatpush1.bf16.msra.mxu0 %v10590
    %10863 = vmatprep.mubr.bf16.mxu0 %v9903
    %10864 = vmatmul.mubr.bf16.gmra.mrb[0].mxu0 %v9776
    %v10865 = vpop.f32.mrb[0].mxu0
    %v10866 = vadd.f32 %v10802, %v10865
    %v10867 = vpop.f32.mrb[0].mxu0
    %v10868 = vpop.f32.mrb[0].mxu0
    %v10869 = vadd.f32 %v10805, %v10868
    %v10870 = vpop.f32.mrb[0].mxu0
    %10871 = vmatprep.mubr.bf16.mxu0 %v9907
    %10872 = vmatmul.mubr.bf16.gmra.mrb[0].mxu0 %v9777
    %v10873 = vpop.f32.mrb[0].mxu0
    %v10874 = vadd.f32 %v10810, %v10873
    %v10875 = vpop.f32.mrb[0].mxu0
    %v10876 = vpop.f32.mrb[0].mxu0
    %v10877 = vadd.f32 %v10813, %v10876
    %v10878 = vpop.f32.mrb[0].mxu0
    %10879 = vmatprep.mubr.bf16.mxu0 %v9911
    %10880 = vmatmul.mubr.bf16.gmra.mrb[0].mxu0 %v9778
    %v10881 = vpop.f32.mrb[0].mxu0
    %v10882 = vadd.f32 %v10818, %v10881
    %v10883 = vpop.f32.mrb[0].mxu0
    %v10884 = vpop.f32.mrb[0].mxu0
    %v10885 = vadd.f32 %v10821, %v10884
    %v10886 = vpop.f32.mrb[0].mxu0
    %10887 = vmatprep.mubr.bf16.mxu0 %v9915
    %10888 = vmatmul.mubr.bf16.gmra.mrb[0].mxu0 %v9779
    %v10889 = vpop.f32.mrb[0].mxu0
    %v10890 = vadd.f32 %v10826, %v10889
    %v10891 = vpop.f32.mrb[0].mxu0
    %v10892 = vpop.f32.mrb[0].mxu0
    %v10893 = vpop.f32.mrb[0].mxu0
    %10894 = vdwg.mxu0
    %10895 = vmatprep.subr.bf16.mxu0 0
    %10896 = vmatpush1.bf16.msra.mxu0 %v10591
    %10897 = vmatprep.subr.bf16.mxu0 0
    %10898 = vmatpush1.bf16.msra.mxu0 %v10592
    %10899 = vmatprep.subr.bf16.mxu0 0
    %10900 = vmatpush1.bf16.msra.mxu0 %v10593
    %10901 = vmatprep.subr.bf16.mxu0 0
    %10902 = vmatpush1.bf16.msra.mxu0 %v10594
    %10903 = vmatprep.subr.bf16.mxu0 0
    %10904 = vmatpush1.bf16.msra.mxu0 %v10595
    %10905 = vmatprep.subr.bf16.mxu0 0
    %10906 = vmatpush1.bf16.msra.mxu0 %v10596
    %10907 = vmatprep.subr.bf16.mxu0 0
    %10908 = vmatpush1.bf16.msra.mxu0 %v10597
    %10909 = vmatprep.subr.bf16.mxu0 0
    %10910 = vmatpush1.bf16.msra.mxu0 %v10598
    %10911 = vmatprep.subr.bf16.mxu0 0
    %10912 = vmatpush1.bf16.msra.mxu0 %v10599
    %10913 = vmatprep.subr.bf16.mxu0 0
    %10914 = vmatpush1.bf16.msra.mxu0 %v10600
    %10915 = vmatprep.subr.bf16.mxu0 0
    %10916 = vmatpush1.bf16.msra.mxu0 %v10601
    %10917 = vmatprep.subr.bf16.mxu0 0
    %10918 = vmatpush1.bf16.msra.mxu0 %v10602
    %10919 = vmatprep.subr.bf16.mxu0 0
    %10920 = vmatpush1.bf16.msra.mxu0 %v10603
    %10921 = vmatprep.subr.bf16.mxu0 0
    %10922 = vmatpush1.bf16.msra.mxu0 %v10604
    %10923 = vmatprep.subr.bf16.mxu0 0
    %10924 = vmatpush1.bf16.msra.mxu0 %v10605
    %10925 = vmatprep.subr.bf16.mxu0 0
    %10926 = vmatpush1.bf16.msra.mxu0 %v10606
    %10927 = vmatprep.mubr.bf16.mxu0 %v9919
    %10928 = vmatmul.mubr.bf16.gmra.mrb[0].mxu0 %v9802
    %v10929 = vpop.f32.mrb[0].mxu0
    %v10930 = vadd.f32 %v10866, %v10929
    %v10931 = vpop.f32.mrb[0].mxu0
    %v10932 = vpop.f32.mrb[0].mxu0
    %v10933 = vadd.f32 %v10869, %v10932
    %v10934 = vpop.f32.mrb[0].mxu0
    %10935 = vmatprep.mubr.bf16.mxu0 %v9923
    %10936 = vmatmul.mubr.bf16.gmra.mrb[0].mxu0 %v9803
    %v10937 = vpop.f32.mrb[0].mxu0
    %v10938 = vadd.f32 %v10874, %v10937
    %v10939 = vpop.f32.mrb[0].mxu0
    %v10940 = vpop.f32.mrb[0].mxu0
    %v10941 = vadd.f32 %v10877, %v10940
    %v10942 = vpop.f32.mrb[0].mxu0
    %10943 = vmatprep.mubr.bf16.mxu0 %v9927
    %10944 = vmatmul.mubr.bf16.gmra.mrb[0].mxu0 %v9804
    %v10945 = vpop.f32.mrb[0].mxu0
    %v10946 = vadd.f32 %v10882, %v10945
    %v10947 = vpop.f32.mrb[0].mxu0
    %v10948 = vpop.f32.mrb[0].mxu0
    %v10949 = vadd.f32 %v10885, %v10948
    %v10950 = vpop.f32.mrb[0].mxu0
    %10951 = vmatprep.mubr.bf16.mxu0 %v9931
    %10952 = vmatmul.mubr.bf16.gmra.mrb[0].mxu0 %v9805
    %v10953 = vpop.f32.mrb[0].mxu0
    %v10954 = vadd.f32 %v10890, %v10953
    %v10955 = vpop.f32.mrb[0].mxu0
    %v10956 = vpop.f32.mrb[0].mxu0
    %v10957 = vpop.f32.mrb[0].mxu0
    %10958 = vdwg.mxu0
    %10959 = vmatprep.subr.bf16.mxu0 0
    %10960 = vmatpush1.bf16.msra.mxu0 %v10607
    %10961 = vmatprep.subr.bf16.mxu0 0
    %10962 = vmatpush1.bf16.msra.mxu0 %v10608
    %10963 = vmatprep.subr.bf16.mxu0 0
    %10964 = vmatpush1.bf16.msra.mxu0 %v10609
    %10965 = vmatprep.subr.bf16.mxu0 0
    %10966 = vmatpush1.bf16.msra.mxu0 %v10610
    %10967 = vmatprep.subr.bf16.mxu0 0
    %10968 = vmatpush1.bf16.msra.mxu0 %v10611
    %10969 = vmatprep.subr.bf16.mxu0 0
    %10970 = vmatpush1.bf16.msra.mxu0 %v10612
    %10971 = vmatprep.subr.bf16.mxu0 0
    %10972 = vmatpush1.bf16.msra.mxu0 %v10613
    %10973 = vmatprep.subr.bf16.mxu0 0
    %10974 = vmatpush1.bf16.msra.mxu0 %v10614
    %10975 = vmatprep.subr.bf16.mxu0 0
    %10976 = vmatpush1.bf16.msra.mxu0 %v10615
    %10977 = vmatprep.subr.bf16.mxu0 0
    %10978 = vmatpush1.bf16.msra.mxu0 %v10616
    %10979 = vmatprep.subr.bf16.mxu0 0
    %10980 = vmatpush1.bf16.msra.mxu0 %v10617
    %10981 = vmatprep.subr.bf16.mxu0 0
    %10982 = vmatpush1.bf16.msra.mxu0 %v10618
    %10983 = vmatprep.subr.bf16.mxu0 0
    %10984 = vmatpush1.bf16.msra.mxu0 %v10619
    %10985 = vmatprep.subr.bf16.mxu0 0
    %10986 = vmatpush1.bf16.msra.mxu0 %v10620
    %10987 = vmatprep.subr.bf16.mxu0 0
    %10988 = vmatpush1.bf16.msra.mxu0 %v10621
    %10989 = vmatprep.subr.bf16.mxu0 0
    %10990 = vmatpush1.bf16.msra.mxu0 %v10622
    %10991 = vmatprep.mubr.bf16.mxu0 %v9678
    %10992 = vmatmul.mubr.bf16.gmra.mrb[0].mxu0 %v9829
    %v10993 = vpop.f32.mrb[0].mxu0
    %v10994 = vadd.f32 %v10930, %v10993
    %v10995 = vpop.f32.mrb[0].mxu0
    %v10996 = vpop.f32.mrb[0].mxu0
    %v10997 = vadd.f32 %v10933, %v10996
    %v10998 = vpop.f32.mrb[0].mxu0
    %10999 = vmatprep.mubr.bf16.mxu0 %v9683
    %11000 = vmatmul.mubr.bf16.gmra.mrb[0].mxu0 %v9830
    %v11001 = vpop.f32.mrb[0].mxu0
    %v11002 = vadd.f32 %v10938, %v11001
    %v11003 = vpop.f32.mrb[0].mxu0
    %v11004 = vpop.f32.mrb[0].mxu0
    %v11005 = vadd.f32 %v10941, %v11004
    %v11006 = vpop.f32.mrb[0].mxu0
    %11007 = vmatprep.mubr.bf16.mxu0 %v9687
    %11008 = vmatmul.mubr.bf16.gmra.mrb[0].mxu0 %v9831
    %v11009 = vpop.f32.mrb[0].mxu0
    %v11010 = vadd.f32 %v10946, %v11009
    %v11011 = vpop.f32.mrb[0].mxu0
    %v11012 = vpop.f32.mrb[0].mxu0
    %v11013 = vadd.f32 %v10949, %v11012
    %v11014 = vpop.f32.mrb[0].mxu0
    %11015 = vmatprep.mubr.bf16.mxu0 %v9695
    %11016 = vmatmul.mubr.bf16.gmra.mrb[0].mxu0 %v9832
    %v11017 = vpop.f32.mrb[0].mxu0
    %v11018 = vadd.f32 %v10954, %v11017
    %v11019 = vpop.f32.mrb[0].mxu0
    %v11020 = vpop.f32.mrb[0].mxu0
    %v11021 = vpop.f32.mrb[0].mxu0
    %11022 = vdwg.mxu0
    %11023 = vmatprep.subr.bf16.mxu0 0
    %11024 = vmatpush1.bf16.msra.mxu0 %v10623
    %11025 = vmatprep.subr.bf16.mxu0 0
    %11026 = vmatpush1.bf16.msra.mxu0 %v10624
    %11027 = vmatprep.subr.bf16.mxu0 0
    %11028 = vmatpush1.bf16.msra.mxu0 %v10625
    %11029 = vmatprep.subr.bf16.mxu0 0
    %11030 = vmatpush1.bf16.msra.mxu0 %v10626
    %11031 = vmatprep.subr.bf16.mxu0 0
    %11032 = vmatpush1.bf16.msra.mxu0 %v10627
    %11033 = vmatprep.subr.bf16.mxu0 0
    %11034 = vmatpush1.bf16.msra.mxu0 %v10628
    %11035 = vmatprep.subr.bf16.mxu0 0
    %11036 = vmatpush1.bf16.msra.mxu0 %v10629
    %11037 = vmatprep.subr.bf16.mxu0 0
    %11038 = vmatpush1.bf16.msra.mxu0 %v10630
    %11039 = vmatprep.subr.bf16.mxu0 0
    %11040 = vmatpush1.bf16.msra.mxu0 %v10631
    %11041 = vmatprep.subr.bf16.mxu0 0
    %11042 = vmatpush1.bf16.msra.mxu0 %v10632
    %11043 = vmatprep.subr.bf16.mxu0 0
    %11044 = vmatpush1.bf16.msra.mxu0 %v10633
    %11045 = vmatprep.subr.bf16.mxu0 0
    %11046 = vmatpush1.bf16.msra.mxu0 %v10634
    %11047 = vmatprep.subr.bf16.mxu0 0
    %11048 = vmatpush1.bf16.msra.mxu0 %v10635
    %11049 = vmatprep.subr.bf16.mxu0 0
    %11050 = vmatpush1.bf16.msra.mxu0 %v10636
    %11051 = vmatprep.subr.bf16.mxu0 0
    %11052 = vmatpush1.bf16.msra.mxu0 %v10637
    %11053 = vmatprep.subr.bf16.mxu0 0
    %11054 = vmatpush1.bf16.msra.mxu0 %v10638
    %11055 = vmatprep.mubr.bf16.mxu0 %v9855
    %11056 = vmatmul.mubr.bf16.gmra.mrb[0].mxu0 %v9935
    %v11057 = vpop.f32.mrb[0].mxu0
    %v11058 = vadd.f32 %v10994, %v11057
    %v11059 = vpop.f32.mrb[0].mxu0
    %v11060 = vpop.f32.mrb[0].mxu0
    %v11061 = vadd.f32 %v10997, %v11060
    %v11062 = vpop.f32.mrb[0].mxu0
    %11063 = vmatprep.mubr.bf16.mxu0 %v9856
    %11064 = vmatmul.mubr.bf16.gmra.mrb[0].mxu0 %v9939
    %v11065 = vpop.f32.mrb[0].mxu0
    %v11066 = vadd.f32 %v11002, %v11065
    %v11067 = vpop.f32.mrb[0].mxu0
    %v11068 = vpop.f32.mrb[0].mxu0
    %v11069 = vadd.f32 %v11005, %v11068
    %v11070 = vpop.f32.mrb[0].mxu0
    %11071 = vmatprep.mubr.bf16.mxu0 %v9857
    %11072 = vmatmul.mubr.bf16.gmra.mrb[0].mxu0 %v9943
    %v11073 = vpop.f32.mrb[0].mxu0
    %v11074 = vadd.f32 %v11010, %v11073
    %v11075 = vpop.f32.mrb[0].mxu0
    %v11076 = vpop.f32.mrb[0].mxu0
    %v11077 = vadd.f32 %v11013, %v11076
    %v11078 = vpop.f32.mrb[0].mxu0
    %11079 = vmatprep.mubr.bf16.mxu0 %v9858
    %11080 = vmatmul.mubr.bf16.gmra.mrb[0].mxu0 %v9946
    %v11081 = vpop.f32.mrb[0].mxu0
    %v11082 = vadd.f32 %v11018, %v11081
    %v11083 = vpop.f32.mrb[0].mxu0
    %v11084 = vpop.f32.mrb[0].mxu0
    %v11085 = vpop.f32.mrb[0].mxu0
    %11086 = vdwg.mxu0
    %11087 = vmatprep.subr.bf16.mxu0 0
    %11088 = vmatpush1.bf16.msra.mxu0 %v10639
    %11089 = vmatprep.subr.bf16.mxu0 0
    %11090 = vmatpush1.bf16.msra.mxu0 %v10640
    %11091 = vmatprep.subr.bf16.mxu0 0
    %11092 = vmatpush1.bf16.msra.mxu0 %v10641
    %11093 = vmatprep.subr.bf16.mxu0 0
    %11094 = vmatpush1.bf16.msra.mxu0 %v10642
    %11095 = vmatprep.subr.bf16.mxu0 0
    %11096 = vmatpush1.bf16.msra.mxu0 %v10643
    %11097 = vmatprep.subr.bf16.mxu0 0
    %11098 = vmatpush1.bf16.msra.mxu0 %v10644
    %11099 = vmatprep.subr.bf16.mxu0 0
    %11100 = vmatpush1.bf16.msra.mxu0 %v10645
    %11101 = vmatprep.subr.bf16.mxu0 0
    %11102 = vmatpush1.bf16.msra.mxu0 %v10646
    %11103 = vmatprep.subr.bf16.mxu0 0
    %11104 = vmatpush1.bf16.msra.mxu0 %v10647
    %11105 = vmatprep.subr.bf16.mxu0 0
    %11106 = vmatpush1.bf16.msra.mxu0 %v10648
    %11107 = vmatprep.subr.bf16.mxu0 0
    %11108 = vmatpush1.bf16.msra.mxu0 %v10649
    %11109 = vmatprep.subr.bf16.mxu0 0
    %11110 = vmatpush1.bf16.msra.mxu0 %v10650
    %11111 = vmatprep.subr.bf16.mxu0 0
    %11112 = vmatpush1.bf16.msra.mxu0 %v10651
    %11113 = vmatprep.subr.bf16.mxu0 0
    %11114 = vmatpush1.bf16.msra.mxu0 %v10652
    %11115 = vmatprep.subr.bf16.mxu0 0
    %11116 = vmatpush1.bf16.msra.mxu0 %v10653
    %11117 = vmatprep.subr.bf16.mxu0 0
    %11118 = vmatpush1.bf16.msra.mxu0 %v10654
    %11119 = vmatprep.mubr.bf16.mxu0 %v9881
    %11120 = vmatmul.mubr.bf16.gmra.mrb[0].mxu0 %v9950
    %v11121 = vpop.f32.mrb[0].mxu0
    %v11122 = vadd.f32 %v11058, %v11121
    %v11123 = vpop.f32.mrb[0].mxu0
    %v11124 = vpop.f32.mrb[0].mxu0
    %v11125 = vadd.f32 %v11061, %v11124
    %v11126 = vpop.f32.mrb[0].mxu0
    %11127 = vmatprep.mubr.bf16.mxu0 %v9882
    %11128 = vmatmul.mubr.bf16.gmra.mrb[0].mxu0 %v9954
    %v11129 = vpop.f32.mrb[0].mxu0
    %v11130 = vadd.f32 %v11066, %v11129
    %v11131 = vpop.f32.mrb[0].mxu0
    %v11132 = vpop.f32.mrb[0].mxu0
    %v11133 = vadd.f32 %v11069, %v11132
    %v11134 = vpop.f32.mrb[0].mxu0
    %11135 = vmatprep.mubr.bf16.mxu0 %v9883
    %11136 = vmatmul.mubr.bf16.gmra.mrb[0].mxu0 %v9958
    %v11137 = vpop.f32.mrb[0].mxu0
    %v11138 = vadd.f32 %v11074, %v11137
    %v11139 = vpop.f32.mrb[0].mxu0
    %v11140 = vpop.f32.mrb[0].mxu0
    %v11141 = vadd.f32 %v11077, %v11140
    %v11142 = vpop.f32.mrb[0].mxu0
    %11143 = vmatprep.mubr.bf16.mxu0 %v9884
    %11144 = vmatmul.mubr.bf16.gmra.mrb[0].mxu0 %v9962
    %v11145 = vpop.f32.mrb[0].mxu0
    %v11146 = vadd.f32 %v11082, %v11145
    %v11147 = vpop.f32.mrb[0].mxu0
    %v11148 = vpop.f32.mrb[0].mxu0
    %v11149 = vpop.f32.mrb[0].mxu0
    %11150 = vdwg.mxu0
    %11151 = vmatprep.subr.bf16.mxu0 0
    %11152 = vmatpush1.bf16.msra.mxu0 %v10655
    %11153 = vmatprep.subr.bf16.mxu0 0
    %11154 = vmatpush1.bf16.msra.mxu0 %v10656
    %11155 = vmatprep.subr.bf16.mxu0 0
    %11156 = vmatpush1.bf16.msra.mxu0 0
    %11157 = vmatprep.subr.bf16.mxu0 0
    %11158 = vmatpush1.bf16.msra.mxu0 0
    %11159 = vmatprep.subr.bf16.mxu0 0
    %11160 = vmatpush1.bf16.msra.mxu0 0
    %11161 = vmatprep.subr.bf16.mxu0 0
    %11162 = vmatpush1.bf16.msra.mxu0 0
    %11163 = vmatprep.subr.bf16.mxu0 0
    %11164 = vmatpush1.bf16.msra.mxu0 0
    %11165 = vmatprep.subr.bf16.mxu0 0
    %11166 = vmatpush1.bf16.msra.mxu0 0
    %11167 = vmatprep.subr.bf16.mxu0 0
    %11168 = vmatpush1.bf16.msra.mxu0 0
    %11169 = vmatprep.subr.bf16.mxu0 0
    %11170 = vmatpush1.bf16.msra.mxu0 0
    %11171 = vmatprep.subr.bf16.mxu0 0
    %11172 = vmatpush1.bf16.msra.mxu0 0
    %11173 = vmatprep.subr.bf16.mxu0 0
    %11174 = vmatpush1.bf16.msra.mxu0 0
    %11175 = vmatprep.subr.bf16.mxu0 0
    %11176 = vmatpush1.bf16.msra.mxu0 0
    %11177 = vmatprep.subr.bf16.mxu0 0
    %11178 = vmatpush1.bf16.msra.mxu0 0
    %11179 = vmatprep.subr.bf16.mxu0 0
    %11180 = vmatpush1.bf16.msra.mxu0 0
    %11181 = vmatprep.subr.bf16.mxu0 0
    %11182 = vmatpush1.bf16.msra.mxu0 0
    %11183 = vmatprep.mubr.bf16.mxu0 0
    %11184 = vmatmul.mubr.bf16.gmra.mrb[0].mxu0 %v10756
    %v11185 = vpop.f32.mrb[0].mxu0
    %v11186 = vadd.f32 %v11122, %v11185
    %v11187 = vpop.f32.mrb[0].mxu0
    %v11188 = vpop.f32.mrb[0].mxu0
    %v11189 = vadd.f32 %v11125, %v11188
    %v11190 = vpop.f32.mrb[0].mxu0
    %11191 = vmatprep.mubr.bf16.mxu0 0
    %11192 = vmatmul.mubr.bf16.gmra.mrb[0].mxu0 %v10759
    %v11193 = vpop.f32.mrb[0].mxu0
    %v11194 = vadd.f32 %v11130, %v11193
    %v11195 = vpop.f32.mrb[0].mxu0
    %v11196 = vpop.f32.mrb[0].mxu0
    %v11197 = vadd.f32 %v11133, %v11196
    %v11198 = vpop.f32.mrb[0].mxu0
    %11199 = vmatprep.mubr.bf16.mxu0 0
    %11200 = vmatmul.mubr.bf16.gmra.mrb[0].mxu0 %v10762
    %v11201 = vpop.f32.mrb[0].mxu0
    %v11202 = vadd.f32 %v11138, %v11201
    %v11203 = vpop.f32.mrb[0].mxu0
    %v11204 = vpop.f32.mrb[0].mxu0
    %v11205 = vadd.f32 %v11141, %v11204
    %v11206 = vpop.f32.mrb[0].mxu0
    %11207 = vmatprep.mubr.bf16.mxu0 0
    %11208 = vmatmul.mubr.bf16.gmra.mrb[0].mxu0 %v10765
    %v11209 = vpop.f32.mrb[0].mxu0
    %v11210 = vadd.f32 %v11146, %v11209
    %v11211 = vpop.f32.mrb[0].mxu0
    %v11212 = vpop.f32.mrb[0].mxu0
    %v11213 = vpop.f32.mrb[0].mxu0
    %11214 = vdwg.mxu0
    %vm11215 = vcmask 80896
    %11216 = vst.msk [vmem:[%s9] sm:$0xff] %vm11215, %v11186
    %11217 = vst.msk [vmem:[%s9 + $0x8] sm:$0xff] %vm11215, %v11189
    %11218 = vst.msk [vmem:[%s9 + $0x10] sm:$0xff] %vm11215, %v11194
    %11219 = vst.msk [vmem:[%s9 + $0x18] sm:$0xff] %vm11215, %v11197
    %11220 = vst.msk [vmem:[%s9 + $0x20] sm:$0xff] %vm11215, %v11202
    %11221 = vst.msk [vmem:[%s9 + $0x28] sm:$0xff] %vm11215, %v11205
    %11222 = vst.msk [vmem:[%s9 + $0x30] sm:$0xff] %vm11215, %v11210
    // Predicated region
    $region66: #{cnn_forward.1} parent=1 // pred_check
      _
    $region67: #{cnn_forward.1} parent=1 // pred_check_branch
      %11224 = sbr.rel (0) target = $region69
    $region68: #{cnn_forward.1} parent=1 // pred_region
      _
    $region69: #{cnn_forward.1} parent=1 // pred_fallthru
      _
    // Predicated region
    $region70: #{cnn_forward.1} parent=1 // pred_check
      _
    $region71: #{cnn_forward.1} parent=1 // pred_check_branch
      %11226 = sbr.rel (0) target = $region73
    $region72: #{cnn_forward.1} parent=1 // pred_region
      _
    $region73: #{cnn_forward.1} parent=1 // pred_fallthru
      _
    %11227 = vsyncpa [#allocation3], 1
    %11228 = vsyncpa [#allocation5], 1
    %11229 = vsyncpa [#allocation8], 1
    %11230 = vsyncpa [#allocation11], 1

</llo_original>
